<compile_context>
chip_gen: v7x
topology: tpu7x:2x2x1
jax: 0.10.0
libtpu: 0.0.40
codegen_flags: <defaults>
</compile_context>

<pallas_src>
import math

import jax
import jax.numpy as jnp
from jax.experimental import pallas as pl
from jax.experimental.pallas import tpu as pltpu


BT = 8  # samples per grid step (multiple of 8 keeps every slice sublane-aligned)


def _sp(v):
    """Parity-split index (even coordinates first) of a pooled coordinate v."""
    return (v % 2) * 7 + v // 2


# ----------------------------------------------------------------------------
# Fused Pallas kernel: whole LeNet forward for BT samples per grid step.
# ----------------------------------------------------------------------------
def _lenet_fused_kernel(p_ref, w1_ref, b1_ref, w2_ref, b2_ref,
                        f1_ref, bf1_ref, f2_ref, bf2_ref, f3_ref, bf3_ref,
                        out_ref):
    # ---- conv1: one (196*BT, 36) x (36, 128) matmul ---------------------------
    # Row = (sp(ph)*14 + sp(pw))*BT + b ; column q1*6 + co holds the conv1
    # output for pool-window position q1 = t1*2 + s1 and channel co.
    y1 = jnp.dot(p_ref[...], w1_ref[...],
                 preferred_element_type=jnp.float32)               # (1568, 128)

    # 2x2 max-pool = max over the 4 lane groups; bias+ReLU after (monotone).
    m1 = jnp.maximum(jnp.maximum(y1[:, 0:6], y1[:, 6:12]),
                     jnp.maximum(y1[:, 12:18], y1[:, 18:24]))      # (1568, 6)
    a1 = jnp.maximum(m1 + b1_ref[...], 0.0)                        # (1568, 6)
    a1 = a1.reshape(14, 14 * BT, 6)      # (sp(ph1), sp(pw1)*BT + b, c)

    # ---- conv2: in-kernel im2col (36 contiguous slices) + one matmul ----------
    # Parity-split coordinates make every stride-2 window a contiguous,
    # sublane-aligned slice of a1.
    pieces = []
    for i in range(6):
        r0 = _sp(i)
        for j in range(6):
            c0 = _sp(j) * BT
            pieces.append(a1[r0:r0 + 5, c0:c0 + 5 * BT, :])        # (5, 5*BT, 6)
    lhs2 = jnp.concatenate(pieces, axis=-1).reshape(25 * BT, 216)  # (200, 216)

    y2 = jnp.dot(lhs2, w2_ref[...],
                 preferred_element_type=jnp.float32)               # (200, 128)
    m2 = jnp.maximum(jnp.maximum(y2[:, 0:16], y2[:, 16:32]),
                     jnp.maximum(y2[:, 32:48], y2[:, 48:64]))      # (200, 16)
    a2 = jnp.maximum(m2 + b2_ref[...], 0.0)                        # (200, 16)

    # ---- flatten (amortized over the whole sample tile) -----------------------
    # feat[b, p*16 + co] with p = ph2*5 + pw2 ; 25 aligned (BT,16) row slices.
    feat = jnp.concatenate(
        [a2[p * BT:(p + 1) * BT, :] for p in range(25)], axis=-1)  # (BT, 400)

    # ---- FC head (stacked across the sample tile) -----------------------------
    h1 = jnp.maximum(
        jnp.dot(feat, f1_ref[...], preferred_element_type=jnp.float32)
        + bf1_ref[...], 0.0)                                       # (BT, 128)
    h2 = jnp.maximum(
        jnp.dot(h1, f2_ref[...], preferred_element_type=jnp.float32)
        + bf2_ref[...], 0.0)                                       # (BT, 128)
    out = jnp.dot(h2, f3_ref[...], preferred_element_type=jnp.float32) \
        + bf3_ref[...]
    out_ref[...] = out.astype(out_ref.dtype)                       # (BT, 128)


# ----------------------------------------------------------------------------
# One-time parameter preparation (padding / reordering hoisted out of forward).
# ----------------------------------------------------------------------------
def prepare_params(params):
    f32 = jnp.float32

    # conv1: union-window weights  rhs1[u*6+v, q1*6+co] = W1[co, u-t1, v-s1]
    w1 = params["conv1_w"].astype(f32)[:, 0]            # (6, 5, 5)  (co, di, dj)
    w1t = jnp.transpose(w1, (1, 2, 0))                  # (di, dj, co)
    rhs1 = jnp.zeros((6, 6, 4, 6), f32)
    for t1 in range(2):
        for s1 in range(2):
            rhs1 = rhs1.at[t1:t1 + 5, s1:s1 + 5, t1 * 2 + s1, :].set(w1t)
    rhs1 = jnp.pad(rhs1.reshape(36, 24), ((0, 0), (0, 104)))        # (36, 128)
    b1 = params["conv1_b"].astype(f32).reshape(1, 6)

    # conv2: union-window weights  rhs2[(i*6+j)*6+c, q2*16+co] = W2[co,c,i-t2,j-s2]
    w2 = params["conv2_w"].astype(f32)                  # (16, 6, 5, 5)
    w2t = jnp.transpose(w2, (2, 3, 1, 0))               # (di, dj, c, co)
    rhs2 = jnp.zeros((6, 6, 6, 4, 16), f32)
    for t2 in range(2):
        for s2 in range(2):
            rhs2 = rhs2.at[t2:t2 + 5, s2:s2 + 5, :, t2 * 2 + s2, :].set(w2t)
    rhs2 = jnp.pad(rhs2.reshape(216, 64), ((0, 0), (0, 64)))        # (216, 128)
    b2 = params["conv2_b"].astype(f32).reshape(1, 16)

    # fc1: reorder columns from PyTorch (c, h, w) flatten to kernel (h, w, c)
    f1 = params["fc1_w"].astype(f32).reshape(120, 16, 5, 5)
    f1 = jnp.transpose(f1, (2, 3, 1, 0)).reshape(400, 120)
    f1 = jnp.pad(f1, ((0, 0), (0, 8)))                              # (400, 128)
    bf1 = jnp.pad(params["fc1_b"].astype(f32), (0, 8)).reshape(1, 128)
    f2 = jnp.pad(params["fc2_w"].astype(f32).T, ((0, 8), (0, 44)))  # (128, 128)
    bf2 = jnp.pad(params["fc2_b"].astype(f32), (0, 44)).reshape(1, 128)
    f3 = jnp.pad(params["fc3_w"].astype(f32).T, ((0, 44), (0, 118)))  # (128, 128)
    bf3 = jnp.pad(params["fc3_b"].astype(f32), (0, 118)).reshape(1, 128)
    return dict(w1=rhs1, b1=b1, w2=rhs2, b2=b2, f1=f1, bf1=bf1,
                f2=f2, bf2=bf2, f3=f3, bf3=bf3)


# ----------------------------------------------------------------------------
# Forward pass (mirrors ConvNet.forward)
# ----------------------------------------------------------------------------
def convnet_forward(prep, x):
    """x: (B, 1, 28, 28) float32 NCHW -> logits (B, 10)."""
    B = x.shape[0]
    Bp = ((B + BT - 1) // BT) * BT
    if Bp != B:
        x = jnp.pad(x, ((0, Bp - B), (0, 0), (0, 0), (0, 0)))
    G = Bp // BT

    # 6x6 / stride-2 patches: one row per pooled conv1 pixel (union of the four
    # 5x5 windows under the 2x2 pool) -> ~3.5x less patch HBM traffic than the
    # old 5x5/stride-1 im2col, and conv1+pool1 become one matmul + lane maxes.
    p = jax.lax.conv_general_dilated_patches(
        x, filter_shape=(6, 6), window_strides=(2, 2),
        padding=((2, 2), (2, 2)),
        dimension_numbers=("NCHW", "OIHW", "NHWC"))       # (Bp, 14, 14, 36)

    # Row order = (parity-split ph, parity-split pw, sample-in-tile): a single
    # transpose produces the kernel layout (kept as one producer so XLA fuses).
    p = p.reshape(G, BT, 7, 2, 7, 2, 36)                  # (g, b, ah, rh, aw, rw, k)
    p = p.transpose(0, 3, 2, 5, 4, 1, 6)                  # (g, rh, ah, rw, aw, b, k)
    p = p.reshape(G * 196 * BT, 36)                       # (G*1568, 36)

    out = pl.pallas_call(
        _lenet_fused_kernel,
        out_shape=jax.ShapeDtypeStruct((Bp, 128), jnp.float32),
        grid=(G,),
        in_specs=[
            pl.BlockSpec((196 * BT, 36), lambda g: (g, 0)),   # conv1 patches
            pl.BlockSpec((36, 128), lambda g: (0, 0)),        # conv1 weights
            pl.BlockSpec((1, 6), lambda g: (0, 0)),           # conv1 bias
            pl.BlockSpec((216, 128), lambda g: (0, 0)),       # conv2 weights
            pl.BlockSpec((1, 16), lambda g: (0, 0)),          # conv2 bias
            pl.BlockSpec((400, 128), lambda g: (0, 0)),       # fc1 w
            pl.BlockSpec((1, 128), lambda g: (0, 0)),         # fc1 b
            pl.BlockSpec((128, 128), lambda g: (0, 0)),       # fc2 w
            pl.BlockSpec((1, 128), lambda g: (0, 0)),         # fc2 b
            pl.BlockSpec((128, 128), lambda g: (0, 0)),       # fc3 w
            pl.BlockSpec((1, 128), lambda g: (0, 0)),         # fc3 b
        ],
        out_specs=pl.BlockSpec((BT, 128), lambda g: (g, 0)),
        compiler_params=pltpu.CompilerParams(
            dimension_semantics=("parallel",)),
    )(p, prep["w1"], prep["b1"], prep["w2"], prep["b2"],
      prep["f1"], prep["bf1"], prep["f2"], prep["bf2"],
      prep["f3"], prep["bf3"])
    return out[:B, :10]


# ----------------------------------------------------------------------------
# Parameters (deterministic, PyTorch-style uniform(-1/sqrt(fan_in), +))
# ----------------------------------------------------------------------------
def init_params(key):
    ks = jax.random.split(key, 10)

    def u(k, shape, fan_in):
        bound = 1.0 / math.sqrt(fan_in)
        return jax.random.uniform(k, shape, jnp.float32, -bound, bound)

    return {
        "conv1_w": u(ks[0], (6, 1, 5, 5), 1 * 5 * 5),
        "conv1_b": u(ks[1], (6,), 1 * 5 * 5),
        "conv2_w": u(ks[2], (16, 6, 5, 5), 6 * 5 * 5),
        "conv2_b": u(ks[3], (16,), 6 * 5 * 5),
        "fc1_w": u(ks[4], (120, 400), 400),
        "fc1_b": u(ks[5], (120,), 400),
        "fc2_w": u(ks[6], (84, 120), 120),
        "fc2_b": u(ks[7], (84,), 120),
        "fc3_w": u(ks[8], (10, 84), 84),
        "fc3_b": u(ks[9], (10,), 84),
    }


# Pure-JAX reference for a correctness cross-check.
def convnet_reference(params, x):
    dn = ("NCHW", "OIHW", "NCHW")

    def conv(x, w, b, pad):
        y = jax.lax.conv_general_dilated(
            x, w, window_strides=(1, 1),
            padding=[(pad, pad), (pad, pad)], dimension_numbers=dn)
        return jax.nn.relu(y + b.reshape(1, -1, 1, 1))

    def pool(x):
        return jax.lax.reduce_window(
            x, -jnp.inf, jax.lax.max,
            window_dimensions=(1, 1, 2, 2), window_strides=(1, 1, 2, 2),
            padding="VALID")

    x = pool(conv(x, params["conv1_w"], params["conv1_b"], 2))
    x = pool(conv(x, params["conv2_w"], params["conv2_b"], 0))
    x = x.reshape(x.shape[0], 400)
    x = jax.nn.relu(x @ params["fc1_w"].T + params["fc1_b"])
    x = jax.nn.relu(x @ params["fc2_w"].T + params["fc2_b"])
    x = x @ params["fc3_w"].T + params["fc3_b"]
    return x


if __name__ == "__main__":
    key = jax.random.PRNGKey(0)
    pkey, xkey = jax.random.split(key)
    params = init_params(pkey)
    prep = prepare_params(params)          # weight reorder/pad done once
    # Small batch of MNIST-sized inputs: (B=2, C=1, H=28, W=28)
    x = jax.random.normal(xkey, (2, 1, 28, 28), dtype=jnp.float32)

    fwd = jax.jit(convnet_forward)
    out = jax.block_until_ready(fwd(prep, x))
    ref = jax.block_until_ready(convnet_reference(params, x))

    assert out.shape == (2, 10), out.shape
    err = float(jnp.max(jnp.abs(out - ref)))
    assert jnp.allclose(out, ref, rtol=1e-4, atol=1e-4), (
        "mismatch vs reference, max abs err = %e" % err)
    print("KERNEL_OK")
</pallas_src>

<mosaic_0001>
module attributes {stable_mosaic.version = 11 : i64} {
  func.func @_lenet_fused_kernel(%arg0: i32, %arg1: memref<1568x36xf32, #tpu.memory_space<vmem>>, %arg2: memref<36x128xf32, #tpu.memory_space<vmem>>, %arg3: memref<1x6xf32, #tpu.memory_space<vmem>>, %arg4: memref<216x128xf32, #tpu.memory_space<vmem>>, %arg5: memref<1x16xf32, #tpu.memory_space<vmem>>, %arg6: memref<400x128xf32, #tpu.memory_space<vmem>>, %arg7: memref<1x128xf32, #tpu.memory_space<vmem>>, %arg8: memref<128x128xf32, #tpu.memory_space<vmem>>, %arg9: memref<1x128xf32, #tpu.memory_space<vmem>>, %arg10: memref<128x128xf32, #tpu.memory_space<vmem>>, %arg11: memref<1x128xf32, #tpu.memory_space<vmem>>, %arg12: memref<8x128xf32, #tpu.memory_space<vmem>>) attributes {dimension_semantics = [#tpu.dimension_semantics<parallel>], iteration_bounds = array<i64: 1>, scalar_prefetch = 0 : i64, scratch_operands = 0 : i64, tpu.core_type = #tpu.core_type<tc>, window_params = [{transform_indices = @transform_0, window_bounds = array<i64: 1568, 36>}, {pipeline_mode = #tpu.pipeline_mode<synchronous>, transform_indices = @transform_1, window_bounds = array<i64: 36, 128>}, {pipeline_mode = #tpu.pipeline_mode<synchronous>, transform_indices = @transform_2, window_bounds = array<i64: 1, 6>}, {pipeline_mode = #tpu.pipeline_mode<synchronous>, transform_indices = @transform_3, window_bounds = array<i64: 216, 128>}, {pipeline_mode = #tpu.pipeline_mode<synchronous>, transform_indices = @transform_4, window_bounds = array<i64: 1, 16>}, {pipeline_mode = #tpu.pipeline_mode<synchronous>, transform_indices = @transform_5, window_bounds = array<i64: 400, 128>}, {pipeline_mode = #tpu.pipeline_mode<synchronous>, transform_indices = @transform_6, window_bounds = array<i64: 1, 128>}, {pipeline_mode = #tpu.pipeline_mode<synchronous>, transform_indices = @transform_7, window_bounds = array<i64: 128, 128>}, {pipeline_mode = #tpu.pipeline_mode<synchronous>, transform_indices = @transform_8, window_bounds = array<i64: 1, 128>}, {pipeline_mode = #tpu.pipeline_mode<synchronous>, transform_indices = @transform_9, window_bounds = array<i64: 128, 128>}, {pipeline_mode = #tpu.pipeline_mode<synchronous>, transform_indices = @transform_10, window_bounds = array<i64: 1, 128>}, {transform_indices = @transform_11, window_bounds = array<i64: 8, 128>}]} {
    %c0 = arith.constant 0 : index
    %c0_0 = arith.constant 0 : index
    %0 = vector.load %arg1[%c0, %c0_0] : memref<1568x36xf32, #tpu.memory_space<vmem>>, vector<1568x36xf32>
    %c0_1 = arith.constant 0 : index
    %c0_2 = arith.constant 0 : index
    %1 = vector.load %arg2[%c0_1, %c0_2] : memref<36x128xf32, #tpu.memory_space<vmem>>, vector<36x128xf32>
    %cst = arith.constant dense<0.000000e+00> : vector<1568x128xf32>
    %2 = tpu.matmul %0, %1, %cst {dimension_numbers = #tpu.dot_dimension_numbers<[1], [0], [0], [1], [0, 0, 1, 1], [], []>} : vector<1568x36xf32>, vector<36x128xf32>, vector<1568x128xf32> -> vector<1568x128xf32>
    %3 = vector.extract_strided_slice %2 {offsets = [0, 0], sizes = [1568, 6], strides = [1, 1]} : vector<1568x128xf32> to vector<1568x6xf32>
    %4 = vector.extract_strided_slice %2 {offsets = [0, 6], sizes = [1568, 6], strides = [1, 1]} : vector<1568x128xf32> to vector<1568x6xf32>
    %5 = arith.maximumf %3, %4 : vector<1568x6xf32>
    %6 = vector.extract_strided_slice %2 {offsets = [0, 12], sizes = [1568, 6], strides = [1, 1]} : vector<1568x128xf32> to vector<1568x6xf32>
    %7 = vector.extract_strided_slice %2 {offsets = [0, 18], sizes = [1568, 6], strides = [1, 1]} : vector<1568x128xf32> to vector<1568x6xf32>
    %8 = arith.maximumf %6, %7 : vector<1568x6xf32>
    %9 = arith.maximumf %5, %8 : vector<1568x6xf32>
    %c0_3 = arith.constant 0 : index
    %c0_4 = arith.constant 0 : index
    %10 = vector.load %arg3[%c0_3, %c0_4] : memref<1x6xf32, #tpu.memory_space<vmem>>, vector<1x6xf32>
    %11 = vector.broadcast %10 : vector<1x6xf32> to vector<1568x6xf32>
    %12 = arith.addf %9, %11 : vector<1568x6xf32>
    %cst_5 = arith.constant 0.000000e+00 : f32
    %13 = vector.broadcast %cst_5 : f32 to vector<1568x6xf32>
    %14 = arith.maximumf %12, %13 : vector<1568x6xf32>
    %15 = vector.shape_cast %14 : vector<1568x6xf32> to vector<14x112x6xf32>
    %16 = vector.extract_strided_slice %15 {offsets = [0, 0, 0], sizes = [5, 40, 6], strides = [1, 1, 1]} : vector<14x112x6xf32> to vector<5x40x6xf32>
    %17 = vector.extract_strided_slice %15 {offsets = [0, 56, 0], sizes = [5, 40, 6], strides = [1, 1, 1]} : vector<14x112x6xf32> to vector<5x40x6xf32>
    %18 = vector.extract_strided_slice %15 {offsets = [0, 8, 0], sizes = [5, 40, 6], strides = [1, 1, 1]} : vector<14x112x6xf32> to vector<5x40x6xf32>
    %19 = vector.extract_strided_slice %15 {offsets = [0, 64, 0], sizes = [5, 40, 6], strides = [1, 1, 1]} : vector<14x112x6xf32> to vector<5x40x6xf32>
    %20 = vector.extract_strided_slice %15 {offsets = [0, 16, 0], sizes = [5, 40, 6], strides = [1, 1, 1]} : vector<14x112x6xf32> to vector<5x40x6xf32>
    %21 = vector.extract_strided_slice %15 {offsets = [0, 72, 0], sizes = [5, 40, 6], strides = [1, 1, 1]} : vector<14x112x6xf32> to vector<5x40x6xf32>
    %22 = vector.extract_strided_slice %15 {offsets = [7, 0, 0], sizes = [5, 40, 6], strides = [1, 1, 1]} : vector<14x112x6xf32> to vector<5x40x6xf32>
    %23 = vector.extract_strided_slice %15 {offsets = [7, 56, 0], sizes = [5, 40, 6], strides = [1, 1, 1]} : vector<14x112x6xf32> to vector<5x40x6xf32>
    %24 = vector.extract_strided_slice %15 {offsets = [7, 8, 0], sizes = [5, 40, 6], strides = [1, 1, 1]} : vector<14x112x6xf32> to vector<5x40x6xf32>
    %25 = vector.extract_strided_slice %15 {offsets = [7, 64, 0], sizes = [5, 40, 6], strides = [1, 1, 1]} : vector<14x112x6xf32> to vector<5x40x6xf32>
    %26 = vector.extract_strided_slice %15 {offsets = [7, 16, 0], sizes = [5, 40, 6], strides = [1, 1, 1]} : vector<14x112x6xf32> to vector<5x40x6xf32>
    %27 = vector.extract_strided_slice %15 {offsets = [7, 72, 0], sizes = [5, 40, 6], strides = [1, 1, 1]} : vector<14x112x6xf32> to vector<5x40x6xf32>
    %28 = vector.extract_strided_slice %15 {offsets = [1, 0, 0], sizes = [5, 40, 6], strides = [1, 1, 1]} : vector<14x112x6xf32> to vector<5x40x6xf32>
    %29 = vector.extract_strided_slice %15 {offsets = [1, 56, 0], sizes = [5, 40, 6], strides = [1, 1, 1]} : vector<14x112x6xf32> to vector<5x40x6xf32>
    %30 = vector.extract_strided_slice %15 {offsets = [1, 8, 0], sizes = [5, 40, 6], strides = [1, 1, 1]} : vector<14x112x6xf32> to vector<5x40x6xf32>
    %31 = vector.extract_strided_slice %15 {offsets = [1, 64, 0], sizes = [5, 40, 6], strides = [1, 1, 1]} : vector<14x112x6xf32> to vector<5x40x6xf32>
    %32 = vector.extract_strided_slice %15 {offsets = [1, 16, 0], sizes = [5, 40, 6], strides = [1, 1, 1]} : vector<14x112x6xf32> to vector<5x40x6xf32>
    %33 = vector.extract_strided_slice %15 {offsets = [1, 72, 0], sizes = [5, 40, 6], strides = [1, 1, 1]} : vector<14x112x6xf32> to vector<5x40x6xf32>
    %34 = vector.extract_strided_slice %15 {offsets = [8, 0, 0], sizes = [5, 40, 6], strides = [1, 1, 1]} : vector<14x112x6xf32> to vector<5x40x6xf32>
    %35 = vector.extract_strided_slice %15 {offsets = [8, 56, 0], sizes = [5, 40, 6], strides = [1, 1, 1]} : vector<14x112x6xf32> to vector<5x40x6xf32>
    %36 = vector.extract_strided_slice %15 {offsets = [8, 8, 0], sizes = [5, 40, 6], strides = [1, 1, 1]} : vector<14x112x6xf32> to vector<5x40x6xf32>
    %37 = vector.extract_strided_slice %15 {offsets = [8, 64, 0], sizes = [5, 40, 6], strides = [1, 1, 1]} : vector<14x112x6xf32> to vector<5x40x6xf32>
    %38 = vector.extract_strided_slice %15 {offsets = [8, 16, 0], sizes = [5, 40, 6], strides = [1, 1, 1]} : vector<14x112x6xf32> to vector<5x40x6xf32>
    %39 = vector.extract_strided_slice %15 {offsets = [8, 72, 0], sizes = [5, 40, 6], strides = [1, 1, 1]} : vector<14x112x6xf32> to vector<5x40x6xf32>
    %40 = vector.extract_strided_slice %15 {offsets = [2, 0, 0], sizes = [5, 40, 6], strides = [1, 1, 1]} : vector<14x112x6xf32> to vector<5x40x6xf32>
    %41 = vector.extract_strided_slice %15 {offsets = [2, 56, 0], sizes = [5, 40, 6], strides = [1, 1, 1]} : vector<14x112x6xf32> to vector<5x40x6xf32>
    %42 = vector.extract_strided_slice %15 {offsets = [2, 8, 0], sizes = [5, 40, 6], strides = [1, 1, 1]} : vector<14x112x6xf32> to vector<5x40x6xf32>
    %43 = vector.extract_strided_slice %15 {offsets = [2, 64, 0], sizes = [5, 40, 6], strides = [1, 1, 1]} : vector<14x112x6xf32> to vector<5x40x6xf32>
    %44 = vector.extract_strided_slice %15 {offsets = [2, 16, 0], sizes = [5, 40, 6], strides = [1, 1, 1]} : vector<14x112x6xf32> to vector<5x40x6xf32>
    %45 = vector.extract_strided_slice %15 {offsets = [2, 72, 0], sizes = [5, 40, 6], strides = [1, 1, 1]} : vector<14x112x6xf32> to vector<5x40x6xf32>
    %46 = vector.extract_strided_slice %15 {offsets = [9, 0, 0], sizes = [5, 40, 6], strides = [1, 1, 1]} : vector<14x112x6xf32> to vector<5x40x6xf32>
    %47 = vector.extract_strided_slice %15 {offsets = [9, 56, 0], sizes = [5, 40, 6], strides = [1, 1, 1]} : vector<14x112x6xf32> to vector<5x40x6xf32>
    %48 = vector.extract_strided_slice %15 {offsets = [9, 8, 0], sizes = [5, 40, 6], strides = [1, 1, 1]} : vector<14x112x6xf32> to vector<5x40x6xf32>
    %49 = vector.extract_strided_slice %15 {offsets = [9, 64, 0], sizes = [5, 40, 6], strides = [1, 1, 1]} : vector<14x112x6xf32> to vector<5x40x6xf32>
    %50 = vector.extract_strided_slice %15 {offsets = [9, 16, 0], sizes = [5, 40, 6], strides = [1, 1, 1]} : vector<14x112x6xf32> to vector<5x40x6xf32>
    %51 = vector.extract_strided_slice %15 {offsets = [9, 72, 0], sizes = [5, 40, 6], strides = [1, 1, 1]} : vector<14x112x6xf32> to vector<5x40x6xf32>
    %52 = tpu.concatenate %16, %17, %18, %19, %20, %21, %22, %23, %24, %25, %26, %27, %28, %29, %30, %31 in 2 : vector<5x40x6xf32>, vector<5x40x6xf32>, vector<5x40x6xf32>, vector<5x40x6xf32>, vector<5x40x6xf32>, vector<5x40x6xf32>, vector<5x40x6xf32>, vector<5x40x6xf32>, vector<5x40x6xf32>, vector<5x40x6xf32>, vector<5x40x6xf32>, vector<5x40x6xf32>, vector<5x40x6xf32>, vector<5x40x6xf32>, vector<5x40x6xf32>, vector<5x40x6xf32> -> vector<5x40x96xf32>
    %53 = tpu.concatenate %32, %33, %34, %35, %36, %37, %38, %39, %40, %41, %42, %43, %44, %45, %46, %47 in 2 : vector<5x40x6xf32>, vector<5x40x6xf32>, vector<5x40x6xf32>, vector<5x40x6xf32>, vector<5x40x6xf32>, vector<5x40x6xf32>, vector<5x40x6xf32>, vector<5x40x6xf32>, vector<5x40x6xf32>, vector<5x40x6xf32>, vector<5x40x6xf32>, vector<5x40x6xf32>, vector<5x40x6xf32>, vector<5x40x6xf32>, vector<5x40x6xf32>, vector<5x40x6xf32> -> vector<5x40x96xf32>
    %54 = tpu.concatenate %48, %49, %50, %51 in 2 : vector<5x40x6xf32>, vector<5x40x6xf32>, vector<5x40x6xf32>, vector<5x40x6xf32> -> vector<5x40x24xf32>
    %55 = tpu.concatenate %52, %53, %54 in 2 : vector<5x40x96xf32>, vector<5x40x96xf32>, vector<5x40x24xf32> -> vector<5x40x216xf32>
    %56 = vector.shape_cast %55 : vector<5x40x216xf32> to vector<200x216xf32>
    %c0_6 = arith.constant 0 : index
    %c0_7 = arith.constant 0 : index
    %57 = vector.load %arg4[%c0_6, %c0_7] : memref<216x128xf32, #tpu.memory_space<vmem>>, vector<216x128xf32>
    %cst_8 = arith.constant dense<0.000000e+00> : vector<200x128xf32>
    %58 = tpu.matmul %56, %57, %cst_8 {dimension_numbers = #tpu.dot_dimension_numbers<[1], [0], [0], [1], [0, 0, 1, 1], [], []>} : vector<200x216xf32>, vector<216x128xf32>, vector<200x128xf32> -> vector<200x128xf32>
    %59 = vector.extract_strided_slice %58 {offsets = [0, 0], sizes = [200, 16], strides = [1, 1]} : vector<200x128xf32> to vector<200x16xf32>
    %60 = vector.extract_strided_slice %58 {offsets = [0, 16], sizes = [200, 16], strides = [1, 1]} : vector<200x128xf32> to vector<200x16xf32>
    %61 = arith.maximumf %59, %60 : vector<200x16xf32>
    %62 = vector.extract_strided_slice %58 {offsets = [0, 32], sizes = [200, 16], strides = [1, 1]} : vector<200x128xf32> to vector<200x16xf32>
    %63 = vector.extract_strided_slice %58 {offsets = [0, 48], sizes = [200, 16], strides = [1, 1]} : vector<200x128xf32> to vector<200x16xf32>
    %64 = arith.maximumf %62, %63 : vector<200x16xf32>
    %65 = arith.maximumf %61, %64 : vector<200x16xf32>
    %c0_9 = arith.constant 0 : index
    %c0_10 = arith.constant 0 : index
    %66 = vector.load %arg5[%c0_9, %c0_10] : memref<1x16xf32, #tpu.memory_space<vmem>>, vector<1x16xf32>
    %67 = vector.broadcast %66 : vector<1x16xf32> to vector<200x16xf32>
    %68 = arith.addf %65, %67 : vector<200x16xf32>
    %cst_11 = arith.constant 0.000000e+00 : f32
    %69 = vector.broadcast %cst_11 : f32 to vector<200x16xf32>
    %70 = arith.maximumf %68, %69 : vector<200x16xf32>
    %71 = vector.extract_strided_slice %70 {offsets = [0, 0], sizes = [8, 16], strides = [1, 1]} : vector<200x16xf32> to vector<8x16xf32>
    %72 = vector.extract_strided_slice %70 {offsets = [8, 0], sizes = [8, 16], strides = [1, 1]} : vector<200x16xf32> to vector<8x16xf32>
    %73 = vector.extract_strided_slice %70 {offsets = [16, 0], sizes = [8, 16], strides = [1, 1]} : vector<200x16xf32> to vector<8x16xf32>
    %74 = vector.extract_strided_slice %70 {offsets = [24, 0], sizes = [8, 16], strides = [1, 1]} : vector<200x16xf32> to vector<8x16xf32>
    %75 = vector.extract_strided_slice %70 {offsets = [32, 0], sizes = [8, 16], strides = [1, 1]} : vector<200x16xf32> to vector<8x16xf32>
    %76 = vector.extract_strided_slice %70 {offsets = [40, 0], sizes = [8, 16], strides = [1, 1]} : vector<200x16xf32> to vector<8x16xf32>
    %77 = vector.extract_strided_slice %70 {offsets = [48, 0], sizes = [8, 16], strides = [1, 1]} : vector<200x16xf32> to vector<8x16xf32>
    %78 = vector.extract_strided_slice %70 {offsets = [56, 0], sizes = [8, 16], strides = [1, 1]} : vector<200x16xf32> to vector<8x16xf32>
    %79 = vector.extract_strided_slice %70 {offsets = [64, 0], sizes = [8, 16], strides = [1, 1]} : vector<200x16xf32> to vector<8x16xf32>
    %80 = vector.extract_strided_slice %70 {offsets = [72, 0], sizes = [8, 16], strides = [1, 1]} : vector<200x16xf32> to vector<8x16xf32>
    %81 = vector.extract_strided_slice %70 {offsets = [80, 0], sizes = [8, 16], strides = [1, 1]} : vector<200x16xf32> to vector<8x16xf32>
    %82 = vector.extract_strided_slice %70 {offsets = [88, 0], sizes = [8, 16], strides = [1, 1]} : vector<200x16xf32> to vector<8x16xf32>
    %83 = vector.extract_strided_slice %70 {offsets = [96, 0], sizes = [8, 16], strides = [1, 1]} : vector<200x16xf32> to vector<8x16xf32>
    %84 = vector.extract_strided_slice %70 {offsets = [104, 0], sizes = [8, 16], strides = [1, 1]} : vector<200x16xf32> to vector<8x16xf32>
    %85 = vector.extract_strided_slice %70 {offsets = [112, 0], sizes = [8, 16], strides = [1, 1]} : vector<200x16xf32> to vector<8x16xf32>
    %86 = vector.extract_strided_slice %70 {offsets = [120, 0], sizes = [8, 16], strides = [1, 1]} : vector<200x16xf32> to vector<8x16xf32>
    %87 = vector.extract_strided_slice %70 {offsets = [128, 0], sizes = [8, 16], strides = [1, 1]} : vector<200x16xf32> to vector<8x16xf32>
    %88 = vector.extract_strided_slice %70 {offsets = [136, 0], sizes = [8, 16], strides = [1, 1]} : vector<200x16xf32> to vector<8x16xf32>
    %89 = vector.extract_strided_slice %70 {offsets = [144, 0], sizes = [8, 16], strides = [1, 1]} : vector<200x16xf32> to vector<8x16xf32>
    %90 = vector.extract_strided_slice %70 {offsets = [152, 0], sizes = [8, 16], strides = [1, 1]} : vector<200x16xf32> to vector<8x16xf32>
    %91 = vector.extract_strided_slice %70 {offsets = [160, 0], sizes = [8, 16], strides = [1, 1]} : vector<200x16xf32> to vector<8x16xf32>
    %92 = vector.extract_strided_slice %70 {offsets = [168, 0], sizes = [8, 16], strides = [1, 1]} : vector<200x16xf32> to vector<8x16xf32>
    %93 = vector.extract_strided_slice %70 {offsets = [176, 0], sizes = [8, 16], strides = [1, 1]} : vector<200x16xf32> to vector<8x16xf32>
    %94 = vector.extract_strided_slice %70 {offsets = [184, 0], sizes = [8, 16], strides = [1, 1]} : vector<200x16xf32> to vector<8x16xf32>
    %95 = vector.extract_strided_slice %70 {offsets = [192, 0], sizes = [8, 16], strides = [1, 1]} : vector<200x16xf32> to vector<8x16xf32>
    %96 = tpu.concatenate %71, %72, %73, %74, %75, %76, %77, %78, %79, %80, %81, %82, %83, %84, %85, %86 in 1 : vector<8x16xf32>, vector<8x16xf32>, vector<8x16xf32>, vector<8x16xf32>, vector<8x16xf32>, vector<8x16xf32>, vector<8x16xf32>, vector<8x16xf32>, vector<8x16xf32>, vector<8x16xf32>, vector<8x16xf32>, vector<8x16xf32>, vector<8x16xf32>, vector<8x16xf32>, vector<8x16xf32>, vector<8x16xf32> -> vector<8x256xf32>
    %97 = tpu.concatenate %87, %88, %89, %90, %91, %92, %93, %94, %95 in 1 : vector<8x16xf32>, vector<8x16xf32>, vector<8x16xf32>, vector<8x16xf32>, vector<8x16xf32>, vector<8x16xf32>, vector<8x16xf32>, vector<8x16xf32>, vector<8x16xf32> -> vector<8x144xf32>
    %98 = tpu.concatenate %96, %97 in 1 : vector<8x256xf32>, vector<8x144xf32> -> vector<8x400xf32>
    %c0_12 = arith.constant 0 : index
    %c0_13 = arith.constant 0 : index
    %99 = vector.load %arg6[%c0_12, %c0_13] : memref<400x128xf32, #tpu.memory_space<vmem>>, vector<400x128xf32>
    %cst_14 = arith.constant dense<0.000000e+00> : vector<8x128xf32>
    %100 = tpu.matmul %98, %99, %cst_14 {dimension_numbers = #tpu.dot_dimension_numbers<[1], [0], [0], [1], [0, 0, 1, 1], [], []>} : vector<8x400xf32>, vector<400x128xf32>, vector<8x128xf32> -> vector<8x128xf32>
    %c0_15 = arith.constant 0 : index
    %c0_16 = arith.constant 0 : index
    %101 = vector.load %arg7[%c0_15, %c0_16] : memref<1x128xf32, #tpu.memory_space<vmem>>, vector<1x128xf32>
    %102 = vector.broadcast %101 : vector<1x128xf32> to vector<8x128xf32>
    %103 = arith.addf %100, %102 : vector<8x128xf32>
    %cst_17 = arith.constant 0.000000e+00 : f32
    %104 = vector.broadcast %cst_17 : f32 to vector<8x128xf32>
    %105 = arith.maximumf %103, %104 : vector<8x128xf32>
    %c0_18 = arith.constant 0 : index
    %c0_19 = arith.constant 0 : index
    %106 = vector.load %arg8[%c0_18, %c0_19] : memref<128x128xf32, #tpu.memory_space<vmem>>, vector<128x128xf32>
    %cst_20 = arith.constant dense<0.000000e+00> : vector<8x128xf32>
    %107 = tpu.matmul %105, %106, %cst_20 {dimension_numbers = #tpu.dot_dimension_numbers<[1], [0], [0], [1], [0, 0, 1, 1], [], []>} : vector<8x128xf32>, vector<128x128xf32>, vector<8x128xf32> -> vector<8x128xf32>
    %c0_21 = arith.constant 0 : index
    %c0_22 = arith.constant 0 : index
    %108 = vector.load %arg9[%c0_21, %c0_22] : memref<1x128xf32, #tpu.memory_space<vmem>>, vector<1x128xf32>
    %109 = vector.broadcast %108 : vector<1x128xf32> to vector<8x128xf32>
    %110 = arith.addf %107, %109 : vector<8x128xf32>
    %cst_23 = arith.constant 0.000000e+00 : f32
    %111 = vector.broadcast %cst_23 : f32 to vector<8x128xf32>
    %112 = arith.maximumf %110, %111 : vector<8x128xf32>
    %c0_24 = arith.constant 0 : index
    %c0_25 = arith.constant 0 : index
    %113 = vector.load %arg10[%c0_24, %c0_25] : memref<128x128xf32, #tpu.memory_space<vmem>>, vector<128x128xf32>
    %cst_26 = arith.constant dense<0.000000e+00> : vector<8x128xf32>
    %114 = tpu.matmul %112, %113, %cst_26 {dimension_numbers = #tpu.dot_dimension_numbers<[1], [0], [0], [1], [0, 0, 1, 1], [], []>} : vector<8x128xf32>, vector<128x128xf32>, vector<8x128xf32> -> vector<8x128xf32>
    %c0_27 = arith.constant 0 : index
    %c0_28 = arith.constant 0 : index
    %115 = vector.load %arg11[%c0_27, %c0_28] : memref<1x128xf32, #tpu.memory_space<vmem>>, vector<1x128xf32>
    %116 = vector.broadcast %115 : vector<1x128xf32> to vector<8x128xf32>
    %117 = arith.addf %114, %116 : vector<8x128xf32>
    %c0_29 = arith.constant 0 : index
    %c0_30 = arith.constant 0 : index
    %118 = vector.load %arg12[%c0_29, %c0_30] : memref<8x128xf32, #tpu.memory_space<vmem>>, vector<8x128xf32>
    tpu.vector_store %arg12[%c0_29, %c0_30], %117 {strides = array<i32>} : memref<8x128xf32, #tpu.memory_space<vmem>>, vector<8x128xf32>,
    return
  }
  func.func @transform_0(%arg0: i32) -> (i32, i32) {
    %c0_i32 = arith.constant 0 : i32
    %c0_i32_0 = arith.constant 0 : i32
    return %arg0, %c0_i32 : i32, i32
  }
  func.func @transform_1(%arg0: i32) -> (i32, i32) {
    %c0_i32 = arith.constant 0 : i32
    %c0_i32_0 = arith.constant 0 : i32
    %c0_i32_1 = arith.constant 0 : i32
    return %c0_i32, %c0_i32_0 : i32, i32
  }
  func.func @transform_2(%arg0: i32) -> (i32, i32) {
    %c0_i32 = arith.constant 0 : i32
    %c0_i32_0 = arith.constant 0 : i32
    %c0_i32_1 = arith.constant 0 : i32
    return %c0_i32, %c0_i32_0 : i32, i32
  }
  func.func @transform_3(%arg0: i32) -> (i32, i32) {
    %c0_i32 = arith.constant 0 : i32
    %c0_i32_0 = arith.constant 0 : i32
    %c0_i32_1 = arith.constant 0 : i32
    return %c0_i32, %c0_i32_0 : i32, i32
  }
  func.func @transform_4(%arg0: i32) -> (i32, i32) {
    %c0_i32 = arith.constant 0 : i32
    %c0_i32_0 = arith.constant 0 : i32
    %c0_i32_1 = arith.constant 0 : i32
    return %c0_i32, %c0_i32_0 : i32, i32
  }
  func.func @transform_5(%arg0: i32) -> (i32, i32) {
    %c0_i32 = arith.constant 0 : i32
    %c0_i32_0 = arith.constant 0 : i32
    %c0_i32_1 = arith.constant 0 : i32
    return %c0_i32, %c0_i32_0 : i32, i32
  }
  func.func @transform_6(%arg0: i32) -> (i32, i32) {
    %c0_i32 = arith.constant 0 : i32
    %c0_i32_0 = arith.constant 0 : i32
    %c0_i32_1 = arith.constant 0 : i32
    return %c0_i32, %c0_i32_0 : i32, i32
  }
  func.func @transform_7(%arg0: i32) -> (i32, i32) {
    %c0_i32 = arith.constant 0 : i32
    %c0_i32_0 = arith.constant 0 : i32
    %c0_i32_1 = arith.constant 0 : i32
    return %c0_i32, %c0_i32_0 : i32, i32
  }
  func.func @transform_8(%arg0: i32) -> (i32, i32) {
    %c0_i32 = arith.constant 0 : i32
    %c0_i32_0 = arith.constant 0 : i32
    %c0_i32_1 = arith.constant 0 : i32
    return %c0_i32, %c0_i32_0 : i32, i32
  }
  func.func @transform_9(%arg0: i32) -> (i32, i32) {
    %c0_i32 = arith.constant 0 : i32
    %c0_i32_0 = arith.constant 0 : i32
    %c0_i32_1 = arith.constant 0 : i32
    return %c0_i32, %c0_i32_0 : i32, i32
  }
  func.func @transform_10(%arg0: i32) -> (i32, i32) {
    %c0_i32 = arith.constant 0 : i32
    %c0_i32_0 = arith.constant 0 : i32
    %c0_i32_1 = arith.constant 0 : i32
    return %c0_i32, %c0_i32_0 : i32, i32
  }
  func.func @transform_11(%arg0: i32) -> (i32, i32) {
    %c0_i32 = arith.constant 0 : i32
    %c0_i32_0 = arith.constant 0 : i32
    return %arg0, %c0_i32 : i32, i32
  }
}

</mosaic_0001>

<llo_original>
// kernel: convnet_forward.1
$region0: #{convnet_forward.1}
  #allocation0 [shape = 'u32[]', space=smem, size = 0x4, offset = 0x4, fixed_abs, tag = 'smem constant byte address 0x4 - core index']
  #allocation1 [shape = 'u32[144,128]{1,0:T(1,128)}', space=vmem, size = 0x12000, scoped, tag = 'internal scratch']
  %s0 = inlined_call_operand.vmem [shape: f32[1568,36], index: 0, kind: input, shape index: {}]
  %s1 = inlined_call_operand.vmem [shape: f32[36,128], index: 1, kind: input, shape index: {}]
  %s2 = inlined_call_operand.vmem [shape: f32[1,6], index: 2, kind: input, shape index: {}]
  %s3 = inlined_call_operand.vmem [shape: f32[216,128], index: 3, kind: input, shape index: {}]
  %s4 = inlined_call_operand.vmem [shape: f32[1,16], index: 4, kind: input, shape index: {}]
  %s5 = inlined_call_operand.vmem [shape: f32[400,128], index: 5, kind: input, shape index: {}]
  %s6 = inlined_call_operand.vmem [shape: f32[1,128], index: 6, kind: input, shape index: {}]
  %s7 = inlined_call_operand.vmem [shape: f32[128,128], index: 7, kind: input, shape index: {}]
  %s8 = inlined_call_operand.vmem [shape: f32[1,128], index: 8, kind: input, shape index: {}]
  %s9 = inlined_call_operand.vmem [shape: f32[128,128], index: 9, kind: input, shape index: {}]
  %s10 = inlined_call_operand.vmem [shape: f32[1,128], index: 10, kind: input, shape index: {}]
  %s11 = inlined_call_operand.vmem [shape: f32[8,128], index: 11, kind: output, shape index: {}]
  %s12 = sld [smem:[#allocation0]]
  $region54: #{convnet_forward.1} parent=0
    _
  %s14 = ssub.s32 1, %s12
  %s15 = scalar_select 0, %s14, %s12
  // Predicated region
  $region2: #{convnet_forward.1} parent=0 // pred_check
    _
  $region3: #{convnet_forward.1} parent=0 // pred_check_branch
    %17 = sbr.rel (0) target = $region5
  $region4: #{convnet_forward.1} parent=0 // pred_region
    _
  $region5: #{convnet_forward.1} parent=0 // pred_fallthru
    _
  // Predicated region
  $region6: #{convnet_forward.1} parent=0 // pred_check
    _
  $region7: #{convnet_forward.1} parent=0 // pred_check_branch
    %19 = sbr.rel (0) target = $region9
  $region8: #{convnet_forward.1} parent=0 // pred_region
    _
  $region9: #{convnet_forward.1} parent=0 // pred_fallthru
    _
  // Predicated region
  $region10: #{convnet_forward.1} parent=0 // pred_check
    _
  $region11: #{convnet_forward.1} parent=0 // pred_check_branch
    %21 = sbr.rel (0) target = $region13
  $region12: #{convnet_forward.1} parent=0 // pred_region
    _
  $region13: #{convnet_forward.1} parent=0 // pred_fallthru
    _
  // Predicated region
  $region14: #{convnet_forward.1} parent=0 // pred_check
    _
  $region15: #{convnet_forward.1} parent=0 // pred_check_branch
    %23 = sbr.rel (0) target = $region17
  $region16: #{convnet_forward.1} parent=0 // pred_region
    _
  $region17: #{convnet_forward.1} parent=0 // pred_fallthru
    _
  // Predicated region
  $region18: #{convnet_forward.1} parent=0 // pred_check
    _
  $region19: #{convnet_forward.1} parent=0 // pred_check_branch
    %25 = sbr.rel (0) target = $region21
  $region20: #{convnet_forward.1} parent=0 // pred_region
    _
  $region21: #{convnet_forward.1} parent=0 // pred_fallthru
    _
  // Predicated region
  $region22: #{convnet_forward.1} parent=0 // pred_check
    _
  $region23: #{convnet_forward.1} parent=0 // pred_check_branch
    %27 = sbr.rel (0) target = $region25
  $region24: #{convnet_forward.1} parent=0 // pred_region
    _
  $region25: #{convnet_forward.1} parent=0 // pred_fallthru
    _
  // Predicated region
  $region26: #{convnet_forward.1} parent=0 // pred_check
    _
  $region27: #{convnet_forward.1} parent=0 // pred_check_branch
    %29 = sbr.rel (0) target = $region29
  $region28: #{convnet_forward.1} parent=0 // pred_region
    _
  $region29: #{convnet_forward.1} parent=0 // pred_fallthru
    _
  // Predicated region
  $region30: #{convnet_forward.1} parent=0 // pred_check
    _
  $region31: #{convnet_forward.1} parent=0 // pred_check_branch
    %31 = sbr.rel (0) target = $region33
  $region32: #{convnet_forward.1} parent=0 // pred_region
    _
  $region33: #{convnet_forward.1} parent=0 // pred_fallthru
    _
  // Predicated region
  $region34: #{convnet_forward.1} parent=0 // pred_check
    _
  $region35: #{convnet_forward.1} parent=0 // pred_check_branch
    %33 = sbr.rel (0) target = $region37
  $region36: #{convnet_forward.1} parent=0 // pred_region
    _
  $region37: #{convnet_forward.1} parent=0 // pred_fallthru
    _
  // Predicated region
  $region38: #{convnet_forward.1} parent=0 // pred_check
    _
  $region39: #{convnet_forward.1} parent=0 // pred_check_branch
    %35 = sbr.rel (0) target = $region41
  $region40: #{convnet_forward.1} parent=0 // pred_region
    _
  $region41: #{convnet_forward.1} parent=0 // pred_fallthru
    _
  // Predicated region
  $region42: #{convnet_forward.1} parent=0 // pred_check
    _
  $region43: #{convnet_forward.1} parent=0 // pred_check_branch
    %37 = sbr.rel (0) target = $region45
  $region44: #{convnet_forward.1} parent=0 // pred_region
    _
  $region45: #{convnet_forward.1} parent=0 // pred_fallthru
    _
  %v38 = vld [vmem:[%s0] sm:$0xff]
  %v39 = vld [vmem:[%s0 + $0x8] sm:$0xff]
  %v40 = vld [vmem:[%s0 + $0x10] sm:$0xff]
  %v41 = vld [vmem:[%s0 + $0x18] sm:$0xff]
  %v42 = vld [vmem:[%s0 + $0x20] sm:$0xff]
  %v43 = vld [vmem:[%s0 + $0x28] sm:$0xff]
  %v44 = vld [vmem:[%s0 + $0x30] sm:$0xff]
  %v45 = vld [vmem:[%s0 + $0x38] sm:$0xff]
  %v46 = vld [vmem:[%s0 + $0x40] sm:$0xff]
  %v47 = vld [vmem:[%s0 + $0x48] sm:$0xff]
  %v48 = vld [vmem:[%s0 + $0x50] sm:$0xff]
  %v49 = vld [vmem:[%s0 + $0x58] sm:$0xff]
  %v50 = vld [vmem:[%s0 + $0x60] sm:$0xff]
  %v51 = vld [vmem:[%s0 + $0x68] sm:$0xff]
  %v52 = vld [vmem:[%s0 + $0x70] sm:$0xff]
  %v53 = vld [vmem:[%s0 + $0x78] sm:$0xff]
  %v54 = vld [vmem:[%s0 + $0x80] sm:$0xff]
  %v55 = vld [vmem:[%s0 + $0x88] sm:$0xff]
  %v56 = vld [vmem:[%s0 + $0x90] sm:$0xff]
  %v57 = vld [vmem:[%s0 + $0x98] sm:$0xff]
  %v58 = vld [vmem:[%s0 + $0xa0] sm:$0xff]
  %v59 = vld [vmem:[%s0 + $0xa8] sm:$0xff]
  %v60 = vld [vmem:[%s0 + $0xb0] sm:$0xff]
  %v61 = vld [vmem:[%s0 + $0xb8] sm:$0xff]
  %v62 = vld [vmem:[%s0 + $0xc0] sm:$0xff]
  %v63 = vld [vmem:[%s0 + $0xc8] sm:$0xff]
  %v64 = vld [vmem:[%s0 + $0xd0] sm:$0xff]
  %v65 = vld [vmem:[%s0 + $0xd8] sm:$0xff]
  %v66 = vld [vmem:[%s0 + $0xe0] sm:$0xff]
  %v67 = vld [vmem:[%s0 + $0xe8] sm:$0xff]
  %v68 = vld [vmem:[%s0 + $0xf0] sm:$0xff]
  %v69 = vld [vmem:[%s0 + $0xf8] sm:$0xff]
  %v70 = vld [vmem:[%s0 + $0x100] sm:$0xff]
  %v71 = vld [vmem:[%s0 + $0x108] sm:$0xff]
  %v72 = vld [vmem:[%s0 + $0x110] sm:$0xff]
  %v73 = vld [vmem:[%s0 + $0x118] sm:$0xff]
  %v74 = vld [vmem:[%s0 + $0x120] sm:$0xff]
  %v75 = vld [vmem:[%s0 + $0x128] sm:$0xff]
  %v76 = vld [vmem:[%s0 + $0x130] sm:$0xff]
  %v77 = vld [vmem:[%s0 + $0x138] sm:$0xff]
  %v78 = vld [vmem:[%s0 + $0x140] sm:$0xff]
  %v79 = vld [vmem:[%s0 + $0x148] sm:$0xff]
  %v80 = vld [vmem:[%s0 + $0x150] sm:$0xff]
  %v81 = vld [vmem:[%s0 + $0x158] sm:$0xff]
  %v82 = vld [vmem:[%s0 + $0x160] sm:$0xff]
  %v83 = vld [vmem:[%s0 + $0x168] sm:$0xff]
  %v84 = vld [vmem:[%s0 + $0x170] sm:$0xff]
  %v85 = vld [vmem:[%s0 + $0x178] sm:$0xff]
  %v86 = vld [vmem:[%s0 + $0x180] sm:$0xff]
  %v87 = vld [vmem:[%s0 + $0x188] sm:$0xff]
  %v88 = vld [vmem:[%s0 + $0x190] sm:$0xff]
  %v89 = vld [vmem:[%s0 + $0x198] sm:$0xff]
  %v90 = vld [vmem:[%s0 + $0x1a0] sm:$0xff]
  %v91 = vld [vmem:[%s0 + $0x1a8] sm:$0xff]
  %v92 = vld [vmem:[%s0 + $0x1b0] sm:$0xff]
  %v93 = vld [vmem:[%s0 + $0x1b8] sm:$0xff]
  %v94 = vld [vmem:[%s0 + $0x1c0] sm:$0xff]
  %v95 = vld [vmem:[%s0 + $0x1c8] sm:$0xff]
  %v96 = vld [vmem:[%s0 + $0x1d0] sm:$0xff]
  %v97 = vld [vmem:[%s0 + $0x1d8] sm:$0xff]
  %v98 = vld [vmem:[%s0 + $0x1e0] sm:$0xff]
  %v99 = vld [vmem:[%s0 + $0x1e8] sm:$0xff]
  %v100 = vld [vmem:[%s0 + $0x1f0] sm:$0xff]
  %v101 = vld [vmem:[%s0 + $0x1f8] sm:$0xff]
  %v102 = vld [vmem:[%s0 + $0x200] sm:$0xff]
  %v103 = vld [vmem:[%s0 + $0x208] sm:$0xff]
  %v104 = vld [vmem:[%s0 + $0x210] sm:$0xff]
  %v105 = vld [vmem:[%s0 + $0x218] sm:$0xff]
  %v106 = vld [vmem:[%s0 + $0x220] sm:$0xff]
  %v107 = vld [vmem:[%s0 + $0x228] sm:$0xff]
  %v108 = vld [vmem:[%s0 + $0x230] sm:$0xff]
  %v109 = vld [vmem:[%s0 + $0x238] sm:$0xff]
  %v110 = vld [vmem:[%s0 + $0x240] sm:$0xff]
  %v111 = vld [vmem:[%s0 + $0x248] sm:$0xff]
  %v112 = vld [vmem:[%s0 + $0x250] sm:$0xff]
  %v113 = vld [vmem:[%s0 + $0x258] sm:$0xff]
  %v114 = vld [vmem:[%s0 + $0x260] sm:$0xff]
  %v115 = vld [vmem:[%s0 + $0x268] sm:$0xff]
  %v116 = vld [vmem:[%s0 + $0x270] sm:$0xff]
  %v117 = vld [vmem:[%s0 + $0x278] sm:$0xff]
  %v118 = vld [vmem:[%s0 + $0x280] sm:$0xff]
  %v119 = vld [vmem:[%s0 + $0x288] sm:$0xff]
  %v120 = vld [vmem:[%s0 + $0x290] sm:$0xff]
  %v121 = vld [vmem:[%s0 + $0x298] sm:$0xff]
  %v122 = vld [vmem:[%s0 + $0x2a0] sm:$0xff]
  %v123 = vld [vmem:[%s0 + $0x2a8] sm:$0xff]
  %v124 = vld [vmem:[%s0 + $0x2b0] sm:$0xff]
  %v125 = vld [vmem:[%s0 + $0x2b8] sm:$0xff]
  %v126 = vld [vmem:[%s0 + $0x2c0] sm:$0xff]
  %v127 = vld [vmem:[%s0 + $0x2c8] sm:$0xff]
  %v128 = vld [vmem:[%s0 + $0x2d0] sm:$0xff]
  %v129 = vld [vmem:[%s0 + $0x2d8] sm:$0xff]
  %v130 = vld [vmem:[%s0 + $0x2e0] sm:$0xff]
  %v131 = vld [vmem:[%s0 + $0x2e8] sm:$0xff]
  %v132 = vld [vmem:[%s0 + $0x2f0] sm:$0xff]
  %v133 = vld [vmem:[%s0 + $0x2f8] sm:$0xff]
  %v134 = vld [vmem:[%s0 + $0x300] sm:$0xff]
  %v135 = vld [vmem:[%s0 + $0x308] sm:$0xff]
  %v136 = vld [vmem:[%s0 + $0x310] sm:$0xff]
  %v137 = vld [vmem:[%s0 + $0x318] sm:$0xff]
  %v138 = vld [vmem:[%s0 + $0x320] sm:$0xff]
  %v139 = vld [vmem:[%s0 + $0x328] sm:$0xff]
  %v140 = vld [vmem:[%s0 + $0x330] sm:$0xff]
  %v141 = vld [vmem:[%s0 + $0x338] sm:$0xff]
  %v142 = vld [vmem:[%s0 + $0x340] sm:$0xff]
  %v143 = vld [vmem:[%s0 + $0x348] sm:$0xff]
  %v144 = vld [vmem:[%s0 + $0x350] sm:$0xff]
  %v145 = vld [vmem:[%s0 + $0x358] sm:$0xff]
  %v146 = vld [vmem:[%s0 + $0x360] sm:$0xff]
  %v147 = vld [vmem:[%s0 + $0x368] sm:$0xff]
  %v148 = vld [vmem:[%s0 + $0x370] sm:$0xff]
  %v149 = vld [vmem:[%s0 + $0x378] sm:$0xff]
  %v150 = vld [vmem:[%s0 + $0x380] sm:$0xff]
  %v151 = vld [vmem:[%s0 + $0x388] sm:$0xff]
  %v152 = vld [vmem:[%s0 + $0x390] sm:$0xff]
  %v153 = vld [vmem:[%s0 + $0x398] sm:$0xff]
  %v154 = vld [vmem:[%s0 + $0x3a0] sm:$0xff]
  %v155 = vld [vmem:[%s0 + $0x3a8] sm:$0xff]
  %v156 = vld [vmem:[%s0 + $0x3b0] sm:$0xff]
  %v157 = vld [vmem:[%s0 + $0x3b8] sm:$0xff]
  %v158 = vld [vmem:[%s0 + $0x3c0] sm:$0xff]
  %v159 = vld [vmem:[%s0 + $0x3c8] sm:$0xff]
  %v160 = vld [vmem:[%s0 + $0x3d0] sm:$0xff]
  %v161 = vld [vmem:[%s0 + $0x3d8] sm:$0xff]
  %v162 = vld [vmem:[%s0 + $0x3e0] sm:$0xff]
  %v163 = vld [vmem:[%s0 + $0x3e8] sm:$0xff]
  %v164 = vld [vmem:[%s0 + $0x3f0] sm:$0xff]
  %v165 = vld [vmem:[%s0 + $0x3f8] sm:$0xff]
  %v166 = vld [vmem:[%s0 + $0x400] sm:$0xff]
  %v167 = vld [vmem:[%s0 + $0x408] sm:$0xff]
  %v168 = vld [vmem:[%s0 + $0x410] sm:$0xff]
  %v169 = vld [vmem:[%s0 + $0x418] sm:$0xff]
  %v170 = vld [vmem:[%s0 + $0x420] sm:$0xff]
  %v171 = vld [vmem:[%s0 + $0x428] sm:$0xff]
  %v172 = vld [vmem:[%s0 + $0x430] sm:$0xff]
  %v173 = vld [vmem:[%s0 + $0x438] sm:$0xff]
  %v174 = vld [vmem:[%s0 + $0x440] sm:$0xff]
  %v175 = vld [vmem:[%s0 + $0x448] sm:$0xff]
  %v176 = vld [vmem:[%s0 + $0x450] sm:$0xff]
  %v177 = vld [vmem:[%s0 + $0x458] sm:$0xff]
  %v178 = vld [vmem:[%s0 + $0x460] sm:$0xff]
  %v179 = vld [vmem:[%s0 + $0x468] sm:$0xff]
  %v180 = vld [vmem:[%s0 + $0x470] sm:$0xff]
  %v181 = vld [vmem:[%s0 + $0x478] sm:$0xff]
  %v182 = vld [vmem:[%s0 + $0x480] sm:$0xff]
  %v183 = vld [vmem:[%s0 + $0x488] sm:$0xff]
  %v184 = vld [vmem:[%s0 + $0x490] sm:$0xff]
  %v185 = vld [vmem:[%s0 + $0x498] sm:$0xff]
  %v186 = vld [vmem:[%s0 + $0x4a0] sm:$0xff]
  %v187 = vld [vmem:[%s0 + $0x4a8] sm:$0xff]
  %v188 = vld [vmem:[%s0 + $0x4b0] sm:$0xff]
  %v189 = vld [vmem:[%s0 + $0x4b8] sm:$0xff]
  %v190 = vld [vmem:[%s0 + $0x4c0] sm:$0xff]
  %v191 = vld [vmem:[%s0 + $0x4c8] sm:$0xff]
  %v192 = vld [vmem:[%s0 + $0x4d0] sm:$0xff]
  %v193 = vld [vmem:[%s0 + $0x4d8] sm:$0xff]
  %v194 = vld [vmem:[%s0 + $0x4e0] sm:$0xff]
  %v195 = vld [vmem:[%s0 + $0x4e8] sm:$0xff]
  %v196 = vld [vmem:[%s0 + $0x4f0] sm:$0xff]
  %v197 = vld [vmem:[%s0 + $0x4f8] sm:$0xff]
  %v198 = vld [vmem:[%s0 + $0x500] sm:$0xff]
  %v199 = vld [vmem:[%s0 + $0x508] sm:$0xff]
  %v200 = vld [vmem:[%s0 + $0x510] sm:$0xff]
  %v201 = vld [vmem:[%s0 + $0x518] sm:$0xff]
  %v202 = vld [vmem:[%s0 + $0x520] sm:$0xff]
  %v203 = vld [vmem:[%s0 + $0x528] sm:$0xff]
  %v204 = vld [vmem:[%s0 + $0x530] sm:$0xff]
  %v205 = vld [vmem:[%s0 + $0x538] sm:$0xff]
  %v206 = vld [vmem:[%s0 + $0x540] sm:$0xff]
  %v207 = vld [vmem:[%s0 + $0x548] sm:$0xff]
  %v208 = vld [vmem:[%s0 + $0x550] sm:$0xff]
  %v209 = vld [vmem:[%s0 + $0x558] sm:$0xff]
  %v210 = vld [vmem:[%s0 + $0x560] sm:$0xff]
  %v211 = vld [vmem:[%s0 + $0x568] sm:$0xff]
  %v212 = vld [vmem:[%s0 + $0x570] sm:$0xff]
  %v213 = vld [vmem:[%s0 + $0x578] sm:$0xff]
  %v214 = vld [vmem:[%s0 + $0x580] sm:$0xff]
  %v215 = vld [vmem:[%s0 + $0x588] sm:$0xff]
  %v216 = vld [vmem:[%s0 + $0x590] sm:$0xff]
  %v217 = vld [vmem:[%s0 + $0x598] sm:$0xff]
  %v218 = vld [vmem:[%s0 + $0x5a0] sm:$0xff]
  %v219 = vld [vmem:[%s0 + $0x5a8] sm:$0xff]
  %v220 = vld [vmem:[%s0 + $0x5b0] sm:$0xff]
  %v221 = vld [vmem:[%s0 + $0x5b8] sm:$0xff]
  %v222 = vld [vmem:[%s0 + $0x5c0] sm:$0xff]
  %v223 = vld [vmem:[%s0 + $0x5c8] sm:$0xff]
  %v224 = vld [vmem:[%s0 + $0x5d0] sm:$0xff]
  %v225 = vld [vmem:[%s0 + $0x5d8] sm:$0xff]
  %v226 = vld [vmem:[%s0 + $0x5e0] sm:$0xff]
  %v227 = vld [vmem:[%s0 + $0x5e8] sm:$0xff]
  %v228 = vld [vmem:[%s0 + $0x5f0] sm:$0xff]
  %v229 = vld [vmem:[%s0 + $0x5f8] sm:$0xff]
  %v230 = vld [vmem:[%s0 + $0x600] sm:$0xff]
  %v231 = vld [vmem:[%s0 + $0x608] sm:$0xff]
  %v232 = vld [vmem:[%s0 + $0x610] sm:$0xff]
  %v233 = vld [vmem:[%s0 + $0x618] sm:$0xff]
  %v234 = vld [vmem:[%s1] sm:$0xff]
  %v235 = vld [vmem:[%s1 + $0x8] sm:$0xff]
  %v236 = vld [vmem:[%s1 + $0x10] sm:$0xff]
  %v237 = vld [vmem:[%s1 + $0x18] sm:$0xff]
  %v238 = vld [vmem:[%s1 + $0x20] sm:$0xf]
  %vm239 = vcmask 293888
  %v241 = vsel %vm239, %v38, 0
  %v244 = vsel %vm239, %v39, 0
  %v247 = vsel %vm239, %v40, 0
  %v250 = vsel %vm239, %v41, 0
  %v253 = vsel %vm239, %v42, 0
  %v256 = vsel %vm239, %v43, 0
  %v259 = vsel %vm239, %v44, 0
  %v262 = vsel %vm239, %v45, 0
  %v265 = vsel %vm239, %v46, 0
  %v268 = vsel %vm239, %v47, 0
  %v271 = vsel %vm239, %v48, 0
  %v274 = vsel %vm239, %v49, 0
  %v277 = vsel %vm239, %v50, 0
  %v280 = vsel %vm239, %v51, 0
  %v283 = vsel %vm239, %v52, 0
  %v286 = vsel %vm239, %v53, 0
  %v289 = vsel %vm239, %v54, 0
  %v292 = vsel %vm239, %v55, 0
  %v295 = vsel %vm239, %v56, 0
  %v298 = vsel %vm239, %v57, 0
  %v301 = vsel %vm239, %v58, 0
  %v304 = vsel %vm239, %v59, 0
  %v307 = vsel %vm239, %v60, 0
  %v310 = vsel %vm239, %v61, 0
  %v313 = vsel %vm239, %v62, 0
  %v316 = vsel %vm239, %v63, 0
  %v319 = vsel %vm239, %v64, 0
  %v322 = vsel %vm239, %v65, 0
  %v325 = vsel %vm239, %v66, 0
  %v328 = vsel %vm239, %v67, 0
  %v331 = vsel %vm239, %v68, 0
  %v334 = vsel %vm239, %v69, 0
  %v337 = vsel %vm239, %v70, 0
  %v340 = vsel %vm239, %v71, 0
  %v343 = vsel %vm239, %v72, 0
  %v346 = vsel %vm239, %v73, 0
  %v349 = vsel %vm239, %v74, 0
  %v352 = vsel %vm239, %v75, 0
  %v355 = vsel %vm239, %v76, 0
  %v358 = vsel %vm239, %v77, 0
  %v361 = vsel %vm239, %v78, 0
  %v364 = vsel %vm239, %v79, 0
  %v367 = vsel %vm239, %v80, 0
  %v370 = vsel %vm239, %v81, 0
  %v373 = vsel %vm239, %v82, 0
  %v376 = vsel %vm239, %v83, 0
  %v379 = vsel %vm239, %v84, 0
  %v382 = vsel %vm239, %v85, 0
  %v385 = vsel %vm239, %v86, 0
  %v388 = vsel %vm239, %v87, 0
  %v391 = vsel %vm239, %v88, 0
  %v394 = vsel %vm239, %v89, 0
  %v397 = vsel %vm239, %v90, 0
  %v400 = vsel %vm239, %v91, 0
  %v403 = vsel %vm239, %v92, 0
  %v406 = vsel %vm239, %v93, 0
  %v409 = vsel %vm239, %v94, 0
  %v412 = vsel %vm239, %v95, 0
  %v415 = vsel %vm239, %v96, 0
  %v418 = vsel %vm239, %v97, 0
  %v421 = vsel %vm239, %v98, 0
  %v424 = vsel %vm239, %v99, 0
  %v427 = vsel %vm239, %v100, 0
  %v430 = vsel %vm239, %v101, 0
  %v433 = vsel %vm239, %v102, 0
  %v436 = vsel %vm239, %v103, 0
  %v439 = vsel %vm239, %v104, 0
  %v442 = vsel %vm239, %v105, 0
  %v445 = vsel %vm239, %v106, 0
  %v448 = vsel %vm239, %v107, 0
  %v451 = vsel %vm239, %v108, 0
  %v454 = vsel %vm239, %v109, 0
  %v457 = vsel %vm239, %v110, 0
  %v460 = vsel %vm239, %v111, 0
  %v463 = vsel %vm239, %v112, 0
  %v466 = vsel %vm239, %v113, 0
  %v469 = vsel %vm239, %v114, 0
  %v472 = vsel %vm239, %v115, 0
  %v475 = vsel %vm239, %v116, 0
  %v478 = vsel %vm239, %v117, 0
  %v481 = vsel %vm239, %v118, 0
  %v484 = vsel %vm239, %v119, 0
  %v487 = vsel %vm239, %v120, 0
  %v490 = vsel %vm239, %v121, 0
  %v493 = vsel %vm239, %v122, 0
  %v496 = vsel %vm239, %v123, 0
  %v499 = vsel %vm239, %v124, 0
  %v502 = vsel %vm239, %v125, 0
  %v505 = vsel %vm239, %v126, 0
  %v508 = vsel %vm239, %v127, 0
  %v511 = vsel %vm239, %v128, 0
  %v514 = vsel %vm239, %v129, 0
  %v517 = vsel %vm239, %v130, 0
  %v520 = vsel %vm239, %v131, 0
  %v523 = vsel %vm239, %v132, 0
  %v526 = vsel %vm239, %v133, 0
  %v529 = vsel %vm239, %v134, 0
  %v532 = vsel %vm239, %v135, 0
  %v535 = vsel %vm239, %v136, 0
  %v538 = vsel %vm239, %v137, 0
  %v541 = vsel %vm239, %v138, 0
  %v544 = vsel %vm239, %v139, 0
  %v547 = vsel %vm239, %v140, 0
  %v550 = vsel %vm239, %v141, 0
  %v553 = vsel %vm239, %v142, 0
  %v556 = vsel %vm239, %v143, 0
  %v559 = vsel %vm239, %v144, 0
  %v562 = vsel %vm239, %v145, 0
  %v565 = vsel %vm239, %v146, 0
  %v568 = vsel %vm239, %v147, 0
  %v571 = vsel %vm239, %v148, 0
  %v574 = vsel %vm239, %v149, 0
  %v577 = vsel %vm239, %v150, 0
  %v580 = vsel %vm239, %v151, 0
  %v583 = vsel %vm239, %v152, 0
  %v586 = vsel %vm239, %v153, 0
  %v589 = vsel %vm239, %v154, 0
  %v592 = vsel %vm239, %v155, 0
  %v595 = vsel %vm239, %v156, 0
  %v598 = vsel %vm239, %v157, 0
  %v601 = vsel %vm239, %v158, 0
  %v604 = vsel %vm239, %v159, 0
  %v607 = vsel %vm239, %v160, 0
  %v610 = vsel %vm239, %v161, 0
  %v613 = vsel %vm239, %v162, 0
  %v616 = vsel %vm239, %v163, 0
  %v619 = vsel %vm239, %v164, 0
  %v622 = vsel %vm239, %v165, 0
  %v625 = vsel %vm239, %v166, 0
  %v628 = vsel %vm239, %v167, 0
  %v631 = vsel %vm239, %v168, 0
  %v634 = vsel %vm239, %v169, 0
  %v637 = vsel %vm239, %v170, 0
  %v640 = vsel %vm239, %v171, 0
  %v643 = vsel %vm239, %v172, 0
  %v646 = vsel %vm239, %v173, 0
  %v649 = vsel %vm239, %v174, 0
  %v652 = vsel %vm239, %v175, 0
  %v655 = vsel %vm239, %v176, 0
  %v658 = vsel %vm239, %v177, 0
  %v661 = vsel %vm239, %v178, 0
  %v664 = vsel %vm239, %v179, 0
  %v667 = vsel %vm239, %v180, 0
  %v670 = vsel %vm239, %v181, 0
  %v673 = vsel %vm239, %v182, 0
  %v676 = vsel %vm239, %v183, 0
  %v679 = vsel %vm239, %v184, 0
  %v682 = vsel %vm239, %v185, 0
  %v685 = vsel %vm239, %v186, 0
  %v688 = vsel %vm239, %v187, 0
  %v691 = vsel %vm239, %v188, 0
  %v694 = vsel %vm239, %v189, 0
  %v697 = vsel %vm239, %v190, 0
  %v700 = vsel %vm239, %v191, 0
  %v703 = vsel %vm239, %v192, 0
  %v706 = vsel %vm239, %v193, 0
  %v709 = vsel %vm239, %v194, 0
  %v712 = vsel %vm239, %v195, 0
  %v715 = vsel %vm239, %v196, 0
  %v718 = vsel %vm239, %v197, 0
  %v721 = vsel %vm239, %v198, 0
  %v724 = vsel %vm239, %v199, 0
  %v727 = vsel %vm239, %v200, 0
  %v730 = vsel %vm239, %v201, 0
  %v733 = vsel %vm239, %v202, 0
  %v736 = vsel %vm239, %v203, 0
  %v739 = vsel %vm239, %v204, 0
  %v742 = vsel %vm239, %v205, 0
  %v745 = vsel %vm239, %v206, 0
  %v748 = vsel %vm239, %v207, 0
  %v751 = vsel %vm239, %v208, 0
  %v754 = vsel %vm239, %v209, 0
  %v757 = vsel %vm239, %v210, 0
  %v760 = vsel %vm239, %v211, 0
  %v763 = vsel %vm239, %v212, 0
  %v766 = vsel %vm239, %v213, 0
  %v769 = vsel %vm239, %v214, 0
  %v772 = vsel %vm239, %v215, 0
  %v775 = vsel %vm239, %v216, 0
  %v778 = vsel %vm239, %v217, 0
  %v781 = vsel %vm239, %v218, 0
  %v784 = vsel %vm239, %v219, 0
  %v787 = vsel %vm239, %v220, 0
  %v790 = vsel %vm239, %v221, 0
  %v793 = vsel %vm239, %v222, 0
  %v796 = vsel %vm239, %v223, 0
  %v799 = vsel %vm239, %v224, 0
  %v802 = vsel %vm239, %v225, 0
  %v805 = vsel %vm239, %v226, 0
  %v808 = vsel %vm239, %v227, 0
  %v811 = vsel %vm239, %v228, 0
  %v814 = vsel %vm239, %v229, 0
  %v817 = vsel %vm239, %v230, 0
  %v820 = vsel %vm239, %v231, 0
  %v823 = vsel %vm239, %v232, 0
  %v826 = vsel %vm239, %v233, 0
  %vm828 = vcmask 1043456
  %v830 = vsel %vm828, %v238, 0
  %832 = vmatprep.subr.mxu0 0.0
  %833 = vmatpush1.msra.mxu0 %v234
  %834 = vmatprep.subr.mxu0 0.0
  %835 = vmatpush1.msra.mxu0 %v235
  %836 = vmatprep.subr.mxu0 0.0
  %837 = vmatpush1.msra.mxu0 %v236
  %838 = vmatprep.subr.mxu0 0.0
  %839 = vmatpush1.msra.mxu0 %v237
  %840 = vmatprep.subr.mxu0 0.0
  %841 = vmatpush1.msra.mxu0 %v830
  %842 = vmatprep.subr.mxu0 0.0
  %843 = vmatpush1.msra.mxu0 0.0
  %844 = vmatprep.subr.mxu0 0.0
  %845 = vmatpush1.msra.mxu0 0.0
  %846 = vmatprep.subr.mxu0 0.0
  %847 = vmatpush1.msra.mxu0 0.0
  %848 = vmatprep.subr.mxu0 0.0
  %849 = vmatpush1.msra.mxu0 0.0
  %850 = vmatprep.subr.mxu0 0.0
  %851 = vmatpush1.msra.mxu0 0.0
  %852 = vmatprep.subr.mxu0 0.0
  %853 = vmatpush1.msra.mxu0 0.0
  %854 = vmatprep.subr.mxu0 0.0
  %855 = vmatpush1.msra.mxu0 0.0
  %856 = vmatprep.subr.mxu0 0.0
  %857 = vmatpush1.msra.mxu0 0.0
  %858 = vmatprep.subr.mxu0 0.0
  %859 = vmatpush1.msra.mxu0 0.0
  %860 = vmatprep.subr.mxu0 0.0
  %861 = vmatpush1.msra.mxu0 0.0
  %862 = vmatprep.subr.mxu0 0.0
  %863 = vmatpush1.msra.mxu0 0.0
  %864 = vmatprep.subr.mxu0 0.0
  %865 = vmatpush1.msra.mxu0 0.0
  %866 = vmatprep.subr.mxu0 0.0
  %867 = vmatpush1.msra.mxu0 0.0
  %868 = vmatprep.subr.mxu0 0.0
  %869 = vmatpush1.msra.mxu0 0.0
  %870 = vmatprep.subr.mxu0 0.0
  %871 = vmatpush1.msra.mxu0 0.0
  %872 = vmatprep.subr.mxu0 0.0
  %873 = vmatpush1.msra.mxu0 0.0
  %874 = vmatprep.subr.mxu0 0.0
  %875 = vmatpush1.msra.mxu0 0.0
  %876 = vmatprep.subr.mxu0 0.0
  %877 = vmatpush1.msra.mxu0 0.0
  %878 = vmatprep.subr.mxu0 0.0
  %879 = vmatpush1.msra.mxu0 0.0
  %880 = vmatprep.subr.mxu0 0.0
  %881 = vmatpush1.msra.mxu0 0.0
  %882 = vmatprep.subr.mxu0 0.0
  %883 = vmatpush1.msra.mxu0 0.0
  %884 = vmatprep.subr.mxu0 0.0
  %885 = vmatpush1.msra.mxu0 0.0
  %886 = vmatprep.subr.mxu0 0.0
  %887 = vmatpush1.msra.mxu0 0.0
  %888 = vmatprep.subr.mxu0 0.0
  %889 = vmatpush1.msra.mxu0 0.0
  %890 = vmatprep.subr.mxu0 0.0
  %891 = vmatpush1.msra.mxu0 0.0
  %892 = vmatprep.subr.mxu0 0.0
  %893 = vmatpush1.msra.mxu0 0.0
  %894 = vmatprep.subr.mxu0 0.0
  %895 = vmatpush1.msra.mxu0 0.0
  %896 = vmatprep.mubr.f32.mxu0 0.0
  %897 = vmatmul.mubr.f32.gmra.mrb[0].mxu0 %v241
  %v898 = vpop.f32.mrb[0].mxu0
  %v899 = vadd.f32 0.0, %v898
  %v900 = vpop.f32.mrb[0].mxu0
  %901 = vmatprep.mubr.f32.mxu0 0.0
  %902 = vmatmul.mubr.f32.gmra.mrb[0].mxu0 %v244
  %v903 = vpop.f32.mrb[0].mxu0
  %v904 = vadd.f32 0.0, %v903
  %v905 = vpop.f32.mrb[0].mxu0
  %906 = vmatprep.mubr.f32.mxu0 0.0
  %907 = vmatmul.mubr.f32.gmra.mrb[0].mxu0 %v247
  %v908 = vpop.f32.mrb[0].mxu0
  %v909 = vadd.f32 0.0, %v908
  %v910 = vpop.f32.mrb[0].mxu0
  %911 = vmatprep.mubr.f32.mxu0 0.0
  %912 = vmatmul.mubr.f32.gmra.mrb[0].mxu0 %v250
  %v913 = vpop.f32.mrb[0].mxu0
  %v914 = vadd.f32 0.0, %v913
  %v915 = vpop.f32.mrb[0].mxu0
  %916 = vmatprep.mubr.f32.mxu0 0.0
  %917 = vmatmul.mubr.f32.gmra.mrb[0].mxu0 %v253
  %v918 = vpop.f32.mrb[0].mxu0
  %v919 = vadd.f32 0.0, %v918
  %v920 = vpop.f32.mrb[0].mxu0
  %921 = vmatprep.mubr.f32.mxu0 0.0
  %922 = vmatmul.mubr.f32.gmra.mrb[0].mxu0 %v256
  %v923 = vpop.f32.mrb[0].mxu0
  %v924 = vadd.f32 0.0, %v923
  %v925 = vpop.f32.mrb[0].mxu0
  %926 = vmatprep.mubr.f32.mxu0 0.0
  %927 = vmatmul.mubr.f32.gmra.mrb[0].mxu0 %v259
  %v928 = vpop.f32.mrb[0].mxu0
  %v929 = vadd.f32 0.0, %v928
  %v930 = vpop.f32.mrb[0].mxu0
  %931 = vmatprep.mubr.f32.mxu0 0.0
  %932 = vmatmul.mubr.f32.gmra.mrb[0].mxu0 %v262
  %v933 = vpop.f32.mrb[0].mxu0
  %v934 = vadd.f32 0.0, %v933
  %v935 = vpop.f32.mrb[0].mxu0
  %936 = vmatprep.mubr.f32.mxu0 0.0
  %937 = vmatmul.mubr.f32.gmra.mrb[0].mxu0 %v265
  %v938 = vpop.f32.mrb[0].mxu0
  %v939 = vadd.f32 0.0, %v938
  %v940 = vpop.f32.mrb[0].mxu0
  %941 = vmatprep.mubr.f32.mxu0 0.0
  %942 = vmatmul.mubr.f32.gmra.mrb[0].mxu0 %v268
  %v943 = vpop.f32.mrb[0].mxu0
  %v944 = vadd.f32 0.0, %v943
  %v945 = vpop.f32.mrb[0].mxu0
  %946 = vmatprep.mubr.f32.mxu0 0.0
  %947 = vmatmul.mubr.f32.gmra.mrb[0].mxu0 %v271
  %v948 = vpop.f32.mrb[0].mxu0
  %v949 = vadd.f32 0.0, %v948
  %v950 = vpop.f32.mrb[0].mxu0
  %951 = vmatprep.mubr.f32.mxu0 0.0
  %952 = vmatmul.mubr.f32.gmra.mrb[0].mxu0 %v274
  %v953 = vpop.f32.mrb[0].mxu0
  %v954 = vadd.f32 0.0, %v953
  %v955 = vpop.f32.mrb[0].mxu0
  %956 = vmatprep.mubr.f32.mxu0 0.0
  %957 = vmatmul.mubr.f32.gmra.mrb[0].mxu0 %v277
  %v958 = vpop.f32.mrb[0].mxu0
  %v959 = vadd.f32 0.0, %v958
  %v960 = vpop.f32.mrb[0].mxu0
  %961 = vmatprep.mubr.f32.mxu0 0.0
  %962 = vmatmul.mubr.f32.gmra.mrb[0].mxu0 %v280
  %v963 = vpop.f32.mrb[0].mxu0
  %v964 = vadd.f32 0.0, %v963
  %v965 = vpop.f32.mrb[0].mxu0
  %966 = vmatprep.mubr.f32.mxu0 0.0
  %967 = vmatmul.mubr.f32.gmra.mrb[0].mxu0 %v283
  %v968 = vpop.f32.mrb[0].mxu0
  %v969 = vadd.f32 0.0, %v968
  %v970 = vpop.f32.mrb[0].mxu0
  %971 = vmatprep.mubr.f32.mxu0 0.0
  %972 = vmatmul.mubr.f32.gmra.mrb[0].mxu0 %v286
  %v973 = vpop.f32.mrb[0].mxu0
  %v974 = vadd.f32 0.0, %v973
  %v975 = vpop.f32.mrb[0].mxu0
  %976 = vmatprep.mubr.f32.mxu0 0.0
  %977 = vmatmul.mubr.f32.gmra.mrb[0].mxu0 %v289
  %v978 = vpop.f32.mrb[0].mxu0
  %v979 = vadd.f32 0.0, %v978
  %v980 = vpop.f32.mrb[0].mxu0
  %981 = vmatprep.mubr.f32.mxu0 0.0
  %982 = vmatmul.mubr.f32.gmra.mrb[0].mxu0 %v292
  %v983 = vpop.f32.mrb[0].mxu0
  %v984 = vadd.f32 0.0, %v983
  %v985 = vpop.f32.mrb[0].mxu0
  %986 = vmatprep.mubr.f32.mxu0 0.0
  %987 = vmatmul.mubr.f32.gmra.mrb[0].mxu0 %v295
  %v988 = vpop.f32.mrb[0].mxu0
  %v989 = vadd.f32 0.0, %v988
  %v990 = vpop.f32.mrb[0].mxu0
  %991 = vmatprep.mubr.f32.mxu0 0.0
  %992 = vmatmul.mubr.f32.gmra.mrb[0].mxu0 %v298
  %v993 = vpop.f32.mrb[0].mxu0
  %v994 = vadd.f32 0.0, %v993
  %v995 = vpop.f32.mrb[0].mxu0
  %996 = vmatprep.mubr.f32.mxu0 0.0
  %997 = vmatmul.mubr.f32.gmra.mrb[0].mxu0 %v301
  %v998 = vpop.f32.mrb[0].mxu0
  %v999 = vadd.f32 0.0, %v998
  %v1000 = vpop.f32.mrb[0].mxu0
  %1001 = vmatprep.mubr.f32.mxu0 0.0
  %1002 = vmatmul.mubr.f32.gmra.mrb[0].mxu0 %v304
  %v1003 = vpop.f32.mrb[0].mxu0
  %v1004 = vadd.f32 0.0, %v1003
  %v1005 = vpop.f32.mrb[0].mxu0
  %1006 = vmatprep.mubr.f32.mxu0 0.0
  %1007 = vmatmul.mubr.f32.gmra.mrb[0].mxu0 %v307
  %v1008 = vpop.f32.mrb[0].mxu0
  %v1009 = vadd.f32 0.0, %v1008
  %v1010 = vpop.f32.mrb[0].mxu0
  %1011 = vmatprep.mubr.f32.mxu0 0.0
  %1012 = vmatmul.mubr.f32.gmra.mrb[0].mxu0 %v310
  %v1013 = vpop.f32.mrb[0].mxu0
  %v1014 = vadd.f32 0.0, %v1013
  %v1015 = vpop.f32.mrb[0].mxu0
  %1016 = vmatprep.mubr.f32.mxu0 0.0
  %1017 = vmatmul.mubr.f32.gmra.mrb[0].mxu0 %v313
  %v1018 = vpop.f32.mrb[0].mxu0
  %v1019 = vadd.f32 0.0, %v1018
  %v1020 = vpop.f32.mrb[0].mxu0
  %1021 = vmatprep.mubr.f32.mxu0 0.0
  %1022 = vmatmul.mubr.f32.gmra.mrb[0].mxu0 %v316
  %v1023 = vpop.f32.mrb[0].mxu0
  %v1024 = vadd.f32 0.0, %v1023
  %v1025 = vpop.f32.mrb[0].mxu0
  %1026 = vmatprep.mubr.f32.mxu0 0.0
  %1027 = vmatmul.mubr.f32.gmra.mrb[0].mxu0 %v319
  %v1028 = vpop.f32.mrb[0].mxu0
  %v1029 = vadd.f32 0.0, %v1028
  %v1030 = vpop.f32.mrb[0].mxu0
  %1031 = vmatprep.mubr.f32.mxu0 0.0
  %1032 = vmatmul.mubr.f32.gmra.mrb[0].mxu0 %v322
  %v1033 = vpop.f32.mrb[0].mxu0
  %v1034 = vadd.f32 0.0, %v1033
  %v1035 = vpop.f32.mrb[0].mxu0
  %1036 = vmatprep.mubr.f32.mxu0 0.0
  %1037 = vmatmul.mubr.f32.gmra.mrb[0].mxu0 %v325
  %v1038 = vpop.f32.mrb[0].mxu0
  %v1039 = vadd.f32 0.0, %v1038
  %v1040 = vpop.f32.mrb[0].mxu0
  %1041 = vmatprep.mubr.f32.mxu0 0.0
  %1042 = vmatmul.mubr.f32.gmra.mrb[0].mxu0 %v328
  %v1043 = vpop.f32.mrb[0].mxu0
  %v1044 = vadd.f32 0.0, %v1043
  %v1045 = vpop.f32.mrb[0].mxu0
  %1046 = vmatprep.mubr.f32.mxu0 0.0
  %1047 = vmatmul.mubr.f32.gmra.mrb[0].mxu0 %v331
  %v1048 = vpop.f32.mrb[0].mxu0
  %v1049 = vadd.f32 0.0, %v1048
  %v1050 = vpop.f32.mrb[0].mxu0
  %1051 = vmatprep.mubr.f32.mxu0 0.0
  %1052 = vmatmul.mubr.f32.gmra.mrb[0].mxu0 %v334
  %v1053 = vpop.f32.mrb[0].mxu0
  %v1054 = vadd.f32 0.0, %v1053
  %v1055 = vpop.f32.mrb[0].mxu0
  %1056 = vmatprep.mubr.f32.mxu0 0.0
  %1057 = vmatmul.mubr.f32.gmra.mrb[0].mxu0 %v337
  %v1058 = vpop.f32.mrb[0].mxu0
  %v1059 = vadd.f32 0.0, %v1058
  %v1060 = vpop.f32.mrb[0].mxu0
  %1061 = vmatprep.mubr.f32.mxu0 0.0
  %1062 = vmatmul.mubr.f32.gmra.mrb[0].mxu0 %v340
  %v1063 = vpop.f32.mrb[0].mxu0
  %v1064 = vadd.f32 0.0, %v1063
  %v1065 = vpop.f32.mrb[0].mxu0
  %1066 = vmatprep.mubr.f32.mxu0 0.0
  %1067 = vmatmul.mubr.f32.gmra.mrb[0].mxu0 %v343
  %v1068 = vpop.f32.mrb[0].mxu0
  %v1069 = vadd.f32 0.0, %v1068
  %v1070 = vpop.f32.mrb[0].mxu0
  %1071 = vmatprep.mubr.f32.mxu0 0.0
  %1072 = vmatmul.mubr.f32.gmra.mrb[0].mxu0 %v346
  %v1073 = vpop.f32.mrb[0].mxu0
  %v1074 = vadd.f32 0.0, %v1073
  %v1075 = vpop.f32.mrb[0].mxu0
  %1076 = vmatprep.mubr.f32.mxu0 0.0
  %1077 = vmatmul.mubr.f32.gmra.mrb[0].mxu0 %v349
  %v1078 = vpop.f32.mrb[0].mxu0
  %v1079 = vadd.f32 0.0, %v1078
  %v1080 = vpop.f32.mrb[0].mxu0
  %1081 = vmatprep.mubr.f32.mxu0 0.0
  %1082 = vmatmul.mubr.f32.gmra.mrb[0].mxu0 %v352
  %v1083 = vpop.f32.mrb[0].mxu0
  %v1084 = vadd.f32 0.0, %v1083
  %v1085 = vpop.f32.mrb[0].mxu0
  %1086 = vmatprep.mubr.f32.mxu0 0.0
  %1087 = vmatmul.mubr.f32.gmra.mrb[0].mxu0 %v355
  %v1088 = vpop.f32.mrb[0].mxu0
  %v1089 = vadd.f32 0.0, %v1088
  %v1090 = vpop.f32.mrb[0].mxu0
  %1091 = vmatprep.mubr.f32.mxu0 0.0
  %1092 = vmatmul.mubr.f32.gmra.mrb[0].mxu0 %v358
  %v1093 = vpop.f32.mrb[0].mxu0
  %v1094 = vadd.f32 0.0, %v1093
  %v1095 = vpop.f32.mrb[0].mxu0
  %1096 = vmatprep.mubr.f32.mxu0 0.0
  %1097 = vmatmul.mubr.f32.gmra.mrb[0].mxu0 %v361
  %v1098 = vpop.f32.mrb[0].mxu0
  %v1099 = vadd.f32 0.0, %v1098
  %v1100 = vpop.f32.mrb[0].mxu0
  %1101 = vmatprep.mubr.f32.mxu0 0.0
  %1102 = vmatmul.mubr.f32.gmra.mrb[0].mxu0 %v364
  %v1103 = vpop.f32.mrb[0].mxu0
  %v1104 = vadd.f32 0.0, %v1103
  %v1105 = vpop.f32.mrb[0].mxu0
  %1106 = vmatprep.mubr.f32.mxu0 0.0
  %1107 = vmatmul.mubr.f32.gmra.mrb[0].mxu0 %v367
  %v1108 = vpop.f32.mrb[0].mxu0
  %v1109 = vadd.f32 0.0, %v1108
  %v1110 = vpop.f32.mrb[0].mxu0
  %1111 = vmatprep.mubr.f32.mxu0 0.0
  %1112 = vmatmul.mubr.f32.gmra.mrb[0].mxu0 %v370
  %v1113 = vpop.f32.mrb[0].mxu0
  %v1114 = vadd.f32 0.0, %v1113
  %v1115 = vpop.f32.mrb[0].mxu0
  %1116 = vmatprep.mubr.f32.mxu0 0.0
  %1117 = vmatmul.mubr.f32.gmra.mrb[0].mxu0 %v373
  %v1118 = vpop.f32.mrb[0].mxu0
  %v1119 = vadd.f32 0.0, %v1118
  %v1120 = vpop.f32.mrb[0].mxu0
  %1121 = vmatprep.mubr.f32.mxu0 0.0
  %1122 = vmatmul.mubr.f32.gmra.mrb[0].mxu0 %v376
  %v1123 = vpop.f32.mrb[0].mxu0
  %v1124 = vadd.f32 0.0, %v1123
  %v1125 = vpop.f32.mrb[0].mxu0
  %1126 = vmatprep.mubr.f32.mxu0 0.0
  %1127 = vmatmul.mubr.f32.gmra.mrb[0].mxu0 %v379
  %v1128 = vpop.f32.mrb[0].mxu0
  %v1129 = vadd.f32 0.0, %v1128
  %v1130 = vpop.f32.mrb[0].mxu0
  %1131 = vmatprep.mubr.f32.mxu0 0.0
  %1132 = vmatmul.mubr.f32.gmra.mrb[0].mxu0 %v382
  %v1133 = vpop.f32.mrb[0].mxu0
  %v1134 = vadd.f32 0.0, %v1133
  %v1135 = vpop.f32.mrb[0].mxu0
  %1136 = vmatprep.mubr.f32.mxu0 0.0
  %1137 = vmatmul.mubr.f32.gmra.mrb[0].mxu0 %v385
  %v1138 = vpop.f32.mrb[0].mxu0
  %v1139 = vadd.f32 0.0, %v1138
  %v1140 = vpop.f32.mrb[0].mxu0
  %1141 = vmatprep.mubr.f32.mxu0 0.0
  %1142 = vmatmul.mubr.f32.gmra.mrb[0].mxu0 %v388
  %v1143 = vpop.f32.mrb[0].mxu0
  %v1144 = vadd.f32 0.0, %v1143
  %v1145 = vpop.f32.mrb[0].mxu0
  %1146 = vmatprep.mubr.f32.mxu0 0.0
  %1147 = vmatmul.mubr.f32.gmra.mrb[0].mxu0 %v391
  %v1148 = vpop.f32.mrb[0].mxu0
  %v1149 = vadd.f32 0.0, %v1148
  %v1150 = vpop.f32.mrb[0].mxu0
  %1151 = vmatprep.mubr.f32.mxu0 0.0
  %1152 = vmatmul.mubr.f32.gmra.mrb[0].mxu0 %v394
  %v1153 = vpop.f32.mrb[0].mxu0
  %v1154 = vadd.f32 0.0, %v1153
  %v1155 = vpop.f32.mrb[0].mxu0
  %1156 = vmatprep.mubr.f32.mxu0 0.0
  %1157 = vmatmul.mubr.f32.gmra.mrb[0].mxu0 %v397
  %v1158 = vpop.f32.mrb[0].mxu0
  %v1159 = vadd.f32 0.0, %v1158
  %v1160 = vpop.f32.mrb[0].mxu0
  %1161 = vmatprep.mubr.f32.mxu0 0.0
  %1162 = vmatmul.mubr.f32.gmra.mrb[0].mxu0 %v400
  %v1163 = vpop.f32.mrb[0].mxu0
  %v1164 = vadd.f32 0.0, %v1163
  %v1165 = vpop.f32.mrb[0].mxu0
  %1166 = vmatprep.mubr.f32.mxu0 0.0
  %1167 = vmatmul.mubr.f32.gmra.mrb[0].mxu0 %v403
  %v1168 = vpop.f32.mrb[0].mxu0
  %v1169 = vadd.f32 0.0, %v1168
  %v1170 = vpop.f32.mrb[0].mxu0
  %1171 = vmatprep.mubr.f32.mxu0 0.0
  %1172 = vmatmul.mubr.f32.gmra.mrb[0].mxu0 %v406
  %v1173 = vpop.f32.mrb[0].mxu0
  %v1174 = vadd.f32 0.0, %v1173
  %v1175 = vpop.f32.mrb[0].mxu0
  %1176 = vmatprep.mubr.f32.mxu0 0.0
  %1177 = vmatmul.mubr.f32.gmra.mrb[0].mxu0 %v409
  %v1178 = vpop.f32.mrb[0].mxu0
  %v1179 = vadd.f32 0.0, %v1178
  %v1180 = vpop.f32.mrb[0].mxu0
  %1181 = vmatprep.mubr.f32.mxu0 0.0
  %1182 = vmatmul.mubr.f32.gmra.mrb[0].mxu0 %v412
  %v1183 = vpop.f32.mrb[0].mxu0
  %v1184 = vadd.f32 0.0, %v1183
  %v1185 = vpop.f32.mrb[0].mxu0
  %1186 = vmatprep.mubr.f32.mxu0 0.0
  %1187 = vmatmul.mubr.f32.gmra.mrb[0].mxu0 %v415
  %v1188 = vpop.f32.mrb[0].mxu0
  %v1189 = vadd.f32 0.0, %v1188
  %v1190 = vpop.f32.mrb[0].mxu0
  %1191 = vmatprep.mubr.f32.mxu0 0.0
  %1192 = vmatmul.mubr.f32.gmra.mrb[0].mxu0 %v418
  %v1193 = vpop.f32.mrb[0].mxu0
  %v1194 = vadd.f32 0.0, %v1193
  %v1195 = vpop.f32.mrb[0].mxu0
  %1196 = vmatprep.mubr.f32.mxu0 0.0
  %1197 = vmatmul.mubr.f32.gmra.mrb[0].mxu0 %v421
  %v1198 = vpop.f32.mrb[0].mxu0
  %v1199 = vadd.f32 0.0, %v1198
  %v1200 = vpop.f32.mrb[0].mxu0
  %1201 = vmatprep.mubr.f32.mxu0 0.0
  %1202 = vmatmul.mubr.f32.gmra.mrb[0].mxu0 %v424
  %v1203 = vpop.f32.mrb[0].mxu0
  %v1204 = vadd.f32 0.0, %v1203
  %v1205 = vpop.f32.mrb[0].mxu0
  %1206 = vmatprep.mubr.f32.mxu0 0.0
  %1207 = vmatmul.mubr.f32.gmra.mrb[0].mxu0 %v427
  %v1208 = vpop.f32.mrb[0].mxu0
  %v1209 = vadd.f32 0.0, %v1208
  %v1210 = vpop.f32.mrb[0].mxu0
  %1211 = vmatprep.mubr.f32.mxu0 0.0
  %1212 = vmatmul.mubr.f32.gmra.mrb[0].mxu0 %v430
  %v1213 = vpop.f32.mrb[0].mxu0
  %v1214 = vadd.f32 0.0, %v1213
  %v1215 = vpop.f32.mrb[0].mxu0
  %1216 = vmatprep.mubr.f32.mxu0 0.0
  %1217 = vmatmul.mubr.f32.gmra.mrb[0].mxu0 %v433
  %v1218 = vpop.f32.mrb[0].mxu0
  %v1219 = vadd.f32 0.0, %v1218
  %v1220 = vpop.f32.mrb[0].mxu0
  %1221 = vmatprep.mubr.f32.mxu0 0.0
  %1222 = vmatmul.mubr.f32.gmra.mrb[0].mxu0 %v436
  %v1223 = vpop.f32.mrb[0].mxu0
  %v1224 = vadd.f32 0.0, %v1223
  %v1225 = vpop.f32.mrb[0].mxu0
  %1226 = vmatprep.mubr.f32.mxu0 0.0
  %1227 = vmatmul.mubr.f32.gmra.mrb[0].mxu0 %v439
  %v1228 = vpop.f32.mrb[0].mxu0
  %v1229 = vadd.f32 0.0, %v1228
  %v1230 = vpop.f32.mrb[0].mxu0
  %1231 = vmatprep.mubr.f32.mxu0 0.0
  %1232 = vmatmul.mubr.f32.gmra.mrb[0].mxu0 %v442
  %v1233 = vpop.f32.mrb[0].mxu0
  %v1234 = vadd.f32 0.0, %v1233
  %v1235 = vpop.f32.mrb[0].mxu0
  %1236 = vmatprep.mubr.f32.mxu0 0.0
  %1237 = vmatmul.mubr.f32.gmra.mrb[0].mxu0 %v445
  %v1238 = vpop.f32.mrb[0].mxu0
  %v1239 = vadd.f32 0.0, %v1238
  %v1240 = vpop.f32.mrb[0].mxu0
  %1241 = vmatprep.mubr.f32.mxu0 0.0
  %1242 = vmatmul.mubr.f32.gmra.mrb[0].mxu0 %v448
  %v1243 = vpop.f32.mrb[0].mxu0
  %v1244 = vadd.f32 0.0, %v1243
  %v1245 = vpop.f32.mrb[0].mxu0
  %1246 = vmatprep.mubr.f32.mxu0 0.0
  %1247 = vmatmul.mubr.f32.gmra.mrb[0].mxu0 %v451
  %v1248 = vpop.f32.mrb[0].mxu0
  %v1249 = vadd.f32 0.0, %v1248
  %v1250 = vpop.f32.mrb[0].mxu0
  %1251 = vmatprep.mubr.f32.mxu0 0.0
  %1252 = vmatmul.mubr.f32.gmra.mrb[0].mxu0 %v454
  %v1253 = vpop.f32.mrb[0].mxu0
  %v1254 = vadd.f32 0.0, %v1253
  %v1255 = vpop.f32.mrb[0].mxu0
  %1256 = vmatprep.mubr.f32.mxu0 0.0
  %1257 = vmatmul.mubr.f32.gmra.mrb[0].mxu0 %v457
  %v1258 = vpop.f32.mrb[0].mxu0
  %v1259 = vadd.f32 0.0, %v1258
  %v1260 = vpop.f32.mrb[0].mxu0
  %1261 = vmatprep.mubr.f32.mxu0 0.0
  %1262 = vmatmul.mubr.f32.gmra.mrb[0].mxu0 %v460
  %v1263 = vpop.f32.mrb[0].mxu0
  %v1264 = vadd.f32 0.0, %v1263
  %v1265 = vpop.f32.mrb[0].mxu0
  %1266 = vmatprep.mubr.f32.mxu0 0.0
  %1267 = vmatmul.mubr.f32.gmra.mrb[0].mxu0 %v463
  %v1268 = vpop.f32.mrb[0].mxu0
  %v1269 = vadd.f32 0.0, %v1268
  %v1270 = vpop.f32.mrb[0].mxu0
  %1271 = vmatprep.mubr.f32.mxu0 0.0
  %1272 = vmatmul.mubr.f32.gmra.mrb[0].mxu0 %v466
  %v1273 = vpop.f32.mrb[0].mxu0
  %v1274 = vadd.f32 0.0, %v1273
  %v1275 = vpop.f32.mrb[0].mxu0
  %1276 = vmatprep.mubr.f32.mxu0 0.0
  %1277 = vmatmul.mubr.f32.gmra.mrb[0].mxu0 %v469
  %v1278 = vpop.f32.mrb[0].mxu0
  %v1279 = vadd.f32 0.0, %v1278
  %v1280 = vpop.f32.mrb[0].mxu0
  %1281 = vmatprep.mubr.f32.mxu0 0.0
  %1282 = vmatmul.mubr.f32.gmra.mrb[0].mxu0 %v472
  %v1283 = vpop.f32.mrb[0].mxu0
  %v1284 = vadd.f32 0.0, %v1283
  %v1285 = vpop.f32.mrb[0].mxu0
  %1286 = vmatprep.mubr.f32.mxu0 0.0
  %1287 = vmatmul.mubr.f32.gmra.mrb[0].mxu0 %v475
  %v1288 = vpop.f32.mrb[0].mxu0
  %v1289 = vadd.f32 0.0, %v1288
  %v1290 = vpop.f32.mrb[0].mxu0
  %1291 = vmatprep.mubr.f32.mxu0 0.0
  %1292 = vmatmul.mubr.f32.gmra.mrb[0].mxu0 %v478
  %v1293 = vpop.f32.mrb[0].mxu0
  %v1294 = vadd.f32 0.0, %v1293
  %v1295 = vpop.f32.mrb[0].mxu0
  %1296 = vmatprep.mubr.f32.mxu0 0.0
  %1297 = vmatmul.mubr.f32.gmra.mrb[0].mxu0 %v481
  %v1298 = vpop.f32.mrb[0].mxu0
  %v1299 = vadd.f32 0.0, %v1298
  %v1300 = vpop.f32.mrb[0].mxu0
  %1301 = vmatprep.mubr.f32.mxu0 0.0
  %1302 = vmatmul.mubr.f32.gmra.mrb[0].mxu0 %v484
  %v1303 = vpop.f32.mrb[0].mxu0
  %v1304 = vadd.f32 0.0, %v1303
  %v1305 = vpop.f32.mrb[0].mxu0
  %1306 = vmatprep.mubr.f32.mxu0 0.0
  %1307 = vmatmul.mubr.f32.gmra.mrb[0].mxu0 %v487
  %v1308 = vpop.f32.mrb[0].mxu0
  %v1309 = vadd.f32 0.0, %v1308
  %v1310 = vpop.f32.mrb[0].mxu0
  %1311 = vmatprep.mubr.f32.mxu0 0.0
  %1312 = vmatmul.mubr.f32.gmra.mrb[0].mxu0 %v490
  %v1313 = vpop.f32.mrb[0].mxu0
  %v1314 = vadd.f32 0.0, %v1313
  %v1315 = vpop.f32.mrb[0].mxu0
  %1316 = vmatprep.mubr.f32.mxu0 0.0
  %1317 = vmatmul.mubr.f32.gmra.mrb[0].mxu0 %v493
  %v1318 = vpop.f32.mrb[0].mxu0
  %v1319 = vadd.f32 0.0, %v1318
  %v1320 = vpop.f32.mrb[0].mxu0
  %1321 = vmatprep.mubr.f32.mxu0 0.0
  %1322 = vmatmul.mubr.f32.gmra.mrb[0].mxu0 %v496
  %v1323 = vpop.f32.mrb[0].mxu0
  %v1324 = vadd.f32 0.0, %v1323
  %v1325 = vpop.f32.mrb[0].mxu0
  %1326 = vmatprep.mubr.f32.mxu0 0.0
  %1327 = vmatmul.mubr.f32.gmra.mrb[0].mxu0 %v499
  %v1328 = vpop.f32.mrb[0].mxu0
  %v1329 = vadd.f32 0.0, %v1328
  %v1330 = vpop.f32.mrb[0].mxu0
  %1331 = vmatprep.mubr.f32.mxu0 0.0
  %1332 = vmatmul.mubr.f32.gmra.mrb[0].mxu0 %v502
  %v1333 = vpop.f32.mrb[0].mxu0
  %v1334 = vadd.f32 0.0, %v1333
  %v1335 = vpop.f32.mrb[0].mxu0
  %1336 = vmatprep.mubr.f32.mxu0 0.0
  %1337 = vmatmul.mubr.f32.gmra.mrb[0].mxu0 %v505
  %v1338 = vpop.f32.mrb[0].mxu0
  %v1339 = vadd.f32 0.0, %v1338
  %v1340 = vpop.f32.mrb[0].mxu0
  %1341 = vmatprep.mubr.f32.mxu0 0.0
  %1342 = vmatmul.mubr.f32.gmra.mrb[0].mxu0 %v508
  %v1343 = vpop.f32.mrb[0].mxu0
  %v1344 = vadd.f32 0.0, %v1343
  %v1345 = vpop.f32.mrb[0].mxu0
  %1346 = vmatprep.mubr.f32.mxu0 0.0
  %1347 = vmatmul.mubr.f32.gmra.mrb[0].mxu0 %v511
  %v1348 = vpop.f32.mrb[0].mxu0
  %v1349 = vadd.f32 0.0, %v1348
  %v1350 = vpop.f32.mrb[0].mxu0
  %1351 = vmatprep.mubr.f32.mxu0 0.0
  %1352 = vmatmul.mubr.f32.gmra.mrb[0].mxu0 %v514
  %v1353 = vpop.f32.mrb[0].mxu0
  %v1354 = vadd.f32 0.0, %v1353
  %v1355 = vpop.f32.mrb[0].mxu0
  %1356 = vmatprep.mubr.f32.mxu0 0.0
  %1357 = vmatmul.mubr.f32.gmra.mrb[0].mxu0 %v517
  %v1358 = vpop.f32.mrb[0].mxu0
  %v1359 = vadd.f32 0.0, %v1358
  %v1360 = vpop.f32.mrb[0].mxu0
  %1361 = vmatprep.mubr.f32.mxu0 0.0
  %1362 = vmatmul.mubr.f32.gmra.mrb[0].mxu0 %v520
  %v1363 = vpop.f32.mrb[0].mxu0
  %v1364 = vadd.f32 0.0, %v1363
  %v1365 = vpop.f32.mrb[0].mxu0
  %1366 = vmatprep.mubr.f32.mxu0 0.0
  %1367 = vmatmul.mubr.f32.gmra.mrb[0].mxu0 %v523
  %v1368 = vpop.f32.mrb[0].mxu0
  %v1369 = vadd.f32 0.0, %v1368
  %v1370 = vpop.f32.mrb[0].mxu0
  %1371 = vmatprep.mubr.f32.mxu0 0.0
  %1372 = vmatmul.mubr.f32.gmra.mrb[0].mxu0 %v526
  %v1373 = vpop.f32.mrb[0].mxu0
  %v1374 = vadd.f32 0.0, %v1373
  %v1375 = vpop.f32.mrb[0].mxu0
  %1376 = vmatprep.mubr.f32.mxu0 0.0
  %1377 = vmatmul.mubr.f32.gmra.mrb[0].mxu0 %v529
  %v1378 = vpop.f32.mrb[0].mxu0
  %v1379 = vadd.f32 0.0, %v1378
  %v1380 = vpop.f32.mrb[0].mxu0
  %1381 = vmatprep.mubr.f32.mxu0 0.0
  %1382 = vmatmul.mubr.f32.gmra.mrb[0].mxu0 %v532
  %v1383 = vpop.f32.mrb[0].mxu0
  %v1384 = vadd.f32 0.0, %v1383
  %v1385 = vpop.f32.mrb[0].mxu0
  %1386 = vmatprep.mubr.f32.mxu0 0.0
  %1387 = vmatmul.mubr.f32.gmra.mrb[0].mxu0 %v535
  %v1388 = vpop.f32.mrb[0].mxu0
  %v1389 = vadd.f32 0.0, %v1388
  %v1390 = vpop.f32.mrb[0].mxu0
  %1391 = vmatprep.mubr.f32.mxu0 0.0
  %1392 = vmatmul.mubr.f32.gmra.mrb[0].mxu0 %v538
  %v1393 = vpop.f32.mrb[0].mxu0
  %v1394 = vadd.f32 0.0, %v1393
  %v1395 = vpop.f32.mrb[0].mxu0
  %1396 = vmatprep.mubr.f32.mxu0 0.0
  %1397 = vmatmul.mubr.f32.gmra.mrb[0].mxu0 %v541
  %v1398 = vpop.f32.mrb[0].mxu0
  %v1399 = vadd.f32 0.0, %v1398
  %v1400 = vpop.f32.mrb[0].mxu0
  %1401 = vmatprep.mubr.f32.mxu0 0.0
  %1402 = vmatmul.mubr.f32.gmra.mrb[0].mxu0 %v544
  %v1403 = vpop.f32.mrb[0].mxu0
  %v1404 = vadd.f32 0.0, %v1403
  %v1405 = vpop.f32.mrb[0].mxu0
  %1406 = vmatprep.mubr.f32.mxu0 0.0
  %1407 = vmatmul.mubr.f32.gmra.mrb[0].mxu0 %v547
  %v1408 = vpop.f32.mrb[0].mxu0
  %v1409 = vadd.f32 0.0, %v1408
  %v1410 = vpop.f32.mrb[0].mxu0
  %1411 = vmatprep.mubr.f32.mxu0 0.0
  %1412 = vmatmul.mubr.f32.gmra.mrb[0].mxu0 %v550
  %v1413 = vpop.f32.mrb[0].mxu0
  %v1414 = vadd.f32 0.0, %v1413
  %v1415 = vpop.f32.mrb[0].mxu0
  %1416 = vmatprep.mubr.f32.mxu0 0.0
  %1417 = vmatmul.mubr.f32.gmra.mrb[0].mxu0 %v553
  %v1418 = vpop.f32.mrb[0].mxu0
  %v1419 = vadd.f32 0.0, %v1418
  %v1420 = vpop.f32.mrb[0].mxu0
  %1421 = vmatprep.mubr.f32.mxu0 0.0
  %1422 = vmatmul.mubr.f32.gmra.mrb[0].mxu0 %v556
  %v1423 = vpop.f32.mrb[0].mxu0
  %v1424 = vadd.f32 0.0, %v1423
  %v1425 = vpop.f32.mrb[0].mxu0
  %1426 = vmatprep.mubr.f32.mxu0 0.0
  %1427 = vmatmul.mubr.f32.gmra.mrb[0].mxu0 %v559
  %v1428 = vpop.f32.mrb[0].mxu0
  %v1429 = vadd.f32 0.0, %v1428
  %v1430 = vpop.f32.mrb[0].mxu0
  %1431 = vmatprep.mubr.f32.mxu0 0.0
  %1432 = vmatmul.mubr.f32.gmra.mrb[0].mxu0 %v562
  %v1433 = vpop.f32.mrb[0].mxu0
  %v1434 = vadd.f32 0.0, %v1433
  %v1435 = vpop.f32.mrb[0].mxu0
  %1436 = vmatprep.mubr.f32.mxu0 0.0
  %1437 = vmatmul.mubr.f32.gmra.mrb[0].mxu0 %v565
  %v1438 = vpop.f32.mrb[0].mxu0
  %v1439 = vadd.f32 0.0, %v1438
  %v1440 = vpop.f32.mrb[0].mxu0
  %1441 = vmatprep.mubr.f32.mxu0 0.0
  %1442 = vmatmul.mubr.f32.gmra.mrb[0].mxu0 %v568
  %v1443 = vpop.f32.mrb[0].mxu0
  %v1444 = vadd.f32 0.0, %v1443
  %v1445 = vpop.f32.mrb[0].mxu0
  %1446 = vmatprep.mubr.f32.mxu0 0.0
  %1447 = vmatmul.mubr.f32.gmra.mrb[0].mxu0 %v571
  %v1448 = vpop.f32.mrb[0].mxu0
  %v1449 = vadd.f32 0.0, %v1448
  %v1450 = vpop.f32.mrb[0].mxu0
  %1451 = vmatprep.mubr.f32.mxu0 0.0
  %1452 = vmatmul.mubr.f32.gmra.mrb[0].mxu0 %v574
  %v1453 = vpop.f32.mrb[0].mxu0
  %v1454 = vadd.f32 0.0, %v1453
  %v1455 = vpop.f32.mrb[0].mxu0
  %1456 = vmatprep.mubr.f32.mxu0 0.0
  %1457 = vmatmul.mubr.f32.gmra.mrb[0].mxu0 %v577
  %v1458 = vpop.f32.mrb[0].mxu0
  %v1459 = vadd.f32 0.0, %v1458
  %v1460 = vpop.f32.mrb[0].mxu0
  %1461 = vmatprep.mubr.f32.mxu0 0.0
  %1462 = vmatmul.mubr.f32.gmra.mrb[0].mxu0 %v580
  %v1463 = vpop.f32.mrb[0].mxu0
  %v1464 = vadd.f32 0.0, %v1463
  %v1465 = vpop.f32.mrb[0].mxu0
  %1466 = vmatprep.mubr.f32.mxu0 0.0
  %1467 = vmatmul.mubr.f32.gmra.mrb[0].mxu0 %v583
  %v1468 = vpop.f32.mrb[0].mxu0
  %v1469 = vadd.f32 0.0, %v1468
  %v1470 = vpop.f32.mrb[0].mxu0
  %1471 = vmatprep.mubr.f32.mxu0 0.0
  %1472 = vmatmul.mubr.f32.gmra.mrb[0].mxu0 %v586
  %v1473 = vpop.f32.mrb[0].mxu0
  %v1474 = vadd.f32 0.0, %v1473
  %v1475 = vpop.f32.mrb[0].mxu0
  %1476 = vmatprep.mubr.f32.mxu0 0.0
  %1477 = vmatmul.mubr.f32.gmra.mrb[0].mxu0 %v589
  %v1478 = vpop.f32.mrb[0].mxu0
  %v1479 = vadd.f32 0.0, %v1478
  %v1480 = vpop.f32.mrb[0].mxu0
  %1481 = vmatprep.mubr.f32.mxu0 0.0
  %1482 = vmatmul.mubr.f32.gmra.mrb[0].mxu0 %v592
  %v1483 = vpop.f32.mrb[0].mxu0
  %v1484 = vadd.f32 0.0, %v1483
  %v1485 = vpop.f32.mrb[0].mxu0
  %1486 = vmatprep.mubr.f32.mxu0 0.0
  %1487 = vmatmul.mubr.f32.gmra.mrb[0].mxu0 %v595
  %v1488 = vpop.f32.mrb[0].mxu0
  %v1489 = vadd.f32 0.0, %v1488
  %v1490 = vpop.f32.mrb[0].mxu0
  %1491 = vmatprep.mubr.f32.mxu0 0.0
  %1492 = vmatmul.mubr.f32.gmra.mrb[0].mxu0 %v598
  %v1493 = vpop.f32.mrb[0].mxu0
  %v1494 = vadd.f32 0.0, %v1493
  %v1495 = vpop.f32.mrb[0].mxu0
  %1496 = vmatprep.mubr.f32.mxu0 0.0
  %1497 = vmatmul.mubr.f32.gmra.mrb[0].mxu0 %v601
  %v1498 = vpop.f32.mrb[0].mxu0
  %v1499 = vadd.f32 0.0, %v1498
  %v1500 = vpop.f32.mrb[0].mxu0
  %1501 = vmatprep.mubr.f32.mxu0 0.0
  %1502 = vmatmul.mubr.f32.gmra.mrb[0].mxu0 %v604
  %v1503 = vpop.f32.mrb[0].mxu0
  %v1504 = vadd.f32 0.0, %v1503
  %v1505 = vpop.f32.mrb[0].mxu0
  %1506 = vmatprep.mubr.f32.mxu0 0.0
  %1507 = vmatmul.mubr.f32.gmra.mrb[0].mxu0 %v607
  %v1508 = vpop.f32.mrb[0].mxu0
  %v1509 = vadd.f32 0.0, %v1508
  %v1510 = vpop.f32.mrb[0].mxu0
  %1511 = vmatprep.mubr.f32.mxu0 0.0
  %1512 = vmatmul.mubr.f32.gmra.mrb[0].mxu0 %v610
  %v1513 = vpop.f32.mrb[0].mxu0
  %v1514 = vadd.f32 0.0, %v1513
  %v1515 = vpop.f32.mrb[0].mxu0
  %1516 = vmatprep.mubr.f32.mxu0 0.0
  %1517 = vmatmul.mubr.f32.gmra.mrb[0].mxu0 %v613
  %v1518 = vpop.f32.mrb[0].mxu0
  %v1519 = vadd.f32 0.0, %v1518
  %v1520 = vpop.f32.mrb[0].mxu0
  %1521 = vmatprep.mubr.f32.mxu0 0.0
  %1522 = vmatmul.mubr.f32.gmra.mrb[0].mxu0 %v616
  %v1523 = vpop.f32.mrb[0].mxu0
  %v1524 = vadd.f32 0.0, %v1523
  %v1525 = vpop.f32.mrb[0].mxu0
  %1526 = vmatprep.mubr.f32.mxu0 0.0
  %1527 = vmatmul.mubr.f32.gmra.mrb[0].mxu0 %v619
  %v1528 = vpop.f32.mrb[0].mxu0
  %v1529 = vadd.f32 0.0, %v1528
  %v1530 = vpop.f32.mrb[0].mxu0
  %1531 = vmatprep.mubr.f32.mxu0 0.0
  %1532 = vmatmul.mubr.f32.gmra.mrb[0].mxu0 %v622
  %v1533 = vpop.f32.mrb[0].mxu0
  %v1534 = vadd.f32 0.0, %v1533
  %v1535 = vpop.f32.mrb[0].mxu0
  %1536 = vmatprep.mubr.f32.mxu0 0.0
  %1537 = vmatmul.mubr.f32.gmra.mrb[0].mxu0 %v625
  %v1538 = vpop.f32.mrb[0].mxu0
  %v1539 = vadd.f32 0.0, %v1538
  %v1540 = vpop.f32.mrb[0].mxu0
  %1541 = vmatprep.mubr.f32.mxu0 0.0
  %1542 = vmatmul.mubr.f32.gmra.mrb[0].mxu0 %v628
  %v1543 = vpop.f32.mrb[0].mxu0
  %v1544 = vadd.f32 0.0, %v1543
  %v1545 = vpop.f32.mrb[0].mxu0
  %1546 = vmatprep.mubr.f32.mxu0 0.0
  %1547 = vmatmul.mubr.f32.gmra.mrb[0].mxu0 %v631
  %v1548 = vpop.f32.mrb[0].mxu0
  %v1549 = vadd.f32 0.0, %v1548
  %v1550 = vpop.f32.mrb[0].mxu0
  %1551 = vmatprep.mubr.f32.mxu0 0.0
  %1552 = vmatmul.mubr.f32.gmra.mrb[0].mxu0 %v634
  %v1553 = vpop.f32.mrb[0].mxu0
  %v1554 = vadd.f32 0.0, %v1553
  %v1555 = vpop.f32.mrb[0].mxu0
  %1556 = vmatprep.mubr.f32.mxu0 0.0
  %1557 = vmatmul.mubr.f32.gmra.mrb[0].mxu0 %v637
  %v1558 = vpop.f32.mrb[0].mxu0
  %v1559 = vadd.f32 0.0, %v1558
  %v1560 = vpop.f32.mrb[0].mxu0
  %1561 = vmatprep.mubr.f32.mxu0 0.0
  %1562 = vmatmul.mubr.f32.gmra.mrb[0].mxu0 %v640
  %v1563 = vpop.f32.mrb[0].mxu0
  %v1564 = vadd.f32 0.0, %v1563
  %v1565 = vpop.f32.mrb[0].mxu0
  %1566 = vmatprep.mubr.f32.mxu0 0.0
  %1567 = vmatmul.mubr.f32.gmra.mrb[0].mxu0 %v643
  %v1568 = vpop.f32.mrb[0].mxu0
  %v1569 = vadd.f32 0.0, %v1568
  %v1570 = vpop.f32.mrb[0].mxu0
  %1571 = vmatprep.mubr.f32.mxu0 0.0
  %1572 = vmatmul.mubr.f32.gmra.mrb[0].mxu0 %v646
  %v1573 = vpop.f32.mrb[0].mxu0
  %v1574 = vadd.f32 0.0, %v1573
  %v1575 = vpop.f32.mrb[0].mxu0
  %1576 = vmatprep.mubr.f32.mxu0 0.0
  %1577 = vmatmul.mubr.f32.gmra.mrb[0].mxu0 %v649
  %v1578 = vpop.f32.mrb[0].mxu0
  %v1579 = vadd.f32 0.0, %v1578
  %v1580 = vpop.f32.mrb[0].mxu0
  %1581 = vmatprep.mubr.f32.mxu0 0.0
  %1582 = vmatmul.mubr.f32.gmra.mrb[0].mxu0 %v652
  %v1583 = vpop.f32.mrb[0].mxu0
  %v1584 = vadd.f32 0.0, %v1583
  %v1585 = vpop.f32.mrb[0].mxu0
  %1586 = vmatprep.mubr.f32.mxu0 0.0
  %1587 = vmatmul.mubr.f32.gmra.mrb[0].mxu0 %v655
  %v1588 = vpop.f32.mrb[0].mxu0
  %v1589 = vadd.f32 0.0, %v1588
  %v1590 = vpop.f32.mrb[0].mxu0
  %1591 = vmatprep.mubr.f32.mxu0 0.0
  %1592 = vmatmul.mubr.f32.gmra.mrb[0].mxu0 %v658
  %v1593 = vpop.f32.mrb[0].mxu0
  %v1594 = vadd.f32 0.0, %v1593
  %v1595 = vpop.f32.mrb[0].mxu0
  %1596 = vmatprep.mubr.f32.mxu0 0.0
  %1597 = vmatmul.mubr.f32.gmra.mrb[0].mxu0 %v661
  %v1598 = vpop.f32.mrb[0].mxu0
  %v1599 = vadd.f32 0.0, %v1598
  %v1600 = vpop.f32.mrb[0].mxu0
  %1601 = vmatprep.mubr.f32.mxu0 0.0
  %1602 = vmatmul.mubr.f32.gmra.mrb[0].mxu0 %v664
  %v1603 = vpop.f32.mrb[0].mxu0
  %v1604 = vadd.f32 0.0, %v1603
  %v1605 = vpop.f32.mrb[0].mxu0
  %1606 = vmatprep.mubr.f32.mxu0 0.0
  %1607 = vmatmul.mubr.f32.gmra.mrb[0].mxu0 %v667
  %v1608 = vpop.f32.mrb[0].mxu0
  %v1609 = vadd.f32 0.0, %v1608
  %v1610 = vpop.f32.mrb[0].mxu0
  %1611 = vmatprep.mubr.f32.mxu0 0.0
  %1612 = vmatmul.mubr.f32.gmra.mrb[0].mxu0 %v670
  %v1613 = vpop.f32.mrb[0].mxu0
  %v1614 = vadd.f32 0.0, %v1613
  %v1615 = vpop.f32.mrb[0].mxu0
  %1616 = vmatprep.mubr.f32.mxu0 0.0
  %1617 = vmatmul.mubr.f32.gmra.mrb[0].mxu0 %v673
  %v1618 = vpop.f32.mrb[0].mxu0
  %v1619 = vadd.f32 0.0, %v1618
  %v1620 = vpop.f32.mrb[0].mxu0
  %1621 = vmatprep.mubr.f32.mxu0 0.0
  %1622 = vmatmul.mubr.f32.gmra.mrb[0].mxu0 %v676
  %v1623 = vpop.f32.mrb[0].mxu0
  %v1624 = vadd.f32 0.0, %v1623
  %v1625 = vpop.f32.mrb[0].mxu0
  %1626 = vmatprep.mubr.f32.mxu0 0.0
  %1627 = vmatmul.mubr.f32.gmra.mrb[0].mxu0 %v679
  %v1628 = vpop.f32.mrb[0].mxu0
  %v1629 = vadd.f32 0.0, %v1628
  %v1630 = vpop.f32.mrb[0].mxu0
  %1631 = vmatprep.mubr.f32.mxu0 0.0
  %1632 = vmatmul.mubr.f32.gmra.mrb[0].mxu0 %v682
  %v1633 = vpop.f32.mrb[0].mxu0
  %v1634 = vadd.f32 0.0, %v1633
  %v1635 = vpop.f32.mrb[0].mxu0
  %1636 = vmatprep.mubr.f32.mxu0 0.0
  %1637 = vmatmul.mubr.f32.gmra.mrb[0].mxu0 %v685
  %v1638 = vpop.f32.mrb[0].mxu0
  %v1639 = vadd.f32 0.0, %v1638
  %v1640 = vpop.f32.mrb[0].mxu0
  %1641 = vmatprep.mubr.f32.mxu0 0.0
  %1642 = vmatmul.mubr.f32.gmra.mrb[0].mxu0 %v688
  %v1643 = vpop.f32.mrb[0].mxu0
  %v1644 = vadd.f32 0.0, %v1643
  %v1645 = vpop.f32.mrb[0].mxu0
  %1646 = vmatprep.mubr.f32.mxu0 0.0
  %1647 = vmatmul.mubr.f32.gmra.mrb[0].mxu0 %v691
  %v1648 = vpop.f32.mrb[0].mxu0
  %v1649 = vadd.f32 0.0, %v1648
  %v1650 = vpop.f32.mrb[0].mxu0
  %1651 = vmatprep.mubr.f32.mxu0 0.0
  %1652 = vmatmul.mubr.f32.gmra.mrb[0].mxu0 %v694
  %v1653 = vpop.f32.mrb[0].mxu0
  %v1654 = vadd.f32 0.0, %v1653
  %v1655 = vpop.f32.mrb[0].mxu0
  %1656 = vmatprep.mubr.f32.mxu0 0.0
  %1657 = vmatmul.mubr.f32.gmra.mrb[0].mxu0 %v697
  %v1658 = vpop.f32.mrb[0].mxu0
  %v1659 = vadd.f32 0.0, %v1658
  %v1660 = vpop.f32.mrb[0].mxu0
  %1661 = vmatprep.mubr.f32.mxu0 0.0
  %1662 = vmatmul.mubr.f32.gmra.mrb[0].mxu0 %v700
  %v1663 = vpop.f32.mrb[0].mxu0
  %v1664 = vadd.f32 0.0, %v1663
  %v1665 = vpop.f32.mrb[0].mxu0
  %1666 = vmatprep.mubr.f32.mxu0 0.0
  %1667 = vmatmul.mubr.f32.gmra.mrb[0].mxu0 %v703
  %v1668 = vpop.f32.mrb[0].mxu0
  %v1669 = vadd.f32 0.0, %v1668
  %v1670 = vpop.f32.mrb[0].mxu0
  %1671 = vmatprep.mubr.f32.mxu0 0.0
  %1672 = vmatmul.mubr.f32.gmra.mrb[0].mxu0 %v706
  %v1673 = vpop.f32.mrb[0].mxu0
  %v1674 = vadd.f32 0.0, %v1673
  %v1675 = vpop.f32.mrb[0].mxu0
  %1676 = vmatprep.mubr.f32.mxu0 0.0
  %1677 = vmatmul.mubr.f32.gmra.mrb[0].mxu0 %v709
  %v1678 = vpop.f32.mrb[0].mxu0
  %v1679 = vadd.f32 0.0, %v1678
  %v1680 = vpop.f32.mrb[0].mxu0
  %1681 = vmatprep.mubr.f32.mxu0 0.0
  %1682 = vmatmul.mubr.f32.gmra.mrb[0].mxu0 %v712
  %v1683 = vpop.f32.mrb[0].mxu0
  %v1684 = vadd.f32 0.0, %v1683
  %v1685 = vpop.f32.mrb[0].mxu0
  %1686 = vmatprep.mubr.f32.mxu0 0.0
  %1687 = vmatmul.mubr.f32.gmra.mrb[0].mxu0 %v715
  %v1688 = vpop.f32.mrb[0].mxu0
  %v1689 = vadd.f32 0.0, %v1688
  %v1690 = vpop.f32.mrb[0].mxu0
  %1691 = vmatprep.mubr.f32.mxu0 0.0
  %1692 = vmatmul.mubr.f32.gmra.mrb[0].mxu0 %v718
  %v1693 = vpop.f32.mrb[0].mxu0
  %v1694 = vadd.f32 0.0, %v1693
  %v1695 = vpop.f32.mrb[0].mxu0
  %1696 = vmatprep.mubr.f32.mxu0 0.0
  %1697 = vmatmul.mubr.f32.gmra.mrb[0].mxu0 %v721
  %v1698 = vpop.f32.mrb[0].mxu0
  %v1699 = vadd.f32 0.0, %v1698
  %v1700 = vpop.f32.mrb[0].mxu0
  %1701 = vmatprep.mubr.f32.mxu0 0.0
  %1702 = vmatmul.mubr.f32.gmra.mrb[0].mxu0 %v724
  %v1703 = vpop.f32.mrb[0].mxu0
  %v1704 = vadd.f32 0.0, %v1703
  %v1705 = vpop.f32.mrb[0].mxu0
  %1706 = vmatprep.mubr.f32.mxu0 0.0
  %1707 = vmatmul.mubr.f32.gmra.mrb[0].mxu0 %v727
  %v1708 = vpop.f32.mrb[0].mxu0
  %v1709 = vadd.f32 0.0, %v1708
  %v1710 = vpop.f32.mrb[0].mxu0
  %1711 = vmatprep.mubr.f32.mxu0 0.0
  %1712 = vmatmul.mubr.f32.gmra.mrb[0].mxu0 %v730
  %v1713 = vpop.f32.mrb[0].mxu0
  %v1714 = vadd.f32 0.0, %v1713
  %v1715 = vpop.f32.mrb[0].mxu0
  %1716 = vmatprep.mubr.f32.mxu0 0.0
  %1717 = vmatmul.mubr.f32.gmra.mrb[0].mxu0 %v733
  %v1718 = vpop.f32.mrb[0].mxu0
  %v1719 = vadd.f32 0.0, %v1718
  %v1720 = vpop.f32.mrb[0].mxu0
  %1721 = vmatprep.mubr.f32.mxu0 0.0
  %1722 = vmatmul.mubr.f32.gmra.mrb[0].mxu0 %v736
  %v1723 = vpop.f32.mrb[0].mxu0
  %v1724 = vadd.f32 0.0, %v1723
  %v1725 = vpop.f32.mrb[0].mxu0
  %1726 = vmatprep.mubr.f32.mxu0 0.0
  %1727 = vmatmul.mubr.f32.gmra.mrb[0].mxu0 %v739
  %v1728 = vpop.f32.mrb[0].mxu0
  %v1729 = vadd.f32 0.0, %v1728
  %v1730 = vpop.f32.mrb[0].mxu0
  %1731 = vmatprep.mubr.f32.mxu0 0.0
  %1732 = vmatmul.mubr.f32.gmra.mrb[0].mxu0 %v742
  %v1733 = vpop.f32.mrb[0].mxu0
  %v1734 = vadd.f32 0.0, %v1733
  %v1735 = vpop.f32.mrb[0].mxu0
  %1736 = vmatprep.mubr.f32.mxu0 0.0
  %1737 = vmatmul.mubr.f32.gmra.mrb[0].mxu0 %v745
  %v1738 = vpop.f32.mrb[0].mxu0
  %v1739 = vadd.f32 0.0, %v1738
  %v1740 = vpop.f32.mrb[0].mxu0
  %1741 = vmatprep.mubr.f32.mxu0 0.0
  %1742 = vmatmul.mubr.f32.gmra.mrb[0].mxu0 %v748
  %v1743 = vpop.f32.mrb[0].mxu0
  %v1744 = vadd.f32 0.0, %v1743
  %v1745 = vpop.f32.mrb[0].mxu0
  %1746 = vmatprep.mubr.f32.mxu0 0.0
  %1747 = vmatmul.mubr.f32.gmra.mrb[0].mxu0 %v751
  %v1748 = vpop.f32.mrb[0].mxu0
  %v1749 = vadd.f32 0.0, %v1748
  %v1750 = vpop.f32.mrb[0].mxu0
  %1751 = vmatprep.mubr.f32.mxu0 0.0
  %1752 = vmatmul.mubr.f32.gmra.mrb[0].mxu0 %v754
  %v1753 = vpop.f32.mrb[0].mxu0
  %v1754 = vadd.f32 0.0, %v1753
  %v1755 = vpop.f32.mrb[0].mxu0
  %1756 = vmatprep.mubr.f32.mxu0 0.0
  %1757 = vmatmul.mubr.f32.gmra.mrb[0].mxu0 %v757
  %v1758 = vpop.f32.mrb[0].mxu0
  %v1759 = vadd.f32 0.0, %v1758
  %v1760 = vpop.f32.mrb[0].mxu0
  %1761 = vmatprep.mubr.f32.mxu0 0.0
  %1762 = vmatmul.mubr.f32.gmra.mrb[0].mxu0 %v760
  %v1763 = vpop.f32.mrb[0].mxu0
  %v1764 = vadd.f32 0.0, %v1763
  %v1765 = vpop.f32.mrb[0].mxu0
  %1766 = vmatprep.mubr.f32.mxu0 0.0
  %1767 = vmatmul.mubr.f32.gmra.mrb[0].mxu0 %v763
  %v1768 = vpop.f32.mrb[0].mxu0
  %v1769 = vadd.f32 0.0, %v1768
  %v1770 = vpop.f32.mrb[0].mxu0
  %1771 = vmatprep.mubr.f32.mxu0 0.0
  %1772 = vmatmul.mubr.f32.gmra.mrb[0].mxu0 %v766
  %v1773 = vpop.f32.mrb[0].mxu0
  %v1774 = vadd.f32 0.0, %v1773
  %v1775 = vpop.f32.mrb[0].mxu0
  %1776 = vmatprep.mubr.f32.mxu0 0.0
  %1777 = vmatmul.mubr.f32.gmra.mrb[0].mxu0 %v769
  %v1778 = vpop.f32.mrb[0].mxu0
  %v1779 = vadd.f32 0.0, %v1778
  %v1780 = vpop.f32.mrb[0].mxu0
  %1781 = vmatprep.mubr.f32.mxu0 0.0
  %1782 = vmatmul.mubr.f32.gmra.mrb[0].mxu0 %v772
  %v1783 = vpop.f32.mrb[0].mxu0
  %v1784 = vadd.f32 0.0, %v1783
  %v1785 = vpop.f32.mrb[0].mxu0
  %1786 = vmatprep.mubr.f32.mxu0 0.0
  %1787 = vmatmul.mubr.f32.gmra.mrb[0].mxu0 %v775
  %v1788 = vpop.f32.mrb[0].mxu0
  %v1789 = vadd.f32 0.0, %v1788
  %v1790 = vpop.f32.mrb[0].mxu0
  %1791 = vmatprep.mubr.f32.mxu0 0.0
  %1792 = vmatmul.mubr.f32.gmra.mrb[0].mxu0 %v778
  %v1793 = vpop.f32.mrb[0].mxu0
  %v1794 = vadd.f32 0.0, %v1793
  %v1795 = vpop.f32.mrb[0].mxu0
  %1796 = vmatprep.mubr.f32.mxu0 0.0
  %1797 = vmatmul.mubr.f32.gmra.mrb[0].mxu0 %v781
  %v1798 = vpop.f32.mrb[0].mxu0
  %v1799 = vadd.f32 0.0, %v1798
  %v1800 = vpop.f32.mrb[0].mxu0
  %1801 = vmatprep.mubr.f32.mxu0 0.0
  %1802 = vmatmul.mubr.f32.gmra.mrb[0].mxu0 %v784
  %v1803 = vpop.f32.mrb[0].mxu0
  %v1804 = vadd.f32 0.0, %v1803
  %v1805 = vpop.f32.mrb[0].mxu0
  %1806 = vmatprep.mubr.f32.mxu0 0.0
  %1807 = vmatmul.mubr.f32.gmra.mrb[0].mxu0 %v787
  %v1808 = vpop.f32.mrb[0].mxu0
  %v1809 = vadd.f32 0.0, %v1808
  %v1810 = vpop.f32.mrb[0].mxu0
  %1811 = vmatprep.mubr.f32.mxu0 0.0
  %1812 = vmatmul.mubr.f32.gmra.mrb[0].mxu0 %v790
  %v1813 = vpop.f32.mrb[0].mxu0
  %v1814 = vadd.f32 0.0, %v1813
  %v1815 = vpop.f32.mrb[0].mxu0
  %1816 = vmatprep.mubr.f32.mxu0 0.0
  %1817 = vmatmul.mubr.f32.gmra.mrb[0].mxu0 %v793
  %v1818 = vpop.f32.mrb[0].mxu0
  %v1819 = vadd.f32 0.0, %v1818
  %v1820 = vpop.f32.mrb[0].mxu0
  %1821 = vmatprep.mubr.f32.mxu0 0.0
  %1822 = vmatmul.mubr.f32.gmra.mrb[0].mxu0 %v796
  %v1823 = vpop.f32.mrb[0].mxu0
  %v1824 = vadd.f32 0.0, %v1823
  %v1825 = vpop.f32.mrb[0].mxu0
  %1826 = vmatprep.mubr.f32.mxu0 0.0
  %1827 = vmatmul.mubr.f32.gmra.mrb[0].mxu0 %v799
  %v1828 = vpop.f32.mrb[0].mxu0
  %v1829 = vadd.f32 0.0, %v1828
  %v1830 = vpop.f32.mrb[0].mxu0
  %1831 = vmatprep.mubr.f32.mxu0 0.0
  %1832 = vmatmul.mubr.f32.gmra.mrb[0].mxu0 %v802
  %v1833 = vpop.f32.mrb[0].mxu0
  %v1834 = vadd.f32 0.0, %v1833
  %v1835 = vpop.f32.mrb[0].mxu0
  %1836 = vmatprep.mubr.f32.mxu0 0.0
  %1837 = vmatmul.mubr.f32.gmra.mrb[0].mxu0 %v805
  %v1838 = vpop.f32.mrb[0].mxu0
  %v1839 = vadd.f32 0.0, %v1838
  %v1840 = vpop.f32.mrb[0].mxu0
  %1841 = vmatprep.mubr.f32.mxu0 0.0
  %1842 = vmatmul.mubr.f32.gmra.mrb[0].mxu0 %v808
  %v1843 = vpop.f32.mrb[0].mxu0
  %v1844 = vadd.f32 0.0, %v1843
  %v1845 = vpop.f32.mrb[0].mxu0
  %1846 = vmatprep.mubr.f32.mxu0 0.0
  %1847 = vmatmul.mubr.f32.gmra.mrb[0].mxu0 %v811
  %v1848 = vpop.f32.mrb[0].mxu0
  %v1849 = vadd.f32 0.0, %v1848
  %v1850 = vpop.f32.mrb[0].mxu0
  %1851 = vmatprep.mubr.f32.mxu0 0.0
  %1852 = vmatmul.mubr.f32.gmra.mrb[0].mxu0 %v814
  %v1853 = vpop.f32.mrb[0].mxu0
  %v1854 = vadd.f32 0.0, %v1853
  %v1855 = vpop.f32.mrb[0].mxu0
  %1856 = vmatprep.mubr.f32.mxu0 0.0
  %1857 = vmatmul.mubr.f32.gmra.mrb[0].mxu0 %v817
  %v1858 = vpop.f32.mrb[0].mxu0
  %v1859 = vadd.f32 0.0, %v1858
  %v1860 = vpop.f32.mrb[0].mxu0
  %1861 = vmatprep.mubr.f32.mxu0 0.0
  %1862 = vmatmul.mubr.f32.gmra.mrb[0].mxu0 %v820
  %v1863 = vpop.f32.mrb[0].mxu0
  %v1864 = vadd.f32 0.0, %v1863
  %v1865 = vpop.f32.mrb[0].mxu0
  %1866 = vmatprep.mubr.f32.mxu0 0.0
  %1867 = vmatmul.mubr.f32.gmra.mrb[0].mxu0 %v823
  %v1868 = vpop.f32.mrb[0].mxu0
  %v1869 = vadd.f32 0.0, %v1868
  %v1870 = vpop.f32.mrb[0].mxu0
  %1871 = vmatprep.mubr.f32.mxu0 0.0
  %1872 = vmatmul.mubr.f32.gmra.mrb[0].mxu0 %v826
  %v1873 = vpop.f32.mrb[0].mxu0
  %v1874 = vadd.f32 0.0, %v1873
  %v1875 = vpop.f32.mrb[0].mxu0
  %1876 = vdwg.mxu0
  %2073 = vrot.lane.b32.xlu0 %v899, 122
  %v2074 = vpop.permute.xlu0 %2073
  %2075 = vrot.lane.b32.xlu0 %v904, 122
  %v2076 = vpop.permute.xlu0 %2075
  %2077 = vrot.lane.b32.xlu0 %v909, 122
  %v2078 = vpop.permute.xlu0 %2077
  %2079 = vrot.lane.b32.xlu0 %v914, 122
  %v2080 = vpop.permute.xlu0 %2079
  %2081 = vrot.lane.b32.xlu0 %v919, 122
  %v2082 = vpop.permute.xlu0 %2081
  %2083 = vrot.lane.b32.xlu0 %v924, 122
  %v2084 = vpop.permute.xlu0 %2083
  %2085 = vrot.lane.b32.xlu0 %v929, 122
  %v2086 = vpop.permute.xlu0 %2085
  %2087 = vrot.lane.b32.xlu0 %v934, 122
  %v2088 = vpop.permute.xlu0 %2087
  %2089 = vrot.lane.b32.xlu0 %v939, 122
  %v2090 = vpop.permute.xlu0 %2089
  %2091 = vrot.lane.b32.xlu0 %v944, 122
  %v2092 = vpop.permute.xlu0 %2091
  %2093 = vrot.lane.b32.xlu0 %v949, 122
  %v2094 = vpop.permute.xlu0 %2093
  %2095 = vrot.lane.b32.xlu0 %v954, 122
  %v2096 = vpop.permute.xlu0 %2095
  %2097 = vrot.lane.b32.xlu0 %v959, 122
  %v2098 = vpop.permute.xlu0 %2097
  %2099 = vrot.lane.b32.xlu0 %v964, 122
  %v2100 = vpop.permute.xlu0 %2099
  %2101 = vrot.lane.b32.xlu0 %v969, 122
  %v2102 = vpop.permute.xlu0 %2101
  %2103 = vrot.lane.b32.xlu0 %v974, 122
  %v2104 = vpop.permute.xlu0 %2103
  %2105 = vrot.lane.b32.xlu0 %v979, 122
  %v2106 = vpop.permute.xlu0 %2105
  %2107 = vrot.lane.b32.xlu0 %v984, 122
  %v2108 = vpop.permute.xlu0 %2107
  %2109 = vrot.lane.b32.xlu0 %v989, 122
  %v2110 = vpop.permute.xlu0 %2109
  %2111 = vrot.lane.b32.xlu0 %v994, 122
  %v2112 = vpop.permute.xlu0 %2111
  %2113 = vrot.lane.b32.xlu0 %v999, 122
  %v2114 = vpop.permute.xlu0 %2113
  %2115 = vrot.lane.b32.xlu0 %v1004, 122
  %v2116 = vpop.permute.xlu0 %2115
  %2117 = vrot.lane.b32.xlu0 %v1009, 122
  %v2118 = vpop.permute.xlu0 %2117
  %2119 = vrot.lane.b32.xlu0 %v1014, 122
  %v2120 = vpop.permute.xlu0 %2119
  %2121 = vrot.lane.b32.xlu0 %v1019, 122
  %v2122 = vpop.permute.xlu0 %2121
  %2123 = vrot.lane.b32.xlu0 %v1024, 122
  %v2124 = vpop.permute.xlu0 %2123
  %2125 = vrot.lane.b32.xlu0 %v1029, 122
  %v2126 = vpop.permute.xlu0 %2125
  %2127 = vrot.lane.b32.xlu0 %v1034, 122
  %v2128 = vpop.permute.xlu0 %2127
  %2129 = vrot.lane.b32.xlu0 %v1039, 122
  %v2130 = vpop.permute.xlu0 %2129
  %2131 = vrot.lane.b32.xlu0 %v1044, 122
  %v2132 = vpop.permute.xlu0 %2131
  %2133 = vrot.lane.b32.xlu0 %v1049, 122
  %v2134 = vpop.permute.xlu0 %2133
  %2135 = vrot.lane.b32.xlu0 %v1054, 122
  %v2136 = vpop.permute.xlu0 %2135
  %2137 = vrot.lane.b32.xlu0 %v1059, 122
  %v2138 = vpop.permute.xlu0 %2137
  %2139 = vrot.lane.b32.xlu0 %v1064, 122
  %v2140 = vpop.permute.xlu0 %2139
  %2141 = vrot.lane.b32.xlu0 %v1069, 122
  %v2142 = vpop.permute.xlu0 %2141
  %2143 = vrot.lane.b32.xlu0 %v1074, 122
  %v2144 = vpop.permute.xlu0 %2143
  %2145 = vrot.lane.b32.xlu0 %v1079, 122
  %v2146 = vpop.permute.xlu0 %2145
  %2147 = vrot.lane.b32.xlu0 %v1084, 122
  %v2148 = vpop.permute.xlu0 %2147
  %2149 = vrot.lane.b32.xlu0 %v1089, 122
  %v2150 = vpop.permute.xlu0 %2149
  %2151 = vrot.lane.b32.xlu0 %v1094, 122
  %v2152 = vpop.permute.xlu0 %2151
  %2153 = vrot.lane.b32.xlu0 %v1099, 122
  %v2154 = vpop.permute.xlu0 %2153
  %2155 = vrot.lane.b32.xlu0 %v1104, 122
  %v2156 = vpop.permute.xlu0 %2155
  %2157 = vrot.lane.b32.xlu0 %v1109, 122
  %v2158 = vpop.permute.xlu0 %2157
  %2159 = vrot.lane.b32.xlu0 %v1114, 122
  %v2160 = vpop.permute.xlu0 %2159
  %2161 = vrot.lane.b32.xlu0 %v1119, 122
  %v2162 = vpop.permute.xlu0 %2161
  %2163 = vrot.lane.b32.xlu0 %v1124, 122
  %v2164 = vpop.permute.xlu0 %2163
  %2165 = vrot.lane.b32.xlu0 %v1129, 122
  %v2166 = vpop.permute.xlu0 %2165
  %2167 = vrot.lane.b32.xlu0 %v1134, 122
  %v2168 = vpop.permute.xlu0 %2167
  %2169 = vrot.lane.b32.xlu0 %v1139, 122
  %v2170 = vpop.permute.xlu0 %2169
  %2171 = vrot.lane.b32.xlu0 %v1144, 122
  %v2172 = vpop.permute.xlu0 %2171
  %2173 = vrot.lane.b32.xlu0 %v1149, 122
  %v2174 = vpop.permute.xlu0 %2173
  %2175 = vrot.lane.b32.xlu0 %v1154, 122
  %v2176 = vpop.permute.xlu0 %2175
  %2177 = vrot.lane.b32.xlu0 %v1159, 122
  %v2178 = vpop.permute.xlu0 %2177
  %2179 = vrot.lane.b32.xlu0 %v1164, 122
  %v2180 = vpop.permute.xlu0 %2179
  %2181 = vrot.lane.b32.xlu0 %v1169, 122
  %v2182 = vpop.permute.xlu0 %2181
  %2183 = vrot.lane.b32.xlu0 %v1174, 122
  %v2184 = vpop.permute.xlu0 %2183
  %2185 = vrot.lane.b32.xlu0 %v1179, 122
  %v2186 = vpop.permute.xlu0 %2185
  %2187 = vrot.lane.b32.xlu0 %v1184, 122
  %v2188 = vpop.permute.xlu0 %2187
  %2189 = vrot.lane.b32.xlu0 %v1189, 122
  %v2190 = vpop.permute.xlu0 %2189
  %2191 = vrot.lane.b32.xlu0 %v1194, 122
  %v2192 = vpop.permute.xlu0 %2191
  %2193 = vrot.lane.b32.xlu0 %v1199, 122
  %v2194 = vpop.permute.xlu0 %2193
  %2195 = vrot.lane.b32.xlu0 %v1204, 122
  %v2196 = vpop.permute.xlu0 %2195
  %2197 = vrot.lane.b32.xlu0 %v1209, 122
  %v2198 = vpop.permute.xlu0 %2197
  %2199 = vrot.lane.b32.xlu0 %v1214, 122
  %v2200 = vpop.permute.xlu0 %2199
  %2201 = vrot.lane.b32.xlu0 %v1219, 122
  %v2202 = vpop.permute.xlu0 %2201
  %2203 = vrot.lane.b32.xlu0 %v1224, 122
  %v2204 = vpop.permute.xlu0 %2203
  %2205 = vrot.lane.b32.xlu0 %v1229, 122
  %v2206 = vpop.permute.xlu0 %2205
  %2207 = vrot.lane.b32.xlu0 %v1234, 122
  %v2208 = vpop.permute.xlu0 %2207
  %2209 = vrot.lane.b32.xlu0 %v1239, 122
  %v2210 = vpop.permute.xlu0 %2209
  %2211 = vrot.lane.b32.xlu0 %v1244, 122
  %v2212 = vpop.permute.xlu0 %2211
  %2213 = vrot.lane.b32.xlu0 %v1249, 122
  %v2214 = vpop.permute.xlu0 %2213
  %2215 = vrot.lane.b32.xlu0 %v1254, 122
  %v2216 = vpop.permute.xlu0 %2215
  %2217 = vrot.lane.b32.xlu0 %v1259, 122
  %v2218 = vpop.permute.xlu0 %2217
  %2219 = vrot.lane.b32.xlu0 %v1264, 122
  %v2220 = vpop.permute.xlu0 %2219
  %2221 = vrot.lane.b32.xlu0 %v1269, 122
  %v2222 = vpop.permute.xlu0 %2221
  %2223 = vrot.lane.b32.xlu0 %v1274, 122
  %v2224 = vpop.permute.xlu0 %2223
  %2225 = vrot.lane.b32.xlu0 %v1279, 122
  %v2226 = vpop.permute.xlu0 %2225
  %2227 = vrot.lane.b32.xlu0 %v1284, 122
  %v2228 = vpop.permute.xlu0 %2227
  %2229 = vrot.lane.b32.xlu0 %v1289, 122
  %v2230 = vpop.permute.xlu0 %2229
  %2231 = vrot.lane.b32.xlu0 %v1294, 122
  %v2232 = vpop.permute.xlu0 %2231
  %2233 = vrot.lane.b32.xlu0 %v1299, 122
  %v2234 = vpop.permute.xlu0 %2233
  %2235 = vrot.lane.b32.xlu0 %v1304, 122
  %v2236 = vpop.permute.xlu0 %2235
  %2237 = vrot.lane.b32.xlu0 %v1309, 122
  %v2238 = vpop.permute.xlu0 %2237
  %2239 = vrot.lane.b32.xlu0 %v1314, 122
  %v2240 = vpop.permute.xlu0 %2239
  %2241 = vrot.lane.b32.xlu0 %v1319, 122
  %v2242 = vpop.permute.xlu0 %2241
  %2243 = vrot.lane.b32.xlu0 %v1324, 122
  %v2244 = vpop.permute.xlu0 %2243
  %2245 = vrot.lane.b32.xlu0 %v1329, 122
  %v2246 = vpop.permute.xlu0 %2245
  %2247 = vrot.lane.b32.xlu0 %v1334, 122
  %v2248 = vpop.permute.xlu0 %2247
  %2249 = vrot.lane.b32.xlu0 %v1339, 122
  %v2250 = vpop.permute.xlu0 %2249
  %2251 = vrot.lane.b32.xlu0 %v1344, 122
  %v2252 = vpop.permute.xlu0 %2251
  %2253 = vrot.lane.b32.xlu0 %v1349, 122
  %v2254 = vpop.permute.xlu0 %2253
  %2255 = vrot.lane.b32.xlu0 %v1354, 122
  %v2256 = vpop.permute.xlu0 %2255
  %2257 = vrot.lane.b32.xlu0 %v1359, 122
  %v2258 = vpop.permute.xlu0 %2257
  %2259 = vrot.lane.b32.xlu0 %v1364, 122
  %v2260 = vpop.permute.xlu0 %2259
  %2261 = vrot.lane.b32.xlu0 %v1369, 122
  %v2262 = vpop.permute.xlu0 %2261
  %2263 = vrot.lane.b32.xlu0 %v1374, 122
  %v2264 = vpop.permute.xlu0 %2263
  %2265 = vrot.lane.b32.xlu0 %v1379, 122
  %v2266 = vpop.permute.xlu0 %2265
  %2267 = vrot.lane.b32.xlu0 %v1384, 122
  %v2268 = vpop.permute.xlu0 %2267
  %2269 = vrot.lane.b32.xlu0 %v1389, 122
  %v2270 = vpop.permute.xlu0 %2269
  %2271 = vrot.lane.b32.xlu0 %v1394, 122
  %v2272 = vpop.permute.xlu0 %2271
  %2273 = vrot.lane.b32.xlu0 %v1399, 122
  %v2274 = vpop.permute.xlu0 %2273
  %2275 = vrot.lane.b32.xlu0 %v1404, 122
  %v2276 = vpop.permute.xlu0 %2275
  %2277 = vrot.lane.b32.xlu0 %v1409, 122
  %v2278 = vpop.permute.xlu0 %2277
  %2279 = vrot.lane.b32.xlu0 %v1414, 122
  %v2280 = vpop.permute.xlu0 %2279
  %2281 = vrot.lane.b32.xlu0 %v1419, 122
  %v2282 = vpop.permute.xlu0 %2281
  %2283 = vrot.lane.b32.xlu0 %v1424, 122
  %v2284 = vpop.permute.xlu0 %2283
  %2285 = vrot.lane.b32.xlu0 %v1429, 122
  %v2286 = vpop.permute.xlu0 %2285
  %2287 = vrot.lane.b32.xlu0 %v1434, 122
  %v2288 = vpop.permute.xlu0 %2287
  %2289 = vrot.lane.b32.xlu0 %v1439, 122
  %v2290 = vpop.permute.xlu0 %2289
  %2291 = vrot.lane.b32.xlu0 %v1444, 122
  %v2292 = vpop.permute.xlu0 %2291
  %2293 = vrot.lane.b32.xlu0 %v1449, 122
  %v2294 = vpop.permute.xlu0 %2293
  %2295 = vrot.lane.b32.xlu0 %v1454, 122
  %v2296 = vpop.permute.xlu0 %2295
  %2297 = vrot.lane.b32.xlu0 %v1459, 122
  %v2298 = vpop.permute.xlu0 %2297
  %2299 = vrot.lane.b32.xlu0 %v1464, 122
  %v2300 = vpop.permute.xlu0 %2299
  %2301 = vrot.lane.b32.xlu0 %v1469, 122
  %v2302 = vpop.permute.xlu0 %2301
  %2303 = vrot.lane.b32.xlu0 %v1474, 122
  %v2304 = vpop.permute.xlu0 %2303
  %2305 = vrot.lane.b32.xlu0 %v1479, 122
  %v2306 = vpop.permute.xlu0 %2305
  %2307 = vrot.lane.b32.xlu0 %v1484, 122
  %v2308 = vpop.permute.xlu0 %2307
  %2309 = vrot.lane.b32.xlu0 %v1489, 122
  %v2310 = vpop.permute.xlu0 %2309
  %2311 = vrot.lane.b32.xlu0 %v1494, 122
  %v2312 = vpop.permute.xlu0 %2311
  %2313 = vrot.lane.b32.xlu0 %v1499, 122
  %v2314 = vpop.permute.xlu0 %2313
  %2315 = vrot.lane.b32.xlu0 %v1504, 122
  %v2316 = vpop.permute.xlu0 %2315
  %2317 = vrot.lane.b32.xlu0 %v1509, 122
  %v2318 = vpop.permute.xlu0 %2317
  %2319 = vrot.lane.b32.xlu0 %v1514, 122
  %v2320 = vpop.permute.xlu0 %2319
  %2321 = vrot.lane.b32.xlu0 %v1519, 122
  %v2322 = vpop.permute.xlu0 %2321
  %2323 = vrot.lane.b32.xlu0 %v1524, 122
  %v2324 = vpop.permute.xlu0 %2323
  %2325 = vrot.lane.b32.xlu0 %v1529, 122
  %v2326 = vpop.permute.xlu0 %2325
  %2327 = vrot.lane.b32.xlu0 %v1534, 122
  %v2328 = vpop.permute.xlu0 %2327
  %2329 = vrot.lane.b32.xlu0 %v1539, 122
  %v2330 = vpop.permute.xlu0 %2329
  %2331 = vrot.lane.b32.xlu0 %v1544, 122
  %v2332 = vpop.permute.xlu0 %2331
  %2333 = vrot.lane.b32.xlu0 %v1549, 122
  %v2334 = vpop.permute.xlu0 %2333
  %2335 = vrot.lane.b32.xlu0 %v1554, 122
  %v2336 = vpop.permute.xlu0 %2335
  %2337 = vrot.lane.b32.xlu0 %v1559, 122
  %v2338 = vpop.permute.xlu0 %2337
  %2339 = vrot.lane.b32.xlu0 %v1564, 122
  %v2340 = vpop.permute.xlu0 %2339
  %2341 = vrot.lane.b32.xlu0 %v1569, 122
  %v2342 = vpop.permute.xlu0 %2341
  %2343 = vrot.lane.b32.xlu0 %v1574, 122
  %v2344 = vpop.permute.xlu0 %2343
  %2345 = vrot.lane.b32.xlu0 %v1579, 122
  %v2346 = vpop.permute.xlu0 %2345
  %2347 = vrot.lane.b32.xlu0 %v1584, 122
  %v2348 = vpop.permute.xlu0 %2347
  %2349 = vrot.lane.b32.xlu0 %v1589, 122
  %v2350 = vpop.permute.xlu0 %2349
  %2351 = vrot.lane.b32.xlu0 %v1594, 122
  %v2352 = vpop.permute.xlu0 %2351
  %2353 = vrot.lane.b32.xlu0 %v1599, 122
  %v2354 = vpop.permute.xlu0 %2353
  %2355 = vrot.lane.b32.xlu0 %v1604, 122
  %v2356 = vpop.permute.xlu0 %2355
  %2357 = vrot.lane.b32.xlu0 %v1609, 122
  %v2358 = vpop.permute.xlu0 %2357
  %2359 = vrot.lane.b32.xlu0 %v1614, 122
  %v2360 = vpop.permute.xlu0 %2359
  %2361 = vrot.lane.b32.xlu0 %v1619, 122
  %v2362 = vpop.permute.xlu0 %2361
  %2363 = vrot.lane.b32.xlu0 %v1624, 122
  %v2364 = vpop.permute.xlu0 %2363
  %2365 = vrot.lane.b32.xlu0 %v1629, 122
  %v2366 = vpop.permute.xlu0 %2365
  %2367 = vrot.lane.b32.xlu0 %v1634, 122
  %v2368 = vpop.permute.xlu0 %2367
  %2369 = vrot.lane.b32.xlu0 %v1639, 122
  %v2370 = vpop.permute.xlu0 %2369
  %2371 = vrot.lane.b32.xlu0 %v1644, 122
  %v2372 = vpop.permute.xlu0 %2371
  %2373 = vrot.lane.b32.xlu0 %v1649, 122
  %v2374 = vpop.permute.xlu0 %2373
  %2375 = vrot.lane.b32.xlu0 %v1654, 122
  %v2376 = vpop.permute.xlu0 %2375
  %2377 = vrot.lane.b32.xlu0 %v1659, 122
  %v2378 = vpop.permute.xlu0 %2377
  %2379 = vrot.lane.b32.xlu0 %v1664, 122
  %v2380 = vpop.permute.xlu0 %2379
  %2381 = vrot.lane.b32.xlu0 %v1669, 122
  %v2382 = vpop.permute.xlu0 %2381
  %2383 = vrot.lane.b32.xlu0 %v1674, 122
  %v2384 = vpop.permute.xlu0 %2383
  %2385 = vrot.lane.b32.xlu0 %v1679, 122
  %v2386 = vpop.permute.xlu0 %2385
  %2387 = vrot.lane.b32.xlu0 %v1684, 122
  %v2388 = vpop.permute.xlu0 %2387
  %2389 = vrot.lane.b32.xlu0 %v1689, 122
  %v2390 = vpop.permute.xlu0 %2389
  %2391 = vrot.lane.b32.xlu0 %v1694, 122
  %v2392 = vpop.permute.xlu0 %2391
  %2393 = vrot.lane.b32.xlu0 %v1699, 122
  %v2394 = vpop.permute.xlu0 %2393
  %2395 = vrot.lane.b32.xlu0 %v1704, 122
  %v2396 = vpop.permute.xlu0 %2395
  %2397 = vrot.lane.b32.xlu0 %v1709, 122
  %v2398 = vpop.permute.xlu0 %2397
  %2399 = vrot.lane.b32.xlu0 %v1714, 122
  %v2400 = vpop.permute.xlu0 %2399
  %2401 = vrot.lane.b32.xlu0 %v1719, 122
  %v2402 = vpop.permute.xlu0 %2401
  %2403 = vrot.lane.b32.xlu0 %v1724, 122
  %v2404 = vpop.permute.xlu0 %2403
  %2405 = vrot.lane.b32.xlu0 %v1729, 122
  %v2406 = vpop.permute.xlu0 %2405
  %2407 = vrot.lane.b32.xlu0 %v1734, 122
  %v2408 = vpop.permute.xlu0 %2407
  %2409 = vrot.lane.b32.xlu0 %v1739, 122
  %v2410 = vpop.permute.xlu0 %2409
  %2411 = vrot.lane.b32.xlu0 %v1744, 122
  %v2412 = vpop.permute.xlu0 %2411
  %2413 = vrot.lane.b32.xlu0 %v1749, 122
  %v2414 = vpop.permute.xlu0 %2413
  %2415 = vrot.lane.b32.xlu0 %v1754, 122
  %v2416 = vpop.permute.xlu0 %2415
  %2417 = vrot.lane.b32.xlu0 %v1759, 122
  %v2418 = vpop.permute.xlu0 %2417
  %2419 = vrot.lane.b32.xlu0 %v1764, 122
  %v2420 = vpop.permute.xlu0 %2419
  %2421 = vrot.lane.b32.xlu0 %v1769, 122
  %v2422 = vpop.permute.xlu0 %2421
  %2423 = vrot.lane.b32.xlu0 %v1774, 122
  %v2424 = vpop.permute.xlu0 %2423
  %2425 = vrot.lane.b32.xlu0 %v1779, 122
  %v2426 = vpop.permute.xlu0 %2425
  %2427 = vrot.lane.b32.xlu0 %v1784, 122
  %v2428 = vpop.permute.xlu0 %2427
  %2429 = vrot.lane.b32.xlu0 %v1789, 122
  %v2430 = vpop.permute.xlu0 %2429
  %2431 = vrot.lane.b32.xlu0 %v1794, 122
  %v2432 = vpop.permute.xlu0 %2431
  %2433 = vrot.lane.b32.xlu0 %v1799, 122
  %v2434 = vpop.permute.xlu0 %2433
  %2435 = vrot.lane.b32.xlu0 %v1804, 122
  %v2436 = vpop.permute.xlu0 %2435
  %2437 = vrot.lane.b32.xlu0 %v1809, 122
  %v2438 = vpop.permute.xlu0 %2437
  %2439 = vrot.lane.b32.xlu0 %v1814, 122
  %v2440 = vpop.permute.xlu0 %2439
  %2441 = vrot.lane.b32.xlu0 %v1819, 122
  %v2442 = vpop.permute.xlu0 %2441
  %2443 = vrot.lane.b32.xlu0 %v1824, 122
  %v2444 = vpop.permute.xlu0 %2443
  %2445 = vrot.lane.b32.xlu0 %v1829, 122
  %v2446 = vpop.permute.xlu0 %2445
  %2447 = vrot.lane.b32.xlu0 %v1834, 122
  %v2448 = vpop.permute.xlu0 %2447
  %2449 = vrot.lane.b32.xlu0 %v1839, 122
  %v2450 = vpop.permute.xlu0 %2449
  %2451 = vrot.lane.b32.xlu0 %v1844, 122
  %v2452 = vpop.permute.xlu0 %2451
  %2453 = vrot.lane.b32.xlu0 %v1849, 122
  %v2454 = vpop.permute.xlu0 %2453
  %2455 = vrot.lane.b32.xlu0 %v1854, 122
  %v2456 = vpop.permute.xlu0 %2455
  %2457 = vrot.lane.b32.xlu0 %v1859, 122
  %v2458 = vpop.permute.xlu0 %2457
  %2459 = vrot.lane.b32.xlu0 %v1864, 122
  %v2460 = vpop.permute.xlu0 %2459
  %2461 = vrot.lane.b32.xlu0 %v1869, 122
  %v2462 = vpop.permute.xlu0 %2461
  %2463 = vrot.lane.b32.xlu0 %v1874, 122
  %v2464 = vpop.permute.xlu0 %2463
  %v2661 = vmax.f32 %v899, %v2074
  %v2662 = vmax.f32 %v904, %v2076
  %v2663 = vmax.f32 %v909, %v2078
  %v2664 = vmax.f32 %v914, %v2080
  %v2665 = vmax.f32 %v919, %v2082
  %v2666 = vmax.f32 %v924, %v2084
  %v2667 = vmax.f32 %v929, %v2086
  %v2668 = vmax.f32 %v934, %v2088
  %v2669 = vmax.f32 %v939, %v2090
  %v2670 = vmax.f32 %v944, %v2092
  %v2671 = vmax.f32 %v949, %v2094
  %v2672 = vmax.f32 %v954, %v2096
  %v2673 = vmax.f32 %v959, %v2098
  %v2674 = vmax.f32 %v964, %v2100
  %v2675 = vmax.f32 %v969, %v2102
  %v2676 = vmax.f32 %v974, %v2104
  %v2677 = vmax.f32 %v979, %v2106
  %v2678 = vmax.f32 %v984, %v2108
  %v2679 = vmax.f32 %v989, %v2110
  %v2680 = vmax.f32 %v994, %v2112
  %v2681 = vmax.f32 %v999, %v2114
  %v2682 = vmax.f32 %v1004, %v2116
  %v2683 = vmax.f32 %v1009, %v2118
  %v2684 = vmax.f32 %v1014, %v2120
  %v2685 = vmax.f32 %v1019, %v2122
  %v2686 = vmax.f32 %v1024, %v2124
  %v2687 = vmax.f32 %v1029, %v2126
  %v2688 = vmax.f32 %v1034, %v2128
  %v2689 = vmax.f32 %v1039, %v2130
  %v2690 = vmax.f32 %v1044, %v2132
  %v2691 = vmax.f32 %v1049, %v2134
  %v2692 = vmax.f32 %v1054, %v2136
  %v2693 = vmax.f32 %v1059, %v2138
  %v2694 = vmax.f32 %v1064, %v2140
  %v2695 = vmax.f32 %v1069, %v2142
  %v2696 = vmax.f32 %v1074, %v2144
  %v2697 = vmax.f32 %v1079, %v2146
  %v2698 = vmax.f32 %v1084, %v2148
  %v2699 = vmax.f32 %v1089, %v2150
  %v2700 = vmax.f32 %v1094, %v2152
  %v2701 = vmax.f32 %v1099, %v2154
  %v2702 = vmax.f32 %v1104, %v2156
  %v2703 = vmax.f32 %v1109, %v2158
  %v2704 = vmax.f32 %v1114, %v2160
  %v2705 = vmax.f32 %v1119, %v2162
  %v2706 = vmax.f32 %v1124, %v2164
  %v2707 = vmax.f32 %v1129, %v2166
  %v2708 = vmax.f32 %v1134, %v2168
  %v2709 = vmax.f32 %v1139, %v2170
  %v2710 = vmax.f32 %v1144, %v2172
  %v2711 = vmax.f32 %v1149, %v2174
  %v2712 = vmax.f32 %v1154, %v2176
  %v2713 = vmax.f32 %v1159, %v2178
  %v2714 = vmax.f32 %v1164, %v2180
  %v2715 = vmax.f32 %v1169, %v2182
  %v2716 = vmax.f32 %v1174, %v2184
  %v2717 = vmax.f32 %v1179, %v2186
  %v2718 = vmax.f32 %v1184, %v2188
  %v2719 = vmax.f32 %v1189, %v2190
  %v2720 = vmax.f32 %v1194, %v2192
  %v2721 = vmax.f32 %v1199, %v2194
  %v2722 = vmax.f32 %v1204, %v2196
  %v2723 = vmax.f32 %v1209, %v2198
  %v2724 = vmax.f32 %v1214, %v2200
  %v2725 = vmax.f32 %v1219, %v2202
  %v2726 = vmax.f32 %v1224, %v2204
  %v2727 = vmax.f32 %v1229, %v2206
  %v2728 = vmax.f32 %v1234, %v2208
  %v2729 = vmax.f32 %v1239, %v2210
  %v2730 = vmax.f32 %v1244, %v2212
  %v2731 = vmax.f32 %v1249, %v2214
  %v2732 = vmax.f32 %v1254, %v2216
  %v2733 = vmax.f32 %v1259, %v2218
  %v2734 = vmax.f32 %v1264, %v2220
  %v2735 = vmax.f32 %v1269, %v2222
  %v2736 = vmax.f32 %v1274, %v2224
  %v2737 = vmax.f32 %v1279, %v2226
  %v2738 = vmax.f32 %v1284, %v2228
  %v2739 = vmax.f32 %v1289, %v2230
  %v2740 = vmax.f32 %v1294, %v2232
  %v2741 = vmax.f32 %v1299, %v2234
  %v2742 = vmax.f32 %v1304, %v2236
  %v2743 = vmax.f32 %v1309, %v2238
  %v2744 = vmax.f32 %v1314, %v2240
  %v2745 = vmax.f32 %v1319, %v2242
  %v2746 = vmax.f32 %v1324, %v2244
  %v2747 = vmax.f32 %v1329, %v2246
  %v2748 = vmax.f32 %v1334, %v2248
  %v2749 = vmax.f32 %v1339, %v2250
  %v2750 = vmax.f32 %v1344, %v2252
  %v2751 = vmax.f32 %v1349, %v2254
  %v2752 = vmax.f32 %v1354, %v2256
  %v2753 = vmax.f32 %v1359, %v2258
  %v2754 = vmax.f32 %v1364, %v2260
  %v2755 = vmax.f32 %v1369, %v2262
  %v2756 = vmax.f32 %v1374, %v2264
  %v2757 = vmax.f32 %v1379, %v2266
  %v2758 = vmax.f32 %v1384, %v2268
  %v2759 = vmax.f32 %v1389, %v2270
  %v2760 = vmax.f32 %v1394, %v2272
  %v2761 = vmax.f32 %v1399, %v2274
  %v2762 = vmax.f32 %v1404, %v2276
  %v2763 = vmax.f32 %v1409, %v2278
  %v2764 = vmax.f32 %v1414, %v2280
  %v2765 = vmax.f32 %v1419, %v2282
  %v2766 = vmax.f32 %v1424, %v2284
  %v2767 = vmax.f32 %v1429, %v2286
  %v2768 = vmax.f32 %v1434, %v2288
  %v2769 = vmax.f32 %v1439, %v2290
  %v2770 = vmax.f32 %v1444, %v2292
  %v2771 = vmax.f32 %v1449, %v2294
  %v2772 = vmax.f32 %v1454, %v2296
  %v2773 = vmax.f32 %v1459, %v2298
  %v2774 = vmax.f32 %v1464, %v2300
  %v2775 = vmax.f32 %v1469, %v2302
  %v2776 = vmax.f32 %v1474, %v2304
  %v2777 = vmax.f32 %v1479, %v2306
  %v2778 = vmax.f32 %v1484, %v2308
  %v2779 = vmax.f32 %v1489, %v2310
  %v2780 = vmax.f32 %v1494, %v2312
  %v2781 = vmax.f32 %v1499, %v2314
  %v2782 = vmax.f32 %v1504, %v2316
  %v2783 = vmax.f32 %v1509, %v2318
  %v2784 = vmax.f32 %v1514, %v2320
  %v2785 = vmax.f32 %v1519, %v2322
  %v2786 = vmax.f32 %v1524, %v2324
  %v2787 = vmax.f32 %v1529, %v2326
  %v2788 = vmax.f32 %v1534, %v2328
  %v2789 = vmax.f32 %v1539, %v2330
  %v2790 = vmax.f32 %v1544, %v2332
  %v2791 = vmax.f32 %v1549, %v2334
  %v2792 = vmax.f32 %v1554, %v2336
  %v2793 = vmax.f32 %v1559, %v2338
  %v2794 = vmax.f32 %v1564, %v2340
  %v2795 = vmax.f32 %v1569, %v2342
  %v2796 = vmax.f32 %v1574, %v2344
  %v2797 = vmax.f32 %v1579, %v2346
  %v2798 = vmax.f32 %v1584, %v2348
  %v2799 = vmax.f32 %v1589, %v2350
  %v2800 = vmax.f32 %v1594, %v2352
  %v2801 = vmax.f32 %v1599, %v2354
  %v2802 = vmax.f32 %v1604, %v2356
  %v2803 = vmax.f32 %v1609, %v2358
  %v2804 = vmax.f32 %v1614, %v2360
  %v2805 = vmax.f32 %v1619, %v2362
  %v2806 = vmax.f32 %v1624, %v2364
  %v2807 = vmax.f32 %v1629, %v2366
  %v2808 = vmax.f32 %v1634, %v2368
  %v2809 = vmax.f32 %v1639, %v2370
  %v2810 = vmax.f32 %v1644, %v2372
  %v2811 = vmax.f32 %v1649, %v2374
  %v2812 = vmax.f32 %v1654, %v2376
  %v2813 = vmax.f32 %v1659, %v2378
  %v2814 = vmax.f32 %v1664, %v2380
  %v2815 = vmax.f32 %v1669, %v2382
  %v2816 = vmax.f32 %v1674, %v2384
  %v2817 = vmax.f32 %v1679, %v2386
  %v2818 = vmax.f32 %v1684, %v2388
  %v2819 = vmax.f32 %v1689, %v2390
  %v2820 = vmax.f32 %v1694, %v2392
  %v2821 = vmax.f32 %v1699, %v2394
  %v2822 = vmax.f32 %v1704, %v2396
  %v2823 = vmax.f32 %v1709, %v2398
  %v2824 = vmax.f32 %v1714, %v2400
  %v2825 = vmax.f32 %v1719, %v2402
  %v2826 = vmax.f32 %v1724, %v2404
  %v2827 = vmax.f32 %v1729, %v2406
  %v2828 = vmax.f32 %v1734, %v2408
  %v2829 = vmax.f32 %v1739, %v2410
  %v2830 = vmax.f32 %v1744, %v2412
  %v2831 = vmax.f32 %v1749, %v2414
  %v2832 = vmax.f32 %v1754, %v2416
  %v2833 = vmax.f32 %v1759, %v2418
  %v2834 = vmax.f32 %v1764, %v2420
  %v2835 = vmax.f32 %v1769, %v2422
  %v2836 = vmax.f32 %v1774, %v2424
  %v2837 = vmax.f32 %v1779, %v2426
  %v2838 = vmax.f32 %v1784, %v2428
  %v2839 = vmax.f32 %v1789, %v2430
  %v2840 = vmax.f32 %v1794, %v2432
  %v2841 = vmax.f32 %v1799, %v2434
  %v2842 = vmax.f32 %v1804, %v2436
  %v2843 = vmax.f32 %v1809, %v2438
  %v2844 = vmax.f32 %v1814, %v2440
  %v2845 = vmax.f32 %v1819, %v2442
  %v2846 = vmax.f32 %v1824, %v2444
  %v2847 = vmax.f32 %v1829, %v2446
  %v2848 = vmax.f32 %v1834, %v2448
  %v2849 = vmax.f32 %v1839, %v2450
  %v2850 = vmax.f32 %v1844, %v2452
  %v2851 = vmax.f32 %v1849, %v2454
  %v2852 = vmax.f32 %v1854, %v2456
  %v2853 = vmax.f32 %v1859, %v2458
  %v2854 = vmax.f32 %v1864, %v2460
  %v2855 = vmax.f32 %v1869, %v2462
  %v2856 = vmax.f32 %v1874, %v2464
  %3053 = vrot.lane.b32.xlu0 %v2661, 116
  %v3054 = vpop.permute.xlu0 %3053
  %3055 = vrot.lane.b32.xlu0 %v2662, 116
  %v3056 = vpop.permute.xlu0 %3055
  %3057 = vrot.lane.b32.xlu0 %v2663, 116
  %v3058 = vpop.permute.xlu0 %3057
  %3059 = vrot.lane.b32.xlu0 %v2664, 116
  %v3060 = vpop.permute.xlu0 %3059
  %3061 = vrot.lane.b32.xlu0 %v2665, 116
  %v3062 = vpop.permute.xlu0 %3061
  %3063 = vrot.lane.b32.xlu0 %v2666, 116
  %v3064 = vpop.permute.xlu0 %3063
  %3065 = vrot.lane.b32.xlu0 %v2667, 116
  %v3066 = vpop.permute.xlu0 %3065
  %3067 = vrot.lane.b32.xlu0 %v2668, 116
  %v3068 = vpop.permute.xlu0 %3067
  %3069 = vrot.lane.b32.xlu0 %v2669, 116
  %v3070 = vpop.permute.xlu0 %3069
  %3071 = vrot.lane.b32.xlu0 %v2670, 116
  %v3072 = vpop.permute.xlu0 %3071
  %3073 = vrot.lane.b32.xlu0 %v2671, 116
  %v3074 = vpop.permute.xlu0 %3073
  %3075 = vrot.lane.b32.xlu0 %v2672, 116
  %v3076 = vpop.permute.xlu0 %3075
  %3077 = vrot.lane.b32.xlu0 %v2673, 116
  %v3078 = vpop.permute.xlu0 %3077
  %3079 = vrot.lane.b32.xlu0 %v2674, 116
  %v3080 = vpop.permute.xlu0 %3079
  %3081 = vrot.lane.b32.xlu0 %v2675, 116
  %v3082 = vpop.permute.xlu0 %3081
  %3083 = vrot.lane.b32.xlu0 %v2676, 116
  %v3084 = vpop.permute.xlu0 %3083
  %3085 = vrot.lane.b32.xlu0 %v2677, 116
  %v3086 = vpop.permute.xlu0 %3085
  %3087 = vrot.lane.b32.xlu0 %v2678, 116
  %v3088 = vpop.permute.xlu0 %3087
  %3089 = vrot.lane.b32.xlu0 %v2679, 116
  %v3090 = vpop.permute.xlu0 %3089
  %3091 = vrot.lane.b32.xlu0 %v2680, 116
  %v3092 = vpop.permute.xlu0 %3091
  %3093 = vrot.lane.b32.xlu0 %v2681, 116
  %v3094 = vpop.permute.xlu0 %3093
  %3095 = vrot.lane.b32.xlu0 %v2682, 116
  %v3096 = vpop.permute.xlu0 %3095
  %3097 = vrot.lane.b32.xlu0 %v2683, 116
  %v3098 = vpop.permute.xlu0 %3097
  %3099 = vrot.lane.b32.xlu0 %v2684, 116
  %v3100 = vpop.permute.xlu0 %3099
  %3101 = vrot.lane.b32.xlu0 %v2685, 116
  %v3102 = vpop.permute.xlu0 %3101
  %3103 = vrot.lane.b32.xlu0 %v2686, 116
  %v3104 = vpop.permute.xlu0 %3103
  %3105 = vrot.lane.b32.xlu0 %v2687, 116
  %v3106 = vpop.permute.xlu0 %3105
  %3107 = vrot.lane.b32.xlu0 %v2688, 116
  %v3108 = vpop.permute.xlu0 %3107
  %3109 = vrot.lane.b32.xlu0 %v2689, 116
  %v3110 = vpop.permute.xlu0 %3109
  %3111 = vrot.lane.b32.xlu0 %v2690, 116
  %v3112 = vpop.permute.xlu0 %3111
  %3113 = vrot.lane.b32.xlu0 %v2691, 116
  %v3114 = vpop.permute.xlu0 %3113
  %3115 = vrot.lane.b32.xlu0 %v2692, 116
  %v3116 = vpop.permute.xlu0 %3115
  %3117 = vrot.lane.b32.xlu0 %v2693, 116
  %v3118 = vpop.permute.xlu0 %3117
  %3119 = vrot.lane.b32.xlu0 %v2694, 116
  %v3120 = vpop.permute.xlu0 %3119
  %3121 = vrot.lane.b32.xlu0 %v2695, 116
  %v3122 = vpop.permute.xlu0 %3121
  %3123 = vrot.lane.b32.xlu0 %v2696, 116
  %v3124 = vpop.permute.xlu0 %3123
  %3125 = vrot.lane.b32.xlu0 %v2697, 116
  %v3126 = vpop.permute.xlu0 %3125
  %3127 = vrot.lane.b32.xlu0 %v2698, 116
  %v3128 = vpop.permute.xlu0 %3127
  %3129 = vrot.lane.b32.xlu0 %v2699, 116
  %v3130 = vpop.permute.xlu0 %3129
  %3131 = vrot.lane.b32.xlu0 %v2700, 116
  %v3132 = vpop.permute.xlu0 %3131
  %3133 = vrot.lane.b32.xlu0 %v2701, 116
  %v3134 = vpop.permute.xlu0 %3133
  %3135 = vrot.lane.b32.xlu0 %v2702, 116
  %v3136 = vpop.permute.xlu0 %3135
  %3137 = vrot.lane.b32.xlu0 %v2703, 116
  %v3138 = vpop.permute.xlu0 %3137
  %3139 = vrot.lane.b32.xlu0 %v2704, 116
  %v3140 = vpop.permute.xlu0 %3139
  %3141 = vrot.lane.b32.xlu0 %v2705, 116
  %v3142 = vpop.permute.xlu0 %3141
  %3143 = vrot.lane.b32.xlu0 %v2706, 116
  %v3144 = vpop.permute.xlu0 %3143
  %3145 = vrot.lane.b32.xlu0 %v2707, 116
  %v3146 = vpop.permute.xlu0 %3145
  %3147 = vrot.lane.b32.xlu0 %v2708, 116
  %v3148 = vpop.permute.xlu0 %3147
  %3149 = vrot.lane.b32.xlu0 %v2709, 116
  %v3150 = vpop.permute.xlu0 %3149
  %3151 = vrot.lane.b32.xlu0 %v2710, 116
  %v3152 = vpop.permute.xlu0 %3151
  %3153 = vrot.lane.b32.xlu0 %v2711, 116
  %v3154 = vpop.permute.xlu0 %3153
  %3155 = vrot.lane.b32.xlu0 %v2712, 116
  %v3156 = vpop.permute.xlu0 %3155
  %3157 = vrot.lane.b32.xlu0 %v2713, 116
  %v3158 = vpop.permute.xlu0 %3157
  %3159 = vrot.lane.b32.xlu0 %v2714, 116
  %v3160 = vpop.permute.xlu0 %3159
  %3161 = vrot.lane.b32.xlu0 %v2715, 116
  %v3162 = vpop.permute.xlu0 %3161
  %3163 = vrot.lane.b32.xlu0 %v2716, 116
  %v3164 = vpop.permute.xlu0 %3163
  %3165 = vrot.lane.b32.xlu0 %v2717, 116
  %v3166 = vpop.permute.xlu0 %3165
  %3167 = vrot.lane.b32.xlu0 %v2718, 116
  %v3168 = vpop.permute.xlu0 %3167
  %3169 = vrot.lane.b32.xlu0 %v2719, 116
  %v3170 = vpop.permute.xlu0 %3169
  %3171 = vrot.lane.b32.xlu0 %v2720, 116
  %v3172 = vpop.permute.xlu0 %3171
  %3173 = vrot.lane.b32.xlu0 %v2721, 116
  %v3174 = vpop.permute.xlu0 %3173
  %3175 = vrot.lane.b32.xlu0 %v2722, 116
  %v3176 = vpop.permute.xlu0 %3175
  %3177 = vrot.lane.b32.xlu0 %v2723, 116
  %v3178 = vpop.permute.xlu0 %3177
  %3179 = vrot.lane.b32.xlu0 %v2724, 116
  %v3180 = vpop.permute.xlu0 %3179
  %3181 = vrot.lane.b32.xlu0 %v2725, 116
  %v3182 = vpop.permute.xlu0 %3181
  %3183 = vrot.lane.b32.xlu0 %v2726, 116
  %v3184 = vpop.permute.xlu0 %3183
  %3185 = vrot.lane.b32.xlu0 %v2727, 116
  %v3186 = vpop.permute.xlu0 %3185
  %3187 = vrot.lane.b32.xlu0 %v2728, 116
  %v3188 = vpop.permute.xlu0 %3187
  %3189 = vrot.lane.b32.xlu0 %v2729, 116
  %v3190 = vpop.permute.xlu0 %3189
  %3191 = vrot.lane.b32.xlu0 %v2730, 116
  %v3192 = vpop.permute.xlu0 %3191
  %3193 = vrot.lane.b32.xlu0 %v2731, 116
  %v3194 = vpop.permute.xlu0 %3193
  %3195 = vrot.lane.b32.xlu0 %v2732, 116
  %v3196 = vpop.permute.xlu0 %3195
  %3197 = vrot.lane.b32.xlu0 %v2733, 116
  %v3198 = vpop.permute.xlu0 %3197
  %3199 = vrot.lane.b32.xlu0 %v2734, 116
  %v3200 = vpop.permute.xlu0 %3199
  %3201 = vrot.lane.b32.xlu0 %v2735, 116
  %v3202 = vpop.permute.xlu0 %3201
  %3203 = vrot.lane.b32.xlu0 %v2736, 116
  %v3204 = vpop.permute.xlu0 %3203
  %3205 = vrot.lane.b32.xlu0 %v2737, 116
  %v3206 = vpop.permute.xlu0 %3205
  %3207 = vrot.lane.b32.xlu0 %v2738, 116
  %v3208 = vpop.permute.xlu0 %3207
  %3209 = vrot.lane.b32.xlu0 %v2739, 116
  %v3210 = vpop.permute.xlu0 %3209
  %3211 = vrot.lane.b32.xlu0 %v2740, 116
  %v3212 = vpop.permute.xlu0 %3211
  %3213 = vrot.lane.b32.xlu0 %v2741, 116
  %v3214 = vpop.permute.xlu0 %3213
  %3215 = vrot.lane.b32.xlu0 %v2742, 116
  %v3216 = vpop.permute.xlu0 %3215
  %3217 = vrot.lane.b32.xlu0 %v2743, 116
  %v3218 = vpop.permute.xlu0 %3217
  %3219 = vrot.lane.b32.xlu0 %v2744, 116
  %v3220 = vpop.permute.xlu0 %3219
  %3221 = vrot.lane.b32.xlu0 %v2745, 116
  %v3222 = vpop.permute.xlu0 %3221
  %3223 = vrot.lane.b32.xlu0 %v2746, 116
  %v3224 = vpop.permute.xlu0 %3223
  %3225 = vrot.lane.b32.xlu0 %v2747, 116
  %v3226 = vpop.permute.xlu0 %3225
  %3227 = vrot.lane.b32.xlu0 %v2748, 116
  %v3228 = vpop.permute.xlu0 %3227
  %3229 = vrot.lane.b32.xlu0 %v2749, 116
  %v3230 = vpop.permute.xlu0 %3229
  %3231 = vrot.lane.b32.xlu0 %v2750, 116
  %v3232 = vpop.permute.xlu0 %3231
  %3233 = vrot.lane.b32.xlu0 %v2751, 116
  %v3234 = vpop.permute.xlu0 %3233
  %3235 = vrot.lane.b32.xlu0 %v2752, 116
  %v3236 = vpop.permute.xlu0 %3235
  %3237 = vrot.lane.b32.xlu0 %v2753, 116
  %v3238 = vpop.permute.xlu0 %3237
  %3239 = vrot.lane.b32.xlu0 %v2754, 116
  %v3240 = vpop.permute.xlu0 %3239
  %3241 = vrot.lane.b32.xlu0 %v2755, 116
  %v3242 = vpop.permute.xlu0 %3241
  %3243 = vrot.lane.b32.xlu0 %v2756, 116
  %v3244 = vpop.permute.xlu0 %3243
  %3245 = vrot.lane.b32.xlu0 %v2757, 116
  %v3246 = vpop.permute.xlu0 %3245
  %3247 = vrot.lane.b32.xlu0 %v2758, 116
  %v3248 = vpop.permute.xlu0 %3247
  %3249 = vrot.lane.b32.xlu0 %v2759, 116
  %v3250 = vpop.permute.xlu0 %3249
  %3251 = vrot.lane.b32.xlu0 %v2760, 116
  %v3252 = vpop.permute.xlu0 %3251
  %3253 = vrot.lane.b32.xlu0 %v2761, 116
  %v3254 = vpop.permute.xlu0 %3253
  %3255 = vrot.lane.b32.xlu0 %v2762, 116
  %v3256 = vpop.permute.xlu0 %3255
  %3257 = vrot.lane.b32.xlu0 %v2763, 116
  %v3258 = vpop.permute.xlu0 %3257
  %3259 = vrot.lane.b32.xlu0 %v2764, 116
  %v3260 = vpop.permute.xlu0 %3259
  %3261 = vrot.lane.b32.xlu0 %v2765, 116
  %v3262 = vpop.permute.xlu0 %3261
  %3263 = vrot.lane.b32.xlu0 %v2766, 116
  %v3264 = vpop.permute.xlu0 %3263
  %3265 = vrot.lane.b32.xlu0 %v2767, 116
  %v3266 = vpop.permute.xlu0 %3265
  %3267 = vrot.lane.b32.xlu0 %v2768, 116
  %v3268 = vpop.permute.xlu0 %3267
  %3269 = vrot.lane.b32.xlu0 %v2769, 116
  %v3270 = vpop.permute.xlu0 %3269
  %3271 = vrot.lane.b32.xlu0 %v2770, 116
  %v3272 = vpop.permute.xlu0 %3271
  %3273 = vrot.lane.b32.xlu0 %v2771, 116
  %v3274 = vpop.permute.xlu0 %3273
  %3275 = vrot.lane.b32.xlu0 %v2772, 116
  %v3276 = vpop.permute.xlu0 %3275
  %3277 = vrot.lane.b32.xlu0 %v2773, 116
  %v3278 = vpop.permute.xlu0 %3277
  %3279 = vrot.lane.b32.xlu0 %v2774, 116
  %v3280 = vpop.permute.xlu0 %3279
  %3281 = vrot.lane.b32.xlu0 %v2775, 116
  %v3282 = vpop.permute.xlu0 %3281
  %3283 = vrot.lane.b32.xlu0 %v2776, 116
  %v3284 = vpop.permute.xlu0 %3283
  %3285 = vrot.lane.b32.xlu0 %v2777, 116
  %v3286 = vpop.permute.xlu0 %3285
  %3287 = vrot.lane.b32.xlu0 %v2778, 116
  %v3288 = vpop.permute.xlu0 %3287
  %3289 = vrot.lane.b32.xlu0 %v2779, 116
  %v3290 = vpop.permute.xlu0 %3289
  %3291 = vrot.lane.b32.xlu0 %v2780, 116
  %v3292 = vpop.permute.xlu0 %3291
  %3293 = vrot.lane.b32.xlu0 %v2781, 116
  %v3294 = vpop.permute.xlu0 %3293
  %3295 = vrot.lane.b32.xlu0 %v2782, 116
  %v3296 = vpop.permute.xlu0 %3295
  %3297 = vrot.lane.b32.xlu0 %v2783, 116
  %v3298 = vpop.permute.xlu0 %3297
  %3299 = vrot.lane.b32.xlu0 %v2784, 116
  %v3300 = vpop.permute.xlu0 %3299
  %3301 = vrot.lane.b32.xlu0 %v2785, 116
  %v3302 = vpop.permute.xlu0 %3301
  %3303 = vrot.lane.b32.xlu0 %v2786, 116
  %v3304 = vpop.permute.xlu0 %3303
  %3305 = vrot.lane.b32.xlu0 %v2787, 116
  %v3306 = vpop.permute.xlu0 %3305
  %3307 = vrot.lane.b32.xlu0 %v2788, 116
  %v3308 = vpop.permute.xlu0 %3307
  %3309 = vrot.lane.b32.xlu0 %v2789, 116
  %v3310 = vpop.permute.xlu0 %3309
  %3311 = vrot.lane.b32.xlu0 %v2790, 116
  %v3312 = vpop.permute.xlu0 %3311
  %3313 = vrot.lane.b32.xlu0 %v2791, 116
  %v3314 = vpop.permute.xlu0 %3313
  %3315 = vrot.lane.b32.xlu0 %v2792, 116
  %v3316 = vpop.permute.xlu0 %3315
  %3317 = vrot.lane.b32.xlu0 %v2793, 116
  %v3318 = vpop.permute.xlu0 %3317
  %3319 = vrot.lane.b32.xlu0 %v2794, 116
  %v3320 = vpop.permute.xlu0 %3319
  %3321 = vrot.lane.b32.xlu0 %v2795, 116
  %v3322 = vpop.permute.xlu0 %3321
  %3323 = vrot.lane.b32.xlu0 %v2796, 116
  %v3324 = vpop.permute.xlu0 %3323
  %3325 = vrot.lane.b32.xlu0 %v2797, 116
  %v3326 = vpop.permute.xlu0 %3325
  %3327 = vrot.lane.b32.xlu0 %v2798, 116
  %v3328 = vpop.permute.xlu0 %3327
  %3329 = vrot.lane.b32.xlu0 %v2799, 116
  %v3330 = vpop.permute.xlu0 %3329
  %3331 = vrot.lane.b32.xlu0 %v2800, 116
  %v3332 = vpop.permute.xlu0 %3331
  %3333 = vrot.lane.b32.xlu0 %v2801, 116
  %v3334 = vpop.permute.xlu0 %3333
  %3335 = vrot.lane.b32.xlu0 %v2802, 116
  %v3336 = vpop.permute.xlu0 %3335
  %3337 = vrot.lane.b32.xlu0 %v2803, 116
  %v3338 = vpop.permute.xlu0 %3337
  %3339 = vrot.lane.b32.xlu0 %v2804, 116
  %v3340 = vpop.permute.xlu0 %3339
  %3341 = vrot.lane.b32.xlu0 %v2805, 116
  %v3342 = vpop.permute.xlu0 %3341
  %3343 = vrot.lane.b32.xlu0 %v2806, 116
  %v3344 = vpop.permute.xlu0 %3343
  %3345 = vrot.lane.b32.xlu0 %v2807, 116
  %v3346 = vpop.permute.xlu0 %3345
  %3347 = vrot.lane.b32.xlu0 %v2808, 116
  %v3348 = vpop.permute.xlu0 %3347
  %3349 = vrot.lane.b32.xlu0 %v2809, 116
  %v3350 = vpop.permute.xlu0 %3349
  %3351 = vrot.lane.b32.xlu0 %v2810, 116
  %v3352 = vpop.permute.xlu0 %3351
  %3353 = vrot.lane.b32.xlu0 %v2811, 116
  %v3354 = vpop.permute.xlu0 %3353
  %3355 = vrot.lane.b32.xlu0 %v2812, 116
  %v3356 = vpop.permute.xlu0 %3355
  %3357 = vrot.lane.b32.xlu0 %v2813, 116
  %v3358 = vpop.permute.xlu0 %3357
  %3359 = vrot.lane.b32.xlu0 %v2814, 116
  %v3360 = vpop.permute.xlu0 %3359
  %3361 = vrot.lane.b32.xlu0 %v2815, 116
  %v3362 = vpop.permute.xlu0 %3361
  %3363 = vrot.lane.b32.xlu0 %v2816, 116
  %v3364 = vpop.permute.xlu0 %3363
  %3365 = vrot.lane.b32.xlu0 %v2817, 116
  %v3366 = vpop.permute.xlu0 %3365
  %3367 = vrot.lane.b32.xlu0 %v2818, 116
  %v3368 = vpop.permute.xlu0 %3367
  %3369 = vrot.lane.b32.xlu0 %v2819, 116
  %v3370 = vpop.permute.xlu0 %3369
  %3371 = vrot.lane.b32.xlu0 %v2820, 116
  %v3372 = vpop.permute.xlu0 %3371
  %3373 = vrot.lane.b32.xlu0 %v2821, 116
  %v3374 = vpop.permute.xlu0 %3373
  %3375 = vrot.lane.b32.xlu0 %v2822, 116
  %v3376 = vpop.permute.xlu0 %3375
  %3377 = vrot.lane.b32.xlu0 %v2823, 116
  %v3378 = vpop.permute.xlu0 %3377
  %3379 = vrot.lane.b32.xlu0 %v2824, 116
  %v3380 = vpop.permute.xlu0 %3379
  %3381 = vrot.lane.b32.xlu0 %v2825, 116
  %v3382 = vpop.permute.xlu0 %3381
  %3383 = vrot.lane.b32.xlu0 %v2826, 116
  %v3384 = vpop.permute.xlu0 %3383
  %3385 = vrot.lane.b32.xlu0 %v2827, 116
  %v3386 = vpop.permute.xlu0 %3385
  %3387 = vrot.lane.b32.xlu0 %v2828, 116
  %v3388 = vpop.permute.xlu0 %3387
  %3389 = vrot.lane.b32.xlu0 %v2829, 116
  %v3390 = vpop.permute.xlu0 %3389
  %3391 = vrot.lane.b32.xlu0 %v2830, 116
  %v3392 = vpop.permute.xlu0 %3391
  %3393 = vrot.lane.b32.xlu0 %v2831, 116
  %v3394 = vpop.permute.xlu0 %3393
  %3395 = vrot.lane.b32.xlu0 %v2832, 116
  %v3396 = vpop.permute.xlu0 %3395
  %3397 = vrot.lane.b32.xlu0 %v2833, 116
  %v3398 = vpop.permute.xlu0 %3397
  %3399 = vrot.lane.b32.xlu0 %v2834, 116
  %v3400 = vpop.permute.xlu0 %3399
  %3401 = vrot.lane.b32.xlu0 %v2835, 116
  %v3402 = vpop.permute.xlu0 %3401
  %3403 = vrot.lane.b32.xlu0 %v2836, 116
  %v3404 = vpop.permute.xlu0 %3403
  %3405 = vrot.lane.b32.xlu0 %v2837, 116
  %v3406 = vpop.permute.xlu0 %3405
  %3407 = vrot.lane.b32.xlu0 %v2838, 116
  %v3408 = vpop.permute.xlu0 %3407
  %3409 = vrot.lane.b32.xlu0 %v2839, 116
  %v3410 = vpop.permute.xlu0 %3409
  %3411 = vrot.lane.b32.xlu0 %v2840, 116
  %v3412 = vpop.permute.xlu0 %3411
  %3413 = vrot.lane.b32.xlu0 %v2841, 116
  %v3414 = vpop.permute.xlu0 %3413
  %3415 = vrot.lane.b32.xlu0 %v2842, 116
  %v3416 = vpop.permute.xlu0 %3415
  %3417 = vrot.lane.b32.xlu0 %v2843, 116
  %v3418 = vpop.permute.xlu0 %3417
  %3419 = vrot.lane.b32.xlu0 %v2844, 116
  %v3420 = vpop.permute.xlu0 %3419
  %3421 = vrot.lane.b32.xlu0 %v2845, 116
  %v3422 = vpop.permute.xlu0 %3421
  %3423 = vrot.lane.b32.xlu0 %v2846, 116
  %v3424 = vpop.permute.xlu0 %3423
  %3425 = vrot.lane.b32.xlu0 %v2847, 116
  %v3426 = vpop.permute.xlu0 %3425
  %3427 = vrot.lane.b32.xlu0 %v2848, 116
  %v3428 = vpop.permute.xlu0 %3427
  %3429 = vrot.lane.b32.xlu0 %v2849, 116
  %v3430 = vpop.permute.xlu0 %3429
  %3431 = vrot.lane.b32.xlu0 %v2850, 116
  %v3432 = vpop.permute.xlu0 %3431
  %3433 = vrot.lane.b32.xlu0 %v2851, 116
  %v3434 = vpop.permute.xlu0 %3433
  %3435 = vrot.lane.b32.xlu0 %v2852, 116
  %v3436 = vpop.permute.xlu0 %3435
  %3437 = vrot.lane.b32.xlu0 %v2853, 116
  %v3438 = vpop.permute.xlu0 %3437
  %3439 = vrot.lane.b32.xlu0 %v2854, 116
  %v3440 = vpop.permute.xlu0 %3439
  %3441 = vrot.lane.b32.xlu0 %v2855, 116
  %v3442 = vpop.permute.xlu0 %3441
  %3443 = vrot.lane.b32.xlu0 %v2856, 116
  %v3444 = vpop.permute.xlu0 %3443
  %v3641 = vmax.f32 %v2661, %v3054
  %v3642 = vmax.f32 %v2662, %v3056
  %v3643 = vmax.f32 %v2663, %v3058
  %v3644 = vmax.f32 %v2664, %v3060
  %v3645 = vmax.f32 %v2665, %v3062
  %v3646 = vmax.f32 %v2666, %v3064
  %v3647 = vmax.f32 %v2667, %v3066
  %v3648 = vmax.f32 %v2668, %v3068
  %v3649 = vmax.f32 %v2669, %v3070
  %v3650 = vmax.f32 %v2670, %v3072
  %v3651 = vmax.f32 %v2671, %v3074
  %v3652 = vmax.f32 %v2672, %v3076
  %v3653 = vmax.f32 %v2673, %v3078
  %v3654 = vmax.f32 %v2674, %v3080
  %v3655 = vmax.f32 %v2675, %v3082
  %v3656 = vmax.f32 %v2676, %v3084
  %v3657 = vmax.f32 %v2677, %v3086
  %v3658 = vmax.f32 %v2678, %v3088
  %v3659 = vmax.f32 %v2679, %v3090
  %v3660 = vmax.f32 %v2680, %v3092
  %v3661 = vmax.f32 %v2681, %v3094
  %v3662 = vmax.f32 %v2682, %v3096
  %v3663 = vmax.f32 %v2683, %v3098
  %v3664 = vmax.f32 %v2684, %v3100
  %v3665 = vmax.f32 %v2685, %v3102
  %v3666 = vmax.f32 %v2686, %v3104
  %v3667 = vmax.f32 %v2687, %v3106
  %v3668 = vmax.f32 %v2688, %v3108
  %v3669 = vmax.f32 %v2689, %v3110
  %v3670 = vmax.f32 %v2690, %v3112
  %v3671 = vmax.f32 %v2691, %v3114
  %v3672 = vmax.f32 %v2692, %v3116
  %v3673 = vmax.f32 %v2693, %v3118
  %v3674 = vmax.f32 %v2694, %v3120
  %v3675 = vmax.f32 %v2695, %v3122
  %v3676 = vmax.f32 %v2696, %v3124
  %v3677 = vmax.f32 %v2697, %v3126
  %v3678 = vmax.f32 %v2698, %v3128
  %v3679 = vmax.f32 %v2699, %v3130
  %v3680 = vmax.f32 %v2700, %v3132
  %v3681 = vmax.f32 %v2701, %v3134
  %v3682 = vmax.f32 %v2702, %v3136
  %v3683 = vmax.f32 %v2703, %v3138
  %v3684 = vmax.f32 %v2704, %v3140
  %v3685 = vmax.f32 %v2705, %v3142
  %v3686 = vmax.f32 %v2706, %v3144
  %v3687 = vmax.f32 %v2707, %v3146
  %v3688 = vmax.f32 %v2708, %v3148
  %v3689 = vmax.f32 %v2709, %v3150
  %v3690 = vmax.f32 %v2710, %v3152
  %v3691 = vmax.f32 %v2711, %v3154
  %v3692 = vmax.f32 %v2712, %v3156
  %v3693 = vmax.f32 %v2713, %v3158
  %v3694 = vmax.f32 %v2714, %v3160
  %v3695 = vmax.f32 %v2715, %v3162
  %v3696 = vmax.f32 %v2716, %v3164
  %v3697 = vmax.f32 %v2717, %v3166
  %v3698 = vmax.f32 %v2718, %v3168
  %v3699 = vmax.f32 %v2719, %v3170
  %v3700 = vmax.f32 %v2720, %v3172
  %v3701 = vmax.f32 %v2721, %v3174
  %v3702 = vmax.f32 %v2722, %v3176
  %v3703 = vmax.f32 %v2723, %v3178
  %v3704 = vmax.f32 %v2724, %v3180
  %v3705 = vmax.f32 %v2725, %v3182
  %v3706 = vmax.f32 %v2726, %v3184
  %v3707 = vmax.f32 %v2727, %v3186
  %v3708 = vmax.f32 %v2728, %v3188
  %v3709 = vmax.f32 %v2729, %v3190
  %v3710 = vmax.f32 %v2730, %v3192
  %v3711 = vmax.f32 %v2731, %v3194
  %v3712 = vmax.f32 %v2732, %v3196
  %v3713 = vmax.f32 %v2733, %v3198
  %v3714 = vmax.f32 %v2734, %v3200
  %v3715 = vmax.f32 %v2735, %v3202
  %v3716 = vmax.f32 %v2736, %v3204
  %v3717 = vmax.f32 %v2737, %v3206
  %v3718 = vmax.f32 %v2738, %v3208
  %v3719 = vmax.f32 %v2739, %v3210
  %v3720 = vmax.f32 %v2740, %v3212
  %v3721 = vmax.f32 %v2741, %v3214
  %v3722 = vmax.f32 %v2742, %v3216
  %v3723 = vmax.f32 %v2743, %v3218
  %v3724 = vmax.f32 %v2744, %v3220
  %v3725 = vmax.f32 %v2745, %v3222
  %v3726 = vmax.f32 %v2746, %v3224
  %v3727 = vmax.f32 %v2747, %v3226
  %v3728 = vmax.f32 %v2748, %v3228
  %v3729 = vmax.f32 %v2749, %v3230
  %v3730 = vmax.f32 %v2750, %v3232
  %v3731 = vmax.f32 %v2751, %v3234
  %v3732 = vmax.f32 %v2752, %v3236
  %v3733 = vmax.f32 %v2753, %v3238
  %v3734 = vmax.f32 %v2754, %v3240
  %v3735 = vmax.f32 %v2755, %v3242
  %v3736 = vmax.f32 %v2756, %v3244
  %v3737 = vmax.f32 %v2757, %v3246
  %v3738 = vmax.f32 %v2758, %v3248
  %v3739 = vmax.f32 %v2759, %v3250
  %v3740 = vmax.f32 %v2760, %v3252
  %v3741 = vmax.f32 %v2761, %v3254
  %v3742 = vmax.f32 %v2762, %v3256
  %v3743 = vmax.f32 %v2763, %v3258
  %v3744 = vmax.f32 %v2764, %v3260
  %v3745 = vmax.f32 %v2765, %v3262
  %v3746 = vmax.f32 %v2766, %v3264
  %v3747 = vmax.f32 %v2767, %v3266
  %v3748 = vmax.f32 %v2768, %v3268
  %v3749 = vmax.f32 %v2769, %v3270
  %v3750 = vmax.f32 %v2770, %v3272
  %v3751 = vmax.f32 %v2771, %v3274
  %v3752 = vmax.f32 %v2772, %v3276
  %v3753 = vmax.f32 %v2773, %v3278
  %v3754 = vmax.f32 %v2774, %v3280
  %v3755 = vmax.f32 %v2775, %v3282
  %v3756 = vmax.f32 %v2776, %v3284
  %v3757 = vmax.f32 %v2777, %v3286
  %v3758 = vmax.f32 %v2778, %v3288
  %v3759 = vmax.f32 %v2779, %v3290
  %v3760 = vmax.f32 %v2780, %v3292
  %v3761 = vmax.f32 %v2781, %v3294
  %v3762 = vmax.f32 %v2782, %v3296
  %v3763 = vmax.f32 %v2783, %v3298
  %v3764 = vmax.f32 %v2784, %v3300
  %v3765 = vmax.f32 %v2785, %v3302
  %v3766 = vmax.f32 %v2786, %v3304
  %v3767 = vmax.f32 %v2787, %v3306
  %v3768 = vmax.f32 %v2788, %v3308
  %v3769 = vmax.f32 %v2789, %v3310
  %v3770 = vmax.f32 %v2790, %v3312
  %v3771 = vmax.f32 %v2791, %v3314
  %v3772 = vmax.f32 %v2792, %v3316
  %v3773 = vmax.f32 %v2793, %v3318
  %v3774 = vmax.f32 %v2794, %v3320
  %v3775 = vmax.f32 %v2795, %v3322
  %v3776 = vmax.f32 %v2796, %v3324
  %v3777 = vmax.f32 %v2797, %v3326
  %v3778 = vmax.f32 %v2798, %v3328
  %v3779 = vmax.f32 %v2799, %v3330
  %v3780 = vmax.f32 %v2800, %v3332
  %v3781 = vmax.f32 %v2801, %v3334
  %v3782 = vmax.f32 %v2802, %v3336
  %v3783 = vmax.f32 %v2803, %v3338
  %v3784 = vmax.f32 %v2804, %v3340
  %v3785 = vmax.f32 %v2805, %v3342
  %v3786 = vmax.f32 %v2806, %v3344
  %v3787 = vmax.f32 %v2807, %v3346
  %v3788 = vmax.f32 %v2808, %v3348
  %v3789 = vmax.f32 %v2809, %v3350
  %v3790 = vmax.f32 %v2810, %v3352
  %v3791 = vmax.f32 %v2811, %v3354
  %v3792 = vmax.f32 %v2812, %v3356
  %v3793 = vmax.f32 %v2813, %v3358
  %v3794 = vmax.f32 %v2814, %v3360
  %v3795 = vmax.f32 %v2815, %v3362
  %v3796 = vmax.f32 %v2816, %v3364
  %v3797 = vmax.f32 %v2817, %v3366
  %v3798 = vmax.f32 %v2818, %v3368
  %v3799 = vmax.f32 %v2819, %v3370
  %v3800 = vmax.f32 %v2820, %v3372
  %v3801 = vmax.f32 %v2821, %v3374
  %v3802 = vmax.f32 %v2822, %v3376
  %v3803 = vmax.f32 %v2823, %v3378
  %v3804 = vmax.f32 %v2824, %v3380
  %v3805 = vmax.f32 %v2825, %v3382
  %v3806 = vmax.f32 %v2826, %v3384
  %v3807 = vmax.f32 %v2827, %v3386
  %v3808 = vmax.f32 %v2828, %v3388
  %v3809 = vmax.f32 %v2829, %v3390
  %v3810 = vmax.f32 %v2830, %v3392
  %v3811 = vmax.f32 %v2831, %v3394
  %v3812 = vmax.f32 %v2832, %v3396
  %v3813 = vmax.f32 %v2833, %v3398
  %v3814 = vmax.f32 %v2834, %v3400
  %v3815 = vmax.f32 %v2835, %v3402
  %v3816 = vmax.f32 %v2836, %v3404
  %v3817 = vmax.f32 %v2837, %v3406
  %v3818 = vmax.f32 %v2838, %v3408
  %v3819 = vmax.f32 %v2839, %v3410
  %v3820 = vmax.f32 %v2840, %v3412
  %v3821 = vmax.f32 %v2841, %v3414
  %v3822 = vmax.f32 %v2842, %v3416
  %v3823 = vmax.f32 %v2843, %v3418
  %v3824 = vmax.f32 %v2844, %v3420
  %v3825 = vmax.f32 %v2845, %v3422
  %v3826 = vmax.f32 %v2846, %v3424
  %v3827 = vmax.f32 %v2847, %v3426
  %v3828 = vmax.f32 %v2848, %v3428
  %v3829 = vmax.f32 %v2849, %v3430
  %v3830 = vmax.f32 %v2850, %v3432
  %v3831 = vmax.f32 %v2851, %v3434
  %v3832 = vmax.f32 %v2852, %v3436
  %v3833 = vmax.f32 %v2853, %v3438
  %v3834 = vmax.f32 %v2854, %v3440
  %v3835 = vmax.f32 %v2855, %v3442
  %v3836 = vmax.f32 %v2856, %v3444
  %v3837 = vld [vmem:[%s2] sm:$0x1]
  %v3839 = vlaneseq
  %v3840 = vshrl.u32 %v3839, 7
  %v3841 = vsub.s32 0, %v3840
  %v3842 = vrot.slane %v3837, %v3841
  %v3844 = vadd.f32 %v3641, %v3842
  %v3845 = vadd.f32 %v3642, %v3842
  %v3846 = vadd.f32 %v3643, %v3842
  %v3847 = vadd.f32 %v3644, %v3842
  %v3848 = vadd.f32 %v3645, %v3842
  %v3849 = vadd.f32 %v3646, %v3842
  %v3850 = vadd.f32 %v3647, %v3842
  %v3851 = vadd.f32 %v3648, %v3842
  %v3852 = vadd.f32 %v3649, %v3842
  %v3853 = vadd.f32 %v3650, %v3842
  %v3854 = vadd.f32 %v3651, %v3842
  %v3855 = vadd.f32 %v3652, %v3842
  %v3856 = vadd.f32 %v3653, %v3842
  %v3857 = vadd.f32 %v3654, %v3842
  %v3858 = vadd.f32 %v3655, %v3842
  %v3859 = vadd.f32 %v3656, %v3842
  %v3860 = vadd.f32 %v3657, %v3842
  %v3861 = vadd.f32 %v3658, %v3842
  %v3862 = vadd.f32 %v3659, %v3842
  %v3863 = vadd.f32 %v3660, %v3842
  %v3864 = vadd.f32 %v3661, %v3842
  %v3865 = vadd.f32 %v3662, %v3842
  %v3866 = vadd.f32 %v3663, %v3842
  %v3867 = vadd.f32 %v3664, %v3842
  %v3868 = vadd.f32 %v3665, %v3842
  %v3869 = vadd.f32 %v3666, %v3842
  %v3870 = vadd.f32 %v3667, %v3842
  %v3871 = vadd.f32 %v3668, %v3842
  %v3872 = vadd.f32 %v3669, %v3842
  %v3873 = vadd.f32 %v3670, %v3842
  %v3874 = vadd.f32 %v3671, %v3842
  %v3875 = vadd.f32 %v3672, %v3842
  %v3876 = vadd.f32 %v3673, %v3842
  %v3877 = vadd.f32 %v3674, %v3842
  %v3878 = vadd.f32 %v3675, %v3842
  %v3879 = vadd.f32 %v3676, %v3842
  %v3880 = vadd.f32 %v3677, %v3842
  %v3881 = vadd.f32 %v3678, %v3842
  %v3882 = vadd.f32 %v3679, %v3842
  %v3883 = vadd.f32 %v3680, %v3842
  %v3884 = vadd.f32 %v3681, %v3842
  %v3885 = vadd.f32 %v3682, %v3842
  %v3886 = vadd.f32 %v3683, %v3842
  %v3887 = vadd.f32 %v3684, %v3842
  %v3888 = vadd.f32 %v3685, %v3842
  %v3889 = vadd.f32 %v3686, %v3842
  %v3890 = vadd.f32 %v3687, %v3842
  %v3891 = vadd.f32 %v3688, %v3842
  %v3892 = vadd.f32 %v3689, %v3842
  %v3893 = vadd.f32 %v3690, %v3842
  %v3894 = vadd.f32 %v3691, %v3842
  %v3895 = vadd.f32 %v3692, %v3842
  %v3896 = vadd.f32 %v3693, %v3842
  %v3897 = vadd.f32 %v3694, %v3842
  %v3898 = vadd.f32 %v3695, %v3842
  %v3899 = vadd.f32 %v3696, %v3842
  %v3900 = vadd.f32 %v3697, %v3842
  %v3901 = vadd.f32 %v3698, %v3842
  %v3902 = vadd.f32 %v3699, %v3842
  %v3903 = vadd.f32 %v3700, %v3842
  %v3904 = vadd.f32 %v3701, %v3842
  %v3905 = vadd.f32 %v3702, %v3842
  %v3906 = vadd.f32 %v3703, %v3842
  %v3907 = vadd.f32 %v3704, %v3842
  %v3908 = vadd.f32 %v3705, %v3842
  %v3909 = vadd.f32 %v3706, %v3842
  %v3910 = vadd.f32 %v3707, %v3842
  %v3911 = vadd.f32 %v3708, %v3842
  %v3912 = vadd.f32 %v3709, %v3842
  %v3913 = vadd.f32 %v3710, %v3842
  %v3914 = vadd.f32 %v3711, %v3842
  %v3915 = vadd.f32 %v3712, %v3842
  %v3916 = vadd.f32 %v3713, %v3842
  %v3917 = vadd.f32 %v3714, %v3842
  %v3918 = vadd.f32 %v3715, %v3842
  %v3919 = vadd.f32 %v3716, %v3842
  %v3920 = vadd.f32 %v3717, %v3842
  %v3921 = vadd.f32 %v3718, %v3842
  %v3922 = vadd.f32 %v3719, %v3842
  %v3923 = vadd.f32 %v3720, %v3842
  %v3924 = vadd.f32 %v3721, %v3842
  %v3925 = vadd.f32 %v3722, %v3842
  %v3926 = vadd.f32 %v3723, %v3842
  %v3927 = vadd.f32 %v3724, %v3842
  %v3928 = vadd.f32 %v3725, %v3842
  %v3929 = vadd.f32 %v3726, %v3842
  %v3930 = vadd.f32 %v3727, %v3842
  %v3931 = vadd.f32 %v3728, %v3842
  %v3932 = vadd.f32 %v3729, %v3842
  %v3933 = vadd.f32 %v3730, %v3842
  %v3934 = vadd.f32 %v3731, %v3842
  %v3935 = vadd.f32 %v3732, %v3842
  %v3936 = vadd.f32 %v3733, %v3842
  %v3937 = vadd.f32 %v3734, %v3842
  %v3938 = vadd.f32 %v3735, %v3842
  %v3939 = vadd.f32 %v3736, %v3842
  %v3940 = vadd.f32 %v3737, %v3842
  %v3941 = vadd.f32 %v3738, %v3842
  %v3942 = vadd.f32 %v3739, %v3842
  %v3943 = vadd.f32 %v3740, %v3842
  %v3944 = vadd.f32 %v3741, %v3842
  %v3945 = vadd.f32 %v3742, %v3842
  %v3946 = vadd.f32 %v3743, %v3842
  %v3947 = vadd.f32 %v3744, %v3842
  %v3948 = vadd.f32 %v3745, %v3842
  %v3949 = vadd.f32 %v3746, %v3842
  %v3950 = vadd.f32 %v3747, %v3842
  %v3951 = vadd.f32 %v3748, %v3842
  %v3952 = vadd.f32 %v3749, %v3842
  %v3953 = vadd.f32 %v3750, %v3842
  %v3954 = vadd.f32 %v3751, %v3842
  %v3955 = vadd.f32 %v3752, %v3842
  %v3956 = vadd.f32 %v3753, %v3842
  %v3957 = vadd.f32 %v3754, %v3842
  %v3958 = vadd.f32 %v3755, %v3842
  %v3959 = vadd.f32 %v3756, %v3842
  %v3960 = vadd.f32 %v3757, %v3842
  %v3961 = vadd.f32 %v3758, %v3842
  %v3962 = vadd.f32 %v3759, %v3842
  %v3963 = vadd.f32 %v3760, %v3842
  %v3964 = vadd.f32 %v3761, %v3842
  %v3965 = vadd.f32 %v3762, %v3842
  %v3966 = vadd.f32 %v3763, %v3842
  %v3967 = vadd.f32 %v3764, %v3842
  %v3968 = vadd.f32 %v3765, %v3842
  %v3969 = vadd.f32 %v3766, %v3842
  %v3970 = vadd.f32 %v3767, %v3842
  %v3971 = vadd.f32 %v3768, %v3842
  %v3972 = vadd.f32 %v3769, %v3842
  %v3973 = vadd.f32 %v3770, %v3842
  %v3974 = vadd.f32 %v3771, %v3842
  %v3975 = vadd.f32 %v3772, %v3842
  %v3976 = vadd.f32 %v3773, %v3842
  %v3977 = vadd.f32 %v3774, %v3842
  %v3978 = vadd.f32 %v3775, %v3842
  %v3979 = vadd.f32 %v3776, %v3842
  %v3980 = vadd.f32 %v3777, %v3842
  %v3981 = vadd.f32 %v3778, %v3842
  %v3982 = vadd.f32 %v3779, %v3842
  %v3983 = vadd.f32 %v3780, %v3842
  %v3984 = vadd.f32 %v3781, %v3842
  %v3985 = vadd.f32 %v3782, %v3842
  %v3986 = vadd.f32 %v3783, %v3842
  %v3987 = vadd.f32 %v3784, %v3842
  %v3988 = vadd.f32 %v3785, %v3842
  %v3989 = vadd.f32 %v3786, %v3842
  %v3990 = vadd.f32 %v3787, %v3842
  %v3991 = vadd.f32 %v3788, %v3842
  %v3992 = vadd.f32 %v3789, %v3842
  %v3993 = vadd.f32 %v3790, %v3842
  %v3994 = vadd.f32 %v3791, %v3842
  %v3995 = vadd.f32 %v3792, %v3842
  %v3996 = vadd.f32 %v3793, %v3842
  %v3997 = vadd.f32 %v3794, %v3842
  %v3998 = vadd.f32 %v3795, %v3842
  %v3999 = vadd.f32 %v3796, %v3842
  %v4000 = vadd.f32 %v3797, %v3842
  %v4001 = vadd.f32 %v3798, %v3842
  %v4002 = vadd.f32 %v3799, %v3842
  %v4003 = vadd.f32 %v3800, %v3842
  %v4004 = vadd.f32 %v3801, %v3842
  %v4005 = vadd.f32 %v3802, %v3842
  %v4006 = vadd.f32 %v3803, %v3842
  %v4007 = vadd.f32 %v3804, %v3842
  %v4008 = vadd.f32 %v3805, %v3842
  %v4009 = vadd.f32 %v3806, %v3842
  %v4010 = vadd.f32 %v3807, %v3842
  %v4011 = vadd.f32 %v3808, %v3842
  %v4012 = vadd.f32 %v3809, %v3842
  %v4013 = vadd.f32 %v3810, %v3842
  %v4014 = vadd.f32 %v3811, %v3842
  %v4015 = vadd.f32 %v3812, %v3842
  %v4016 = vadd.f32 %v3813, %v3842
  %v4017 = vadd.f32 %v3814, %v3842
  %v4018 = vadd.f32 %v3815, %v3842
  %v4019 = vadd.f32 %v3816, %v3842
  %v4020 = vadd.f32 %v3817, %v3842
  %v4021 = vadd.f32 %v3818, %v3842
  %v4022 = vadd.f32 %v3819, %v3842
  %v4023 = vadd.f32 %v3820, %v3842
  %v4024 = vadd.f32 %v3821, %v3842
  %v4025 = vadd.f32 %v3822, %v3842
  %v4026 = vadd.f32 %v3823, %v3842
  %v4027 = vadd.f32 %v3824, %v3842
  %v4028 = vadd.f32 %v3825, %v3842
  %v4029 = vadd.f32 %v3826, %v3842
  %v4030 = vadd.f32 %v3827, %v3842
  %v4031 = vadd.f32 %v3828, %v3842
  %v4032 = vadd.f32 %v3829, %v3842
  %v4033 = vadd.f32 %v3830, %v3842
  %v4034 = vadd.f32 %v3831, %v3842
  %v4035 = vadd.f32 %v3832, %v3842
  %v4036 = vadd.f32 %v3833, %v3842
  %v4037 = vadd.f32 %v3834, %v3842
  %v4038 = vadd.f32 %v3835, %v3842
  %v4039 = vadd.f32 %v3836, %v3842
  %v4040 = vmax.f32 %v3844, 0.0
  %v4041 = vmax.f32 %v3845, 0.0
  %v4042 = vmax.f32 %v3846, 0.0
  %v4043 = vmax.f32 %v3847, 0.0
  %v4044 = vmax.f32 %v3848, 0.0
  %v4045 = vmax.f32 %v3849, 0.0
  %v4046 = vmax.f32 %v3850, 0.0
  %v4047 = vmax.f32 %v3851, 0.0
  %v4048 = vmax.f32 %v3852, 0.0
  %v4049 = vmax.f32 %v3853, 0.0
  %v4050 = vmax.f32 %v3854, 0.0
  %v4051 = vmax.f32 %v3855, 0.0
  %v4052 = vmax.f32 %v3856, 0.0
  %v4053 = vmax.f32 %v3857, 0.0
  %v4054 = vmax.f32 %v3858, 0.0
  %v4055 = vmax.f32 %v3859, 0.0
  %v4056 = vmax.f32 %v3860, 0.0
  %v4057 = vmax.f32 %v3861, 0.0
  %v4058 = vmax.f32 %v3862, 0.0
  %v4059 = vmax.f32 %v3863, 0.0
  %v4060 = vmax.f32 %v3864, 0.0
  %v4061 = vmax.f32 %v3865, 0.0
  %v4062 = vmax.f32 %v3866, 0.0
  %v4063 = vmax.f32 %v3867, 0.0
  %v4064 = vmax.f32 %v3868, 0.0
  %v4065 = vmax.f32 %v3869, 0.0
  %v4066 = vmax.f32 %v3870, 0.0
  %v4067 = vmax.f32 %v3871, 0.0
  %v4068 = vmax.f32 %v3872, 0.0
  %v4069 = vmax.f32 %v3873, 0.0
  %v4070 = vmax.f32 %v3874, 0.0
  %v4071 = vmax.f32 %v3875, 0.0
  %v4072 = vmax.f32 %v3876, 0.0
  %v4073 = vmax.f32 %v3877, 0.0
  %v4074 = vmax.f32 %v3878, 0.0
  %v4075 = vmax.f32 %v3879, 0.0
  %v4076 = vmax.f32 %v3880, 0.0
  %v4077 = vmax.f32 %v3881, 0.0
  %v4078 = vmax.f32 %v3882, 0.0
  %v4079 = vmax.f32 %v3883, 0.0
  %v4080 = vmax.f32 %v3884, 0.0
  %v4081 = vmax.f32 %v3885, 0.0
  %v4082 = vmax.f32 %v3886, 0.0
  %v4083 = vmax.f32 %v3887, 0.0
  %v4084 = vmax.f32 %v3888, 0.0
  %v4085 = vmax.f32 %v3889, 0.0
  %v4086 = vmax.f32 %v3890, 0.0
  %v4087 = vmax.f32 %v3891, 0.0
  %v4088 = vmax.f32 %v3892, 0.0
  %v4089 = vmax.f32 %v3893, 0.0
  %v4090 = vmax.f32 %v3894, 0.0
  %v4091 = vmax.f32 %v3895, 0.0
  %v4092 = vmax.f32 %v3896, 0.0
  %v4093 = vmax.f32 %v3897, 0.0
  %v4094 = vmax.f32 %v3898, 0.0
  %v4095 = vmax.f32 %v3899, 0.0
  %v4096 = vmax.f32 %v3900, 0.0
  %v4097 = vmax.f32 %v3901, 0.0
  %v4098 = vmax.f32 %v3902, 0.0
  %v4099 = vmax.f32 %v3903, 0.0
  %v4100 = vmax.f32 %v3904, 0.0
  %v4101 = vmax.f32 %v3905, 0.0
  %v4102 = vmax.f32 %v3906, 0.0
  %v4103 = vmax.f32 %v3907, 0.0
  %v4104 = vmax.f32 %v3908, 0.0
  %v4105 = vmax.f32 %v3909, 0.0
  %v4106 = vmax.f32 %v3910, 0.0
  %v4107 = vmax.f32 %v3911, 0.0
  %v4108 = vmax.f32 %v3912, 0.0
  %v4109 = vmax.f32 %v3913, 0.0
  %v4110 = vmax.f32 %v3914, 0.0
  %v4111 = vmax.f32 %v3915, 0.0
  %v4112 = vmax.f32 %v3916, 0.0
  %v4113 = vmax.f32 %v3917, 0.0
  %v4114 = vmax.f32 %v3918, 0.0
  %v4115 = vmax.f32 %v3919, 0.0
  %v4116 = vmax.f32 %v3920, 0.0
  %v4117 = vmax.f32 %v3921, 0.0
  %v4118 = vmax.f32 %v3922, 0.0
  %v4119 = vmax.f32 %v3923, 0.0
  %v4120 = vmax.f32 %v3924, 0.0
  %v4121 = vmax.f32 %v3925, 0.0
  %v4122 = vmax.f32 %v3926, 0.0
  %v4123 = vmax.f32 %v3927, 0.0
  %v4124 = vmax.f32 %v3928, 0.0
  %v4125 = vmax.f32 %v3929, 0.0
  %v4126 = vmax.f32 %v3930, 0.0
  %v4127 = vmax.f32 %v3931, 0.0
  %v4128 = vmax.f32 %v3932, 0.0
  %v4129 = vmax.f32 %v3933, 0.0
  %v4130 = vmax.f32 %v3934, 0.0
  %v4131 = vmax.f32 %v3935, 0.0
  %v4132 = vmax.f32 %v3936, 0.0
  %v4133 = vmax.f32 %v3937, 0.0
  %v4134 = vmax.f32 %v3938, 0.0
  %v4135 = vmax.f32 %v3939, 0.0
  %v4136 = vmax.f32 %v3940, 0.0
  %v4137 = vmax.f32 %v3941, 0.0
  %v4138 = vmax.f32 %v3942, 0.0
  %v4139 = vmax.f32 %v3943, 0.0
  %v4140 = vmax.f32 %v3944, 0.0
  %v4141 = vmax.f32 %v3945, 0.0
  %v4142 = vmax.f32 %v3946, 0.0
  %v4143 = vmax.f32 %v3947, 0.0
  %v4144 = vmax.f32 %v3948, 0.0
  %v4145 = vmax.f32 %v3949, 0.0
  %v4146 = vmax.f32 %v3950, 0.0
  %v4147 = vmax.f32 %v3951, 0.0
  %v4148 = vmax.f32 %v3952, 0.0
  %v4149 = vmax.f32 %v3953, 0.0
  %v4150 = vmax.f32 %v3954, 0.0
  %v4151 = vmax.f32 %v3955, 0.0
  %v4152 = vmax.f32 %v3956, 0.0
  %v4153 = vmax.f32 %v3957, 0.0
  %v4154 = vmax.f32 %v3958, 0.0
  %v4155 = vmax.f32 %v3959, 0.0
  %v4156 = vmax.f32 %v3960, 0.0
  %v4157 = vmax.f32 %v3961, 0.0
  %v4158 = vmax.f32 %v3962, 0.0
  %v4159 = vmax.f32 %v3963, 0.0
  %v4160 = vmax.f32 %v3964, 0.0
  %v4161 = vmax.f32 %v3965, 0.0
  %v4162 = vmax.f32 %v3966, 0.0
  %v4163 = vmax.f32 %v3967, 0.0
  %v4164 = vmax.f32 %v3968, 0.0
  %v4165 = vmax.f32 %v3969, 0.0
  %v4166 = vmax.f32 %v3970, 0.0
  %v4167 = vmax.f32 %v3971, 0.0
  %v4168 = vmax.f32 %v3972, 0.0
  %v4169 = vmax.f32 %v3973, 0.0
  %v4170 = vmax.f32 %v3974, 0.0
  %v4171 = vmax.f32 %v3975, 0.0
  %v4172 = vmax.f32 %v3976, 0.0
  %v4173 = vmax.f32 %v3977, 0.0
  %v4174 = vmax.f32 %v3978, 0.0
  %v4175 = vmax.f32 %v3979, 0.0
  %v4176 = vmax.f32 %v3980, 0.0
  %v4177 = vmax.f32 %v3981, 0.0
  %v4178 = vmax.f32 %v3982, 0.0
  %v4179 = vmax.f32 %v3983, 0.0
  %v4180 = vmax.f32 %v3984, 0.0
  %v4181 = vmax.f32 %v3985, 0.0
  %v4182 = vmax.f32 %v3986, 0.0
  %v4183 = vmax.f32 %v3987, 0.0
  %v4184 = vmax.f32 %v3988, 0.0
  %v4185 = vmax.f32 %v3989, 0.0
  %v4186 = vmax.f32 %v3990, 0.0
  %v4187 = vmax.f32 %v3991, 0.0
  %v4188 = vmax.f32 %v3992, 0.0
  %v4189 = vmax.f32 %v3993, 0.0
  %v4190 = vmax.f32 %v3994, 0.0
  %v4191 = vmax.f32 %v3995, 0.0
  %v4192 = vmax.f32 %v3996, 0.0
  %v4193 = vmax.f32 %v3997, 0.0
  %v4194 = vmax.f32 %v3998, 0.0
  %v4195 = vmax.f32 %v3999, 0.0
  %v4196 = vmax.f32 %v4000, 0.0
  %v4197 = vmax.f32 %v4001, 0.0
  %v4198 = vmax.f32 %v4002, 0.0
  %v4199 = vmax.f32 %v4003, 0.0
  %v4200 = vmax.f32 %v4004, 0.0
  %v4201 = vmax.f32 %v4005, 0.0
  %v4202 = vmax.f32 %v4006, 0.0
  %v4203 = vmax.f32 %v4007, 0.0
  %v4204 = vmax.f32 %v4008, 0.0
  %v4205 = vmax.f32 %v4009, 0.0
  %v4206 = vmax.f32 %v4010, 0.0
  %v4207 = vmax.f32 %v4011, 0.0
  %v4208 = vmax.f32 %v4012, 0.0
  %v4209 = vmax.f32 %v4013, 0.0
  %v4210 = vmax.f32 %v4014, 0.0
  %v4211 = vmax.f32 %v4015, 0.0
  %v4212 = vmax.f32 %v4016, 0.0
  %v4213 = vmax.f32 %v4017, 0.0
  %v4214 = vmax.f32 %v4018, 0.0
  %v4215 = vmax.f32 %v4019, 0.0
  %v4216 = vmax.f32 %v4020, 0.0
  %v4217 = vmax.f32 %v4021, 0.0
  %v4218 = vmax.f32 %v4022, 0.0
  %v4219 = vmax.f32 %v4023, 0.0
  %v4220 = vmax.f32 %v4024, 0.0
  %v4221 = vmax.f32 %v4025, 0.0
  %v4222 = vmax.f32 %v4026, 0.0
  %v4223 = vmax.f32 %v4027, 0.0
  %v4224 = vmax.f32 %v4028, 0.0
  %v4225 = vmax.f32 %v4029, 0.0
  %v4226 = vmax.f32 %v4030, 0.0
  %v4227 = vmax.f32 %v4031, 0.0
  %v4228 = vmax.f32 %v4032, 0.0
  %v4229 = vmax.f32 %v4033, 0.0
  %v4230 = vmax.f32 %v4034, 0.0
  %v4231 = vmax.f32 %v4035, 0.0
  %v4232 = vmax.f32 %v4036, 0.0
  %v4233 = vmax.f32 %v4037, 0.0
  %v4234 = vmax.f32 %v4038, 0.0
  %v4235 = vmax.f32 %v4039, 0.0
  %4261 = vrot.lane.b32.xlu0 %v4047, 6
  %v4262 = vpop.permute.xlu0 %4261
  %4263 = vrot.lane.b32.xlu0 %v4048, 6
  %v4264 = vpop.permute.xlu0 %4263
  %4265 = vrot.lane.b32.xlu0 %v4049, 6
  %v4266 = vpop.permute.xlu0 %4265
  %4267 = vrot.lane.b32.xlu0 %v4050, 6
  %v4268 = vpop.permute.xlu0 %4267
  %4269 = vrot.lane.b32.xlu0 %v4051, 6
  %v4270 = vpop.permute.xlu0 %4269
  %4271 = vrot.lane.b32.xlu0 %v4061, 6
  %v4272 = vpop.permute.xlu0 %4271
  %4273 = vrot.lane.b32.xlu0 %v4062, 6
  %v4274 = vpop.permute.xlu0 %4273
  %4275 = vrot.lane.b32.xlu0 %v4063, 6
  %v4276 = vpop.permute.xlu0 %4275
  %4277 = vrot.lane.b32.xlu0 %v4064, 6
  %v4278 = vpop.permute.xlu0 %4277
  %4279 = vrot.lane.b32.xlu0 %v4065, 6
  %v4280 = vpop.permute.xlu0 %4279
  %4281 = vrot.lane.b32.xlu0 %v4075, 6
  %v4282 = vpop.permute.xlu0 %4281
  %4283 = vrot.lane.b32.xlu0 %v4076, 6
  %v4284 = vpop.permute.xlu0 %4283
  %4285 = vrot.lane.b32.xlu0 %v4077, 6
  %v4286 = vpop.permute.xlu0 %4285
  %4287 = vrot.lane.b32.xlu0 %v4078, 6
  %v4288 = vpop.permute.xlu0 %4287
  %4289 = vrot.lane.b32.xlu0 %v4079, 6
  %v4290 = vpop.permute.xlu0 %4289
  %4291 = vrot.lane.b32.xlu0 %v4089, 6
  %v4292 = vpop.permute.xlu0 %4291
  %4293 = vrot.lane.b32.xlu0 %v4090, 6
  %v4294 = vpop.permute.xlu0 %4293
  %4295 = vrot.lane.b32.xlu0 %v4091, 6
  %v4296 = vpop.permute.xlu0 %4295
  %4297 = vrot.lane.b32.xlu0 %v4092, 6
  %v4298 = vpop.permute.xlu0 %4297
  %4299 = vrot.lane.b32.xlu0 %v4093, 6
  %v4300 = vpop.permute.xlu0 %4299
  %4301 = vrot.lane.b32.xlu0 %v4103, 6
  %v4302 = vpop.permute.xlu0 %4301
  %4303 = vrot.lane.b32.xlu0 %v4104, 6
  %v4304 = vpop.permute.xlu0 %4303
  %4305 = vrot.lane.b32.xlu0 %v4105, 6
  %v4306 = vpop.permute.xlu0 %4305
  %4307 = vrot.lane.b32.xlu0 %v4106, 6
  %v4308 = vpop.permute.xlu0 %4307
  %4309 = vrot.lane.b32.xlu0 %v4107, 6
  %v4310 = vpop.permute.xlu0 %4309
  %4361 = vrot.lane.b32.xlu0 %v4041, 12
  %v4362 = vpop.permute.xlu0 %4361
  %4363 = vrot.lane.b32.xlu0 %v4042, 12
  %v4364 = vpop.permute.xlu0 %4363
  %4365 = vrot.lane.b32.xlu0 %v4043, 12
  %v4366 = vpop.permute.xlu0 %4365
  %4367 = vrot.lane.b32.xlu0 %v4044, 12
  %v4368 = vpop.permute.xlu0 %4367
  %4369 = vrot.lane.b32.xlu0 %v4045, 12
  %v4370 = vpop.permute.xlu0 %4369
  %4371 = vrot.lane.b32.xlu0 %v4055, 12
  %v4372 = vpop.permute.xlu0 %4371
  %4373 = vrot.lane.b32.xlu0 %v4056, 12
  %v4374 = vpop.permute.xlu0 %4373
  %4375 = vrot.lane.b32.xlu0 %v4057, 12
  %v4376 = vpop.permute.xlu0 %4375
  %4377 = vrot.lane.b32.xlu0 %v4058, 12
  %v4378 = vpop.permute.xlu0 %4377
  %4379 = vrot.lane.b32.xlu0 %v4059, 12
  %v4380 = vpop.permute.xlu0 %4379
  %4381 = vrot.lane.b32.xlu0 %v4069, 12
  %v4382 = vpop.permute.xlu0 %4381
  %4383 = vrot.lane.b32.xlu0 %v4070, 12
  %v4384 = vpop.permute.xlu0 %4383
  %4385 = vrot.lane.b32.xlu0 %v4071, 12
  %v4386 = vpop.permute.xlu0 %4385
  %4387 = vrot.lane.b32.xlu0 %v4072, 12
  %v4388 = vpop.permute.xlu0 %4387
  %4389 = vrot.lane.b32.xlu0 %v4073, 12
  %v4390 = vpop.permute.xlu0 %4389
  %4391 = vrot.lane.b32.xlu0 %v4083, 12
  %v4392 = vpop.permute.xlu0 %4391
  %4393 = vrot.lane.b32.xlu0 %v4084, 12
  %v4394 = vpop.permute.xlu0 %4393
  %4395 = vrot.lane.b32.xlu0 %v4085, 12
  %v4396 = vpop.permute.xlu0 %4395
  %4397 = vrot.lane.b32.xlu0 %v4086, 12
  %v4398 = vpop.permute.xlu0 %4397
  %4399 = vrot.lane.b32.xlu0 %v4087, 12
  %v4400 = vpop.permute.xlu0 %4399
  %4401 = vrot.lane.b32.xlu0 %v4097, 12
  %v4402 = vpop.permute.xlu0 %4401
  %4403 = vrot.lane.b32.xlu0 %v4098, 12
  %v4404 = vpop.permute.xlu0 %4403
  %4405 = vrot.lane.b32.xlu0 %v4099, 12
  %v4406 = vpop.permute.xlu0 %4405
  %4407 = vrot.lane.b32.xlu0 %v4100, 12
  %v4408 = vpop.permute.xlu0 %4407
  %4409 = vrot.lane.b32.xlu0 %v4101, 12
  %v4410 = vpop.permute.xlu0 %4409
  %4441 = vrot.lane.b32.xlu0 %v4048, 18
  %v4442 = vpop.permute.xlu0 %4441
  %4443 = vrot.lane.b32.xlu0 %v4049, 18
  %v4444 = vpop.permute.xlu0 %4443
  %4445 = vrot.lane.b32.xlu0 %v4050, 18
  %v4446 = vpop.permute.xlu0 %4445
  %4447 = vrot.lane.b32.xlu0 %v4051, 18
  %v4448 = vpop.permute.xlu0 %4447
  %4449 = vrot.lane.b32.xlu0 %v4052, 18
  %v4450 = vpop.permute.xlu0 %4449
  %4451 = vrot.lane.b32.xlu0 %v4062, 18
  %v4452 = vpop.permute.xlu0 %4451
  %4453 = vrot.lane.b32.xlu0 %v4063, 18
  %v4454 = vpop.permute.xlu0 %4453
  %4455 = vrot.lane.b32.xlu0 %v4064, 18
  %v4456 = vpop.permute.xlu0 %4455
  %4457 = vrot.lane.b32.xlu0 %v4065, 18
  %v4458 = vpop.permute.xlu0 %4457
  %4459 = vrot.lane.b32.xlu0 %v4066, 18
  %v4460 = vpop.permute.xlu0 %4459
  %4461 = vrot.lane.b32.xlu0 %v4076, 18
  %v4462 = vpop.permute.xlu0 %4461
  %4463 = vrot.lane.b32.xlu0 %v4077, 18
  %v4464 = vpop.permute.xlu0 %4463
  %4465 = vrot.lane.b32.xlu0 %v4078, 18
  %v4466 = vpop.permute.xlu0 %4465
  %4467 = vrot.lane.b32.xlu0 %v4079, 18
  %v4468 = vpop.permute.xlu0 %4467
  %4469 = vrot.lane.b32.xlu0 %v4080, 18
  %v4470 = vpop.permute.xlu0 %4469
  %4471 = vrot.lane.b32.xlu0 %v4090, 18
  %v4472 = vpop.permute.xlu0 %4471
  %4473 = vrot.lane.b32.xlu0 %v4091, 18
  %v4474 = vpop.permute.xlu0 %4473
  %4475 = vrot.lane.b32.xlu0 %v4092, 18
  %v4476 = vpop.permute.xlu0 %4475
  %4477 = vrot.lane.b32.xlu0 %v4093, 18
  %v4478 = vpop.permute.xlu0 %4477
  %4479 = vrot.lane.b32.xlu0 %v4094, 18
  %v4480 = vpop.permute.xlu0 %4479
  %4481 = vrot.lane.b32.xlu0 %v4104, 18
  %v4482 = vpop.permute.xlu0 %4481
  %4483 = vrot.lane.b32.xlu0 %v4105, 18
  %v4484 = vpop.permute.xlu0 %4483
  %4485 = vrot.lane.b32.xlu0 %v4106, 18
  %v4486 = vpop.permute.xlu0 %4485
  %4487 = vrot.lane.b32.xlu0 %v4107, 18
  %v4488 = vpop.permute.xlu0 %4487
  %4489 = vrot.lane.b32.xlu0 %v4108, 18
  %v4490 = vpop.permute.xlu0 %4489
  %4521 = vrot.lane.b32.xlu0 %v4042, 24
  %v4522 = vpop.permute.xlu0 %4521
  %4523 = vrot.lane.b32.xlu0 %v4043, 24
  %v4524 = vpop.permute.xlu0 %4523
  %4525 = vrot.lane.b32.xlu0 %v4044, 24
  %v4526 = vpop.permute.xlu0 %4525
  %4527 = vrot.lane.b32.xlu0 %v4045, 24
  %v4528 = vpop.permute.xlu0 %4527
  %4529 = vrot.lane.b32.xlu0 %v4046, 24
  %v4530 = vpop.permute.xlu0 %4529
  %4531 = vrot.lane.b32.xlu0 %v4056, 24
  %v4532 = vpop.permute.xlu0 %4531
  %4533 = vrot.lane.b32.xlu0 %v4057, 24
  %v4534 = vpop.permute.xlu0 %4533
  %4535 = vrot.lane.b32.xlu0 %v4058, 24
  %v4536 = vpop.permute.xlu0 %4535
  %4537 = vrot.lane.b32.xlu0 %v4059, 24
  %v4538 = vpop.permute.xlu0 %4537
  %4539 = vrot.lane.b32.xlu0 %v4060, 24
  %v4540 = vpop.permute.xlu0 %4539
  %4541 = vrot.lane.b32.xlu0 %v4070, 24
  %v4542 = vpop.permute.xlu0 %4541
  %4543 = vrot.lane.b32.xlu0 %v4071, 24
  %v4544 = vpop.permute.xlu0 %4543
  %4545 = vrot.lane.b32.xlu0 %v4072, 24
  %v4546 = vpop.permute.xlu0 %4545
  %4547 = vrot.lane.b32.xlu0 %v4073, 24
  %v4548 = vpop.permute.xlu0 %4547
  %4549 = vrot.lane.b32.xlu0 %v4074, 24
  %v4550 = vpop.permute.xlu0 %4549
  %4551 = vrot.lane.b32.xlu0 %v4084, 24
  %v4552 = vpop.permute.xlu0 %4551
  %4553 = vrot.lane.b32.xlu0 %v4085, 24
  %v4554 = vpop.permute.xlu0 %4553
  %4555 = vrot.lane.b32.xlu0 %v4086, 24
  %v4556 = vpop.permute.xlu0 %4555
  %4557 = vrot.lane.b32.xlu0 %v4087, 24
  %v4558 = vpop.permute.xlu0 %4557
  %4559 = vrot.lane.b32.xlu0 %v4088, 24
  %v4560 = vpop.permute.xlu0 %4559
  %4561 = vrot.lane.b32.xlu0 %v4098, 24
  %v4562 = vpop.permute.xlu0 %4561
  %4563 = vrot.lane.b32.xlu0 %v4099, 24
  %v4564 = vpop.permute.xlu0 %4563
  %4565 = vrot.lane.b32.xlu0 %v4100, 24
  %v4566 = vpop.permute.xlu0 %4565
  %4567 = vrot.lane.b32.xlu0 %v4101, 24
  %v4568 = vpop.permute.xlu0 %4567
  %4569 = vrot.lane.b32.xlu0 %v4102, 24
  %v4570 = vpop.permute.xlu0 %4569
  %4601 = vrot.lane.b32.xlu0 %v4049, 30
  %v4602 = vpop.permute.xlu0 %4601
  %4603 = vrot.lane.b32.xlu0 %v4050, 30
  %v4604 = vpop.permute.xlu0 %4603
  %4605 = vrot.lane.b32.xlu0 %v4051, 30
  %v4606 = vpop.permute.xlu0 %4605
  %4607 = vrot.lane.b32.xlu0 %v4052, 30
  %v4608 = vpop.permute.xlu0 %4607
  %4609 = vrot.lane.b32.xlu0 %v4053, 30
  %v4610 = vpop.permute.xlu0 %4609
  %4611 = vrot.lane.b32.xlu0 %v4063, 30
  %v4612 = vpop.permute.xlu0 %4611
  %4613 = vrot.lane.b32.xlu0 %v4064, 30
  %v4614 = vpop.permute.xlu0 %4613
  %4615 = vrot.lane.b32.xlu0 %v4065, 30
  %v4616 = vpop.permute.xlu0 %4615
  %4617 = vrot.lane.b32.xlu0 %v4066, 30
  %v4618 = vpop.permute.xlu0 %4617
  %4619 = vrot.lane.b32.xlu0 %v4067, 30
  %v4620 = vpop.permute.xlu0 %4619
  %4621 = vrot.lane.b32.xlu0 %v4077, 30
  %v4622 = vpop.permute.xlu0 %4621
  %4623 = vrot.lane.b32.xlu0 %v4078, 30
  %v4624 = vpop.permute.xlu0 %4623
  %4625 = vrot.lane.b32.xlu0 %v4079, 30
  %v4626 = vpop.permute.xlu0 %4625
  %4627 = vrot.lane.b32.xlu0 %v4080, 30
  %v4628 = vpop.permute.xlu0 %4627
  %4629 = vrot.lane.b32.xlu0 %v4081, 30
  %v4630 = vpop.permute.xlu0 %4629
  %4631 = vrot.lane.b32.xlu0 %v4091, 30
  %v4632 = vpop.permute.xlu0 %4631
  %4633 = vrot.lane.b32.xlu0 %v4092, 30
  %v4634 = vpop.permute.xlu0 %4633
  %4635 = vrot.lane.b32.xlu0 %v4093, 30
  %v4636 = vpop.permute.xlu0 %4635
  %4637 = vrot.lane.b32.xlu0 %v4094, 30
  %v4638 = vpop.permute.xlu0 %4637
  %4639 = vrot.lane.b32.xlu0 %v4095, 30
  %v4640 = vpop.permute.xlu0 %4639
  %4641 = vrot.lane.b32.xlu0 %v4105, 30
  %v4642 = vpop.permute.xlu0 %4641
  %4643 = vrot.lane.b32.xlu0 %v4106, 30
  %v4644 = vpop.permute.xlu0 %4643
  %4645 = vrot.lane.b32.xlu0 %v4107, 30
  %v4646 = vpop.permute.xlu0 %4645
  %4647 = vrot.lane.b32.xlu0 %v4108, 30
  %v4648 = vpop.permute.xlu0 %4647
  %4649 = vrot.lane.b32.xlu0 %v4109, 30
  %v4650 = vpop.permute.xlu0 %4649
  %4701 = vrot.lane.b32.xlu0 %v4138, 36
  %v4702 = vpop.permute.xlu0 %4701
  %4703 = vrot.lane.b32.xlu0 %v4139, 36
  %v4704 = vpop.permute.xlu0 %4703
  %4705 = vrot.lane.b32.xlu0 %v4140, 36
  %v4706 = vpop.permute.xlu0 %4705
  %4707 = vrot.lane.b32.xlu0 %v4141, 36
  %v4708 = vpop.permute.xlu0 %4707
  %4709 = vrot.lane.b32.xlu0 %v4142, 36
  %v4710 = vpop.permute.xlu0 %4709
  %4711 = vrot.lane.b32.xlu0 %v4152, 36
  %v4712 = vpop.permute.xlu0 %4711
  %4713 = vrot.lane.b32.xlu0 %v4153, 36
  %v4714 = vpop.permute.xlu0 %4713
  %4715 = vrot.lane.b32.xlu0 %v4154, 36
  %v4716 = vpop.permute.xlu0 %4715
  %4717 = vrot.lane.b32.xlu0 %v4155, 36
  %v4718 = vpop.permute.xlu0 %4717
  %4719 = vrot.lane.b32.xlu0 %v4156, 36
  %v4720 = vpop.permute.xlu0 %4719
  %4721 = vrot.lane.b32.xlu0 %v4166, 36
  %v4722 = vpop.permute.xlu0 %4721
  %4723 = vrot.lane.b32.xlu0 %v4167, 36
  %v4724 = vpop.permute.xlu0 %4723
  %4725 = vrot.lane.b32.xlu0 %v4168, 36
  %v4726 = vpop.permute.xlu0 %4725
  %4727 = vrot.lane.b32.xlu0 %v4169, 36
  %v4728 = vpop.permute.xlu0 %4727
  %4729 = vrot.lane.b32.xlu0 %v4170, 36
  %v4730 = vpop.permute.xlu0 %4729
  %4731 = vrot.lane.b32.xlu0 %v4180, 36
  %v4732 = vpop.permute.xlu0 %4731
  %4733 = vrot.lane.b32.xlu0 %v4181, 36
  %v4734 = vpop.permute.xlu0 %4733
  %4735 = vrot.lane.b32.xlu0 %v4182, 36
  %v4736 = vpop.permute.xlu0 %4735
  %4737 = vrot.lane.b32.xlu0 %v4183, 36
  %v4738 = vpop.permute.xlu0 %4737
  %4739 = vrot.lane.b32.xlu0 %v4184, 36
  %v4740 = vpop.permute.xlu0 %4739
  %4741 = vrot.lane.b32.xlu0 %v4194, 36
  %v4742 = vpop.permute.xlu0 %4741
  %4743 = vrot.lane.b32.xlu0 %v4195, 36
  %v4744 = vpop.permute.xlu0 %4743
  %4745 = vrot.lane.b32.xlu0 %v4196, 36
  %v4746 = vpop.permute.xlu0 %4745
  %4747 = vrot.lane.b32.xlu0 %v4197, 36
  %v4748 = vpop.permute.xlu0 %4747
  %4749 = vrot.lane.b32.xlu0 %v4198, 36
  %v4750 = vpop.permute.xlu0 %4749
  %4801 = vrot.lane.b32.xlu0 %v4145, 42
  %v4802 = vpop.permute.xlu0 %4801
  %4803 = vrot.lane.b32.xlu0 %v4146, 42
  %v4804 = vpop.permute.xlu0 %4803
  %4805 = vrot.lane.b32.xlu0 %v4147, 42
  %v4806 = vpop.permute.xlu0 %4805
  %4807 = vrot.lane.b32.xlu0 %v4148, 42
  %v4808 = vpop.permute.xlu0 %4807
  %4809 = vrot.lane.b32.xlu0 %v4149, 42
  %v4810 = vpop.permute.xlu0 %4809
  %4811 = vrot.lane.b32.xlu0 %v4159, 42
  %v4812 = vpop.permute.xlu0 %4811
  %4813 = vrot.lane.b32.xlu0 %v4160, 42
  %v4814 = vpop.permute.xlu0 %4813
  %4815 = vrot.lane.b32.xlu0 %v4161, 42
  %v4816 = vpop.permute.xlu0 %4815
  %4817 = vrot.lane.b32.xlu0 %v4162, 42
  %v4818 = vpop.permute.xlu0 %4817
  %4819 = vrot.lane.b32.xlu0 %v4163, 42
  %v4820 = vpop.permute.xlu0 %4819
  %4821 = vrot.lane.b32.xlu0 %v4173, 42
  %v4822 = vpop.permute.xlu0 %4821
  %4823 = vrot.lane.b32.xlu0 %v4174, 42
  %v4824 = vpop.permute.xlu0 %4823
  %4825 = vrot.lane.b32.xlu0 %v4175, 42
  %v4826 = vpop.permute.xlu0 %4825
  %4827 = vrot.lane.b32.xlu0 %v4176, 42
  %v4828 = vpop.permute.xlu0 %4827
  %4829 = vrot.lane.b32.xlu0 %v4177, 42
  %v4830 = vpop.permute.xlu0 %4829
  %4831 = vrot.lane.b32.xlu0 %v4187, 42
  %v4832 = vpop.permute.xlu0 %4831
  %4833 = vrot.lane.b32.xlu0 %v4188, 42
  %v4834 = vpop.permute.xlu0 %4833
  %4835 = vrot.lane.b32.xlu0 %v4189, 42
  %v4836 = vpop.permute.xlu0 %4835
  %4837 = vrot.lane.b32.xlu0 %v4190, 42
  %v4838 = vpop.permute.xlu0 %4837
  %4839 = vrot.lane.b32.xlu0 %v4191, 42
  %v4840 = vpop.permute.xlu0 %4839
  %4841 = vrot.lane.b32.xlu0 %v4201, 42
  %v4842 = vpop.permute.xlu0 %4841
  %4843 = vrot.lane.b32.xlu0 %v4202, 42
  %v4844 = vpop.permute.xlu0 %4843
  %4845 = vrot.lane.b32.xlu0 %v4203, 42
  %v4846 = vpop.permute.xlu0 %4845
  %4847 = vrot.lane.b32.xlu0 %v4204, 42
  %v4848 = vpop.permute.xlu0 %4847
  %4849 = vrot.lane.b32.xlu0 %v4205, 42
  %v4850 = vpop.permute.xlu0 %4849
  %4881 = vrot.lane.b32.xlu0 %v4139, 48
  %v4882 = vpop.permute.xlu0 %4881
  %4883 = vrot.lane.b32.xlu0 %v4140, 48
  %v4884 = vpop.permute.xlu0 %4883
  %4885 = vrot.lane.b32.xlu0 %v4141, 48
  %v4886 = vpop.permute.xlu0 %4885
  %4887 = vrot.lane.b32.xlu0 %v4142, 48
  %v4888 = vpop.permute.xlu0 %4887
  %4889 = vrot.lane.b32.xlu0 %v4143, 48
  %v4890 = vpop.permute.xlu0 %4889
  %4891 = vrot.lane.b32.xlu0 %v4153, 48
  %v4892 = vpop.permute.xlu0 %4891
  %4893 = vrot.lane.b32.xlu0 %v4154, 48
  %v4894 = vpop.permute.xlu0 %4893
  %4895 = vrot.lane.b32.xlu0 %v4155, 48
  %v4896 = vpop.permute.xlu0 %4895
  %4897 = vrot.lane.b32.xlu0 %v4156, 48
  %v4898 = vpop.permute.xlu0 %4897
  %4899 = vrot.lane.b32.xlu0 %v4157, 48
  %v4900 = vpop.permute.xlu0 %4899
  %4901 = vrot.lane.b32.xlu0 %v4167, 48
  %v4902 = vpop.permute.xlu0 %4901
  %4903 = vrot.lane.b32.xlu0 %v4168, 48
  %v4904 = vpop.permute.xlu0 %4903
  %4905 = vrot.lane.b32.xlu0 %v4169, 48
  %v4906 = vpop.permute.xlu0 %4905
  %4907 = vrot.lane.b32.xlu0 %v4170, 48
  %v4908 = vpop.permute.xlu0 %4907
  %4909 = vrot.lane.b32.xlu0 %v4171, 48
  %v4910 = vpop.permute.xlu0 %4909
  %4911 = vrot.lane.b32.xlu0 %v4181, 48
  %v4912 = vpop.permute.xlu0 %4911
  %4913 = vrot.lane.b32.xlu0 %v4182, 48
  %v4914 = vpop.permute.xlu0 %4913
  %4915 = vrot.lane.b32.xlu0 %v4183, 48
  %v4916 = vpop.permute.xlu0 %4915
  %4917 = vrot.lane.b32.xlu0 %v4184, 48
  %v4918 = vpop.permute.xlu0 %4917
  %4919 = vrot.lane.b32.xlu0 %v4185, 48
  %v4920 = vpop.permute.xlu0 %4919
  %4921 = vrot.lane.b32.xlu0 %v4195, 48
  %v4922 = vpop.permute.xlu0 %4921
  %4923 = vrot.lane.b32.xlu0 %v4196, 48
  %v4924 = vpop.permute.xlu0 %4923
  %4925 = vrot.lane.b32.xlu0 %v4197, 48
  %v4926 = vpop.permute.xlu0 %4925
  %4927 = vrot.lane.b32.xlu0 %v4198, 48
  %v4928 = vpop.permute.xlu0 %4927
  %4929 = vrot.lane.b32.xlu0 %v4199, 48
  %v4930 = vpop.permute.xlu0 %4929
  %4961 = vrot.lane.b32.xlu0 %v4146, 54
  %v4962 = vpop.permute.xlu0 %4961
  %4963 = vrot.lane.b32.xlu0 %v4147, 54
  %v4964 = vpop.permute.xlu0 %4963
  %4965 = vrot.lane.b32.xlu0 %v4148, 54
  %v4966 = vpop.permute.xlu0 %4965
  %4967 = vrot.lane.b32.xlu0 %v4149, 54
  %v4968 = vpop.permute.xlu0 %4967
  %4969 = vrot.lane.b32.xlu0 %v4150, 54
  %v4970 = vpop.permute.xlu0 %4969
  %4971 = vrot.lane.b32.xlu0 %v4160, 54
  %v4972 = vpop.permute.xlu0 %4971
  %4973 = vrot.lane.b32.xlu0 %v4161, 54
  %v4974 = vpop.permute.xlu0 %4973
  %4975 = vrot.lane.b32.xlu0 %v4162, 54
  %v4976 = vpop.permute.xlu0 %4975
  %4977 = vrot.lane.b32.xlu0 %v4163, 54
  %v4978 = vpop.permute.xlu0 %4977
  %4979 = vrot.lane.b32.xlu0 %v4164, 54
  %v4980 = vpop.permute.xlu0 %4979
  %4981 = vrot.lane.b32.xlu0 %v4174, 54
  %v4982 = vpop.permute.xlu0 %4981
  %4983 = vrot.lane.b32.xlu0 %v4175, 54
  %v4984 = vpop.permute.xlu0 %4983
  %4985 = vrot.lane.b32.xlu0 %v4176, 54
  %v4986 = vpop.permute.xlu0 %4985
  %4987 = vrot.lane.b32.xlu0 %v4177, 54
  %v4988 = vpop.permute.xlu0 %4987
  %4989 = vrot.lane.b32.xlu0 %v4178, 54
  %v4990 = vpop.permute.xlu0 %4989
  %4991 = vrot.lane.b32.xlu0 %v4188, 54
  %v4992 = vpop.permute.xlu0 %4991
  %4993 = vrot.lane.b32.xlu0 %v4189, 54
  %v4994 = vpop.permute.xlu0 %4993
  %4995 = vrot.lane.b32.xlu0 %v4190, 54
  %v4996 = vpop.permute.xlu0 %4995
  %4997 = vrot.lane.b32.xlu0 %v4191, 54
  %v4998 = vpop.permute.xlu0 %4997
  %4999 = vrot.lane.b32.xlu0 %v4192, 54
  %v5000 = vpop.permute.xlu0 %4999
  %5001 = vrot.lane.b32.xlu0 %v4202, 54
  %v5002 = vpop.permute.xlu0 %5001
  %5003 = vrot.lane.b32.xlu0 %v4203, 54
  %v5004 = vpop.permute.xlu0 %5003
  %5005 = vrot.lane.b32.xlu0 %v4204, 54
  %v5006 = vpop.permute.xlu0 %5005
  %5007 = vrot.lane.b32.xlu0 %v4205, 54
  %v5008 = vpop.permute.xlu0 %5007
  %5009 = vrot.lane.b32.xlu0 %v4206, 54
  %v5010 = vpop.permute.xlu0 %5009
  %5041 = vrot.lane.b32.xlu0 %v4140, 60
  %v5042 = vpop.permute.xlu0 %5041
  %5043 = vrot.lane.b32.xlu0 %v4141, 60
  %v5044 = vpop.permute.xlu0 %5043
  %5045 = vrot.lane.b32.xlu0 %v4142, 60
  %v5046 = vpop.permute.xlu0 %5045
  %5047 = vrot.lane.b32.xlu0 %v4143, 60
  %v5048 = vpop.permute.xlu0 %5047
  %5049 = vrot.lane.b32.xlu0 %v4144, 60
  %v5050 = vpop.permute.xlu0 %5049
  %5051 = vrot.lane.b32.xlu0 %v4154, 60
  %v5052 = vpop.permute.xlu0 %5051
  %5053 = vrot.lane.b32.xlu0 %v4155, 60
  %v5054 = vpop.permute.xlu0 %5053
  %5055 = vrot.lane.b32.xlu0 %v4156, 60
  %v5056 = vpop.permute.xlu0 %5055
  %5057 = vrot.lane.b32.xlu0 %v4157, 60
  %v5058 = vpop.permute.xlu0 %5057
  %5059 = vrot.lane.b32.xlu0 %v4158, 60
  %v5060 = vpop.permute.xlu0 %5059
  %5061 = vrot.lane.b32.xlu0 %v4168, 60
  %v5062 = vpop.permute.xlu0 %5061
  %5063 = vrot.lane.b32.xlu0 %v4169, 60
  %v5064 = vpop.permute.xlu0 %5063
  %5065 = vrot.lane.b32.xlu0 %v4170, 60
  %v5066 = vpop.permute.xlu0 %5065
  %5067 = vrot.lane.b32.xlu0 %v4171, 60
  %v5068 = vpop.permute.xlu0 %5067
  %5069 = vrot.lane.b32.xlu0 %v4172, 60
  %v5070 = vpop.permute.xlu0 %5069
  %5071 = vrot.lane.b32.xlu0 %v4182, 60
  %v5072 = vpop.permute.xlu0 %5071
  %5073 = vrot.lane.b32.xlu0 %v4183, 60
  %v5074 = vpop.permute.xlu0 %5073
  %5075 = vrot.lane.b32.xlu0 %v4184, 60
  %v5076 = vpop.permute.xlu0 %5075
  %5077 = vrot.lane.b32.xlu0 %v4185, 60
  %v5078 = vpop.permute.xlu0 %5077
  %5079 = vrot.lane.b32.xlu0 %v4186, 60
  %v5080 = vpop.permute.xlu0 %5079
  %5081 = vrot.lane.b32.xlu0 %v4196, 60
  %v5082 = vpop.permute.xlu0 %5081
  %5083 = vrot.lane.b32.xlu0 %v4197, 60
  %v5084 = vpop.permute.xlu0 %5083
  %5085 = vrot.lane.b32.xlu0 %v4198, 60
  %v5086 = vpop.permute.xlu0 %5085
  %5087 = vrot.lane.b32.xlu0 %v4199, 60
  %v5088 = vpop.permute.xlu0 %5087
  %5089 = vrot.lane.b32.xlu0 %v4200, 60
  %v5090 = vpop.permute.xlu0 %5089
  %5121 = vrot.lane.b32.xlu0 %v4147, 66
  %v5122 = vpop.permute.xlu0 %5121
  %5123 = vrot.lane.b32.xlu0 %v4148, 66
  %v5124 = vpop.permute.xlu0 %5123
  %5125 = vrot.lane.b32.xlu0 %v4149, 66
  %v5126 = vpop.permute.xlu0 %5125
  %5127 = vrot.lane.b32.xlu0 %v4150, 66
  %v5128 = vpop.permute.xlu0 %5127
  %5129 = vrot.lane.b32.xlu0 %v4151, 66
  %v5130 = vpop.permute.xlu0 %5129
  %5131 = vrot.lane.b32.xlu0 %v4161, 66
  %v5132 = vpop.permute.xlu0 %5131
  %5133 = vrot.lane.b32.xlu0 %v4162, 66
  %v5134 = vpop.permute.xlu0 %5133
  %5135 = vrot.lane.b32.xlu0 %v4163, 66
  %v5136 = vpop.permute.xlu0 %5135
  %5137 = vrot.lane.b32.xlu0 %v4164, 66
  %v5138 = vpop.permute.xlu0 %5137
  %5139 = vrot.lane.b32.xlu0 %v4165, 66
  %v5140 = vpop.permute.xlu0 %5139
  %5141 = vrot.lane.b32.xlu0 %v4175, 66
  %v5142 = vpop.permute.xlu0 %5141
  %5143 = vrot.lane.b32.xlu0 %v4176, 66
  %v5144 = vpop.permute.xlu0 %5143
  %5145 = vrot.lane.b32.xlu0 %v4177, 66
  %v5146 = vpop.permute.xlu0 %5145
  %5147 = vrot.lane.b32.xlu0 %v4178, 66
  %v5148 = vpop.permute.xlu0 %5147
  %5149 = vrot.lane.b32.xlu0 %v4179, 66
  %v5150 = vpop.permute.xlu0 %5149
  %5151 = vrot.lane.b32.xlu0 %v4189, 66
  %v5152 = vpop.permute.xlu0 %5151
  %5153 = vrot.lane.b32.xlu0 %v4190, 66
  %v5154 = vpop.permute.xlu0 %5153
  %5155 = vrot.lane.b32.xlu0 %v4191, 66
  %v5156 = vpop.permute.xlu0 %5155
  %5157 = vrot.lane.b32.xlu0 %v4192, 66
  %v5158 = vpop.permute.xlu0 %5157
  %5159 = vrot.lane.b32.xlu0 %v4193, 66
  %v5160 = vpop.permute.xlu0 %5159
  %5161 = vrot.lane.b32.xlu0 %v4203, 66
  %v5162 = vpop.permute.xlu0 %5161
  %5163 = vrot.lane.b32.xlu0 %v4204, 66
  %v5164 = vpop.permute.xlu0 %5163
  %5165 = vrot.lane.b32.xlu0 %v4205, 66
  %v5166 = vpop.permute.xlu0 %5165
  %5167 = vrot.lane.b32.xlu0 %v4206, 66
  %v5168 = vpop.permute.xlu0 %5167
  %5169 = vrot.lane.b32.xlu0 %v4207, 66
  %v5170 = vpop.permute.xlu0 %5169
  %5205 = vrot.lane.b32.xlu0 %v4054, 72
  %v5206 = vpop.permute.xlu0 %5205
  %5207 = vrot.lane.b32.xlu0 %v4055, 72
  %v5208 = vpop.permute.xlu0 %5207
  %5209 = vrot.lane.b32.xlu0 %v4056, 72
  %v5210 = vpop.permute.xlu0 %5209
  %5211 = vrot.lane.b32.xlu0 %v4057, 72
  %v5212 = vpop.permute.xlu0 %5211
  %5213 = vrot.lane.b32.xlu0 %v4058, 72
  %v5214 = vpop.permute.xlu0 %5213
  %5215 = vrot.lane.b32.xlu0 %v4068, 72
  %v5216 = vpop.permute.xlu0 %5215
  %5217 = vrot.lane.b32.xlu0 %v4069, 72
  %v5218 = vpop.permute.xlu0 %5217
  %5219 = vrot.lane.b32.xlu0 %v4070, 72
  %v5220 = vpop.permute.xlu0 %5219
  %5221 = vrot.lane.b32.xlu0 %v4071, 72
  %v5222 = vpop.permute.xlu0 %5221
  %5223 = vrot.lane.b32.xlu0 %v4072, 72
  %v5224 = vpop.permute.xlu0 %5223
  %5225 = vrot.lane.b32.xlu0 %v4082, 72
  %v5226 = vpop.permute.xlu0 %5225
  %5227 = vrot.lane.b32.xlu0 %v4083, 72
  %v5228 = vpop.permute.xlu0 %5227
  %5229 = vrot.lane.b32.xlu0 %v4084, 72
  %v5230 = vpop.permute.xlu0 %5229
  %5231 = vrot.lane.b32.xlu0 %v4085, 72
  %v5232 = vpop.permute.xlu0 %5231
  %5233 = vrot.lane.b32.xlu0 %v4086, 72
  %v5234 = vpop.permute.xlu0 %5233
  %5235 = vrot.lane.b32.xlu0 %v4096, 72
  %v5236 = vpop.permute.xlu0 %5235
  %5237 = vrot.lane.b32.xlu0 %v4097, 72
  %v5238 = vpop.permute.xlu0 %5237
  %5239 = vrot.lane.b32.xlu0 %v4098, 72
  %v5240 = vpop.permute.xlu0 %5239
  %5241 = vrot.lane.b32.xlu0 %v4099, 72
  %v5242 = vpop.permute.xlu0 %5241
  %5243 = vrot.lane.b32.xlu0 %v4100, 72
  %v5244 = vpop.permute.xlu0 %5243
  %5245 = vrot.lane.b32.xlu0 %v4110, 72
  %v5246 = vpop.permute.xlu0 %5245
  %5247 = vrot.lane.b32.xlu0 %v4111, 72
  %v5248 = vpop.permute.xlu0 %5247
  %5249 = vrot.lane.b32.xlu0 %v4112, 72
  %v5250 = vpop.permute.xlu0 %5249
  %5251 = vrot.lane.b32.xlu0 %v4113, 72
  %v5252 = vpop.permute.xlu0 %5251
  %5253 = vrot.lane.b32.xlu0 %v4114, 72
  %v5254 = vpop.permute.xlu0 %5253
  %5285 = vrot.lane.b32.xlu0 %v4061, 78
  %v5286 = vpop.permute.xlu0 %5285
  %5287 = vrot.lane.b32.xlu0 %v4062, 78
  %v5288 = vpop.permute.xlu0 %5287
  %5289 = vrot.lane.b32.xlu0 %v4063, 78
  %v5290 = vpop.permute.xlu0 %5289
  %5291 = vrot.lane.b32.xlu0 %v4064, 78
  %v5292 = vpop.permute.xlu0 %5291
  %5293 = vrot.lane.b32.xlu0 %v4065, 78
  %v5294 = vpop.permute.xlu0 %5293
  %5295 = vrot.lane.b32.xlu0 %v4075, 78
  %v5296 = vpop.permute.xlu0 %5295
  %5297 = vrot.lane.b32.xlu0 %v4076, 78
  %v5298 = vpop.permute.xlu0 %5297
  %5299 = vrot.lane.b32.xlu0 %v4077, 78
  %v5300 = vpop.permute.xlu0 %5299
  %5301 = vrot.lane.b32.xlu0 %v4078, 78
  %v5302 = vpop.permute.xlu0 %5301
  %5303 = vrot.lane.b32.xlu0 %v4079, 78
  %v5304 = vpop.permute.xlu0 %5303
  %5305 = vrot.lane.b32.xlu0 %v4089, 78
  %v5306 = vpop.permute.xlu0 %5305
  %5307 = vrot.lane.b32.xlu0 %v4090, 78
  %v5308 = vpop.permute.xlu0 %5307
  %5309 = vrot.lane.b32.xlu0 %v4091, 78
  %v5310 = vpop.permute.xlu0 %5309
  %5311 = vrot.lane.b32.xlu0 %v4092, 78
  %v5312 = vpop.permute.xlu0 %5311
  %5313 = vrot.lane.b32.xlu0 %v4093, 78
  %v5314 = vpop.permute.xlu0 %5313
  %5315 = vrot.lane.b32.xlu0 %v4103, 78
  %v5316 = vpop.permute.xlu0 %5315
  %5317 = vrot.lane.b32.xlu0 %v4104, 78
  %v5318 = vpop.permute.xlu0 %5317
  %5319 = vrot.lane.b32.xlu0 %v4105, 78
  %v5320 = vpop.permute.xlu0 %5319
  %5321 = vrot.lane.b32.xlu0 %v4106, 78
  %v5322 = vpop.permute.xlu0 %5321
  %5323 = vrot.lane.b32.xlu0 %v4107, 78
  %v5324 = vpop.permute.xlu0 %5323
  %5325 = vrot.lane.b32.xlu0 %v4117, 78
  %v5326 = vpop.permute.xlu0 %5325
  %5327 = vrot.lane.b32.xlu0 %v4118, 78
  %v5328 = vpop.permute.xlu0 %5327
  %5329 = vrot.lane.b32.xlu0 %v4119, 78
  %v5330 = vpop.permute.xlu0 %5329
  %5331 = vrot.lane.b32.xlu0 %v4120, 78
  %v5332 = vpop.permute.xlu0 %5331
  %5333 = vrot.lane.b32.xlu0 %v4121, 78
  %v5334 = vpop.permute.xlu0 %5333
  %5361 = vrot.lane.b32.xlu0 %v4055, 84
  %v5362 = vpop.permute.xlu0 %5361
  %5363 = vrot.lane.b32.xlu0 %v4056, 84
  %v5364 = vpop.permute.xlu0 %5363
  %5365 = vrot.lane.b32.xlu0 %v4057, 84
  %v5366 = vpop.permute.xlu0 %5365
  %5367 = vrot.lane.b32.xlu0 %v4058, 84
  %v5368 = vpop.permute.xlu0 %5367
  %5369 = vrot.lane.b32.xlu0 %v4059, 84
  %v5370 = vpop.permute.xlu0 %5369
  %5371 = vrot.lane.b32.xlu0 %v4069, 84
  %v5372 = vpop.permute.xlu0 %5371
  %5373 = vrot.lane.b32.xlu0 %v4070, 84
  %v5374 = vpop.permute.xlu0 %5373
  %5375 = vrot.lane.b32.xlu0 %v4071, 84
  %v5376 = vpop.permute.xlu0 %5375
  %5377 = vrot.lane.b32.xlu0 %v4072, 84
  %v5378 = vpop.permute.xlu0 %5377
  %5379 = vrot.lane.b32.xlu0 %v4073, 84
  %v5380 = vpop.permute.xlu0 %5379
  %5381 = vrot.lane.b32.xlu0 %v4083, 84
  %v5382 = vpop.permute.xlu0 %5381
  %5383 = vrot.lane.b32.xlu0 %v4084, 84
  %v5384 = vpop.permute.xlu0 %5383
  %5385 = vrot.lane.b32.xlu0 %v4085, 84
  %v5386 = vpop.permute.xlu0 %5385
  %5387 = vrot.lane.b32.xlu0 %v4086, 84
  %v5388 = vpop.permute.xlu0 %5387
  %5389 = vrot.lane.b32.xlu0 %v4087, 84
  %v5390 = vpop.permute.xlu0 %5389
  %5391 = vrot.lane.b32.xlu0 %v4097, 84
  %v5392 = vpop.permute.xlu0 %5391
  %5393 = vrot.lane.b32.xlu0 %v4098, 84
  %v5394 = vpop.permute.xlu0 %5393
  %5395 = vrot.lane.b32.xlu0 %v4099, 84
  %v5396 = vpop.permute.xlu0 %5395
  %5397 = vrot.lane.b32.xlu0 %v4100, 84
  %v5398 = vpop.permute.xlu0 %5397
  %5399 = vrot.lane.b32.xlu0 %v4101, 84
  %v5400 = vpop.permute.xlu0 %5399
  %5401 = vrot.lane.b32.xlu0 %v4111, 84
  %v5402 = vpop.permute.xlu0 %5401
  %5403 = vrot.lane.b32.xlu0 %v4112, 84
  %v5404 = vpop.permute.xlu0 %5403
  %5405 = vrot.lane.b32.xlu0 %v4113, 84
  %v5406 = vpop.permute.xlu0 %5405
  %5407 = vrot.lane.b32.xlu0 %v4114, 84
  %v5408 = vpop.permute.xlu0 %5407
  %5409 = vrot.lane.b32.xlu0 %v4115, 84
  %v5410 = vpop.permute.xlu0 %5409
  %5437 = vrot.lane.b32.xlu0 %v4062, 90
  %v5438 = vpop.permute.xlu0 %5437
  %5439 = vrot.lane.b32.xlu0 %v4063, 90
  %v5440 = vpop.permute.xlu0 %5439
  %5441 = vrot.lane.b32.xlu0 %v4064, 90
  %v5442 = vpop.permute.xlu0 %5441
  %5443 = vrot.lane.b32.xlu0 %v4065, 90
  %v5444 = vpop.permute.xlu0 %5443
  %5445 = vrot.lane.b32.xlu0 %v4066, 90
  %v5446 = vpop.permute.xlu0 %5445
  %5447 = vrot.lane.b32.xlu0 %v4076, 90
  %v5448 = vpop.permute.xlu0 %5447
  %5449 = vrot.lane.b32.xlu0 %v4077, 90
  %v5450 = vpop.permute.xlu0 %5449
  %5451 = vrot.lane.b32.xlu0 %v4078, 90
  %v5452 = vpop.permute.xlu0 %5451
  %5453 = vrot.lane.b32.xlu0 %v4079, 90
  %v5454 = vpop.permute.xlu0 %5453
  %5455 = vrot.lane.b32.xlu0 %v4080, 90
  %v5456 = vpop.permute.xlu0 %5455
  %5457 = vrot.lane.b32.xlu0 %v4090, 90
  %v5458 = vpop.permute.xlu0 %5457
  %5459 = vrot.lane.b32.xlu0 %v4091, 90
  %v5460 = vpop.permute.xlu0 %5459
  %5461 = vrot.lane.b32.xlu0 %v4092, 90
  %v5462 = vpop.permute.xlu0 %5461
  %5463 = vrot.lane.b32.xlu0 %v4093, 90
  %v5464 = vpop.permute.xlu0 %5463
  %5465 = vrot.lane.b32.xlu0 %v4094, 90
  %v5466 = vpop.permute.xlu0 %5465
  %5467 = vrot.lane.b32.xlu0 %v4104, 90
  %v5468 = vpop.permute.xlu0 %5467
  %5469 = vrot.lane.b32.xlu0 %v4105, 90
  %v5470 = vpop.permute.xlu0 %5469
  %5471 = vrot.lane.b32.xlu0 %v4106, 90
  %v5472 = vpop.permute.xlu0 %5471
  %5473 = vrot.lane.b32.xlu0 %v4107, 90
  %v5474 = vpop.permute.xlu0 %5473
  %5475 = vrot.lane.b32.xlu0 %v4108, 90
  %v5476 = vpop.permute.xlu0 %5475
  %5477 = vrot.lane.b32.xlu0 %v4118, 90
  %v5478 = vpop.permute.xlu0 %5477
  %5479 = vrot.lane.b32.xlu0 %v4119, 90
  %v5480 = vpop.permute.xlu0 %5479
  %5481 = vrot.lane.b32.xlu0 %v4120, 90
  %v5482 = vpop.permute.xlu0 %5481
  %5483 = vrot.lane.b32.xlu0 %v4121, 90
  %v5484 = vpop.permute.xlu0 %5483
  %5485 = vrot.lane.b32.xlu0 %v4122, 90
  %v5486 = vpop.permute.xlu0 %5485
  %vm5512 = vcmask 48128
  %v5513 = vsel %vm5512, %v4040, %v4262
  %v5514 = vsel %vm5512, %v4041, %v4264
  %v5515 = vsel %vm5512, %v4042, %v4266
  %v5516 = vsel %vm5512, %v4043, %v4268
  %v5517 = vsel %vm5512, %v4044, %v4270
  %v5518 = vsel %vm5512, %v4054, %v4272
  %v5519 = vsel %vm5512, %v4055, %v4274
  %v5520 = vsel %vm5512, %v4056, %v4276
  %v5521 = vsel %vm5512, %v4057, %v4278
  %v5522 = vsel %vm5512, %v4058, %v4280
  %v5523 = vsel %vm5512, %v4068, %v4282
  %v5524 = vsel %vm5512, %v4069, %v4284
  %v5525 = vsel %vm5512, %v4070, %v4286
  %v5526 = vsel %vm5512, %v4071, %v4288
  %v5527 = vsel %vm5512, %v4072, %v4290
  %v5528 = vsel %vm5512, %v4082, %v4292
  %v5529 = vsel %vm5512, %v4083, %v4294
  %v5530 = vsel %vm5512, %v4084, %v4296
  %v5531 = vsel %vm5512, %v4085, %v4298
  %v5532 = vsel %vm5512, %v4086, %v4300
  %v5533 = vsel %vm5512, %v4096, %v4302
  %v5534 = vsel %vm5512, %v4097, %v4304
  %v5535 = vsel %vm5512, %v4098, %v4306
  %v5536 = vsel %vm5512, %v4099, %v4308
  %v5537 = vsel %vm5512, %v4100, %v4310
  %vm5538 = vcmask 97280
  %v5539 = vsel %vm5538, %v5513, %v4362
  %v5540 = vsel %vm5538, %v5514, %v4364
  %v5541 = vsel %vm5538, %v5515, %v4366
  %v5542 = vsel %vm5538, %v5516, %v4368
  %v5543 = vsel %vm5538, %v5517, %v4370
  %v5544 = vsel %vm5538, %v5518, %v4372
  %v5545 = vsel %vm5538, %v5519, %v4374
  %v5546 = vsel %vm5538, %v5520, %v4376
  %v5547 = vsel %vm5538, %v5521, %v4378
  %v5548 = vsel %vm5538, %v5522, %v4380
  %v5549 = vsel %vm5538, %v5523, %v4382
  %v5550 = vsel %vm5538, %v5524, %v4384
  %v5551 = vsel %vm5538, %v5525, %v4386
  %v5552 = vsel %vm5538, %v5526, %v4388
  %v5553 = vsel %vm5538, %v5527, %v4390
  %v5554 = vsel %vm5538, %v5528, %v4392
  %v5555 = vsel %vm5538, %v5529, %v4394
  %v5556 = vsel %vm5538, %v5530, %v4396
  %v5557 = vsel %vm5538, %v5531, %v4398
  %v5558 = vsel %vm5538, %v5532, %v4400
  %v5559 = vsel %vm5538, %v5533, %v4402
  %v5560 = vsel %vm5538, %v5534, %v4404
  %v5561 = vsel %vm5538, %v5535, %v4406
  %v5562 = vsel %vm5538, %v5536, %v4408
  %v5563 = vsel %vm5538, %v5537, %v4410
  %vm5564 = vcmask 146432
  %v5565 = vsel %vm5564, %v5539, %v4442
  %v5566 = vsel %vm5564, %v5540, %v4444
  %v5567 = vsel %vm5564, %v5541, %v4446
  %v5568 = vsel %vm5564, %v5542, %v4448
  %v5569 = vsel %vm5564, %v5543, %v4450
  %v5570 = vsel %vm5564, %v5544, %v4452
  %v5571 = vsel %vm5564, %v5545, %v4454
  %v5572 = vsel %vm5564, %v5546, %v4456
  %v5573 = vsel %vm5564, %v5547, %v4458
  %v5574 = vsel %vm5564, %v5548, %v4460
  %v5575 = vsel %vm5564, %v5549, %v4462
  %v5576 = vsel %vm5564, %v5550, %v4464
  %v5577 = vsel %vm5564, %v5551, %v4466
  %v5578 = vsel %vm5564, %v5552, %v4468
  %v5579 = vsel %vm5564, %v5553, %v4470
  %v5580 = vsel %vm5564, %v5554, %v4472
  %v5581 = vsel %vm5564, %v5555, %v4474
  %v5582 = vsel %vm5564, %v5556, %v4476
  %v5583 = vsel %vm5564, %v5557, %v4478
  %v5584 = vsel %vm5564, %v5558, %v4480
  %v5585 = vsel %vm5564, %v5559, %v4482
  %v5586 = vsel %vm5564, %v5560, %v4484
  %v5587 = vsel %vm5564, %v5561, %v4486
  %v5588 = vsel %vm5564, %v5562, %v4488
  %v5589 = vsel %vm5564, %v5563, %v4490
  %vm5590 = vcmask 195584
  %v5591 = vsel %vm5590, %v5565, %v4522
  %v5592 = vsel %vm5590, %v5566, %v4524
  %v5593 = vsel %vm5590, %v5567, %v4526
  %v5594 = vsel %vm5590, %v5568, %v4528
  %v5595 = vsel %vm5590, %v5569, %v4530
  %v5596 = vsel %vm5590, %v5570, %v4532
  %v5597 = vsel %vm5590, %v5571, %v4534
  %v5598 = vsel %vm5590, %v5572, %v4536
  %v5599 = vsel %vm5590, %v5573, %v4538
  %v5600 = vsel %vm5590, %v5574, %v4540
  %v5601 = vsel %vm5590, %v5575, %v4542
  %v5602 = vsel %vm5590, %v5576, %v4544
  %v5603 = vsel %vm5590, %v5577, %v4546
  %v5604 = vsel %vm5590, %v5578, %v4548
  %v5605 = vsel %vm5590, %v5579, %v4550
  %v5606 = vsel %vm5590, %v5580, %v4552
  %v5607 = vsel %vm5590, %v5581, %v4554
  %v5608 = vsel %vm5590, %v5582, %v4556
  %v5609 = vsel %vm5590, %v5583, %v4558
  %v5610 = vsel %vm5590, %v5584, %v4560
  %v5611 = vsel %vm5590, %v5585, %v4562
  %v5612 = vsel %vm5590, %v5586, %v4564
  %v5613 = vsel %vm5590, %v5587, %v4566
  %v5614 = vsel %vm5590, %v5588, %v4568
  %v5615 = vsel %vm5590, %v5589, %v4570
  %vm5616 = vcmask 244736
  %v5617 = vsel %vm5616, %v5591, %v4602
  %v5618 = vsel %vm5616, %v5592, %v4604
  %v5619 = vsel %vm5616, %v5593, %v4606
  %v5620 = vsel %vm5616, %v5594, %v4608
  %v5621 = vsel %vm5616, %v5595, %v4610
  %v5622 = vsel %vm5616, %v5596, %v4612
  %v5623 = vsel %vm5616, %v5597, %v4614
  %v5624 = vsel %vm5616, %v5598, %v4616
  %v5625 = vsel %vm5616, %v5599, %v4618
  %v5626 = vsel %vm5616, %v5600, %v4620
  %v5627 = vsel %vm5616, %v5601, %v4622
  %v5628 = vsel %vm5616, %v5602, %v4624
  %v5629 = vsel %vm5616, %v5603, %v4626
  %v5630 = vsel %vm5616, %v5604, %v4628
  %v5631 = vsel %vm5616, %v5605, %v4630
  %v5632 = vsel %vm5616, %v5606, %v4632
  %v5633 = vsel %vm5616, %v5607, %v4634
  %v5634 = vsel %vm5616, %v5608, %v4636
  %v5635 = vsel %vm5616, %v5609, %v4638
  %v5636 = vsel %vm5616, %v5610, %v4640
  %v5637 = vsel %vm5616, %v5611, %v4642
  %v5638 = vsel %vm5616, %v5612, %v4644
  %v5639 = vsel %vm5616, %v5613, %v4646
  %v5640 = vsel %vm5616, %v5614, %v4648
  %v5641 = vsel %vm5616, %v5615, %v4650
  %v5642 = vsel %vm239, %v5617, %v4702
  %v5643 = vsel %vm239, %v5618, %v4704
  %v5644 = vsel %vm239, %v5619, %v4706
  %v5645 = vsel %vm239, %v5620, %v4708
  %v5646 = vsel %vm239, %v5621, %v4710
  %v5647 = vsel %vm239, %v5622, %v4712
  %v5648 = vsel %vm239, %v5623, %v4714
  %v5649 = vsel %vm239, %v5624, %v4716
  %v5650 = vsel %vm239, %v5625, %v4718
  %v5651 = vsel %vm239, %v5626, %v4720
  %v5652 = vsel %vm239, %v5627, %v4722
  %v5653 = vsel %vm239, %v5628, %v4724
  %v5654 = vsel %vm239, %v5629, %v4726
  %v5655 = vsel %vm239, %v5630, %v4728
  %v5656 = vsel %vm239, %v5631, %v4730
  %v5657 = vsel %vm239, %v5632, %v4732
  %v5658 = vsel %vm239, %v5633, %v4734
  %v5659 = vsel %vm239, %v5634, %v4736
  %v5660 = vsel %vm239, %v5635, %v4738
  %v5661 = vsel %vm239, %v5636, %v4740
  %v5662 = vsel %vm239, %v5637, %v4742
  %v5663 = vsel %vm239, %v5638, %v4744
  %v5664 = vsel %vm239, %v5639, %v4746
  %v5665 = vsel %vm239, %v5640, %v4748
  %v5666 = vsel %vm239, %v5641, %v4750
  %vm5667 = vcmask 343040
  %v5668 = vsel %vm5667, %v5642, %v4802
  %v5669 = vsel %vm5667, %v5643, %v4804
  %v5670 = vsel %vm5667, %v5644, %v4806
  %v5671 = vsel %vm5667, %v5645, %v4808
  %v5672 = vsel %vm5667, %v5646, %v4810
  %v5673 = vsel %vm5667, %v5647, %v4812
  %v5674 = vsel %vm5667, %v5648, %v4814
  %v5675 = vsel %vm5667, %v5649, %v4816
  %v5676 = vsel %vm5667, %v5650, %v4818
  %v5677 = vsel %vm5667, %v5651, %v4820
  %v5678 = vsel %vm5667, %v5652, %v4822
  %v5679 = vsel %vm5667, %v5653, %v4824
  %v5680 = vsel %vm5667, %v5654, %v4826
  %v5681 = vsel %vm5667, %v5655, %v4828
  %v5682 = vsel %vm5667, %v5656, %v4830
  %v5683 = vsel %vm5667, %v5657, %v4832
  %v5684 = vsel %vm5667, %v5658, %v4834
  %v5685 = vsel %vm5667, %v5659, %v4836
  %v5686 = vsel %vm5667, %v5660, %v4838
  %v5687 = vsel %vm5667, %v5661, %v4840
  %v5688 = vsel %vm5667, %v5662, %v4842
  %v5689 = vsel %vm5667, %v5663, %v4844
  %v5690 = vsel %vm5667, %v5664, %v4846
  %v5691 = vsel %vm5667, %v5665, %v4848
  %v5692 = vsel %vm5667, %v5666, %v4850
  %vm5693 = vcmask 392192
  %v5694 = vsel %vm5693, %v5668, %v4882
  %v5695 = vsel %vm5693, %v5669, %v4884
  %v5696 = vsel %vm5693, %v5670, %v4886
  %v5697 = vsel %vm5693, %v5671, %v4888
  %v5698 = vsel %vm5693, %v5672, %v4890
  %v5699 = vsel %vm5693, %v5673, %v4892
  %v5700 = vsel %vm5693, %v5674, %v4894
  %v5701 = vsel %vm5693, %v5675, %v4896
  %v5702 = vsel %vm5693, %v5676, %v4898
  %v5703 = vsel %vm5693, %v5677, %v4900
  %v5704 = vsel %vm5693, %v5678, %v4902
  %v5705 = vsel %vm5693, %v5679, %v4904
  %v5706 = vsel %vm5693, %v5680, %v4906
  %v5707 = vsel %vm5693, %v5681, %v4908
  %v5708 = vsel %vm5693, %v5682, %v4910
  %v5709 = vsel %vm5693, %v5683, %v4912
  %v5710 = vsel %vm5693, %v5684, %v4914
  %v5711 = vsel %vm5693, %v5685, %v4916
  %v5712 = vsel %vm5693, %v5686, %v4918
  %v5713 = vsel %vm5693, %v5687, %v4920
  %v5714 = vsel %vm5693, %v5688, %v4922
  %v5715 = vsel %vm5693, %v5689, %v4924
  %v5716 = vsel %vm5693, %v5690, %v4926
  %v5717 = vsel %vm5693, %v5691, %v4928
  %v5718 = vsel %vm5693, %v5692, %v4930
  %vm5719 = vcmask 441344
  %v5720 = vsel %vm5719, %v5694, %v4962
  %v5721 = vsel %vm5719, %v5695, %v4964
  %v5722 = vsel %vm5719, %v5696, %v4966
  %v5723 = vsel %vm5719, %v5697, %v4968
  %v5724 = vsel %vm5719, %v5698, %v4970
  %v5725 = vsel %vm5719, %v5699, %v4972
  %v5726 = vsel %vm5719, %v5700, %v4974
  %v5727 = vsel %vm5719, %v5701, %v4976
  %v5728 = vsel %vm5719, %v5702, %v4978
  %v5729 = vsel %vm5719, %v5703, %v4980
  %v5730 = vsel %vm5719, %v5704, %v4982
  %v5731 = vsel %vm5719, %v5705, %v4984
  %v5732 = vsel %vm5719, %v5706, %v4986
  %v5733 = vsel %vm5719, %v5707, %v4988
  %v5734 = vsel %vm5719, %v5708, %v4990
  %v5735 = vsel %vm5719, %v5709, %v4992
  %v5736 = vsel %vm5719, %v5710, %v4994
  %v5737 = vsel %vm5719, %v5711, %v4996
  %v5738 = vsel %vm5719, %v5712, %v4998
  %v5739 = vsel %vm5719, %v5713, %v5000
  %v5740 = vsel %vm5719, %v5714, %v5002
  %v5741 = vsel %vm5719, %v5715, %v5004
  %v5742 = vsel %vm5719, %v5716, %v5006
  %v5743 = vsel %vm5719, %v5717, %v5008
  %v5744 = vsel %vm5719, %v5718, %v5010
  %vm5745 = vcmask 490496
  %v5746 = vsel %vm5745, %v5720, %v5042
  %v5747 = vsel %vm5745, %v5721, %v5044
  %v5748 = vsel %vm5745, %v5722, %v5046
  %v5749 = vsel %vm5745, %v5723, %v5048
  %v5750 = vsel %vm5745, %v5724, %v5050
  %v5751 = vsel %vm5745, %v5725, %v5052
  %v5752 = vsel %vm5745, %v5726, %v5054
  %v5753 = vsel %vm5745, %v5727, %v5056
  %v5754 = vsel %vm5745, %v5728, %v5058
  %v5755 = vsel %vm5745, %v5729, %v5060
  %v5756 = vsel %vm5745, %v5730, %v5062
  %v5757 = vsel %vm5745, %v5731, %v5064
  %v5758 = vsel %vm5745, %v5732, %v5066
  %v5759 = vsel %vm5745, %v5733, %v5068
  %v5760 = vsel %vm5745, %v5734, %v5070
  %v5761 = vsel %vm5745, %v5735, %v5072
  %v5762 = vsel %vm5745, %v5736, %v5074
  %v5763 = vsel %vm5745, %v5737, %v5076
  %v5764 = vsel %vm5745, %v5738, %v5078
  %v5765 = vsel %vm5745, %v5739, %v5080
  %v5766 = vsel %vm5745, %v5740, %v5082
  %v5767 = vsel %vm5745, %v5741, %v5084
  %v5768 = vsel %vm5745, %v5742, %v5086
  %v5769 = vsel %vm5745, %v5743, %v5088
  %v5770 = vsel %vm5745, %v5744, %v5090
  %vm5771 = vcmask 539648
  %v5772 = vsel %vm5771, %v5746, %v5122
  %v5773 = vsel %vm5771, %v5747, %v5124
  %v5774 = vsel %vm5771, %v5748, %v5126
  %v5775 = vsel %vm5771, %v5749, %v5128
  %v5776 = vsel %vm5771, %v5750, %v5130
  %v5777 = vsel %vm5771, %v5751, %v5132
  %v5778 = vsel %vm5771, %v5752, %v5134
  %v5779 = vsel %vm5771, %v5753, %v5136
  %v5780 = vsel %vm5771, %v5754, %v5138
  %v5781 = vsel %vm5771, %v5755, %v5140
  %v5782 = vsel %vm5771, %v5756, %v5142
  %v5783 = vsel %vm5771, %v5757, %v5144
  %v5784 = vsel %vm5771, %v5758, %v5146
  %v5785 = vsel %vm5771, %v5759, %v5148
  %v5786 = vsel %vm5771, %v5760, %v5150
  %v5787 = vsel %vm5771, %v5761, %v5152
  %v5788 = vsel %vm5771, %v5762, %v5154
  %v5789 = vsel %vm5771, %v5763, %v5156
  %v5790 = vsel %vm5771, %v5764, %v5158
  %v5791 = vsel %vm5771, %v5765, %v5160
  %v5792 = vsel %vm5771, %v5766, %v5162
  %v5793 = vsel %vm5771, %v5767, %v5164
  %v5794 = vsel %vm5771, %v5768, %v5166
  %v5795 = vsel %vm5771, %v5769, %v5168
  %v5796 = vsel %vm5771, %v5770, %v5170
  %vm5797 = vcmask 588800
  %v5798 = vsel %vm5797, %v5772, %v5206
  %v5799 = vsel %vm5797, %v5773, %v5208
  %v5800 = vsel %vm5797, %v5774, %v5210
  %v5801 = vsel %vm5797, %v5775, %v5212
  %v5802 = vsel %vm5797, %v5776, %v5214
  %v5803 = vsel %vm5797, %v5777, %v5216
  %v5804 = vsel %vm5797, %v5778, %v5218
  %v5805 = vsel %vm5797, %v5779, %v5220
  %v5806 = vsel %vm5797, %v5780, %v5222
  %v5807 = vsel %vm5797, %v5781, %v5224
  %v5808 = vsel %vm5797, %v5782, %v5226
  %v5809 = vsel %vm5797, %v5783, %v5228
  %v5810 = vsel %vm5797, %v5784, %v5230
  %v5811 = vsel %vm5797, %v5785, %v5232
  %v5812 = vsel %vm5797, %v5786, %v5234
  %v5813 = vsel %vm5797, %v5787, %v5236
  %v5814 = vsel %vm5797, %v5788, %v5238
  %v5815 = vsel %vm5797, %v5789, %v5240
  %v5816 = vsel %vm5797, %v5790, %v5242
  %v5817 = vsel %vm5797, %v5791, %v5244
  %v5818 = vsel %vm5797, %v5792, %v5246
  %v5819 = vsel %vm5797, %v5793, %v5248
  %v5820 = vsel %vm5797, %v5794, %v5250
  %v5821 = vsel %vm5797, %v5795, %v5252
  %v5822 = vsel %vm5797, %v5796, %v5254
  %vm5823 = vcmask 637952
  %v5824 = vsel %vm5823, %v5798, %v5286
  %v5825 = vsel %vm5823, %v5799, %v5288
  %v5826 = vsel %vm5823, %v5800, %v5290
  %v5827 = vsel %vm5823, %v5801, %v5292
  %v5828 = vsel %vm5823, %v5802, %v5294
  %v5829 = vsel %vm5823, %v5803, %v5296
  %v5830 = vsel %vm5823, %v5804, %v5298
  %v5831 = vsel %vm5823, %v5805, %v5300
  %v5832 = vsel %vm5823, %v5806, %v5302
  %v5833 = vsel %vm5823, %v5807, %v5304
  %v5834 = vsel %vm5823, %v5808, %v5306
  %v5835 = vsel %vm5823, %v5809, %v5308
  %v5836 = vsel %vm5823, %v5810, %v5310
  %v5837 = vsel %vm5823, %v5811, %v5312
  %v5838 = vsel %vm5823, %v5812, %v5314
  %v5839 = vsel %vm5823, %v5813, %v5316
  %v5840 = vsel %vm5823, %v5814, %v5318
  %v5841 = vsel %vm5823, %v5815, %v5320
  %v5842 = vsel %vm5823, %v5816, %v5322
  %v5843 = vsel %vm5823, %v5817, %v5324
  %v5844 = vsel %vm5823, %v5818, %v5326
  %v5845 = vsel %vm5823, %v5819, %v5328
  %v5846 = vsel %vm5823, %v5820, %v5330
  %v5847 = vsel %vm5823, %v5821, %v5332
  %v5848 = vsel %vm5823, %v5822, %v5334
  %vm5849 = vcmask 687104
  %v5850 = vsel %vm5849, %v5824, %v5362
  %v5851 = vsel %vm5849, %v5825, %v5364
  %v5852 = vsel %vm5849, %v5826, %v5366
  %v5853 = vsel %vm5849, %v5827, %v5368
  %v5854 = vsel %vm5849, %v5828, %v5370
  %v5855 = vsel %vm5849, %v5829, %v5372
  %v5856 = vsel %vm5849, %v5830, %v5374
  %v5857 = vsel %vm5849, %v5831, %v5376
  %v5858 = vsel %vm5849, %v5832, %v5378
  %v5859 = vsel %vm5849, %v5833, %v5380
  %v5860 = vsel %vm5849, %v5834, %v5382
  %v5861 = vsel %vm5849, %v5835, %v5384
  %v5862 = vsel %vm5849, %v5836, %v5386
  %v5863 = vsel %vm5849, %v5837, %v5388
  %v5864 = vsel %vm5849, %v5838, %v5390
  %v5865 = vsel %vm5849, %v5839, %v5392
  %v5866 = vsel %vm5849, %v5840, %v5394
  %v5867 = vsel %vm5849, %v5841, %v5396
  %v5868 = vsel %vm5849, %v5842, %v5398
  %v5869 = vsel %vm5849, %v5843, %v5400
  %v5870 = vsel %vm5849, %v5844, %v5402
  %v5871 = vsel %vm5849, %v5845, %v5404
  %v5872 = vsel %vm5849, %v5846, %v5406
  %v5873 = vsel %vm5849, %v5847, %v5408
  %v5874 = vsel %vm5849, %v5848, %v5410
  %vm5875 = vcmask 736256
  %v5876 = vsel %vm5875, %v5850, %v5438
  %v5877 = vsel %vm5875, %v5851, %v5440
  %v5878 = vsel %vm5875, %v5852, %v5442
  %v5879 = vsel %vm5875, %v5853, %v5444
  %v5880 = vsel %vm5875, %v5854, %v5446
  %v5881 = vsel %vm5875, %v5855, %v5448
  %v5882 = vsel %vm5875, %v5856, %v5450
  %v5883 = vsel %vm5875, %v5857, %v5452
  %v5884 = vsel %vm5875, %v5858, %v5454
  %v5885 = vsel %vm5875, %v5859, %v5456
  %v5886 = vsel %vm5875, %v5860, %v5458
  %v5887 = vsel %vm5875, %v5861, %v5460
  %v5888 = vsel %vm5875, %v5862, %v5462
  %v5889 = vsel %vm5875, %v5863, %v5464
  %v5890 = vsel %vm5875, %v5864, %v5466
  %v5891 = vsel %vm5875, %v5865, %v5468
  %v5892 = vsel %vm5875, %v5866, %v5470
  %v5893 = vsel %vm5875, %v5867, %v5472
  %v5894 = vsel %vm5875, %v5868, %v5474
  %v5895 = vsel %vm5875, %v5869, %v5476
  %v5896 = vsel %vm5875, %v5870, %v5478
  %v5897 = vsel %vm5875, %v5871, %v5480
  %v5898 = vsel %vm5875, %v5872, %v5482
  %v5899 = vsel %vm5875, %v5873, %v5484
  %v5900 = vsel %vm5875, %v5874, %v5486
  %5902 = vrot.lane.b32.xlu0 %v4066, 6
  %v5903 = vpop.permute.xlu0 %5902
  %5904 = vrot.lane.b32.xlu0 %v4067, 6
  %v5905 = vpop.permute.xlu0 %5904
  %5906 = vrot.lane.b32.xlu0 %v4080, 6
  %v5907 = vpop.permute.xlu0 %5906
  %5908 = vrot.lane.b32.xlu0 %v4081, 6
  %v5909 = vpop.permute.xlu0 %5908
  %5910 = vrot.lane.b32.xlu0 %v4094, 6
  %v5911 = vpop.permute.xlu0 %5910
  %5912 = vrot.lane.b32.xlu0 %v4095, 6
  %v5913 = vpop.permute.xlu0 %5912
  %5914 = vrot.lane.b32.xlu0 %v4108, 6
  %v5915 = vpop.permute.xlu0 %5914
  %5916 = vrot.lane.b32.xlu0 %v4109, 6
  %v5917 = vpop.permute.xlu0 %5916
  %5918 = vrot.lane.b32.xlu0 %v4119, 6
  %v5919 = vpop.permute.xlu0 %5918
  %5920 = vrot.lane.b32.xlu0 %v4120, 6
  %v5921 = vpop.permute.xlu0 %5920
  %5922 = vrot.lane.b32.xlu0 %v4121, 6
  %v5923 = vpop.permute.xlu0 %5922
  %5924 = vrot.lane.b32.xlu0 %v4122, 6
  %v5925 = vpop.permute.xlu0 %5924
  %5926 = vrot.lane.b32.xlu0 %v4123, 6
  %v5927 = vpop.permute.xlu0 %5926
  %5946 = vrot.lane.b32.xlu0 %v4152, 12
  %v5947 = vpop.permute.xlu0 %5946
  %5948 = vrot.lane.b32.xlu0 %v4153, 12
  %v5949 = vpop.permute.xlu0 %5948
  %5950 = vrot.lane.b32.xlu0 %v4154, 12
  %v5951 = vpop.permute.xlu0 %5950
  %5952 = vrot.lane.b32.xlu0 %v4155, 12
  %v5953 = vpop.permute.xlu0 %5952
  %5954 = vrot.lane.b32.xlu0 %v4156, 12
  %v5955 = vpop.permute.xlu0 %5954
  %5956 = vrot.lane.b32.xlu0 %v4166, 12
  %v5957 = vpop.permute.xlu0 %5956
  %5958 = vrot.lane.b32.xlu0 %v4167, 12
  %v5959 = vpop.permute.xlu0 %5958
  %5960 = vrot.lane.b32.xlu0 %v4168, 12
  %v5961 = vpop.permute.xlu0 %5960
  %5962 = vrot.lane.b32.xlu0 %v4169, 12
  %v5963 = vpop.permute.xlu0 %5962
  %5964 = vrot.lane.b32.xlu0 %v4170, 12
  %v5965 = vpop.permute.xlu0 %5964
  %5966 = vrot.lane.b32.xlu0 %v4180, 12
  %v5967 = vpop.permute.xlu0 %5966
  %5968 = vrot.lane.b32.xlu0 %v4181, 12
  %v5969 = vpop.permute.xlu0 %5968
  %5970 = vrot.lane.b32.xlu0 %v4182, 12
  %v5971 = vpop.permute.xlu0 %5970
  %5972 = vrot.lane.b32.xlu0 %v4183, 12
  %v5973 = vpop.permute.xlu0 %5972
  %5974 = vrot.lane.b32.xlu0 %v4184, 12
  %v5975 = vpop.permute.xlu0 %5974
  %5976 = vrot.lane.b32.xlu0 %v4194, 12
  %v5977 = vpop.permute.xlu0 %5976
  %5978 = vrot.lane.b32.xlu0 %v4195, 12
  %v5979 = vpop.permute.xlu0 %5978
  %5980 = vrot.lane.b32.xlu0 %v4196, 12
  %v5981 = vpop.permute.xlu0 %5980
  %5982 = vrot.lane.b32.xlu0 %v4197, 12
  %v5983 = vpop.permute.xlu0 %5982
  %5984 = vrot.lane.b32.xlu0 %v4198, 12
  %v5985 = vpop.permute.xlu0 %5984
  %5986 = vrot.lane.b32.xlu0 %v4208, 12
  %v5987 = vpop.permute.xlu0 %5986
  %5988 = vrot.lane.b32.xlu0 %v4209, 12
  %v5989 = vpop.permute.xlu0 %5988
  %5990 = vrot.lane.b32.xlu0 %v4210, 12
  %v5991 = vpop.permute.xlu0 %5990
  %5992 = vrot.lane.b32.xlu0 %v4211, 12
  %v5993 = vpop.permute.xlu0 %5992
  %5994 = vrot.lane.b32.xlu0 %v4212, 12
  %v5995 = vpop.permute.xlu0 %5994
  %6026 = vrot.lane.b32.xlu0 %v4159, 18
  %v6027 = vpop.permute.xlu0 %6026
  %6028 = vrot.lane.b32.xlu0 %v4160, 18
  %v6029 = vpop.permute.xlu0 %6028
  %6030 = vrot.lane.b32.xlu0 %v4161, 18
  %v6031 = vpop.permute.xlu0 %6030
  %6032 = vrot.lane.b32.xlu0 %v4162, 18
  %v6033 = vpop.permute.xlu0 %6032
  %6034 = vrot.lane.b32.xlu0 %v4163, 18
  %v6035 = vpop.permute.xlu0 %6034
  %6036 = vrot.lane.b32.xlu0 %v4173, 18
  %v6037 = vpop.permute.xlu0 %6036
  %6038 = vrot.lane.b32.xlu0 %v4174, 18
  %v6039 = vpop.permute.xlu0 %6038
  %6040 = vrot.lane.b32.xlu0 %v4175, 18
  %v6041 = vpop.permute.xlu0 %6040
  %6042 = vrot.lane.b32.xlu0 %v4176, 18
  %v6043 = vpop.permute.xlu0 %6042
  %6044 = vrot.lane.b32.xlu0 %v4177, 18
  %v6045 = vpop.permute.xlu0 %6044
  %6046 = vrot.lane.b32.xlu0 %v4187, 18
  %v6047 = vpop.permute.xlu0 %6046
  %6048 = vrot.lane.b32.xlu0 %v4188, 18
  %v6049 = vpop.permute.xlu0 %6048
  %6050 = vrot.lane.b32.xlu0 %v4189, 18
  %v6051 = vpop.permute.xlu0 %6050
  %6052 = vrot.lane.b32.xlu0 %v4190, 18
  %v6053 = vpop.permute.xlu0 %6052
  %6054 = vrot.lane.b32.xlu0 %v4191, 18
  %v6055 = vpop.permute.xlu0 %6054
  %6056 = vrot.lane.b32.xlu0 %v4201, 18
  %v6057 = vpop.permute.xlu0 %6056
  %6058 = vrot.lane.b32.xlu0 %v4202, 18
  %v6059 = vpop.permute.xlu0 %6058
  %6060 = vrot.lane.b32.xlu0 %v4203, 18
  %v6061 = vpop.permute.xlu0 %6060
  %6062 = vrot.lane.b32.xlu0 %v4204, 18
  %v6063 = vpop.permute.xlu0 %6062
  %6064 = vrot.lane.b32.xlu0 %v4205, 18
  %v6065 = vpop.permute.xlu0 %6064
  %6066 = vrot.lane.b32.xlu0 %v4215, 18
  %v6067 = vpop.permute.xlu0 %6066
  %6068 = vrot.lane.b32.xlu0 %v4216, 18
  %v6069 = vpop.permute.xlu0 %6068
  %6070 = vrot.lane.b32.xlu0 %v4217, 18
  %v6071 = vpop.permute.xlu0 %6070
  %6072 = vrot.lane.b32.xlu0 %v4218, 18
  %v6073 = vpop.permute.xlu0 %6072
  %6074 = vrot.lane.b32.xlu0 %v4219, 18
  %v6075 = vpop.permute.xlu0 %6074
  %6102 = vrot.lane.b32.xlu0 %v4153, 24
  %v6103 = vpop.permute.xlu0 %6102
  %6104 = vrot.lane.b32.xlu0 %v4154, 24
  %v6105 = vpop.permute.xlu0 %6104
  %6106 = vrot.lane.b32.xlu0 %v4155, 24
  %v6107 = vpop.permute.xlu0 %6106
  %6108 = vrot.lane.b32.xlu0 %v4156, 24
  %v6109 = vpop.permute.xlu0 %6108
  %6110 = vrot.lane.b32.xlu0 %v4157, 24
  %v6111 = vpop.permute.xlu0 %6110
  %6112 = vrot.lane.b32.xlu0 %v4167, 24
  %v6113 = vpop.permute.xlu0 %6112
  %6114 = vrot.lane.b32.xlu0 %v4168, 24
  %v6115 = vpop.permute.xlu0 %6114
  %6116 = vrot.lane.b32.xlu0 %v4169, 24
  %v6117 = vpop.permute.xlu0 %6116
  %6118 = vrot.lane.b32.xlu0 %v4170, 24
  %v6119 = vpop.permute.xlu0 %6118
  %6120 = vrot.lane.b32.xlu0 %v4171, 24
  %v6121 = vpop.permute.xlu0 %6120
  %6122 = vrot.lane.b32.xlu0 %v4181, 24
  %v6123 = vpop.permute.xlu0 %6122
  %6124 = vrot.lane.b32.xlu0 %v4182, 24
  %v6125 = vpop.permute.xlu0 %6124
  %6126 = vrot.lane.b32.xlu0 %v4183, 24
  %v6127 = vpop.permute.xlu0 %6126
  %6128 = vrot.lane.b32.xlu0 %v4184, 24
  %v6129 = vpop.permute.xlu0 %6128
  %6130 = vrot.lane.b32.xlu0 %v4185, 24
  %v6131 = vpop.permute.xlu0 %6130
  %6132 = vrot.lane.b32.xlu0 %v4195, 24
  %v6133 = vpop.permute.xlu0 %6132
  %6134 = vrot.lane.b32.xlu0 %v4196, 24
  %v6135 = vpop.permute.xlu0 %6134
  %6136 = vrot.lane.b32.xlu0 %v4197, 24
  %v6137 = vpop.permute.xlu0 %6136
  %6138 = vrot.lane.b32.xlu0 %v4198, 24
  %v6139 = vpop.permute.xlu0 %6138
  %6140 = vrot.lane.b32.xlu0 %v4199, 24
  %v6141 = vpop.permute.xlu0 %6140
  %6142 = vrot.lane.b32.xlu0 %v4209, 24
  %v6143 = vpop.permute.xlu0 %6142
  %6144 = vrot.lane.b32.xlu0 %v4210, 24
  %v6145 = vpop.permute.xlu0 %6144
  %6146 = vrot.lane.b32.xlu0 %v4211, 24
  %v6147 = vpop.permute.xlu0 %6146
  %6148 = vrot.lane.b32.xlu0 %v4212, 24
  %v6149 = vpop.permute.xlu0 %6148
  %6150 = vrot.lane.b32.xlu0 %v4213, 24
  %v6151 = vpop.permute.xlu0 %6150
  %6178 = vrot.lane.b32.xlu0 %v4160, 30
  %v6179 = vpop.permute.xlu0 %6178
  %6180 = vrot.lane.b32.xlu0 %v4161, 30
  %v6181 = vpop.permute.xlu0 %6180
  %6182 = vrot.lane.b32.xlu0 %v4162, 30
  %v6183 = vpop.permute.xlu0 %6182
  %6184 = vrot.lane.b32.xlu0 %v4163, 30
  %v6185 = vpop.permute.xlu0 %6184
  %6186 = vrot.lane.b32.xlu0 %v4164, 30
  %v6187 = vpop.permute.xlu0 %6186
  %6188 = vrot.lane.b32.xlu0 %v4174, 30
  %v6189 = vpop.permute.xlu0 %6188
  %6190 = vrot.lane.b32.xlu0 %v4175, 30
  %v6191 = vpop.permute.xlu0 %6190
  %6192 = vrot.lane.b32.xlu0 %v4176, 30
  %v6193 = vpop.permute.xlu0 %6192
  %6194 = vrot.lane.b32.xlu0 %v4177, 30
  %v6195 = vpop.permute.xlu0 %6194
  %6196 = vrot.lane.b32.xlu0 %v4178, 30
  %v6197 = vpop.permute.xlu0 %6196
  %6198 = vrot.lane.b32.xlu0 %v4188, 30
  %v6199 = vpop.permute.xlu0 %6198
  %6200 = vrot.lane.b32.xlu0 %v4189, 30
  %v6201 = vpop.permute.xlu0 %6200
  %6202 = vrot.lane.b32.xlu0 %v4190, 30
  %v6203 = vpop.permute.xlu0 %6202
  %6204 = vrot.lane.b32.xlu0 %v4191, 30
  %v6205 = vpop.permute.xlu0 %6204
  %6206 = vrot.lane.b32.xlu0 %v4192, 30
  %v6207 = vpop.permute.xlu0 %6206
  %6208 = vrot.lane.b32.xlu0 %v4202, 30
  %v6209 = vpop.permute.xlu0 %6208
  %6210 = vrot.lane.b32.xlu0 %v4203, 30
  %v6211 = vpop.permute.xlu0 %6210
  %6212 = vrot.lane.b32.xlu0 %v4204, 30
  %v6213 = vpop.permute.xlu0 %6212
  %6214 = vrot.lane.b32.xlu0 %v4205, 30
  %v6215 = vpop.permute.xlu0 %6214
  %6216 = vrot.lane.b32.xlu0 %v4206, 30
  %v6217 = vpop.permute.xlu0 %6216
  %6218 = vrot.lane.b32.xlu0 %v4216, 30
  %v6219 = vpop.permute.xlu0 %6218
  %6220 = vrot.lane.b32.xlu0 %v4217, 30
  %v6221 = vpop.permute.xlu0 %6220
  %6222 = vrot.lane.b32.xlu0 %v4218, 30
  %v6223 = vpop.permute.xlu0 %6222
  %6224 = vrot.lane.b32.xlu0 %v4219, 30
  %v6225 = vpop.permute.xlu0 %6224
  %6226 = vrot.lane.b32.xlu0 %v4220, 30
  %v6227 = vpop.permute.xlu0 %6226
  %6254 = vrot.lane.b32.xlu0 %v4157, 36
  %v6255 = vpop.permute.xlu0 %6254
  %6256 = vrot.lane.b32.xlu0 %v4158, 36
  %v6257 = vpop.permute.xlu0 %6256
  %6258 = vrot.lane.b32.xlu0 %v4171, 36
  %v6259 = vpop.permute.xlu0 %6258
  %6260 = vrot.lane.b32.xlu0 %v4172, 36
  %v6261 = vpop.permute.xlu0 %6260
  %6262 = vrot.lane.b32.xlu0 %v4185, 36
  %v6263 = vpop.permute.xlu0 %6262
  %6264 = vrot.lane.b32.xlu0 %v4186, 36
  %v6265 = vpop.permute.xlu0 %6264
  %6266 = vrot.lane.b32.xlu0 %v4199, 36
  %v6267 = vpop.permute.xlu0 %6266
  %6268 = vrot.lane.b32.xlu0 %v4200, 36
  %v6269 = vpop.permute.xlu0 %6268
  %6270 = vrot.lane.b32.xlu0 %v4210, 36
  %v6271 = vpop.permute.xlu0 %6270
  %6272 = vrot.lane.b32.xlu0 %v4211, 36
  %v6273 = vpop.permute.xlu0 %6272
  %6274 = vrot.lane.b32.xlu0 %v4212, 36
  %v6275 = vpop.permute.xlu0 %6274
  %6276 = vrot.lane.b32.xlu0 %v4213, 36
  %v6277 = vpop.permute.xlu0 %6276
  %6278 = vrot.lane.b32.xlu0 %v4214, 36
  %v6279 = vpop.permute.xlu0 %6278
  %6294 = vrot.lane.b32.xlu0 %v4164, 42
  %v6295 = vpop.permute.xlu0 %6294
  %6296 = vrot.lane.b32.xlu0 %v4165, 42
  %v6297 = vpop.permute.xlu0 %6296
  %6298 = vrot.lane.b32.xlu0 %v4178, 42
  %v6299 = vpop.permute.xlu0 %6298
  %6300 = vrot.lane.b32.xlu0 %v4179, 42
  %v6301 = vpop.permute.xlu0 %6300
  %6302 = vrot.lane.b32.xlu0 %v4192, 42
  %v6303 = vpop.permute.xlu0 %6302
  %6304 = vrot.lane.b32.xlu0 %v4193, 42
  %v6305 = vpop.permute.xlu0 %6304
  %6306 = vrot.lane.b32.xlu0 %v4206, 42
  %v6307 = vpop.permute.xlu0 %6306
  %6308 = vrot.lane.b32.xlu0 %v4207, 42
  %v6309 = vpop.permute.xlu0 %6308
  %6310 = vrot.lane.b32.xlu0 %v4217, 42
  %v6311 = vpop.permute.xlu0 %6310
  %6312 = vrot.lane.b32.xlu0 %v4218, 42
  %v6313 = vpop.permute.xlu0 %6312
  %6314 = vrot.lane.b32.xlu0 %v4219, 42
  %v6315 = vpop.permute.xlu0 %6314
  %6316 = vrot.lane.b32.xlu0 %v4220, 42
  %v6317 = vpop.permute.xlu0 %6316
  %6318 = vrot.lane.b32.xlu0 %v4221, 42
  %v6319 = vpop.permute.xlu0 %6318
  %6338 = vrot.lane.b32.xlu0 %v4068, 48
  %v6339 = vpop.permute.xlu0 %6338
  %6340 = vrot.lane.b32.xlu0 %v4069, 48
  %v6341 = vpop.permute.xlu0 %6340
  %6342 = vrot.lane.b32.xlu0 %v4070, 48
  %v6343 = vpop.permute.xlu0 %6342
  %6344 = vrot.lane.b32.xlu0 %v4071, 48
  %v6345 = vpop.permute.xlu0 %6344
  %6346 = vrot.lane.b32.xlu0 %v4072, 48
  %v6347 = vpop.permute.xlu0 %6346
  %6348 = vrot.lane.b32.xlu0 %v4082, 48
  %v6349 = vpop.permute.xlu0 %6348
  %6350 = vrot.lane.b32.xlu0 %v4083, 48
  %v6351 = vpop.permute.xlu0 %6350
  %6352 = vrot.lane.b32.xlu0 %v4084, 48
  %v6353 = vpop.permute.xlu0 %6352
  %6354 = vrot.lane.b32.xlu0 %v4085, 48
  %v6355 = vpop.permute.xlu0 %6354
  %6356 = vrot.lane.b32.xlu0 %v4086, 48
  %v6357 = vpop.permute.xlu0 %6356
  %6358 = vrot.lane.b32.xlu0 %v4096, 48
  %v6359 = vpop.permute.xlu0 %6358
  %6360 = vrot.lane.b32.xlu0 %v4097, 48
  %v6361 = vpop.permute.xlu0 %6360
  %6362 = vrot.lane.b32.xlu0 %v4098, 48
  %v6363 = vpop.permute.xlu0 %6362
  %6364 = vrot.lane.b32.xlu0 %v4099, 48
  %v6365 = vpop.permute.xlu0 %6364
  %6366 = vrot.lane.b32.xlu0 %v4100, 48
  %v6367 = vpop.permute.xlu0 %6366
  %6368 = vrot.lane.b32.xlu0 %v4110, 48
  %v6369 = vpop.permute.xlu0 %6368
  %6370 = vrot.lane.b32.xlu0 %v4111, 48
  %v6371 = vpop.permute.xlu0 %6370
  %6372 = vrot.lane.b32.xlu0 %v4112, 48
  %v6373 = vpop.permute.xlu0 %6372
  %6374 = vrot.lane.b32.xlu0 %v4113, 48
  %v6375 = vpop.permute.xlu0 %6374
  %6376 = vrot.lane.b32.xlu0 %v4114, 48
  %v6377 = vpop.permute.xlu0 %6376
  %6378 = vrot.lane.b32.xlu0 %v4124, 48
  %v6379 = vpop.permute.xlu0 %6378
  %6380 = vrot.lane.b32.xlu0 %v4125, 48
  %v6381 = vpop.permute.xlu0 %6380
  %6382 = vrot.lane.b32.xlu0 %v4126, 48
  %v6383 = vpop.permute.xlu0 %6382
  %6384 = vrot.lane.b32.xlu0 %v4127, 48
  %v6385 = vpop.permute.xlu0 %6384
  %6386 = vrot.lane.b32.xlu0 %v4128, 48
  %v6387 = vpop.permute.xlu0 %6386
  %6418 = vrot.lane.b32.xlu0 %v4075, 54
  %v6419 = vpop.permute.xlu0 %6418
  %6420 = vrot.lane.b32.xlu0 %v4076, 54
  %v6421 = vpop.permute.xlu0 %6420
  %6422 = vrot.lane.b32.xlu0 %v4077, 54
  %v6423 = vpop.permute.xlu0 %6422
  %6424 = vrot.lane.b32.xlu0 %v4078, 54
  %v6425 = vpop.permute.xlu0 %6424
  %6426 = vrot.lane.b32.xlu0 %v4079, 54
  %v6427 = vpop.permute.xlu0 %6426
  %6428 = vrot.lane.b32.xlu0 %v4089, 54
  %v6429 = vpop.permute.xlu0 %6428
  %6430 = vrot.lane.b32.xlu0 %v4090, 54
  %v6431 = vpop.permute.xlu0 %6430
  %6432 = vrot.lane.b32.xlu0 %v4091, 54
  %v6433 = vpop.permute.xlu0 %6432
  %6434 = vrot.lane.b32.xlu0 %v4092, 54
  %v6435 = vpop.permute.xlu0 %6434
  %6436 = vrot.lane.b32.xlu0 %v4093, 54
  %v6437 = vpop.permute.xlu0 %6436
  %6438 = vrot.lane.b32.xlu0 %v4103, 54
  %v6439 = vpop.permute.xlu0 %6438
  %6440 = vrot.lane.b32.xlu0 %v4104, 54
  %v6441 = vpop.permute.xlu0 %6440
  %6442 = vrot.lane.b32.xlu0 %v4105, 54
  %v6443 = vpop.permute.xlu0 %6442
  %6444 = vrot.lane.b32.xlu0 %v4106, 54
  %v6445 = vpop.permute.xlu0 %6444
  %6446 = vrot.lane.b32.xlu0 %v4107, 54
  %v6447 = vpop.permute.xlu0 %6446
  %6448 = vrot.lane.b32.xlu0 %v4117, 54
  %v6449 = vpop.permute.xlu0 %6448
  %6450 = vrot.lane.b32.xlu0 %v4118, 54
  %v6451 = vpop.permute.xlu0 %6450
  %6452 = vrot.lane.b32.xlu0 %v4119, 54
  %v6453 = vpop.permute.xlu0 %6452
  %6454 = vrot.lane.b32.xlu0 %v4120, 54
  %v6455 = vpop.permute.xlu0 %6454
  %6456 = vrot.lane.b32.xlu0 %v4121, 54
  %v6457 = vpop.permute.xlu0 %6456
  %6458 = vrot.lane.b32.xlu0 %v4131, 54
  %v6459 = vpop.permute.xlu0 %6458
  %6460 = vrot.lane.b32.xlu0 %v4132, 54
  %v6461 = vpop.permute.xlu0 %6460
  %6462 = vrot.lane.b32.xlu0 %v4133, 54
  %v6463 = vpop.permute.xlu0 %6462
  %6464 = vrot.lane.b32.xlu0 %v4134, 54
  %v6465 = vpop.permute.xlu0 %6464
  %6466 = vrot.lane.b32.xlu0 %v4135, 54
  %v6467 = vpop.permute.xlu0 %6466
  %6494 = vrot.lane.b32.xlu0 %v4069, 60
  %v6495 = vpop.permute.xlu0 %6494
  %6496 = vrot.lane.b32.xlu0 %v4070, 60
  %v6497 = vpop.permute.xlu0 %6496
  %6498 = vrot.lane.b32.xlu0 %v4071, 60
  %v6499 = vpop.permute.xlu0 %6498
  %6500 = vrot.lane.b32.xlu0 %v4072, 60
  %v6501 = vpop.permute.xlu0 %6500
  %6502 = vrot.lane.b32.xlu0 %v4073, 60
  %v6503 = vpop.permute.xlu0 %6502
  %6504 = vrot.lane.b32.xlu0 %v4083, 60
  %v6505 = vpop.permute.xlu0 %6504
  %6506 = vrot.lane.b32.xlu0 %v4084, 60
  %v6507 = vpop.permute.xlu0 %6506
  %6508 = vrot.lane.b32.xlu0 %v4085, 60
  %v6509 = vpop.permute.xlu0 %6508
  %6510 = vrot.lane.b32.xlu0 %v4086, 60
  %v6511 = vpop.permute.xlu0 %6510
  %6512 = vrot.lane.b32.xlu0 %v4087, 60
  %v6513 = vpop.permute.xlu0 %6512
  %6514 = vrot.lane.b32.xlu0 %v4097, 60
  %v6515 = vpop.permute.xlu0 %6514
  %6516 = vrot.lane.b32.xlu0 %v4098, 60
  %v6517 = vpop.permute.xlu0 %6516
  %6518 = vrot.lane.b32.xlu0 %v4099, 60
  %v6519 = vpop.permute.xlu0 %6518
  %6520 = vrot.lane.b32.xlu0 %v4100, 60
  %v6521 = vpop.permute.xlu0 %6520
  %6522 = vrot.lane.b32.xlu0 %v4101, 60
  %v6523 = vpop.permute.xlu0 %6522
  %6524 = vrot.lane.b32.xlu0 %v4111, 60
  %v6525 = vpop.permute.xlu0 %6524
  %6526 = vrot.lane.b32.xlu0 %v4112, 60
  %v6527 = vpop.permute.xlu0 %6526
  %6528 = vrot.lane.b32.xlu0 %v4113, 60
  %v6529 = vpop.permute.xlu0 %6528
  %6530 = vrot.lane.b32.xlu0 %v4114, 60
  %v6531 = vpop.permute.xlu0 %6530
  %6532 = vrot.lane.b32.xlu0 %v4115, 60
  %v6533 = vpop.permute.xlu0 %6532
  %6534 = vrot.lane.b32.xlu0 %v4125, 60
  %v6535 = vpop.permute.xlu0 %6534
  %6536 = vrot.lane.b32.xlu0 %v4126, 60
  %v6537 = vpop.permute.xlu0 %6536
  %6538 = vrot.lane.b32.xlu0 %v4127, 60
  %v6539 = vpop.permute.xlu0 %6538
  %6540 = vrot.lane.b32.xlu0 %v4128, 60
  %v6541 = vpop.permute.xlu0 %6540
  %6542 = vrot.lane.b32.xlu0 %v4129, 60
  %v6543 = vpop.permute.xlu0 %6542
  %6570 = vrot.lane.b32.xlu0 %v4076, 66
  %v6571 = vpop.permute.xlu0 %6570
  %6572 = vrot.lane.b32.xlu0 %v4077, 66
  %v6573 = vpop.permute.xlu0 %6572
  %6574 = vrot.lane.b32.xlu0 %v4078, 66
  %v6575 = vpop.permute.xlu0 %6574
  %6576 = vrot.lane.b32.xlu0 %v4079, 66
  %v6577 = vpop.permute.xlu0 %6576
  %6578 = vrot.lane.b32.xlu0 %v4080, 66
  %v6579 = vpop.permute.xlu0 %6578
  %6580 = vrot.lane.b32.xlu0 %v4090, 66
  %v6581 = vpop.permute.xlu0 %6580
  %6582 = vrot.lane.b32.xlu0 %v4091, 66
  %v6583 = vpop.permute.xlu0 %6582
  %6584 = vrot.lane.b32.xlu0 %v4092, 66
  %v6585 = vpop.permute.xlu0 %6584
  %6586 = vrot.lane.b32.xlu0 %v4093, 66
  %v6587 = vpop.permute.xlu0 %6586
  %6588 = vrot.lane.b32.xlu0 %v4094, 66
  %v6589 = vpop.permute.xlu0 %6588
  %6590 = vrot.lane.b32.xlu0 %v4104, 66
  %v6591 = vpop.permute.xlu0 %6590
  %6592 = vrot.lane.b32.xlu0 %v4105, 66
  %v6593 = vpop.permute.xlu0 %6592
  %6594 = vrot.lane.b32.xlu0 %v4106, 66
  %v6595 = vpop.permute.xlu0 %6594
  %6596 = vrot.lane.b32.xlu0 %v4107, 66
  %v6597 = vpop.permute.xlu0 %6596
  %6598 = vrot.lane.b32.xlu0 %v4108, 66
  %v6599 = vpop.permute.xlu0 %6598
  %6600 = vrot.lane.b32.xlu0 %v4118, 66
  %v6601 = vpop.permute.xlu0 %6600
  %6602 = vrot.lane.b32.xlu0 %v4119, 66
  %v6603 = vpop.permute.xlu0 %6602
  %6604 = vrot.lane.b32.xlu0 %v4120, 66
  %v6605 = vpop.permute.xlu0 %6604
  %6606 = vrot.lane.b32.xlu0 %v4121, 66
  %v6607 = vpop.permute.xlu0 %6606
  %6608 = vrot.lane.b32.xlu0 %v4122, 66
  %v6609 = vpop.permute.xlu0 %6608
  %6610 = vrot.lane.b32.xlu0 %v4132, 66
  %v6611 = vpop.permute.xlu0 %6610
  %6612 = vrot.lane.b32.xlu0 %v4133, 66
  %v6613 = vpop.permute.xlu0 %6612
  %6614 = vrot.lane.b32.xlu0 %v4134, 66
  %v6615 = vpop.permute.xlu0 %6614
  %6616 = vrot.lane.b32.xlu0 %v4135, 66
  %v6617 = vpop.permute.xlu0 %6616
  %6618 = vrot.lane.b32.xlu0 %v4136, 66
  %v6619 = vpop.permute.xlu0 %6618
  %6647 = vrot.lane.b32.xlu0 %v4073, 72
  %v6648 = vpop.permute.xlu0 %6647
  %6649 = vrot.lane.b32.xlu0 %v4074, 72
  %v6650 = vpop.permute.xlu0 %6649
  %6651 = vrot.lane.b32.xlu0 %v4087, 72
  %v6652 = vpop.permute.xlu0 %6651
  %6653 = vrot.lane.b32.xlu0 %v4088, 72
  %v6654 = vpop.permute.xlu0 %6653
  %6655 = vrot.lane.b32.xlu0 %v4101, 72
  %v6656 = vpop.permute.xlu0 %6655
  %6657 = vrot.lane.b32.xlu0 %v4102, 72
  %v6658 = vpop.permute.xlu0 %6657
  %6659 = vrot.lane.b32.xlu0 %v4115, 72
  %v6660 = vpop.permute.xlu0 %6659
  %6661 = vrot.lane.b32.xlu0 %v4116, 72
  %v6662 = vpop.permute.xlu0 %6661
  %6663 = vrot.lane.b32.xlu0 %v4126, 72
  %v6664 = vpop.permute.xlu0 %6663
  %6665 = vrot.lane.b32.xlu0 %v4127, 72
  %v6666 = vpop.permute.xlu0 %6665
  %6667 = vrot.lane.b32.xlu0 %v4128, 72
  %v6668 = vpop.permute.xlu0 %6667
  %6669 = vrot.lane.b32.xlu0 %v4129, 72
  %v6670 = vpop.permute.xlu0 %6669
  %6671 = vrot.lane.b32.xlu0 %v4130, 72
  %v6672 = vpop.permute.xlu0 %6671
  %6687 = vrot.lane.b32.xlu0 %v4080, 78
  %v6688 = vpop.permute.xlu0 %6687
  %6689 = vrot.lane.b32.xlu0 %v4081, 78
  %v6690 = vpop.permute.xlu0 %6689
  %6691 = vrot.lane.b32.xlu0 %v4094, 78
  %v6692 = vpop.permute.xlu0 %6691
  %6693 = vrot.lane.b32.xlu0 %v4095, 78
  %v6694 = vpop.permute.xlu0 %6693
  %6695 = vrot.lane.b32.xlu0 %v4108, 78
  %v6696 = vpop.permute.xlu0 %6695
  %6697 = vrot.lane.b32.xlu0 %v4109, 78
  %v6698 = vpop.permute.xlu0 %6697
  %6699 = vrot.lane.b32.xlu0 %v4122, 78
  %v6700 = vpop.permute.xlu0 %6699
  %6701 = vrot.lane.b32.xlu0 %v4123, 78
  %v6702 = vpop.permute.xlu0 %6701
  %6703 = vrot.lane.b32.xlu0 %v4133, 78
  %v6704 = vpop.permute.xlu0 %6703
  %6705 = vrot.lane.b32.xlu0 %v4134, 78
  %v6706 = vpop.permute.xlu0 %6705
  %6707 = vrot.lane.b32.xlu0 %v4135, 78
  %v6708 = vpop.permute.xlu0 %6707
  %6709 = vrot.lane.b32.xlu0 %v4136, 78
  %v6710 = vpop.permute.xlu0 %6709
  %6711 = vrot.lane.b32.xlu0 %v4137, 78
  %v6712 = vpop.permute.xlu0 %6711
  %6731 = vrot.lane.b32.xlu0 %v4166, 84
  %v6732 = vpop.permute.xlu0 %6731
  %6733 = vrot.lane.b32.xlu0 %v4167, 84
  %v6734 = vpop.permute.xlu0 %6733
  %6735 = vrot.lane.b32.xlu0 %v4168, 84
  %v6736 = vpop.permute.xlu0 %6735
  %6737 = vrot.lane.b32.xlu0 %v4169, 84
  %v6738 = vpop.permute.xlu0 %6737
  %6739 = vrot.lane.b32.xlu0 %v4170, 84
  %v6740 = vpop.permute.xlu0 %6739
  %6741 = vrot.lane.b32.xlu0 %v4180, 84
  %v6742 = vpop.permute.xlu0 %6741
  %6743 = vrot.lane.b32.xlu0 %v4181, 84
  %v6744 = vpop.permute.xlu0 %6743
  %6745 = vrot.lane.b32.xlu0 %v4182, 84
  %v6746 = vpop.permute.xlu0 %6745
  %6747 = vrot.lane.b32.xlu0 %v4183, 84
  %v6748 = vpop.permute.xlu0 %6747
  %6749 = vrot.lane.b32.xlu0 %v4184, 84
  %v6750 = vpop.permute.xlu0 %6749
  %6751 = vrot.lane.b32.xlu0 %v4194, 84
  %v6752 = vpop.permute.xlu0 %6751
  %6753 = vrot.lane.b32.xlu0 %v4195, 84
  %v6754 = vpop.permute.xlu0 %6753
  %6755 = vrot.lane.b32.xlu0 %v4196, 84
  %v6756 = vpop.permute.xlu0 %6755
  %6757 = vrot.lane.b32.xlu0 %v4197, 84
  %v6758 = vpop.permute.xlu0 %6757
  %6759 = vrot.lane.b32.xlu0 %v4198, 84
  %v6760 = vpop.permute.xlu0 %6759
  %6761 = vrot.lane.b32.xlu0 %v4208, 84
  %v6762 = vpop.permute.xlu0 %6761
  %6763 = vrot.lane.b32.xlu0 %v4209, 84
  %v6764 = vpop.permute.xlu0 %6763
  %6765 = vrot.lane.b32.xlu0 %v4210, 84
  %v6766 = vpop.permute.xlu0 %6765
  %6767 = vrot.lane.b32.xlu0 %v4211, 84
  %v6768 = vpop.permute.xlu0 %6767
  %6769 = vrot.lane.b32.xlu0 %v4212, 84
  %v6770 = vpop.permute.xlu0 %6769
  %6771 = vrot.lane.b32.xlu0 %v4222, 84
  %v6772 = vpop.permute.xlu0 %6771
  %6773 = vrot.lane.b32.xlu0 %v4223, 84
  %v6774 = vpop.permute.xlu0 %6773
  %6775 = vrot.lane.b32.xlu0 %v4224, 84
  %v6776 = vpop.permute.xlu0 %6775
  %6777 = vrot.lane.b32.xlu0 %v4225, 84
  %v6778 = vpop.permute.xlu0 %6777
  %6779 = vrot.lane.b32.xlu0 %v4226, 84
  %v6780 = vpop.permute.xlu0 %6779
  %6811 = vrot.lane.b32.xlu0 %v4173, 90
  %v6812 = vpop.permute.xlu0 %6811
  %6813 = vrot.lane.b32.xlu0 %v4174, 90
  %v6814 = vpop.permute.xlu0 %6813
  %6815 = vrot.lane.b32.xlu0 %v4175, 90
  %v6816 = vpop.permute.xlu0 %6815
  %6817 = vrot.lane.b32.xlu0 %v4176, 90
  %v6818 = vpop.permute.xlu0 %6817
  %6819 = vrot.lane.b32.xlu0 %v4177, 90
  %v6820 = vpop.permute.xlu0 %6819
  %6821 = vrot.lane.b32.xlu0 %v4187, 90
  %v6822 = vpop.permute.xlu0 %6821
  %6823 = vrot.lane.b32.xlu0 %v4188, 90
  %v6824 = vpop.permute.xlu0 %6823
  %6825 = vrot.lane.b32.xlu0 %v4189, 90
  %v6826 = vpop.permute.xlu0 %6825
  %6827 = vrot.lane.b32.xlu0 %v4190, 90
  %v6828 = vpop.permute.xlu0 %6827
  %6829 = vrot.lane.b32.xlu0 %v4191, 90
  %v6830 = vpop.permute.xlu0 %6829
  %6831 = vrot.lane.b32.xlu0 %v4201, 90
  %v6832 = vpop.permute.xlu0 %6831
  %6833 = vrot.lane.b32.xlu0 %v4202, 90
  %v6834 = vpop.permute.xlu0 %6833
  %6835 = vrot.lane.b32.xlu0 %v4203, 90
  %v6836 = vpop.permute.xlu0 %6835
  %6837 = vrot.lane.b32.xlu0 %v4204, 90
  %v6838 = vpop.permute.xlu0 %6837
  %6839 = vrot.lane.b32.xlu0 %v4205, 90
  %v6840 = vpop.permute.xlu0 %6839
  %6841 = vrot.lane.b32.xlu0 %v4215, 90
  %v6842 = vpop.permute.xlu0 %6841
  %6843 = vrot.lane.b32.xlu0 %v4216, 90
  %v6844 = vpop.permute.xlu0 %6843
  %6845 = vrot.lane.b32.xlu0 %v4217, 90
  %v6846 = vpop.permute.xlu0 %6845
  %6847 = vrot.lane.b32.xlu0 %v4218, 90
  %v6848 = vpop.permute.xlu0 %6847
  %6849 = vrot.lane.b32.xlu0 %v4219, 90
  %v6850 = vpop.permute.xlu0 %6849
  %6851 = vrot.lane.b32.xlu0 %v4229, 90
  %v6852 = vpop.permute.xlu0 %6851
  %6853 = vrot.lane.b32.xlu0 %v4230, 90
  %v6854 = vpop.permute.xlu0 %6853
  %6855 = vrot.lane.b32.xlu0 %v4231, 90
  %v6856 = vpop.permute.xlu0 %6855
  %6857 = vrot.lane.b32.xlu0 %v4232, 90
  %v6858 = vpop.permute.xlu0 %6857
  %6859 = vrot.lane.b32.xlu0 %v4233, 90
  %v6860 = vpop.permute.xlu0 %6859
  %v6886 = vsel %vm5512, %v4059, %v5903
  %v6887 = vsel %vm5512, %v4060, %v5905
  %v6888 = vsel %vm5512, %v4073, %v5907
  %v6889 = vsel %vm5512, %v4074, %v5909
  %v6890 = vsel %vm5512, %v4087, %v5911
  %v6891 = vsel %vm5512, %v4088, %v5913
  %v6892 = vsel %vm5512, %v4101, %v5915
  %v6893 = vsel %vm5512, %v4102, %v5917
  %v6894 = vsel %vm5512, %v4112, %v5919
  %v6895 = vsel %vm5512, %v4113, %v5921
  %v6896 = vsel %vm5512, %v4114, %v5923
  %v6897 = vsel %vm5512, %v4115, %v5925
  %v6898 = vsel %vm5512, %v4116, %v5927
  %v6899 = vsel %vm5538, %v5520, %v5947
  %v6900 = vsel %vm5538, %v5521, %v5949
  %v6901 = vsel %vm5538, %v5522, %v5951
  %v6902 = vsel %vm5538, %v6886, %v5953
  %v6903 = vsel %vm5538, %v6887, %v5955
  %v6904 = vsel %vm5538, %v5525, %v5957
  %v6905 = vsel %vm5538, %v5526, %v5959
  %v6906 = vsel %vm5538, %v5527, %v5961
  %v6907 = vsel %vm5538, %v6888, %v5963
  %v6908 = vsel %vm5538, %v6889, %v5965
  %v6909 = vsel %vm5538, %v5530, %v5967
  %v6910 = vsel %vm5538, %v5531, %v5969
  %v6911 = vsel %vm5538, %v5532, %v5971
  %v6912 = vsel %vm5538, %v6890, %v5973
  %v6913 = vsel %vm5538, %v6891, %v5975
  %v6914 = vsel %vm5538, %v5535, %v5977
  %v6915 = vsel %vm5538, %v5536, %v5979
  %v6916 = vsel %vm5538, %v5537, %v5981
  %v6917 = vsel %vm5538, %v6892, %v5983
  %v6918 = vsel %vm5538, %v6893, %v5985
  %v6919 = vsel %vm5538, %v6894, %v5987
  %v6920 = vsel %vm5538, %v6895, %v5989
  %v6921 = vsel %vm5538, %v6896, %v5991
  %v6922 = vsel %vm5538, %v6897, %v5993
  %v6923 = vsel %vm5538, %v6898, %v5995
  %v6924 = vsel %vm5564, %v6899, %v6027
  %v6925 = vsel %vm5564, %v6900, %v6029
  %v6926 = vsel %vm5564, %v6901, %v6031
  %v6927 = vsel %vm5564, %v6902, %v6033
  %v6928 = vsel %vm5564, %v6903, %v6035
  %v6929 = vsel %vm5564, %v6904, %v6037
  %v6930 = vsel %vm5564, %v6905, %v6039
  %v6931 = vsel %vm5564, %v6906, %v6041
  %v6932 = vsel %vm5564, %v6907, %v6043
  %v6933 = vsel %vm5564, %v6908, %v6045
  %v6934 = vsel %vm5564, %v6909, %v6047
  %v6935 = vsel %vm5564, %v6910, %v6049
  %v6936 = vsel %vm5564, %v6911, %v6051
  %v6937 = vsel %vm5564, %v6912, %v6053
  %v6938 = vsel %vm5564, %v6913, %v6055
  %v6939 = vsel %vm5564, %v6914, %v6057
  %v6940 = vsel %vm5564, %v6915, %v6059
  %v6941 = vsel %vm5564, %v6916, %v6061
  %v6942 = vsel %vm5564, %v6917, %v6063
  %v6943 = vsel %vm5564, %v6918, %v6065
  %v6944 = vsel %vm5564, %v6919, %v6067
  %v6945 = vsel %vm5564, %v6920, %v6069
  %v6946 = vsel %vm5564, %v6921, %v6071
  %v6947 = vsel %vm5564, %v6922, %v6073
  %v6948 = vsel %vm5564, %v6923, %v6075
  %v6949 = vsel %vm5590, %v6924, %v6103
  %v6950 = vsel %vm5590, %v6925, %v6105
  %v6951 = vsel %vm5590, %v6926, %v6107
  %v6952 = vsel %vm5590, %v6927, %v6109
  %v6953 = vsel %vm5590, %v6928, %v6111
  %v6954 = vsel %vm5590, %v6929, %v6113
  %v6955 = vsel %vm5590, %v6930, %v6115
  %v6956 = vsel %vm5590, %v6931, %v6117
  %v6957 = vsel %vm5590, %v6932, %v6119
  %v6958 = vsel %vm5590, %v6933, %v6121
  %v6959 = vsel %vm5590, %v6934, %v6123
  %v6960 = vsel %vm5590, %v6935, %v6125
  %v6961 = vsel %vm5590, %v6936, %v6127
  %v6962 = vsel %vm5590, %v6937, %v6129
  %v6963 = vsel %vm5590, %v6938, %v6131
  %v6964 = vsel %vm5590, %v6939, %v6133
  %v6965 = vsel %vm5590, %v6940, %v6135
  %v6966 = vsel %vm5590, %v6941, %v6137
  %v6967 = vsel %vm5590, %v6942, %v6139
  %v6968 = vsel %vm5590, %v6943, %v6141
  %v6969 = vsel %vm5590, %v6944, %v6143
  %v6970 = vsel %vm5590, %v6945, %v6145
  %v6971 = vsel %vm5590, %v6946, %v6147
  %v6972 = vsel %vm5590, %v6947, %v6149
  %v6973 = vsel %vm5590, %v6948, %v6151
  %v6974 = vsel %vm5616, %v6949, %v6179
  %v6975 = vsel %vm5616, %v6950, %v6181
  %v6976 = vsel %vm5616, %v6951, %v6183
  %v6977 = vsel %vm5616, %v6952, %v6185
  %v6978 = vsel %vm5616, %v6953, %v6187
  %v6979 = vsel %vm5616, %v6954, %v6189
  %v6980 = vsel %vm5616, %v6955, %v6191
  %v6981 = vsel %vm5616, %v6956, %v6193
  %v6982 = vsel %vm5616, %v6957, %v6195
  %v6983 = vsel %vm5616, %v6958, %v6197
  %v6984 = vsel %vm5616, %v6959, %v6199
  %v6985 = vsel %vm5616, %v6960, %v6201
  %v6986 = vsel %vm5616, %v6961, %v6203
  %v6987 = vsel %vm5616, %v6962, %v6205
  %v6988 = vsel %vm5616, %v6963, %v6207
  %v6989 = vsel %vm5616, %v6964, %v6209
  %v6990 = vsel %vm5616, %v6965, %v6211
  %v6991 = vsel %vm5616, %v6966, %v6213
  %v6992 = vsel %vm5616, %v6967, %v6215
  %v6993 = vsel %vm5616, %v6968, %v6217
  %v6994 = vsel %vm5616, %v6969, %v6219
  %v6995 = vsel %vm5616, %v6970, %v6221
  %v6996 = vsel %vm5616, %v6971, %v6223
  %v6997 = vsel %vm5616, %v6972, %v6225
  %v6998 = vsel %vm5616, %v6973, %v6227
  %v6999 = vsel %vm239, %v6974, %v4716
  %v7000 = vsel %vm239, %v6975, %v4718
  %v7001 = vsel %vm239, %v6976, %v4720
  %v7002 = vsel %vm239, %v6977, %v6255
  %v7003 = vsel %vm239, %v6978, %v6257
  %v7004 = vsel %vm239, %v6979, %v4726
  %v7005 = vsel %vm239, %v6980, %v4728
  %v7006 = vsel %vm239, %v6981, %v4730
  %v7007 = vsel %vm239, %v6982, %v6259
  %v7008 = vsel %vm239, %v6983, %v6261
  %v7009 = vsel %vm239, %v6984, %v4736
  %v7010 = vsel %vm239, %v6985, %v4738
  %v7011 = vsel %vm239, %v6986, %v4740
  %v7012 = vsel %vm239, %v6987, %v6263
  %v7013 = vsel %vm239, %v6988, %v6265
  %v7014 = vsel %vm239, %v6989, %v4746
  %v7015 = vsel %vm239, %v6990, %v4748
  %v7016 = vsel %vm239, %v6991, %v4750
  %v7017 = vsel %vm239, %v6992, %v6267
  %v7018 = vsel %vm239, %v6993, %v6269
  %v7019 = vsel %vm239, %v6994, %v6271
  %v7020 = vsel %vm239, %v6995, %v6273
  %v7021 = vsel %vm239, %v6996, %v6275
  %v7022 = vsel %vm239, %v6997, %v6277
  %v7023 = vsel %vm239, %v6998, %v6279
  %v7024 = vsel %vm5667, %v6999, %v4816
  %v7025 = vsel %vm5667, %v7000, %v4818
  %v7026 = vsel %vm5667, %v7001, %v4820
  %v7027 = vsel %vm5667, %v7002, %v6295
  %v7028 = vsel %vm5667, %v7003, %v6297
  %v7029 = vsel %vm5667, %v7004, %v4826
  %v7030 = vsel %vm5667, %v7005, %v4828
  %v7031 = vsel %vm5667, %v7006, %v4830
  %v7032 = vsel %vm5667, %v7007, %v6299
  %v7033 = vsel %vm5667, %v7008, %v6301
  %v7034 = vsel %vm5667, %v7009, %v4836
  %v7035 = vsel %vm5667, %v7010, %v4838
  %v7036 = vsel %vm5667, %v7011, %v4840
  %v7037 = vsel %vm5667, %v7012, %v6303
  %v7038 = vsel %vm5667, %v7013, %v6305
  %v7039 = vsel %vm5667, %v7014, %v4846
  %v7040 = vsel %vm5667, %v7015, %v4848
  %v7041 = vsel %vm5667, %v7016, %v4850
  %v7042 = vsel %vm5667, %v7017, %v6307
  %v7043 = vsel %vm5667, %v7018, %v6309
  %v7044 = vsel %vm5667, %v7019, %v6311
  %v7045 = vsel %vm5667, %v7020, %v6313
  %v7046 = vsel %vm5667, %v7021, %v6315
  %v7047 = vsel %vm5667, %v7022, %v6317
  %v7048 = vsel %vm5667, %v7023, %v6319
  %v7049 = vsel %vm5693, %v7024, %v6339
  %v7050 = vsel %vm5693, %v7025, %v6341
  %v7051 = vsel %vm5693, %v7026, %v6343
  %v7052 = vsel %vm5693, %v7027, %v6345
  %v7053 = vsel %vm5693, %v7028, %v6347
  %v7054 = vsel %vm5693, %v7029, %v6349
  %v7055 = vsel %vm5693, %v7030, %v6351
  %v7056 = vsel %vm5693, %v7031, %v6353
  %v7057 = vsel %vm5693, %v7032, %v6355
  %v7058 = vsel %vm5693, %v7033, %v6357
  %v7059 = vsel %vm5693, %v7034, %v6359
  %v7060 = vsel %vm5693, %v7035, %v6361
  %v7061 = vsel %vm5693, %v7036, %v6363
  %v7062 = vsel %vm5693, %v7037, %v6365
  %v7063 = vsel %vm5693, %v7038, %v6367
  %v7064 = vsel %vm5693, %v7039, %v6369
  %v7065 = vsel %vm5693, %v7040, %v6371
  %v7066 = vsel %vm5693, %v7041, %v6373
  %v7067 = vsel %vm5693, %v7042, %v6375
  %v7068 = vsel %vm5693, %v7043, %v6377
  %v7069 = vsel %vm5693, %v7044, %v6379
  %v7070 = vsel %vm5693, %v7045, %v6381
  %v7071 = vsel %vm5693, %v7046, %v6383
  %v7072 = vsel %vm5693, %v7047, %v6385
  %v7073 = vsel %vm5693, %v7048, %v6387
  %v7074 = vsel %vm5719, %v7049, %v6419
  %v7075 = vsel %vm5719, %v7050, %v6421
  %v7076 = vsel %vm5719, %v7051, %v6423
  %v7077 = vsel %vm5719, %v7052, %v6425
  %v7078 = vsel %vm5719, %v7053, %v6427
  %v7079 = vsel %vm5719, %v7054, %v6429
  %v7080 = vsel %vm5719, %v7055, %v6431
  %v7081 = vsel %vm5719, %v7056, %v6433
  %v7082 = vsel %vm5719, %v7057, %v6435
  %v7083 = vsel %vm5719, %v7058, %v6437
  %v7084 = vsel %vm5719, %v7059, %v6439
  %v7085 = vsel %vm5719, %v7060, %v6441
  %v7086 = vsel %vm5719, %v7061, %v6443
  %v7087 = vsel %vm5719, %v7062, %v6445
  %v7088 = vsel %vm5719, %v7063, %v6447
  %v7089 = vsel %vm5719, %v7064, %v6449
  %v7090 = vsel %vm5719, %v7065, %v6451
  %v7091 = vsel %vm5719, %v7066, %v6453
  %v7092 = vsel %vm5719, %v7067, %v6455
  %v7093 = vsel %vm5719, %v7068, %v6457
  %v7094 = vsel %vm5719, %v7069, %v6459
  %v7095 = vsel %vm5719, %v7070, %v6461
  %v7096 = vsel %vm5719, %v7071, %v6463
  %v7097 = vsel %vm5719, %v7072, %v6465
  %v7098 = vsel %vm5719, %v7073, %v6467
  %v7099 = vsel %vm5745, %v7074, %v6495
  %v7100 = vsel %vm5745, %v7075, %v6497
  %v7101 = vsel %vm5745, %v7076, %v6499
  %v7102 = vsel %vm5745, %v7077, %v6501
  %v7103 = vsel %vm5745, %v7078, %v6503
  %v7104 = vsel %vm5745, %v7079, %v6505
  %v7105 = vsel %vm5745, %v7080, %v6507
  %v7106 = vsel %vm5745, %v7081, %v6509
  %v7107 = vsel %vm5745, %v7082, %v6511
  %v7108 = vsel %vm5745, %v7083, %v6513
  %v7109 = vsel %vm5745, %v7084, %v6515
  %v7110 = vsel %vm5745, %v7085, %v6517
  %v7111 = vsel %vm5745, %v7086, %v6519
  %v7112 = vsel %vm5745, %v7087, %v6521
  %v7113 = vsel %vm5745, %v7088, %v6523
  %v7114 = vsel %vm5745, %v7089, %v6525
  %v7115 = vsel %vm5745, %v7090, %v6527
  %v7116 = vsel %vm5745, %v7091, %v6529
  %v7117 = vsel %vm5745, %v7092, %v6531
  %v7118 = vsel %vm5745, %v7093, %v6533
  %v7119 = vsel %vm5745, %v7094, %v6535
  %v7120 = vsel %vm5745, %v7095, %v6537
  %v7121 = vsel %vm5745, %v7096, %v6539
  %v7122 = vsel %vm5745, %v7097, %v6541
  %v7123 = vsel %vm5745, %v7098, %v6543
  %v7124 = vsel %vm5771, %v7099, %v6571
  %v7125 = vsel %vm5771, %v7100, %v6573
  %v7126 = vsel %vm5771, %v7101, %v6575
  %v7127 = vsel %vm5771, %v7102, %v6577
  %v7128 = vsel %vm5771, %v7103, %v6579
  %v7129 = vsel %vm5771, %v7104, %v6581
  %v7130 = vsel %vm5771, %v7105, %v6583
  %v7131 = vsel %vm5771, %v7106, %v6585
  %v7132 = vsel %vm5771, %v7107, %v6587
  %v7133 = vsel %vm5771, %v7108, %v6589
  %v7134 = vsel %vm5771, %v7109, %v6591
  %v7135 = vsel %vm5771, %v7110, %v6593
  %v7136 = vsel %vm5771, %v7111, %v6595
  %v7137 = vsel %vm5771, %v7112, %v6597
  %v7138 = vsel %vm5771, %v7113, %v6599
  %v7139 = vsel %vm5771, %v7114, %v6601
  %v7140 = vsel %vm5771, %v7115, %v6603
  %v7141 = vsel %vm5771, %v7116, %v6605
  %v7142 = vsel %vm5771, %v7117, %v6607
  %v7143 = vsel %vm5771, %v7118, %v6609
  %v7144 = vsel %vm5771, %v7119, %v6611
  %v7145 = vsel %vm5771, %v7120, %v6613
  %v7146 = vsel %vm5771, %v7121, %v6615
  %v7147 = vsel %vm5771, %v7122, %v6617
  %v7148 = vsel %vm5771, %v7123, %v6619
  %v7149 = vsel %vm5797, %v7124, %v5220
  %v7150 = vsel %vm5797, %v7125, %v5222
  %v7151 = vsel %vm5797, %v7126, %v5224
  %v7152 = vsel %vm5797, %v7127, %v6648
  %v7153 = vsel %vm5797, %v7128, %v6650
  %v7154 = vsel %vm5797, %v7129, %v5230
  %v7155 = vsel %vm5797, %v7130, %v5232
  %v7156 = vsel %vm5797, %v7131, %v5234
  %v7157 = vsel %vm5797, %v7132, %v6652
  %v7158 = vsel %vm5797, %v7133, %v6654
  %v7159 = vsel %vm5797, %v7134, %v5240
  %v7160 = vsel %vm5797, %v7135, %v5242
  %v7161 = vsel %vm5797, %v7136, %v5244
  %v7162 = vsel %vm5797, %v7137, %v6656
  %v7163 = vsel %vm5797, %v7138, %v6658
  %v7164 = vsel %vm5797, %v7139, %v5250
  %v7165 = vsel %vm5797, %v7140, %v5252
  %v7166 = vsel %vm5797, %v7141, %v5254
  %v7167 = vsel %vm5797, %v7142, %v6660
  %v7168 = vsel %vm5797, %v7143, %v6662
  %v7169 = vsel %vm5797, %v7144, %v6664
  %v7170 = vsel %vm5797, %v7145, %v6666
  %v7171 = vsel %vm5797, %v7146, %v6668
  %v7172 = vsel %vm5797, %v7147, %v6670
  %v7173 = vsel %vm5797, %v7148, %v6672
  %v7174 = vsel %vm5823, %v7149, %v5300
  %v7175 = vsel %vm5823, %v7150, %v5302
  %v7176 = vsel %vm5823, %v7151, %v5304
  %v7177 = vsel %vm5823, %v7152, %v6688
  %v7178 = vsel %vm5823, %v7153, %v6690
  %v7179 = vsel %vm5823, %v7154, %v5310
  %v7180 = vsel %vm5823, %v7155, %v5312
  %v7181 = vsel %vm5823, %v7156, %v5314
  %v7182 = vsel %vm5823, %v7157, %v6692
  %v7183 = vsel %vm5823, %v7158, %v6694
  %v7184 = vsel %vm5823, %v7159, %v5320
  %v7185 = vsel %vm5823, %v7160, %v5322
  %v7186 = vsel %vm5823, %v7161, %v5324
  %v7187 = vsel %vm5823, %v7162, %v6696
  %v7188 = vsel %vm5823, %v7163, %v6698
  %v7189 = vsel %vm5823, %v7164, %v5330
  %v7190 = vsel %vm5823, %v7165, %v5332
  %v7191 = vsel %vm5823, %v7166, %v5334
  %v7192 = vsel %vm5823, %v7167, %v6700
  %v7193 = vsel %vm5823, %v7168, %v6702
  %v7194 = vsel %vm5823, %v7169, %v6704
  %v7195 = vsel %vm5823, %v7170, %v6706
  %v7196 = vsel %vm5823, %v7171, %v6708
  %v7197 = vsel %vm5823, %v7172, %v6710
  %v7198 = vsel %vm5823, %v7173, %v6712
  %v7199 = vsel %vm5849, %v7174, %v6732
  %v7200 = vsel %vm5849, %v7175, %v6734
  %v7201 = vsel %vm5849, %v7176, %v6736
  %v7202 = vsel %vm5849, %v7177, %v6738
  %v7203 = vsel %vm5849, %v7178, %v6740
  %v7204 = vsel %vm5849, %v7179, %v6742
  %v7205 = vsel %vm5849, %v7180, %v6744
  %v7206 = vsel %vm5849, %v7181, %v6746
  %v7207 = vsel %vm5849, %v7182, %v6748
  %v7208 = vsel %vm5849, %v7183, %v6750
  %v7209 = vsel %vm5849, %v7184, %v6752
  %v7210 = vsel %vm5849, %v7185, %v6754
  %v7211 = vsel %vm5849, %v7186, %v6756
  %v7212 = vsel %vm5849, %v7187, %v6758
  %v7213 = vsel %vm5849, %v7188, %v6760
  %v7214 = vsel %vm5849, %v7189, %v6762
  %v7215 = vsel %vm5849, %v7190, %v6764
  %v7216 = vsel %vm5849, %v7191, %v6766
  %v7217 = vsel %vm5849, %v7192, %v6768
  %v7218 = vsel %vm5849, %v7193, %v6770
  %v7219 = vsel %vm5849, %v7194, %v6772
  %v7220 = vsel %vm5849, %v7195, %v6774
  %v7221 = vsel %vm5849, %v7196, %v6776
  %v7222 = vsel %vm5849, %v7197, %v6778
  %v7223 = vsel %vm5849, %v7198, %v6780
  %v7224 = vsel %vm5875, %v7199, %v6812
  %v7225 = vsel %vm5875, %v7200, %v6814
  %v7226 = vsel %vm5875, %v7201, %v6816
  %v7227 = vsel %vm5875, %v7202, %v6818
  %v7228 = vsel %vm5875, %v7203, %v6820
  %v7229 = vsel %vm5875, %v7204, %v6822
  %v7230 = vsel %vm5875, %v7205, %v6824
  %v7231 = vsel %vm5875, %v7206, %v6826
  %v7232 = vsel %vm5875, %v7207, %v6828
  %v7233 = vsel %vm5875, %v7208, %v6830
  %v7234 = vsel %vm5875, %v7209, %v6832
  %v7235 = vsel %vm5875, %v7210, %v6834
  %v7236 = vsel %vm5875, %v7211, %v6836
  %v7237 = vsel %vm5875, %v7212, %v6838
  %v7238 = vsel %vm5875, %v7213, %v6840
  %v7239 = vsel %vm5875, %v7214, %v6842
  %v7240 = vsel %vm5875, %v7215, %v6844
  %v7241 = vsel %vm5875, %v7216, %v6846
  %v7242 = vsel %vm5875, %v7217, %v6848
  %v7243 = vsel %vm5875, %v7218, %v6850
  %v7244 = vsel %vm5875, %v7219, %v6852
  %v7245 = vsel %vm5875, %v7220, %v6854
  %v7246 = vsel %vm5875, %v7221, %v6856
  %v7247 = vsel %vm5875, %v7222, %v6858
  %v7248 = vsel %vm5875, %v7223, %v6860
  %7250 = vrot.lane.b32.xlu0 %v4174, 6
  %v7251 = vpop.permute.xlu0 %7250
  %7252 = vrot.lane.b32.xlu0 %v4175, 6
  %v7253 = vpop.permute.xlu0 %7252
  %7254 = vrot.lane.b32.xlu0 %v4176, 6
  %v7255 = vpop.permute.xlu0 %7254
  %7256 = vrot.lane.b32.xlu0 %v4177, 6
  %v7257 = vpop.permute.xlu0 %7256
  %7258 = vrot.lane.b32.xlu0 %v4178, 6
  %v7259 = vpop.permute.xlu0 %7258
  %7260 = vrot.lane.b32.xlu0 %v4188, 6
  %v7261 = vpop.permute.xlu0 %7260
  %7262 = vrot.lane.b32.xlu0 %v4189, 6
  %v7263 = vpop.permute.xlu0 %7262
  %7264 = vrot.lane.b32.xlu0 %v4190, 6
  %v7265 = vpop.permute.xlu0 %7264
  %7266 = vrot.lane.b32.xlu0 %v4191, 6
  %v7267 = vpop.permute.xlu0 %7266
  %7268 = vrot.lane.b32.xlu0 %v4192, 6
  %v7269 = vpop.permute.xlu0 %7268
  %7270 = vrot.lane.b32.xlu0 %v4202, 6
  %v7271 = vpop.permute.xlu0 %7270
  %7272 = vrot.lane.b32.xlu0 %v4203, 6
  %v7273 = vpop.permute.xlu0 %7272
  %7274 = vrot.lane.b32.xlu0 %v4204, 6
  %v7275 = vpop.permute.xlu0 %7274
  %7276 = vrot.lane.b32.xlu0 %v4205, 6
  %v7277 = vpop.permute.xlu0 %7276
  %7278 = vrot.lane.b32.xlu0 %v4206, 6
  %v7279 = vpop.permute.xlu0 %7278
  %7280 = vrot.lane.b32.xlu0 %v4216, 6
  %v7281 = vpop.permute.xlu0 %7280
  %7282 = vrot.lane.b32.xlu0 %v4217, 6
  %v7283 = vpop.permute.xlu0 %7282
  %7284 = vrot.lane.b32.xlu0 %v4218, 6
  %v7285 = vpop.permute.xlu0 %7284
  %7286 = vrot.lane.b32.xlu0 %v4219, 6
  %v7287 = vpop.permute.xlu0 %7286
  %7288 = vrot.lane.b32.xlu0 %v4220, 6
  %v7289 = vpop.permute.xlu0 %7288
  %7290 = vrot.lane.b32.xlu0 %v4230, 6
  %v7291 = vpop.permute.xlu0 %7290
  %7292 = vrot.lane.b32.xlu0 %v4231, 6
  %v7293 = vpop.permute.xlu0 %7292
  %7294 = vrot.lane.b32.xlu0 %v4232, 6
  %v7295 = vpop.permute.xlu0 %7294
  %7296 = vrot.lane.b32.xlu0 %v4233, 6
  %v7297 = vpop.permute.xlu0 %7296
  %7298 = vrot.lane.b32.xlu0 %v4234, 6
  %v7299 = vpop.permute.xlu0 %7298
  %7327 = vrot.lane.b32.xlu0 %v4171, 12
  %v7328 = vpop.permute.xlu0 %7327
  %7329 = vrot.lane.b32.xlu0 %v4172, 12
  %v7330 = vpop.permute.xlu0 %7329
  %7331 = vrot.lane.b32.xlu0 %v4185, 12
  %v7332 = vpop.permute.xlu0 %7331
  %7333 = vrot.lane.b32.xlu0 %v4186, 12
  %v7334 = vpop.permute.xlu0 %7333
  %7335 = vrot.lane.b32.xlu0 %v4199, 12
  %v7336 = vpop.permute.xlu0 %7335
  %7337 = vrot.lane.b32.xlu0 %v4200, 12
  %v7338 = vpop.permute.xlu0 %7337
  %7339 = vrot.lane.b32.xlu0 %v4213, 12
  %v7340 = vpop.permute.xlu0 %7339
  %7341 = vrot.lane.b32.xlu0 %v4214, 12
  %v7342 = vpop.permute.xlu0 %7341
  %7343 = vrot.lane.b32.xlu0 %v4224, 12
  %v7344 = vpop.permute.xlu0 %7343
  %7345 = vrot.lane.b32.xlu0 %v4225, 12
  %v7346 = vpop.permute.xlu0 %7345
  %7347 = vrot.lane.b32.xlu0 %v4226, 12
  %v7348 = vpop.permute.xlu0 %7347
  %7349 = vrot.lane.b32.xlu0 %v4227, 12
  %v7350 = vpop.permute.xlu0 %7349
  %7351 = vrot.lane.b32.xlu0 %v4228, 12
  %v7352 = vpop.permute.xlu0 %7351
  %7367 = vrot.lane.b32.xlu0 %v4178, 18
  %v7368 = vpop.permute.xlu0 %7367
  %7369 = vrot.lane.b32.xlu0 %v4179, 18
  %v7370 = vpop.permute.xlu0 %7369
  %7371 = vrot.lane.b32.xlu0 %v4192, 18
  %v7372 = vpop.permute.xlu0 %7371
  %7373 = vrot.lane.b32.xlu0 %v4193, 18
  %v7374 = vpop.permute.xlu0 %7373
  %7375 = vrot.lane.b32.xlu0 %v4206, 18
  %v7376 = vpop.permute.xlu0 %7375
  %7377 = vrot.lane.b32.xlu0 %v4207, 18
  %v7378 = vpop.permute.xlu0 %7377
  %7379 = vrot.lane.b32.xlu0 %v4220, 18
  %v7380 = vpop.permute.xlu0 %7379
  %7381 = vrot.lane.b32.xlu0 %v4221, 18
  %v7382 = vpop.permute.xlu0 %7381
  %7383 = vrot.lane.b32.xlu0 %v4231, 18
  %v7384 = vpop.permute.xlu0 %7383
  %7385 = vrot.lane.b32.xlu0 %v4232, 18
  %v7386 = vpop.permute.xlu0 %7385
  %7387 = vrot.lane.b32.xlu0 %v4233, 18
  %v7388 = vpop.permute.xlu0 %7387
  %7389 = vrot.lane.b32.xlu0 %v4234, 18
  %v7390 = vpop.permute.xlu0 %7389
  %7391 = vrot.lane.b32.xlu0 %v4235, 18
  %v7392 = vpop.permute.xlu0 %7391
  %v7406 = vsel %vm5512, %v4167, %v7251
  %v7407 = vsel %vm5512, %v4168, %v7253
  %v7408 = vsel %vm5512, %v4169, %v7255
  %v7409 = vsel %vm5512, %v4170, %v7257
  %v7410 = vsel %vm5512, %v4171, %v7259
  %v7411 = vsel %vm5512, %v4181, %v7261
  %v7412 = vsel %vm5512, %v4182, %v7263
  %v7413 = vsel %vm5512, %v4183, %v7265
  %v7414 = vsel %vm5512, %v4184, %v7267
  %v7415 = vsel %vm5512, %v4185, %v7269
  %v7416 = vsel %vm5512, %v4195, %v7271
  %v7417 = vsel %vm5512, %v4196, %v7273
  %v7418 = vsel %vm5512, %v4197, %v7275
  %v7419 = vsel %vm5512, %v4198, %v7277
  %v7420 = vsel %vm5512, %v4199, %v7279
  %v7421 = vsel %vm5512, %v4209, %v7281
  %v7422 = vsel %vm5512, %v4210, %v7283
  %v7423 = vsel %vm5512, %v4211, %v7285
  %v7424 = vsel %vm5512, %v4212, %v7287
  %v7425 = vsel %vm5512, %v4213, %v7289
  %v7426 = vsel %vm5512, %v4223, %v7291
  %v7427 = vsel %vm5512, %v4224, %v7293
  %v7428 = vsel %vm5512, %v4225, %v7295
  %v7429 = vsel %vm5512, %v4226, %v7297
  %v7430 = vsel %vm5512, %v4227, %v7299
  %v7431 = vsel %vm5538, %v7406, %v5961
  %v7432 = vsel %vm5538, %v7407, %v5963
  %v7433 = vsel %vm5538, %v7408, %v5965
  %v7434 = vsel %vm5538, %v7409, %v7328
  %v7435 = vsel %vm5538, %v7410, %v7330
  %v7436 = vsel %vm5538, %v7411, %v5971
  %v7437 = vsel %vm5538, %v7412, %v5973
  %v7438 = vsel %vm5538, %v7413, %v5975
  %v7439 = vsel %vm5538, %v7414, %v7332
  %v7440 = vsel %vm5538, %v7415, %v7334
  %v7441 = vsel %vm5538, %v7416, %v5981
  %v7442 = vsel %vm5538, %v7417, %v5983
  %v7443 = vsel %vm5538, %v7418, %v5985
  %v7444 = vsel %vm5538, %v7419, %v7336
  %v7445 = vsel %vm5538, %v7420, %v7338
  %v7446 = vsel %vm5538, %v7421, %v5991
  %v7447 = vsel %vm5538, %v7422, %v5993
  %v7448 = vsel %vm5538, %v7423, %v5995
  %v7449 = vsel %vm5538, %v7424, %v7340
  %v7450 = vsel %vm5538, %v7425, %v7342
  %v7451 = vsel %vm5538, %v7426, %v7344
  %v7452 = vsel %vm5538, %v7427, %v7346
  %v7453 = vsel %vm5538, %v7428, %v7348
  %v7454 = vsel %vm5538, %v7429, %v7350
  %v7455 = vsel %vm5538, %v7430, %v7352
  %v7456 = vsel %vm5564, %v7431, %v6041
  %v7457 = vsel %vm5564, %v7432, %v6043
  %v7458 = vsel %vm5564, %v7433, %v6045
  %v7459 = vsel %vm5564, %v7434, %v7368
  %v7460 = vsel %vm5564, %v7435, %v7370
  %v7461 = vsel %vm5564, %v7436, %v6051
  %v7462 = vsel %vm5564, %v7437, %v6053
  %v7463 = vsel %vm5564, %v7438, %v6055
  %v7464 = vsel %vm5564, %v7439, %v7372
  %v7465 = vsel %vm5564, %v7440, %v7374
  %v7466 = vsel %vm5564, %v7441, %v6061
  %v7467 = vsel %vm5564, %v7442, %v6063
  %v7468 = vsel %vm5564, %v7443, %v6065
  %v7469 = vsel %vm5564, %v7444, %v7376
  %v7470 = vsel %vm5564, %v7445, %v7378
  %v7471 = vsel %vm5564, %v7446, %v6071
  %v7472 = vsel %vm5564, %v7447, %v6073
  %v7473 = vsel %vm5564, %v7448, %v6075
  %v7474 = vsel %vm5564, %v7449, %v7380
  %v7475 = vsel %vm5564, %v7450, %v7382
  %v7476 = vsel %vm5564, %v7451, %v7384
  %v7477 = vsel %vm5564, %v7452, %v7386
  %v7478 = vsel %vm5564, %v7453, %v7388
  %v7479 = vsel %vm5564, %v7454, %v7390
  %v7480 = vsel %vm5564, %v7455, %v7392
  %7506 = vrot.lane.b32.xlu0 %v7224, 96
  %v7507 = vpop.permute.xlu0 %7506
  %7508 = vrot.lane.b32.xlu0 %v7225, 96
  %v7509 = vpop.permute.xlu0 %7508
  %7510 = vrot.lane.b32.xlu0 %v7226, 96
  %v7511 = vpop.permute.xlu0 %7510
  %7512 = vrot.lane.b32.xlu0 %v7227, 96
  %v7513 = vpop.permute.xlu0 %7512
  %7514 = vrot.lane.b32.xlu0 %v7228, 96
  %v7515 = vpop.permute.xlu0 %7514
  %7516 = vrot.lane.b32.xlu0 %v7229, 96
  %v7517 = vpop.permute.xlu0 %7516
  %7518 = vrot.lane.b32.xlu0 %v7230, 96
  %v7519 = vpop.permute.xlu0 %7518
  %7520 = vrot.lane.b32.xlu0 %v7231, 96
  %v7521 = vpop.permute.xlu0 %7520
  %7522 = vrot.lane.b32.xlu0 %v7232, 96
  %v7523 = vpop.permute.xlu0 %7522
  %7524 = vrot.lane.b32.xlu0 %v7233, 96
  %v7525 = vpop.permute.xlu0 %7524
  %7526 = vrot.lane.b32.xlu0 %v7234, 96
  %v7527 = vpop.permute.xlu0 %7526
  %7528 = vrot.lane.b32.xlu0 %v7235, 96
  %v7529 = vpop.permute.xlu0 %7528
  %7530 = vrot.lane.b32.xlu0 %v7236, 96
  %v7531 = vpop.permute.xlu0 %7530
  %7532 = vrot.lane.b32.xlu0 %v7237, 96
  %v7533 = vpop.permute.xlu0 %7532
  %7534 = vrot.lane.b32.xlu0 %v7238, 96
  %v7535 = vpop.permute.xlu0 %7534
  %7536 = vrot.lane.b32.xlu0 %v7239, 96
  %v7537 = vpop.permute.xlu0 %7536
  %7538 = vrot.lane.b32.xlu0 %v7240, 96
  %v7539 = vpop.permute.xlu0 %7538
  %7540 = vrot.lane.b32.xlu0 %v7241, 96
  %v7541 = vpop.permute.xlu0 %7540
  %7542 = vrot.lane.b32.xlu0 %v7242, 96
  %v7543 = vpop.permute.xlu0 %7542
  %7544 = vrot.lane.b32.xlu0 %v7243, 96
  %v7545 = vpop.permute.xlu0 %7544
  %7546 = vrot.lane.b32.xlu0 %v7244, 96
  %v7547 = vpop.permute.xlu0 %7546
  %7548 = vrot.lane.b32.xlu0 %v7245, 96
  %v7549 = vpop.permute.xlu0 %7548
  %7550 = vrot.lane.b32.xlu0 %v7246, 96
  %v7551 = vpop.permute.xlu0 %7550
  %7552 = vrot.lane.b32.xlu0 %v7247, 96
  %v7553 = vpop.permute.xlu0 %7552
  %7554 = vrot.lane.b32.xlu0 %v7248, 96
  %v7555 = vpop.permute.xlu0 %7554
  %7606 = vrot.lane.b32.xlu0 %v7456, 64
  %v7607 = vpop.permute.xlu0 %7606
  %7608 = vrot.lane.b32.xlu0 %v7457, 64
  %v7609 = vpop.permute.xlu0 %7608
  %7610 = vrot.lane.b32.xlu0 %v7458, 64
  %v7611 = vpop.permute.xlu0 %7610
  %7612 = vrot.lane.b32.xlu0 %v7459, 64
  %v7613 = vpop.permute.xlu0 %7612
  %7614 = vrot.lane.b32.xlu0 %v7460, 64
  %v7615 = vpop.permute.xlu0 %7614
  %7616 = vrot.lane.b32.xlu0 %v7461, 64
  %v7617 = vpop.permute.xlu0 %7616
  %7618 = vrot.lane.b32.xlu0 %v7462, 64
  %v7619 = vpop.permute.xlu0 %7618
  %7620 = vrot.lane.b32.xlu0 %v7463, 64
  %v7621 = vpop.permute.xlu0 %7620
  %7622 = vrot.lane.b32.xlu0 %v7464, 64
  %v7623 = vpop.permute.xlu0 %7622
  %7624 = vrot.lane.b32.xlu0 %v7465, 64
  %v7625 = vpop.permute.xlu0 %7624
  %7626 = vrot.lane.b32.xlu0 %v7466, 64
  %v7627 = vpop.permute.xlu0 %7626
  %7628 = vrot.lane.b32.xlu0 %v7467, 64
  %v7629 = vpop.permute.xlu0 %7628
  %7630 = vrot.lane.b32.xlu0 %v7468, 64
  %v7631 = vpop.permute.xlu0 %7630
  %7632 = vrot.lane.b32.xlu0 %v7469, 64
  %v7633 = vpop.permute.xlu0 %7632
  %7634 = vrot.lane.b32.xlu0 %v7470, 64
  %v7635 = vpop.permute.xlu0 %7634
  %7636 = vrot.lane.b32.xlu0 %v7471, 64
  %v7637 = vpop.permute.xlu0 %7636
  %7638 = vrot.lane.b32.xlu0 %v7472, 64
  %v7639 = vpop.permute.xlu0 %7638
  %7640 = vrot.lane.b32.xlu0 %v7473, 64
  %v7641 = vpop.permute.xlu0 %7640
  %7642 = vrot.lane.b32.xlu0 %v7474, 64
  %v7643 = vpop.permute.xlu0 %7642
  %7644 = vrot.lane.b32.xlu0 %v7475, 64
  %v7645 = vpop.permute.xlu0 %7644
  %7646 = vrot.lane.b32.xlu0 %v7476, 64
  %v7647 = vpop.permute.xlu0 %7646
  %7648 = vrot.lane.b32.xlu0 %v7477, 64
  %v7649 = vpop.permute.xlu0 %7648
  %7650 = vrot.lane.b32.xlu0 %v7478, 64
  %v7651 = vpop.permute.xlu0 %7650
  %7652 = vrot.lane.b32.xlu0 %v7479, 64
  %v7653 = vpop.permute.xlu0 %7652
  %7654 = vrot.lane.b32.xlu0 %v7480, 64
  %v7655 = vpop.permute.xlu0 %7654
  %vm7681 = vcmask 785408
  %v7682 = vsel %vm7681, %v5876, %v7507
  %v7683 = vsel %vm7681, %v5877, %v7509
  %v7684 = vsel %vm7681, %v5878, %v7511
  %v7685 = vsel %vm7681, %v5879, %v7513
  %v7686 = vsel %vm7681, %v5880, %v7515
  %v7687 = vsel %vm7681, %v5881, %v7517
  %v7688 = vsel %vm7681, %v5882, %v7519
  %v7689 = vsel %vm7681, %v5883, %v7521
  %v7690 = vsel %vm7681, %v5884, %v7523
  %v7691 = vsel %vm7681, %v5885, %v7525
  %v7692 = vsel %vm7681, %v5886, %v7527
  %v7693 = vsel %vm7681, %v5887, %v7529
  %v7694 = vsel %vm7681, %v5888, %v7531
  %v7695 = vsel %vm7681, %v5889, %v7533
  %v7696 = vsel %vm7681, %v5890, %v7535
  %v7697 = vsel %vm7681, %v5891, %v7537
  %v7698 = vsel %vm7681, %v5892, %v7539
  %v7699 = vsel %vm7681, %v5893, %v7541
  %v7700 = vsel %vm7681, %v5894, %v7543
  %v7701 = vsel %vm7681, %v5895, %v7545
  %v7702 = vsel %vm7681, %v5896, %v7547
  %v7703 = vsel %vm7681, %v5897, %v7549
  %v7704 = vsel %vm7681, %v5898, %v7551
  %v7705 = vsel %vm7681, %v5899, %v7553
  %v7706 = vsel %vm7681, %v5900, %v7555
  %vm7707 = vcmask 523264
  %v7708 = vsel %vm7707, %v7507, %v7607
  %v7709 = vsel %vm7707, %v7509, %v7609
  %v7710 = vsel %vm7707, %v7511, %v7611
  %v7711 = vsel %vm7707, %v7513, %v7613
  %v7712 = vsel %vm7707, %v7515, %v7615
  %v7713 = vsel %vm7707, %v7517, %v7617
  %v7714 = vsel %vm7707, %v7519, %v7619
  %v7715 = vsel %vm7707, %v7521, %v7621
  %v7716 = vsel %vm7707, %v7523, %v7623
  %v7717 = vsel %vm7707, %v7525, %v7625
  %v7718 = vsel %vm7707, %v7527, %v7627
  %v7719 = vsel %vm7707, %v7529, %v7629
  %v7720 = vsel %vm7707, %v7531, %v7631
  %v7721 = vsel %vm7707, %v7533, %v7633
  %v7722 = vsel %vm7707, %v7535, %v7635
  %v7723 = vsel %vm7707, %v7537, %v7637
  %v7724 = vsel %vm7707, %v7539, %v7639
  %v7725 = vsel %vm7707, %v7541, %v7641
  %v7726 = vsel %vm7707, %v7543, %v7643
  %v7727 = vsel %vm7707, %v7545, %v7645
  %v7728 = vsel %vm7707, %v7547, %v7647
  %v7729 = vsel %vm7707, %v7549, %v7649
  %v7730 = vsel %vm7707, %v7551, %v7651
  %v7731 = vsel %vm7707, %v7553, %v7653
  %v7732 = vsel %vm7707, %v7555, %v7655
  %v7733 = vld [vmem:[%s3] sm:$0xff]
  %v7734 = vld [vmem:[%s3 + $0x8] sm:$0xff]
  %v7735 = vld [vmem:[%s3 + $0x10] sm:$0xff]
  %v7736 = vld [vmem:[%s3 + $0x18] sm:$0xff]
  %v7737 = vld [vmem:[%s3 + $0x20] sm:$0xff]
  %v7738 = vld [vmem:[%s3 + $0x28] sm:$0xff]
  %v7739 = vld [vmem:[%s3 + $0x30] sm:$0xff]
  %v7740 = vld [vmem:[%s3 + $0x38] sm:$0xff]
  %v7741 = vld [vmem:[%s3 + $0x40] sm:$0xff]
  %v7742 = vld [vmem:[%s3 + $0x48] sm:$0xff]
  %v7743 = vld [vmem:[%s3 + $0x50] sm:$0xff]
  %v7744 = vld [vmem:[%s3 + $0x58] sm:$0xff]
  %v7745 = vld [vmem:[%s3 + $0x60] sm:$0xff]
  %v7746 = vld [vmem:[%s3 + $0x68] sm:$0xff]
  %v7747 = vld [vmem:[%s3 + $0x70] sm:$0xff]
  %v7748 = vld [vmem:[%s3 + $0x78] sm:$0xff]
  %v7749 = vld [vmem:[%s3 + $0x80] sm:$0xff]
  %v7750 = vld [vmem:[%s3 + $0x88] sm:$0xff]
  %v7751 = vld [vmem:[%s3 + $0x90] sm:$0xff]
  %v7752 = vld [vmem:[%s3 + $0x98] sm:$0xff]
  %v7753 = vld [vmem:[%s3 + $0xa0] sm:$0xff]
  %v7754 = vld [vmem:[%s3 + $0xa8] sm:$0xff]
  %v7755 = vld [vmem:[%s3 + $0xb0] sm:$0xff]
  %v7756 = vld [vmem:[%s3 + $0xb8] sm:$0xff]
  %v7757 = vld [vmem:[%s3 + $0xc0] sm:$0xff]
  %v7758 = vld [vmem:[%s3 + $0xc8] sm:$0xff]
  %v7759 = vld [vmem:[%s3 + $0xd0] sm:$0xff]
  %vm7760 = vcmask 719872
  %v7762 = vsel %vm7760, %v7708, 0
  %v7765 = vsel %vm7760, %v7709, 0
  %v7768 = vsel %vm7760, %v7710, 0
  %v7771 = vsel %vm7760, %v7711, 0
  %v7774 = vsel %vm7760, %v7712, 0
  %v7777 = vsel %vm7760, %v7713, 0
  %v7780 = vsel %vm7760, %v7714, 0
  %v7783 = vsel %vm7760, %v7715, 0
  %v7786 = vsel %vm7760, %v7716, 0
  %v7789 = vsel %vm7760, %v7717, 0
  %v7792 = vsel %vm7760, %v7718, 0
  %v7795 = vsel %vm7760, %v7719, 0
  %v7798 = vsel %vm7760, %v7720, 0
  %v7801 = vsel %vm7760, %v7721, 0
  %v7804 = vsel %vm7760, %v7722, 0
  %v7807 = vsel %vm7760, %v7723, 0
  %v7810 = vsel %vm7760, %v7724, 0
  %v7813 = vsel %vm7760, %v7725, 0
  %v7816 = vsel %vm7760, %v7726, 0
  %v7819 = vsel %vm7760, %v7727, 0
  %v7822 = vsel %vm7760, %v7728, 0
  %v7825 = vsel %vm7760, %v7729, 0
  %v7828 = vsel %vm7760, %v7730, 0
  %v7831 = vsel %vm7760, %v7731, 0
  %v7834 = vsel %vm7760, %v7732, 0
  %7836 = vmatprep.subr.mxu0 0.0
  %7837 = vmatpush1.msra.mxu0 %v7733
  %7838 = vmatprep.subr.mxu0 0.0
  %7839 = vmatpush1.msra.mxu0 %v7734
  %7840 = vmatprep.subr.mxu0 0.0
  %7841 = vmatpush1.msra.mxu0 %v7735
  %7842 = vmatprep.subr.mxu0 0.0
  %7843 = vmatpush1.msra.mxu0 %v7736
  %7844 = vmatprep.subr.mxu0 0.0
  %7845 = vmatpush1.msra.mxu0 %v7737
  %7846 = vmatprep.subr.mxu0 0.0
  %7847 = vmatpush1.msra.mxu0 %v7738
  %7848 = vmatprep.subr.mxu0 0.0
  %7849 = vmatpush1.msra.mxu0 %v7739
  %7850 = vmatprep.subr.mxu0 0.0
  %7851 = vmatpush1.msra.mxu0 %v7740
  %7852 = vmatprep.subr.mxu0 0.0
  %7853 = vmatpush1.msra.mxu0 %v7741
  %7854 = vmatprep.subr.mxu0 0.0
  %7855 = vmatpush1.msra.mxu0 %v7742
  %7856 = vmatprep.subr.mxu0 0.0
  %7857 = vmatpush1.msra.mxu0 %v7743
  %7858 = vmatprep.subr.mxu0 0.0
  %7859 = vmatpush1.msra.mxu0 %v7744
  %7860 = vmatprep.subr.mxu0 0.0
  %7861 = vmatpush1.msra.mxu0 %v7745
  %7862 = vmatprep.subr.mxu0 0.0
  %7863 = vmatpush1.msra.mxu0 %v7746
  %7864 = vmatprep.subr.mxu0 0.0
  %7865 = vmatpush1.msra.mxu0 %v7747
  %7866 = vmatprep.subr.mxu0 0.0
  %7867 = vmatpush1.msra.mxu0 %v7748
  %7868 = vmatprep.subr.mxu0 0.0
  %7869 = vmatpush1.msra.mxu0 %v7749
  %7870 = vmatprep.subr.mxu0 0.0
  %7871 = vmatpush1.msra.mxu0 %v7750
  %7872 = vmatprep.subr.mxu0 0.0
  %7873 = vmatpush1.msra.mxu0 %v7751
  %7874 = vmatprep.subr.mxu0 0.0
  %7875 = vmatpush1.msra.mxu0 %v7752
  %7876 = vmatprep.subr.mxu0 0.0
  %7877 = vmatpush1.msra.mxu0 %v7753
  %7878 = vmatprep.subr.mxu0 0.0
  %7879 = vmatpush1.msra.mxu0 %v7754
  %7880 = vmatprep.subr.mxu0 0.0
  %7881 = vmatpush1.msra.mxu0 %v7755
  %7882 = vmatprep.subr.mxu0 0.0
  %7883 = vmatpush1.msra.mxu0 %v7756
  %7884 = vmatprep.subr.mxu0 0.0
  %7885 = vmatpush1.msra.mxu0 %v7757
  %7886 = vmatprep.subr.mxu0 0.0
  %7887 = vmatpush1.msra.mxu0 %v7758
  %7888 = vmatprep.subr.mxu0 0.0
  %7889 = vmatpush1.msra.mxu0 %v7759
  %7890 = vmatprep.subr.mxu0 0.0
  %7891 = vmatpush1.msra.mxu0 0.0
  %7892 = vmatprep.subr.mxu0 0.0
  %7893 = vmatpush1.msra.mxu0 0.0
  %7894 = vmatprep.subr.mxu0 0.0
  %7895 = vmatpush1.msra.mxu0 0.0
  %7896 = vmatprep.subr.mxu0 0.0
  %7897 = vmatpush1.msra.mxu0 0.0
  %7898 = vmatprep.subr.mxu0 0.0
  %7899 = vmatpush1.msra.mxu0 0.0
  %7900 = vmatprep.mubr.f32.mxu0 %v7762
  %7901 = vmatmul.mubr.f32.gmra.mrb[0].mxu0 %v7682
  %v7902 = vpop.f32.mrb[0].mxu0
  %v7903 = vadd.f32 0.0, %v7902
  %v7904 = vpop.f32.mrb[0].mxu0
  %7905 = vmatprep.mubr.f32.mxu0 %v7765
  %7906 = vmatmul.mubr.f32.gmra.mrb[0].mxu0 %v7683
  %v7907 = vpop.f32.mrb[0].mxu0
  %v7908 = vadd.f32 0.0, %v7907
  %v7909 = vpop.f32.mrb[0].mxu0
  %7910 = vmatprep.mubr.f32.mxu0 %v7768
  %7911 = vmatmul.mubr.f32.gmra.mrb[0].mxu0 %v7684
  %v7912 = vpop.f32.mrb[0].mxu0
  %v7913 = vadd.f32 0.0, %v7912
  %v7914 = vpop.f32.mrb[0].mxu0
  %7915 = vmatprep.mubr.f32.mxu0 %v7771
  %7916 = vmatmul.mubr.f32.gmra.mrb[0].mxu0 %v7685
  %v7917 = vpop.f32.mrb[0].mxu0
  %v7918 = vadd.f32 0.0, %v7917
  %v7919 = vpop.f32.mrb[0].mxu0
  %7920 = vmatprep.mubr.f32.mxu0 %v7774
  %7921 = vmatmul.mubr.f32.gmra.mrb[0].mxu0 %v7686
  %v7922 = vpop.f32.mrb[0].mxu0
  %v7923 = vadd.f32 0.0, %v7922
  %v7924 = vpop.f32.mrb[0].mxu0
  %7925 = vmatprep.mubr.f32.mxu0 %v7777
  %7926 = vmatmul.mubr.f32.gmra.mrb[0].mxu0 %v7687
  %v7927 = vpop.f32.mrb[0].mxu0
  %v7928 = vadd.f32 0.0, %v7927
  %v7929 = vpop.f32.mrb[0].mxu0
  %7930 = vmatprep.mubr.f32.mxu0 %v7780
  %7931 = vmatmul.mubr.f32.gmra.mrb[0].mxu0 %v7688
  %v7932 = vpop.f32.mrb[0].mxu0
  %v7933 = vadd.f32 0.0, %v7932
  %v7934 = vpop.f32.mrb[0].mxu0
  %7935 = vmatprep.mubr.f32.mxu0 %v7783
  %7936 = vmatmul.mubr.f32.gmra.mrb[0].mxu0 %v7689
  %v7937 = vpop.f32.mrb[0].mxu0
  %v7938 = vadd.f32 0.0, %v7937
  %v7939 = vpop.f32.mrb[0].mxu0
  %7940 = vmatprep.mubr.f32.mxu0 %v7786
  %7941 = vmatmul.mubr.f32.gmra.mrb[0].mxu0 %v7690
  %v7942 = vpop.f32.mrb[0].mxu0
  %v7943 = vadd.f32 0.0, %v7942
  %v7944 = vpop.f32.mrb[0].mxu0
  %7945 = vmatprep.mubr.f32.mxu0 %v7789
  %7946 = vmatmul.mubr.f32.gmra.mrb[0].mxu0 %v7691
  %v7947 = vpop.f32.mrb[0].mxu0
  %v7948 = vadd.f32 0.0, %v7947
  %v7949 = vpop.f32.mrb[0].mxu0
  %7950 = vmatprep.mubr.f32.mxu0 %v7792
  %7951 = vmatmul.mubr.f32.gmra.mrb[0].mxu0 %v7692
  %v7952 = vpop.f32.mrb[0].mxu0
  %v7953 = vadd.f32 0.0, %v7952
  %v7954 = vpop.f32.mrb[0].mxu0
  %7955 = vmatprep.mubr.f32.mxu0 %v7795
  %7956 = vmatmul.mubr.f32.gmra.mrb[0].mxu0 %v7693
  %v7957 = vpop.f32.mrb[0].mxu0
  %v7958 = vadd.f32 0.0, %v7957
  %v7959 = vpop.f32.mrb[0].mxu0
  %7960 = vmatprep.mubr.f32.mxu0 %v7798
  %7961 = vmatmul.mubr.f32.gmra.mrb[0].mxu0 %v7694
  %v7962 = vpop.f32.mrb[0].mxu0
  %v7963 = vadd.f32 0.0, %v7962
  %v7964 = vpop.f32.mrb[0].mxu0
  %7965 = vmatprep.mubr.f32.mxu0 %v7801
  %7966 = vmatmul.mubr.f32.gmra.mrb[0].mxu0 %v7695
  %v7967 = vpop.f32.mrb[0].mxu0
  %v7968 = vadd.f32 0.0, %v7967
  %v7969 = vpop.f32.mrb[0].mxu0
  %7970 = vmatprep.mubr.f32.mxu0 %v7804
  %7971 = vmatmul.mubr.f32.gmra.mrb[0].mxu0 %v7696
  %v7972 = vpop.f32.mrb[0].mxu0
  %v7973 = vadd.f32 0.0, %v7972
  %v7974 = vpop.f32.mrb[0].mxu0
  %7975 = vmatprep.mubr.f32.mxu0 %v7807
  %7976 = vmatmul.mubr.f32.gmra.mrb[0].mxu0 %v7697
  %v7977 = vpop.f32.mrb[0].mxu0
  %v7978 = vadd.f32 0.0, %v7977
  %v7979 = vpop.f32.mrb[0].mxu0
  %7980 = vmatprep.mubr.f32.mxu0 %v7810
  %7981 = vmatmul.mubr.f32.gmra.mrb[0].mxu0 %v7698
  %v7982 = vpop.f32.mrb[0].mxu0
  %v7983 = vadd.f32 0.0, %v7982
  %v7984 = vpop.f32.mrb[0].mxu0
  %7985 = vmatprep.mubr.f32.mxu0 %v7813
  %7986 = vmatmul.mubr.f32.gmra.mrb[0].mxu0 %v7699
  %v7987 = vpop.f32.mrb[0].mxu0
  %v7988 = vadd.f32 0.0, %v7987
  %v7989 = vpop.f32.mrb[0].mxu0
  %7990 = vmatprep.mubr.f32.mxu0 %v7816
  %7991 = vmatmul.mubr.f32.gmra.mrb[0].mxu0 %v7700
  %v7992 = vpop.f32.mrb[0].mxu0
  %v7993 = vadd.f32 0.0, %v7992
  %v7994 = vpop.f32.mrb[0].mxu0
  %7995 = vmatprep.mubr.f32.mxu0 %v7819
  %7996 = vmatmul.mubr.f32.gmra.mrb[0].mxu0 %v7701
  %v7997 = vpop.f32.mrb[0].mxu0
  %v7998 = vadd.f32 0.0, %v7997
  %v7999 = vpop.f32.mrb[0].mxu0
  %8000 = vmatprep.mubr.f32.mxu0 %v7822
  %8001 = vmatmul.mubr.f32.gmra.mrb[0].mxu0 %v7702
  %v8002 = vpop.f32.mrb[0].mxu0
  %v8003 = vadd.f32 0.0, %v8002
  %v8004 = vpop.f32.mrb[0].mxu0
  %8005 = vmatprep.mubr.f32.mxu0 %v7825
  %8006 = vmatmul.mubr.f32.gmra.mrb[0].mxu0 %v7703
  %v8007 = vpop.f32.mrb[0].mxu0
  %v8008 = vadd.f32 0.0, %v8007
  %v8009 = vpop.f32.mrb[0].mxu0
  %8010 = vmatprep.mubr.f32.mxu0 %v7828
  %8011 = vmatmul.mubr.f32.gmra.mrb[0].mxu0 %v7704
  %v8012 = vpop.f32.mrb[0].mxu0
  %v8013 = vadd.f32 0.0, %v8012
  %v8014 = vpop.f32.mrb[0].mxu0
  %8015 = vmatprep.mubr.f32.mxu0 %v7831
  %8016 = vmatmul.mubr.f32.gmra.mrb[0].mxu0 %v7705
  %v8017 = vpop.f32.mrb[0].mxu0
  %v8018 = vadd.f32 0.0, %v8017
  %v8019 = vpop.f32.mrb[0].mxu0
  %8020 = vmatprep.mubr.f32.mxu0 %v7834
  %8021 = vmatmul.mubr.f32.gmra.mrb[0].mxu0 %v7706
  %v8022 = vpop.f32.mrb[0].mxu0
  %v8023 = vadd.f32 0.0, %v8022
  %v8024 = vpop.f32.mrb[0].mxu0
  %8025 = vdwg.mxu0
  %8051 = vrot.lane.b32.xlu0 %v7903, 112
  %v8052 = vpop.permute.xlu0 %8051
  %8053 = vrot.lane.b32.xlu0 %v7908, 112
  %v8054 = vpop.permute.xlu0 %8053
  %8055 = vrot.lane.b32.xlu0 %v7913, 112
  %v8056 = vpop.permute.xlu0 %8055
  %8057 = vrot.lane.b32.xlu0 %v7918, 112
  %v8058 = vpop.permute.xlu0 %8057
  %8059 = vrot.lane.b32.xlu0 %v7923, 112
  %v8060 = vpop.permute.xlu0 %8059
  %8061 = vrot.lane.b32.xlu0 %v7928, 112
  %v8062 = vpop.permute.xlu0 %8061
  %8063 = vrot.lane.b32.xlu0 %v7933, 112
  %v8064 = vpop.permute.xlu0 %8063
  %8065 = vrot.lane.b32.xlu0 %v7938, 112
  %v8066 = vpop.permute.xlu0 %8065
  %8067 = vrot.lane.b32.xlu0 %v7943, 112
  %v8068 = vpop.permute.xlu0 %8067
  %8069 = vrot.lane.b32.xlu0 %v7948, 112
  %v8070 = vpop.permute.xlu0 %8069
  %8071 = vrot.lane.b32.xlu0 %v7953, 112
  %v8072 = vpop.permute.xlu0 %8071
  %8073 = vrot.lane.b32.xlu0 %v7958, 112
  %v8074 = vpop.permute.xlu0 %8073
  %8075 = vrot.lane.b32.xlu0 %v7963, 112
  %v8076 = vpop.permute.xlu0 %8075
  %8077 = vrot.lane.b32.xlu0 %v7968, 112
  %v8078 = vpop.permute.xlu0 %8077
  %8079 = vrot.lane.b32.xlu0 %v7973, 112
  %v8080 = vpop.permute.xlu0 %8079
  %8081 = vrot.lane.b32.xlu0 %v7978, 112
  %v8082 = vpop.permute.xlu0 %8081
  %8083 = vrot.lane.b32.xlu0 %v7983, 112
  %v8084 = vpop.permute.xlu0 %8083
  %8085 = vrot.lane.b32.xlu0 %v7988, 112
  %v8086 = vpop.permute.xlu0 %8085
  %8087 = vrot.lane.b32.xlu0 %v7993, 112
  %v8088 = vpop.permute.xlu0 %8087
  %8089 = vrot.lane.b32.xlu0 %v7998, 112
  %v8090 = vpop.permute.xlu0 %8089
  %8091 = vrot.lane.b32.xlu0 %v8003, 112
  %v8092 = vpop.permute.xlu0 %8091
  %8093 = vrot.lane.b32.xlu0 %v8008, 112
  %v8094 = vpop.permute.xlu0 %8093
  %8095 = vrot.lane.b32.xlu0 %v8013, 112
  %v8096 = vpop.permute.xlu0 %8095
  %8097 = vrot.lane.b32.xlu0 %v8018, 112
  %v8098 = vpop.permute.xlu0 %8097
  %8099 = vrot.lane.b32.xlu0 %v8023, 112
  %v8100 = vpop.permute.xlu0 %8099
  %v8126 = vmax.f32 %v7903, %v8052
  %v8127 = vmax.f32 %v7908, %v8054
  %v8128 = vmax.f32 %v7913, %v8056
  %v8129 = vmax.f32 %v7918, %v8058
  %v8130 = vmax.f32 %v7923, %v8060
  %v8131 = vmax.f32 %v7928, %v8062
  %v8132 = vmax.f32 %v7933, %v8064
  %v8133 = vmax.f32 %v7938, %v8066
  %v8134 = vmax.f32 %v7943, %v8068
  %v8135 = vmax.f32 %v7948, %v8070
  %v8136 = vmax.f32 %v7953, %v8072
  %v8137 = vmax.f32 %v7958, %v8074
  %v8138 = vmax.f32 %v7963, %v8076
  %v8139 = vmax.f32 %v7968, %v8078
  %v8140 = vmax.f32 %v7973, %v8080
  %v8141 = vmax.f32 %v7978, %v8082
  %v8142 = vmax.f32 %v7983, %v8084
  %v8143 = vmax.f32 %v7988, %v8086
  %v8144 = vmax.f32 %v7993, %v8088
  %v8145 = vmax.f32 %v7998, %v8090
  %v8146 = vmax.f32 %v8003, %v8092
  %v8147 = vmax.f32 %v8008, %v8094
  %v8148 = vmax.f32 %v8013, %v8096
  %v8149 = vmax.f32 %v8018, %v8098
  %v8150 = vmax.f32 %v8023, %v8100
  %8176 = vrot.lane.b32.xlu0 %v8126, 96
  %v8177 = vpop.permute.xlu0 %8176
  %8178 = vrot.lane.b32.xlu0 %v8127, 96
  %v8179 = vpop.permute.xlu0 %8178
  %8180 = vrot.lane.b32.xlu0 %v8128, 96
  %v8181 = vpop.permute.xlu0 %8180
  %8182 = vrot.lane.b32.xlu0 %v8129, 96
  %v8183 = vpop.permute.xlu0 %8182
  %8184 = vrot.lane.b32.xlu0 %v8130, 96
  %v8185 = vpop.permute.xlu0 %8184
  %8186 = vrot.lane.b32.xlu0 %v8131, 96
  %v8187 = vpop.permute.xlu0 %8186
  %8188 = vrot.lane.b32.xlu0 %v8132, 96
  %v8189 = vpop.permute.xlu0 %8188
  %8190 = vrot.lane.b32.xlu0 %v8133, 96
  %v8191 = vpop.permute.xlu0 %8190
  %8192 = vrot.lane.b32.xlu0 %v8134, 96
  %v8193 = vpop.permute.xlu0 %8192
  %8194 = vrot.lane.b32.xlu0 %v8135, 96
  %v8195 = vpop.permute.xlu0 %8194
  %8196 = vrot.lane.b32.xlu0 %v8136, 96
  %v8197 = vpop.permute.xlu0 %8196
  %8198 = vrot.lane.b32.xlu0 %v8137, 96
  %v8199 = vpop.permute.xlu0 %8198
  %8200 = vrot.lane.b32.xlu0 %v8138, 96
  %v8201 = vpop.permute.xlu0 %8200
  %8202 = vrot.lane.b32.xlu0 %v8139, 96
  %v8203 = vpop.permute.xlu0 %8202
  %8204 = vrot.lane.b32.xlu0 %v8140, 96
  %v8205 = vpop.permute.xlu0 %8204
  %8206 = vrot.lane.b32.xlu0 %v8141, 96
  %v8207 = vpop.permute.xlu0 %8206
  %8208 = vrot.lane.b32.xlu0 %v8142, 96
  %v8209 = vpop.permute.xlu0 %8208
  %8210 = vrot.lane.b32.xlu0 %v8143, 96
  %v8211 = vpop.permute.xlu0 %8210
  %8212 = vrot.lane.b32.xlu0 %v8144, 96
  %v8213 = vpop.permute.xlu0 %8212
  %8214 = vrot.lane.b32.xlu0 %v8145, 96
  %v8215 = vpop.permute.xlu0 %8214
  %8216 = vrot.lane.b32.xlu0 %v8146, 96
  %v8217 = vpop.permute.xlu0 %8216
  %8218 = vrot.lane.b32.xlu0 %v8147, 96
  %v8219 = vpop.permute.xlu0 %8218
  %8220 = vrot.lane.b32.xlu0 %v8148, 96
  %v8221 = vpop.permute.xlu0 %8220
  %8222 = vrot.lane.b32.xlu0 %v8149, 96
  %v8223 = vpop.permute.xlu0 %8222
  %8224 = vrot.lane.b32.xlu0 %v8150, 96
  %v8225 = vpop.permute.xlu0 %8224
  %v8251 = vmax.f32 %v8126, %v8177
  %v8252 = vmax.f32 %v8127, %v8179
  %v8253 = vmax.f32 %v8128, %v8181
  %v8254 = vmax.f32 %v8129, %v8183
  %v8255 = vmax.f32 %v8130, %v8185
  %v8256 = vmax.f32 %v8131, %v8187
  %v8257 = vmax.f32 %v8132, %v8189
  %v8258 = vmax.f32 %v8133, %v8191
  %v8259 = vmax.f32 %v8134, %v8193
  %v8260 = vmax.f32 %v8135, %v8195
  %v8261 = vmax.f32 %v8136, %v8197
  %v8262 = vmax.f32 %v8137, %v8199
  %v8263 = vmax.f32 %v8138, %v8201
  %v8264 = vmax.f32 %v8139, %v8203
  %v8265 = vmax.f32 %v8140, %v8205
  %v8266 = vmax.f32 %v8141, %v8207
  %v8267 = vmax.f32 %v8142, %v8209
  %v8268 = vmax.f32 %v8143, %v8211
  %v8269 = vmax.f32 %v8144, %v8213
  %v8270 = vmax.f32 %v8145, %v8215
  %v8271 = vmax.f32 %v8146, %v8217
  %v8272 = vmax.f32 %v8147, %v8219
  %v8273 = vmax.f32 %v8148, %v8221
  %v8274 = vmax.f32 %v8149, %v8223
  %v8275 = vmax.f32 %v8150, %v8225
  %v8276 = vld [vmem:[%s4] sm:$0x1]
  %v8278 = vlaneseq
  %v8279 = vshrl.u32 %v8278, 7
  %v8280 = vsub.s32 0, %v8279
  %v8281 = vrot.slane %v8276, %v8280
  %v8283 = vadd.f32 %v8251, %v8281
  %v8284 = vadd.f32 %v8252, %v8281
  %v8285 = vadd.f32 %v8253, %v8281
  %v8286 = vadd.f32 %v8254, %v8281
  %v8287 = vadd.f32 %v8255, %v8281
  %v8288 = vadd.f32 %v8256, %v8281
  %v8289 = vadd.f32 %v8257, %v8281
  %v8290 = vadd.f32 %v8258, %v8281
  %v8291 = vadd.f32 %v8259, %v8281
  %v8292 = vadd.f32 %v8260, %v8281
  %v8293 = vadd.f32 %v8261, %v8281
  %v8294 = vadd.f32 %v8262, %v8281
  %v8295 = vadd.f32 %v8263, %v8281
  %v8296 = vadd.f32 %v8264, %v8281
  %v8297 = vadd.f32 %v8265, %v8281
  %v8298 = vadd.f32 %v8266, %v8281
  %v8299 = vadd.f32 %v8267, %v8281
  %v8300 = vadd.f32 %v8268, %v8281
  %v8301 = vadd.f32 %v8269, %v8281
  %v8302 = vadd.f32 %v8270, %v8281
  %v8303 = vadd.f32 %v8271, %v8281
  %v8304 = vadd.f32 %v8272, %v8281
  %v8305 = vadd.f32 %v8273, %v8281
  %v8306 = vadd.f32 %v8274, %v8281
  %v8307 = vadd.f32 %v8275, %v8281
  %v8308 = vmax.f32 %v8283, 0.0
  %v8309 = vmax.f32 %v8284, 0.0
  %v8310 = vmax.f32 %v8285, 0.0
  %v8311 = vmax.f32 %v8286, 0.0
  %v8312 = vmax.f32 %v8287, 0.0
  %v8313 = vmax.f32 %v8288, 0.0
  %v8314 = vmax.f32 %v8289, 0.0
  %v8315 = vmax.f32 %v8290, 0.0
  %v8316 = vmax.f32 %v8291, 0.0
  %v8317 = vmax.f32 %v8292, 0.0
  %v8318 = vmax.f32 %v8293, 0.0
  %v8319 = vmax.f32 %v8294, 0.0
  %v8320 = vmax.f32 %v8295, 0.0
  %v8321 = vmax.f32 %v8296, 0.0
  %v8322 = vmax.f32 %v8297, 0.0
  %v8323 = vmax.f32 %v8298, 0.0
  %v8324 = vmax.f32 %v8299, 0.0
  %v8325 = vmax.f32 %v8300, 0.0
  %v8326 = vmax.f32 %v8301, 0.0
  %v8327 = vmax.f32 %v8302, 0.0
  %v8328 = vmax.f32 %v8303, 0.0
  %v8329 = vmax.f32 %v8304, 0.0
  %v8330 = vmax.f32 %v8305, 0.0
  %v8331 = vmax.f32 %v8306, 0.0
  %v8332 = vmax.f32 %v8307, 0.0
  %8334 = vrot.lane.b32.xlu0 %v8309, 16
  %v8335 = vpop.permute.xlu0 %8334
  %8338 = vrot.lane.b32.xlu0 %v8310, 32
  %v8339 = vpop.permute.xlu0 %8338
  %8342 = vrot.lane.b32.xlu0 %v8311, 48
  %v8343 = vpop.permute.xlu0 %8342
  %8346 = vrot.lane.b32.xlu0 %v8312, 64
  %v8347 = vpop.permute.xlu0 %8346
  %8350 = vrot.lane.b32.xlu0 %v8313, 80
  %v8351 = vpop.permute.xlu0 %8350
  %8354 = vrot.lane.b32.xlu0 %v8314, 96
  %v8355 = vpop.permute.xlu0 %8354
  %8358 = vrot.lane.b32.xlu0 %v8315, 112
  %v8359 = vpop.permute.xlu0 %8358
  %8362 = vrot.lane.b32.xlu0 %v8317, 16
  %v8363 = vpop.permute.xlu0 %8362
  %8366 = vrot.lane.b32.xlu0 %v8318, 32
  %v8367 = vpop.permute.xlu0 %8366
  %8370 = vrot.lane.b32.xlu0 %v8319, 48
  %v8371 = vpop.permute.xlu0 %8370
  %8374 = vrot.lane.b32.xlu0 %v8320, 64
  %v8375 = vpop.permute.xlu0 %8374
  %8378 = vrot.lane.b32.xlu0 %v8321, 80
  %v8379 = vpop.permute.xlu0 %8378
  %8382 = vrot.lane.b32.xlu0 %v8322, 96
  %v8383 = vpop.permute.xlu0 %8382
  %8386 = vrot.lane.b32.xlu0 %v8323, 112
  %v8387 = vpop.permute.xlu0 %8386
  %vm8389 = vcmask 130048
  %v8390 = vsel %vm8389, %v8308, %v8335
  %vm8391 = vcmask 261120
  %v8392 = vsel %vm8391, %v8390, %v8339
  %v8393 = vsel %vm5693, %v8392, %v8343
  %v8394 = vsel %vm7707, %v8393, %v8347
  %vm8395 = vcmask 654336
  %v8396 = vsel %vm8395, %v8394, %v8351
  %v8397 = vsel %vm7681, %v8396, %v8355
  %vm8398 = vcmask 916480
  %v8399 = vsel %vm8398, %v8397, %v8359
  %v8400 = vsel %vm8389, %v8316, %v8363
  %v8401 = vsel %vm8391, %v8400, %v8367
  %v8402 = vsel %vm5693, %v8401, %v8371
  %v8403 = vsel %vm7707, %v8402, %v8375
  %v8404 = vsel %vm8395, %v8403, %v8379
  %v8405 = vsel %vm7681, %v8404, %v8383
  %v8406 = vsel %vm8398, %v8405, %v8387
  %8408 = vrot.lane.b32.xlu0 %v8325, 16
  %v8409 = vpop.permute.xlu0 %8408
  %8412 = vrot.lane.b32.xlu0 %v8326, 32
  %v8413 = vpop.permute.xlu0 %8412
  %8416 = vrot.lane.b32.xlu0 %v8327, 48
  %v8417 = vpop.permute.xlu0 %8416
  %8420 = vrot.lane.b32.xlu0 %v8328, 64
  %v8421 = vpop.permute.xlu0 %8420
  %8424 = vrot.lane.b32.xlu0 %v8329, 80
  %v8425 = vpop.permute.xlu0 %8424
  %8428 = vrot.lane.b32.xlu0 %v8330, 96
  %v8429 = vpop.permute.xlu0 %8428
  %8432 = vrot.lane.b32.xlu0 %v8331, 112
  %v8433 = vpop.permute.xlu0 %8432
  %v8435 = vsel %vm8389, %v8324, %v8409
  %v8436 = vsel %vm8391, %v8435, %v8413
  %v8437 = vsel %vm5693, %v8436, %v8417
  %v8438 = vsel %vm7707, %v8437, %v8421
  %v8439 = vsel %vm8395, %v8438, %v8425
  %v8440 = vsel %vm7681, %v8439, %v8429
  %v8441 = vsel %vm8398, %v8440, %v8433
  %v8442 = vld [vmem:[%s5] sm:$0xff]
  %v8443 = vld [vmem:[%s5 + $0x8] sm:$0xff]
  %v8444 = vld [vmem:[%s5 + $0x10] sm:$0xff]
  %v8445 = vld [vmem:[%s5 + $0x18] sm:$0xff]
  %v8446 = vld [vmem:[%s5 + $0x20] sm:$0xff]
  %v8447 = vld [vmem:[%s5 + $0x28] sm:$0xff]
  %v8448 = vld [vmem:[%s5 + $0x30] sm:$0xff]
  %v8449 = vld [vmem:[%s5 + $0x38] sm:$0xff]
  %v8450 = vld [vmem:[%s5 + $0x40] sm:$0xff]
  %v8451 = vld [vmem:[%s5 + $0x48] sm:$0xff]
  %v8452 = vld [vmem:[%s5 + $0x50] sm:$0xff]
  %v8453 = vld [vmem:[%s5 + $0x58] sm:$0xff]
  %v8454 = vld [vmem:[%s5 + $0x60] sm:$0xff]
  %v8455 = vld [vmem:[%s5 + $0x68] sm:$0xff]
  %v8456 = vld [vmem:[%s5 + $0x70] sm:$0xff]
  %v8457 = vld [vmem:[%s5 + $0x78] sm:$0xff]
  %v8458 = vld [vmem:[%s5 + $0x80] sm:$0xff]
  %v8459 = vld [vmem:[%s5 + $0x88] sm:$0xff]
  %v8460 = vld [vmem:[%s5 + $0x90] sm:$0xff]
  %v8461 = vld [vmem:[%s5 + $0x98] sm:$0xff]
  %v8462 = vld [vmem:[%s5 + $0xa0] sm:$0xff]
  %v8463 = vld [vmem:[%s5 + $0xa8] sm:$0xff]
  %v8464 = vld [vmem:[%s5 + $0xb0] sm:$0xff]
  %v8465 = vld [vmem:[%s5 + $0xb8] sm:$0xff]
  %v8466 = vld [vmem:[%s5 + $0xc0] sm:$0xff]
  %v8467 = vld [vmem:[%s5 + $0xc8] sm:$0xff]
  %v8468 = vld [vmem:[%s5 + $0xd0] sm:$0xff]
  %v8469 = vld [vmem:[%s5 + $0xd8] sm:$0xff]
  %v8470 = vld [vmem:[%s5 + $0xe0] sm:$0xff]
  %v8471 = vld [vmem:[%s5 + $0xe8] sm:$0xff]
  %v8472 = vld [vmem:[%s5 + $0xf0] sm:$0xff]
  %v8473 = vld [vmem:[%s5 + $0xf8] sm:$0xff]
  %v8474 = vld [vmem:[%s5 + $0x100] sm:$0xff]
  %v8475 = vld [vmem:[%s5 + $0x108] sm:$0xff]
  %v8476 = vld [vmem:[%s5 + $0x110] sm:$0xff]
  %v8477 = vld [vmem:[%s5 + $0x118] sm:$0xff]
  %v8478 = vld [vmem:[%s5 + $0x120] sm:$0xff]
  %v8479 = vld [vmem:[%s5 + $0x128] sm:$0xff]
  %v8480 = vld [vmem:[%s5 + $0x130] sm:$0xff]
  %v8481 = vld [vmem:[%s5 + $0x138] sm:$0xff]
  %v8482 = vld [vmem:[%s5 + $0x140] sm:$0xff]
  %v8483 = vld [vmem:[%s5 + $0x148] sm:$0xff]
  %v8484 = vld [vmem:[%s5 + $0x150] sm:$0xff]
  %v8485 = vld [vmem:[%s5 + $0x158] sm:$0xff]
  %v8486 = vld [vmem:[%s5 + $0x160] sm:$0xff]
  %v8487 = vld [vmem:[%s5 + $0x168] sm:$0xff]
  %v8488 = vld [vmem:[%s5 + $0x170] sm:$0xff]
  %v8489 = vld [vmem:[%s5 + $0x178] sm:$0xff]
  %v8490 = vld [vmem:[%s5 + $0x180] sm:$0xff]
  %v8491 = vld [vmem:[%s5 + $0x188] sm:$0xff]
  %v8492 = vld [vmem:[%s6] sm:$0x1]
  %v8494 = vlaneseq
  %v8495 = vshrl.u32 %v8494, 7
  %v8496 = vsub.s32 0, %v8495
  %v8497 = vrot.slane %v8492, %v8496
  %v8500 = vsel %vm8389, %v8332, 0
  %8502 = vmatprep.subr.mxu0 0.0
  %8503 = vmatpush1.msra.mxu0 %v8442
  %8504 = vmatprep.subr.mxu0 0.0
  %8505 = vmatpush1.msra.mxu0 %v8443
  %8506 = vmatprep.subr.mxu0 0.0
  %8507 = vmatpush1.msra.mxu0 %v8444
  %8508 = vmatprep.subr.mxu0 0.0
  %8509 = vmatpush1.msra.mxu0 %v8445
  %8510 = vmatprep.subr.mxu0 0.0
  %8511 = vmatpush1.msra.mxu0 %v8446
  %8512 = vmatprep.subr.mxu0 0.0
  %8513 = vmatpush1.msra.mxu0 %v8447
  %8514 = vmatprep.subr.mxu0 0.0
  %8515 = vmatpush1.msra.mxu0 %v8448
  %8516 = vmatprep.subr.mxu0 0.0
  %8517 = vmatpush1.msra.mxu0 %v8449
  %8518 = vmatprep.subr.mxu0 0.0
  %8519 = vmatpush1.msra.mxu0 %v8450
  %8520 = vmatprep.subr.mxu0 0.0
  %8521 = vmatpush1.msra.mxu0 %v8451
  %8522 = vmatprep.subr.mxu0 0.0
  %8523 = vmatpush1.msra.mxu0 %v8452
  %8524 = vmatprep.subr.mxu0 0.0
  %8525 = vmatpush1.msra.mxu0 %v8453
  %8526 = vmatprep.subr.mxu0 0.0
  %8527 = vmatpush1.msra.mxu0 %v8454
  %8528 = vmatprep.subr.mxu0 0.0
  %8529 = vmatpush1.msra.mxu0 %v8455
  %8530 = vmatprep.subr.mxu0 0.0
  %8531 = vmatpush1.msra.mxu0 %v8456
  %8532 = vmatprep.subr.mxu0 0.0
  %8533 = vmatpush1.msra.mxu0 %v8457
  %8534 = vmatprep.subr.mxu0 0.0
  %8535 = vmatpush1.msra.mxu0 %v8458
  %8536 = vmatprep.subr.mxu0 0.0
  %8537 = vmatpush1.msra.mxu0 %v8459
  %8538 = vmatprep.subr.mxu0 0.0
  %8539 = vmatpush1.msra.mxu0 %v8460
  %8540 = vmatprep.subr.mxu0 0.0
  %8541 = vmatpush1.msra.mxu0 %v8461
  %8542 = vmatprep.subr.mxu0 0.0
  %8543 = vmatpush1.msra.mxu0 %v8462
  %8544 = vmatprep.subr.mxu0 0.0
  %8545 = vmatpush1.msra.mxu0 %v8463
  %8546 = vmatprep.subr.mxu0 0.0
  %8547 = vmatpush1.msra.mxu0 %v8464
  %8548 = vmatprep.subr.mxu0 0.0
  %8549 = vmatpush1.msra.mxu0 %v8465
  %8550 = vmatprep.subr.mxu0 0.0
  %8551 = vmatpush1.msra.mxu0 %v8466
  %8552 = vmatprep.subr.mxu0 0.0
  %8553 = vmatpush1.msra.mxu0 %v8467
  %8554 = vmatprep.subr.mxu0 0.0
  %8555 = vmatpush1.msra.mxu0 %v8468
  %8556 = vmatprep.subr.mxu0 0.0
  %8557 = vmatpush1.msra.mxu0 %v8469
  %8558 = vmatprep.subr.mxu0 0.0
  %8559 = vmatpush1.msra.mxu0 %v8470
  %8560 = vmatprep.subr.mxu0 0.0
  %8561 = vmatpush1.msra.mxu0 %v8471
  %8562 = vmatprep.subr.mxu0 0.0
  %8563 = vmatpush1.msra.mxu0 %v8472
  %8564 = vmatprep.subr.mxu0 0.0
  %8565 = vmatpush1.msra.mxu0 %v8473
  %8566 = vmatprep.mubr.f32.mxu0 %v8406
  %8567 = vmatmul.mubr.f32.gmra.mrb[0].mxu0 %v8399
  %v8568 = vpop.f32.mrb[0].mxu0
  %v8569 = vadd.f32 %v8497, %v8568
  %v8570 = vpop.f32.mrb[0].mxu0
  %8571 = vdwg.mxu0
  %8572 = vmatprep.subr.mxu0 0.0
  %8573 = vmatpush1.msra.mxu0 %v8474
  %8574 = vmatprep.subr.mxu0 0.0
  %8575 = vmatpush1.msra.mxu0 %v8475
  %8576 = vmatprep.subr.mxu0 0.0
  %8577 = vmatpush1.msra.mxu0 %v8476
  %8578 = vmatprep.subr.mxu0 0.0
  %8579 = vmatpush1.msra.mxu0 %v8477
  %8580 = vmatprep.subr.mxu0 0.0
  %8581 = vmatpush1.msra.mxu0 %v8478
  %8582 = vmatprep.subr.mxu0 0.0
  %8583 = vmatpush1.msra.mxu0 %v8479
  %8584 = vmatprep.subr.mxu0 0.0
  %8585 = vmatpush1.msra.mxu0 %v8480
  %8586 = vmatprep.subr.mxu0 0.0
  %8587 = vmatpush1.msra.mxu0 %v8481
  %8588 = vmatprep.subr.mxu0 0.0
  %8589 = vmatpush1.msra.mxu0 %v8482
  %8590 = vmatprep.subr.mxu0 0.0
  %8591 = vmatpush1.msra.mxu0 %v8483
  %8592 = vmatprep.subr.mxu0 0.0
  %8593 = vmatpush1.msra.mxu0 %v8484
  %8594 = vmatprep.subr.mxu0 0.0
  %8595 = vmatpush1.msra.mxu0 %v8485
  %8596 = vmatprep.subr.mxu0 0.0
  %8597 = vmatpush1.msra.mxu0 %v8486
  %8598 = vmatprep.subr.mxu0 0.0
  %8599 = vmatpush1.msra.mxu0 %v8487
  %8600 = vmatprep.subr.mxu0 0.0
  %8601 = vmatpush1.msra.mxu0 %v8488
  %8602 = vmatprep.subr.mxu0 0.0
  %8603 = vmatpush1.msra.mxu0 %v8489
  %8604 = vmatprep.subr.mxu0 0.0
  %8605 = vmatpush1.msra.mxu0 %v8490
  %8606 = vmatprep.subr.mxu0 0.0
  %8607 = vmatpush1.msra.mxu0 %v8491
  %8608 = vmatprep.subr.mxu0 0.0
  %8609 = vmatpush1.msra.mxu0 0.0
  %8610 = vmatprep.subr.mxu0 0.0
  %8611 = vmatpush1.msra.mxu0 0.0
  %8612 = vmatprep.subr.mxu0 0.0
  %8613 = vmatpush1.msra.mxu0 0.0
  %8614 = vmatprep.subr.mxu0 0.0
  %8615 = vmatpush1.msra.mxu0 0.0
  %8616 = vmatprep.subr.mxu0 0.0
  %8617 = vmatpush1.msra.mxu0 0.0
  %8618 = vmatprep.subr.mxu0 0.0
  %8619 = vmatpush1.msra.mxu0 0.0
  %8620 = vmatprep.subr.mxu0 0.0
  %8621 = vmatpush1.msra.mxu0 0.0
  %8622 = vmatprep.subr.mxu0 0.0
  %8623 = vmatpush1.msra.mxu0 0.0
  %8624 = vmatprep.subr.mxu0 0.0
  %8625 = vmatpush1.msra.mxu0 0.0
  %8626 = vmatprep.subr.mxu0 0.0
  %8627 = vmatpush1.msra.mxu0 0.0
  %8628 = vmatprep.subr.mxu0 0.0
  %8629 = vmatpush1.msra.mxu0 0.0
  %8630 = vmatprep.subr.mxu0 0.0
  %8631 = vmatpush1.msra.mxu0 0.0
  %8632 = vmatprep.subr.mxu0 0.0
  %8633 = vmatpush1.msra.mxu0 0.0
  %8634 = vmatprep.subr.mxu0 0.0
  %8635 = vmatpush1.msra.mxu0 0.0
  %8636 = vmatprep.mubr.f32.mxu0 %v8500
  %8637 = vmatmul.mubr.f32.gmra.mrb[0].mxu0 %v8441
  %v8638 = vpop.f32.mrb[0].mxu0
  %v8639 = vadd.f32 %v8569, %v8638
  %v8640 = vpop.f32.mrb[0].mxu0
  %8641 = vdwg.mxu0
  %v8642 = vmax.f32 %v8639, 0.0
  %v8643 = vld [vmem:[%s7] sm:$0xff]
  %v8644 = vld [vmem:[%s7 + $0x8] sm:$0xff]
  %v8645 = vld [vmem:[%s7 + $0x10] sm:$0xff]
  %v8646 = vld [vmem:[%s7 + $0x18] sm:$0xff]
  %v8647 = vld [vmem:[%s7 + $0x20] sm:$0xff]
  %v8648 = vld [vmem:[%s7 + $0x28] sm:$0xff]
  %v8649 = vld [vmem:[%s7 + $0x30] sm:$0xff]
  %v8650 = vld [vmem:[%s7 + $0x38] sm:$0xff]
  %v8651 = vld [vmem:[%s7 + $0x40] sm:$0xff]
  %v8652 = vld [vmem:[%s7 + $0x48] sm:$0xff]
  %v8653 = vld [vmem:[%s7 + $0x50] sm:$0xff]
  %v8654 = vld [vmem:[%s7 + $0x58] sm:$0xff]
  %v8655 = vld [vmem:[%s7 + $0x60] sm:$0xff]
  %v8656 = vld [vmem:[%s7 + $0x68] sm:$0xff]
  %v8657 = vld [vmem:[%s7 + $0x70] sm:$0xff]
  %v8658 = vld [vmem:[%s7 + $0x78] sm:$0xff]
  %v8659 = vld [vmem:[%s8] sm:$0x1]
  %v8661 = vlaneseq
  %v8662 = vshrl.u32 %v8661, 7
  %v8663 = vsub.s32 0, %v8662
  %v8664 = vrot.slane %v8659, %v8663
  %8666 = vmatprep.subr.mxu0 0.0
  %8667 = vmatpush1.msra.mxu0 %v8643
  %8668 = vmatprep.subr.mxu0 0.0
  %8669 = vmatpush1.msra.mxu0 %v8644
  %8670 = vmatprep.subr.mxu0 0.0
  %8671 = vmatpush1.msra.mxu0 %v8645
  %8672 = vmatprep.subr.mxu0 0.0
  %8673 = vmatpush1.msra.mxu0 %v8646
  %8674 = vmatprep.subr.mxu0 0.0
  %8675 = vmatpush1.msra.mxu0 %v8647
  %8676 = vmatprep.subr.mxu0 0.0
  %8677 = vmatpush1.msra.mxu0 %v8648
  %8678 = vmatprep.subr.mxu0 0.0
  %8679 = vmatpush1.msra.mxu0 %v8649
  %8680 = vmatprep.subr.mxu0 0.0
  %8681 = vmatpush1.msra.mxu0 %v8650
  %8682 = vmatprep.subr.mxu0 0.0
  %8683 = vmatpush1.msra.mxu0 %v8651
  %8684 = vmatprep.subr.mxu0 0.0
  %8685 = vmatpush1.msra.mxu0 %v8652
  %8686 = vmatprep.subr.mxu0 0.0
  %8687 = vmatpush1.msra.mxu0 %v8653
  %8688 = vmatprep.subr.mxu0 0.0
  %8689 = vmatpush1.msra.mxu0 %v8654
  %8690 = vmatprep.subr.mxu0 0.0
  %8691 = vmatpush1.msra.mxu0 %v8655
  %8692 = vmatprep.subr.mxu0 0.0
  %8693 = vmatpush1.msra.mxu0 %v8656
  %8694 = vmatprep.subr.mxu0 0.0
  %8695 = vmatpush1.msra.mxu0 %v8657
  %8696 = vmatprep.subr.mxu0 0.0
  %8697 = vmatpush1.msra.mxu0 %v8658
  %8698 = vmatprep.subr.mxu0 0.0
  %8699 = vmatpush1.msra.mxu0 0.0
  %8700 = vmatprep.subr.mxu0 0.0
  %8701 = vmatpush1.msra.mxu0 0.0
  %8702 = vmatprep.subr.mxu0 0.0
  %8703 = vmatpush1.msra.mxu0 0.0
  %8704 = vmatprep.subr.mxu0 0.0
  %8705 = vmatpush1.msra.mxu0 0.0
  %8706 = vmatprep.subr.mxu0 0.0
  %8707 = vmatpush1.msra.mxu0 0.0
  %8708 = vmatprep.subr.mxu0 0.0
  %8709 = vmatpush1.msra.mxu0 0.0
  %8710 = vmatprep.subr.mxu0 0.0
  %8711 = vmatpush1.msra.mxu0 0.0
  %8712 = vmatprep.subr.mxu0 0.0
  %8713 = vmatpush1.msra.mxu0 0.0
  %8714 = vmatprep.subr.mxu0 0.0
  %8715 = vmatpush1.msra.mxu0 0.0
  %8716 = vmatprep.subr.mxu0 0.0
  %8717 = vmatpush1.msra.mxu0 0.0
  %8718 = vmatprep.subr.mxu0 0.0
  %8719 = vmatpush1.msra.mxu0 0.0
  %8720 = vmatprep.subr.mxu0 0.0
  %8721 = vmatpush1.msra.mxu0 0.0
  %8722 = vmatprep.subr.mxu0 0.0
  %8723 = vmatpush1.msra.mxu0 0.0
  %8724 = vmatprep.subr.mxu0 0.0
  %8725 = vmatpush1.msra.mxu0 0.0
  %8726 = vmatprep.subr.mxu0 0.0
  %8727 = vmatpush1.msra.mxu0 0.0
  %8728 = vmatprep.subr.mxu0 0.0
  %8729 = vmatpush1.msra.mxu0 0.0
  %8730 = vmatprep.mubr.f32.mxu0 0.0
  %8731 = vmatmul.mubr.f32.gmra.mrb[0].mxu0 %v8642
  %v8732 = vpop.f32.mrb[0].mxu0
  %v8733 = vadd.f32 %v8664, %v8732
  %v8734 = vpop.f32.mrb[0].mxu0
  %8735 = vdwg.mxu0
  %v8736 = vmax.f32 %v8733, 0.0
  %v8737 = vld [vmem:[%s9] sm:$0xff]
  %v8738 = vld [vmem:[%s9 + $0x8] sm:$0xff]
  %v8739 = vld [vmem:[%s9 + $0x10] sm:$0xff]
  %v8740 = vld [vmem:[%s9 + $0x18] sm:$0xff]
  %v8741 = vld [vmem:[%s9 + $0x20] sm:$0xff]
  %v8742 = vld [vmem:[%s9 + $0x28] sm:$0xff]
  %v8743 = vld [vmem:[%s9 + $0x30] sm:$0xff]
  %v8744 = vld [vmem:[%s9 + $0x38] sm:$0xff]
  %v8745 = vld [vmem:[%s9 + $0x40] sm:$0xff]
  %v8746 = vld [vmem:[%s9 + $0x48] sm:$0xff]
  %v8747 = vld [vmem:[%s9 + $0x50] sm:$0xff]
  %v8748 = vld [vmem:[%s9 + $0x58] sm:$0xff]
  %v8749 = vld [vmem:[%s9 + $0x60] sm:$0xff]
  %v8750 = vld [vmem:[%s9 + $0x68] sm:$0xff]
  %v8751 = vld [vmem:[%s9 + $0x70] sm:$0xff]
  %v8752 = vld [vmem:[%s9 + $0x78] sm:$0xff]
  %v8753 = vld [vmem:[%s10] sm:$0x1]
  %v8755 = vlaneseq
  %v8756 = vshrl.u32 %v8755, 7
  %v8757 = vsub.s32 0, %v8756
  %v8758 = vrot.slane %v8753, %v8757
  %8760 = vmatprep.subr.mxu0 0.0
  %8761 = vmatpush1.msra.mxu0 %v8737
  %8762 = vmatprep.subr.mxu0 0.0
  %8763 = vmatpush1.msra.mxu0 %v8738
  %8764 = vmatprep.subr.mxu0 0.0
  %8765 = vmatpush1.msra.mxu0 %v8739
  %8766 = vmatprep.subr.mxu0 0.0
  %8767 = vmatpush1.msra.mxu0 %v8740
  %8768 = vmatprep.subr.mxu0 0.0
  %8769 = vmatpush1.msra.mxu0 %v8741
  %8770 = vmatprep.subr.mxu0 0.0
  %8771 = vmatpush1.msra.mxu0 %v8742
  %8772 = vmatprep.subr.mxu0 0.0
  %8773 = vmatpush1.msra.mxu0 %v8743
  %8774 = vmatprep.subr.mxu0 0.0
  %8775 = vmatpush1.msra.mxu0 %v8744
  %8776 = vmatprep.subr.mxu0 0.0
  %8777 = vmatpush1.msra.mxu0 %v8745
  %8778 = vmatprep.subr.mxu0 0.0
  %8779 = vmatpush1.msra.mxu0 %v8746
  %8780 = vmatprep.subr.mxu0 0.0
  %8781 = vmatpush1.msra.mxu0 %v8747
  %8782 = vmatprep.subr.mxu0 0.0
  %8783 = vmatpush1.msra.mxu0 %v8748
  %8784 = vmatprep.subr.mxu0 0.0
  %8785 = vmatpush1.msra.mxu0 %v8749
  %8786 = vmatprep.subr.mxu0 0.0
  %8787 = vmatpush1.msra.mxu0 %v8750
  %8788 = vmatprep.subr.mxu0 0.0
  %8789 = vmatpush1.msra.mxu0 %v8751
  %8790 = vmatprep.subr.mxu0 0.0
  %8791 = vmatpush1.msra.mxu0 %v8752
  %8792 = vmatprep.subr.mxu0 0.0
  %8793 = vmatpush1.msra.mxu0 0.0
  %8794 = vmatprep.subr.mxu0 0.0
  %8795 = vmatpush1.msra.mxu0 0.0
  %8796 = vmatprep.subr.mxu0 0.0
  %8797 = vmatpush1.msra.mxu0 0.0
  %8798 = vmatprep.subr.mxu0 0.0
  %8799 = vmatpush1.msra.mxu0 0.0
  %8800 = vmatprep.subr.mxu0 0.0
  %8801 = vmatpush1.msra.mxu0 0.0
  %8802 = vmatprep.subr.mxu0 0.0
  %8803 = vmatpush1.msra.mxu0 0.0
  %8804 = vmatprep.subr.mxu0 0.0
  %8805 = vmatpush1.msra.mxu0 0.0
  %8806 = vmatprep.subr.mxu0 0.0
  %8807 = vmatpush1.msra.mxu0 0.0
  %8808 = vmatprep.subr.mxu0 0.0
  %8809 = vmatpush1.msra.mxu0 0.0
  %8810 = vmatprep.subr.mxu0 0.0
  %8811 = vmatpush1.msra.mxu0 0.0
  %8812 = vmatprep.subr.mxu0 0.0
  %8813 = vmatpush1.msra.mxu0 0.0
  %8814 = vmatprep.subr.mxu0 0.0
  %8815 = vmatpush1.msra.mxu0 0.0
  %8816 = vmatprep.subr.mxu0 0.0
  %8817 = vmatpush1.msra.mxu0 0.0
  %8818 = vmatprep.subr.mxu0 0.0
  %8819 = vmatpush1.msra.mxu0 0.0
  %8820 = vmatprep.subr.mxu0 0.0
  %8821 = vmatpush1.msra.mxu0 0.0
  %8822 = vmatprep.subr.mxu0 0.0
  %8823 = vmatpush1.msra.mxu0 0.0
  %8824 = vmatprep.mubr.f32.mxu0 0.0
  %8825 = vmatmul.mubr.f32.gmra.mrb[0].mxu0 %v8736
  %v8826 = vpop.f32.mrb[0].mxu0
  %v8827 = vadd.f32 %v8758, %v8826
  %v8828 = vpop.f32.mrb[0].mxu0
  %8829 = vdwg.mxu0
  %8830 = vst [vmem:[%s11] sm:$0xff] %v8827
  // Predicated region
  $region46: #{convnet_forward.1} parent=0 // pred_check
    _
  $region47: #{convnet_forward.1} parent=0 // pred_check_branch
    %8832 = sbr.rel (0) target = $region49
  $region48: #{convnet_forward.1} parent=0 // pred_region
    _
  $region49: #{convnet_forward.1} parent=0 // pred_fallthru
    _
  // Predicated region
  $region50: #{convnet_forward.1} parent=0 // pred_check
    _
  $region51: #{convnet_forward.1} parent=0 // pred_check_branch
    %8834 = sbr.rel (0) target = $region53
  $region52: #{convnet_forward.1} parent=0 // pred_region
    _
  $region53: #{convnet_forward.1} parent=0 // pred_fallthru
    _

</llo_original>
